<compile_context>
chip_gen: v6e
topology: v6e:2x2x1
jax: 0.10.0
libtpu: 0.0.40
codegen_flags: <defaults>
</compile_context>

<pallas_src>
import jax
import jax.numpy as jnp
from jax import lax
from jax.experimental import pallas as pl
from jax.experimental.pallas import tpu as pltpu


def _round_up(v, m):
    return ((v + m - 1) // m) * m


def _elu(x):
    # clamp the dead branch so exp never sees large positive values
    return jnp.where(x > 0, x, jnp.exp(jnp.minimum(x, 0.0)) - 1.0)


def eegnet_kernel(x_ref, w2s1_ref, toep_ref, s2r_ref, h2r_ref, p1m_ref,
                  w3r_ref, wbig_ref, h3r_ref, wtail_ref, smat_ref, bfc_ref,
                  o_ref):
    f1, t_len, _ = toep_ref.shape
    d = w2s1_ref.shape[0] // f1
    bsz = x_ref.shape[1] // t_len                       # samples in this block
    k2 = w3r_ref.shape[1]
    ncls, _, w2ap = wtail_ref.shape
    nclsp = o_ref.shape[1]

    # ----- layer 1a: spatial mix (BN1 scale folded into w2s1); batch on lanes
    x_bf = x_ref[...].astype(jnp.bfloat16)                        # (ceeg, B*T)
    xmix = jnp.dot(w2s1_ref[...], x_bf,
                   preferred_element_type=jnp.float32)            # (f1d, B*T)

    # ----- layer 1b: per-group Toeplitz temporal conv; rows become (g, b, j)
    z_parts = []
    for g in range(f1):
        rows = [xmix[g * d:(g + 1) * d, s * t_len:(s + 1) * t_len]
                for s in range(bsz)]                               # B x (d, T)
        xg = jnp.concatenate(rows, axis=0).astype(jnp.bfloat16)    # (B*d, T)
        z_parts.append(jnp.dot(xg, toep_ref[g],
                               preferred_element_type=jnp.float32))
    zs = jnp.concatenate(z_parts, axis=0)                          # (f1*B*d, w0p)

    # BN2 (+ folded conv biases / BN1 shift) + ELU, then avg-pool/4 as a matmul
    z = _elu(zs * s2r_ref[...] + h2r_ref[...])
    p1 = jnp.dot(z.astype(jnp.bfloat16), p1m_ref[...],
                 preferred_element_type=jnp.float32)               # (R1, w1wP)

    # ----- layer 2a: depthwise (1,16) conv as 16 shifted FMAs with per-row taps
    acc = p1[:, 0:w2ap] * w3r_ref[:, 0:1]
    for k in range(1, k2):                                         # k2 = 16, static
        acc = acc + p1[:, k:k + w2ap] * w3r_ref[:, k:k + 1]        # (R1, w2aP)

    # ----- layer 2b: pointwise 1x1 conv (+ BN3 scale folded into wbig) + ELU
    z4 = jnp.dot(wbig_ref[...], acc.astype(jnp.bfloat16),
                 preferred_element_type=jnp.float32)               # (B*f2, w2aP)
    z4e = _elu(z4 + h3r_ref[...])

    # ----- layer 3: avg-pool/8 + flatten + FC folded into per-class weights
    u_cols = [jnp.sum(z4e * wtail_ref[c], axis=1, keepdims=True)
              for c in range(ncls)]
    u = jnp.concatenate(u_cols, axis=1)                            # (B*f2, ncls)
    logits = jnp.dot(smat_ref[...], u.astype(jnp.bfloat16),
                     preferred_element_type=jnp.float32) + bfc_ref[...]

    m = jnp.max(logits, axis=1, keepdims=True)
    e = jnp.exp(logits - m)
    probs = e / jnp.sum(e, axis=1, keepdims=True)                  # (B, ncls)
    o_ref[...] = jnp.concatenate(
        [probs, jnp.zeros((bsz, nclsp - ncls), jnp.float32)], axis=1)


def eegnet_forward(x_nchw, pk, *, b_blk=8):
    n = x_nchw.shape[0]
    w2s1, toep = pk["w2s1"], pk["toep"]
    f1d, ceeg = w2s1.shape
    f1, t_len, w0p = toep.shape
    d = f1d // f1
    f2 = pk["w4s3"].shape[0]
    k2 = pk["w3"].shape[1]
    ncls, _, w2ap = pk["wfold"].shape
    nclsp = 128

    if n <= b_blk:
        b_eff = n
    else:
        b_eff = max(8, (b_blk // 8) * 8)      # keep multi-block batches 8-aligned
    n_pad = _round_up(n, b_eff)

    x_k = x_nchw[:, 0].astype(jnp.float32)                         # (N, ceeg, T)
    if n_pad != n:
        x_k = jnp.concatenate(
            [x_k, jnp.zeros((n_pad - n, ceeg, t_len), jnp.float32)], axis=0)
    # lane-major input slab: x2[e, b*T + t] = x[b, e, t]
    x2 = jnp.transpose(x_k, (1, 0, 2)).reshape(ceeg, n_pad * t_len)

    r1 = f1 * b_eff * d
    r2 = b_eff * f2

    # per-row (channel x batch) expansions of the folded BN / conv parameters
    s2row = jnp.broadcast_to(pk["s2"].reshape(f1, 1, d),
                             (f1, b_eff, d)).reshape(r1, 1)
    h2row = jnp.broadcast_to(pk["h2"].reshape(f1, 1, d),
                             (f1, b_eff, d)).reshape(r1, 1)
    w3rows = jnp.broadcast_to(pk["w3"].reshape(f1, 1, d, k2),
                              (f1, b_eff, d, k2)).reshape(r1, k2)
    base = pk["w4s3"].reshape(f2, f1, d)
    wbig = jnp.einsum("fgj,bc->bfgcj", base,
                      jnp.eye(b_eff, dtype=jnp.float32)).reshape(r2, r1)
    h3row = jnp.tile(pk["h3"].reshape(1, f2), (b_eff, 1)).reshape(r2, 1)
    wtail = jnp.tile(pk["wfold"], (1, b_eff, 1))                   # (ncls, R2, w2aP)
    smat = jnp.kron(jnp.eye(b_eff, dtype=jnp.float32),
                    jnp.ones((1, f2), jnp.float32))                # (B, R2)
    bfcrow = pk["bfc"].reshape(1, ncls)

    weights = [w2s1, toep,
               s2row.astype(jnp.float32), h2row.astype(jnp.float32),
               pk["p1m"], w3rows.astype(jnp.float32),
               wbig.astype(jnp.bfloat16), h3row.astype(jnp.float32),
               wtail.astype(jnp.float32), smat.astype(jnp.bfloat16),
               bfcrow.astype(jnp.float32)]

    def const_spec(arr):
        nd = arr.ndim
        return pl.BlockSpec(arr.shape, lambda i, _n=nd: (0,) * _n)

    steps = n_pad // b_eff
    w1wp = pk["p1m"].shape[1]
    flops = steps * 2 * (f1d * ceeg * b_eff * t_len
                         + b_eff * f1d * t_len * w0p
                         + r1 * w0p * w1wp
                         + r1 * k2 * w2ap
                         + r2 * r1 * w2ap
                         + b_eff * r2 * ncls)
    transcendentals = steps * (r1 * w0p + r2 * w2ap)
    bytes_accessed = steps * (ceeg * b_eff * t_len * 4 + b_eff * nclsp * 4
                              + sum(int(w.size) * w.dtype.itemsize
                                    for w in weights))

    out = pl.pallas_call(
        eegnet_kernel,
        grid=(steps,),
        in_specs=[pl.BlockSpec((ceeg, b_eff * t_len), lambda i: (0, i))]
                 + [const_spec(w) for w in weights],
        out_specs=pl.BlockSpec((b_eff, nclsp), lambda i: (i, 0)),
        out_shape=jax.ShapeDtypeStruct((n_pad, nclsp), jnp.float32),
        compiler_params=pltpu.CompilerParams(dimension_semantics=("parallel",)),
        cost_estimate=pl.CostEstimate(flops=int(flops),
                                      transcendentals=int(transcendentals),
                                      bytes_accessed=int(bytes_accessed)),
    )(x2, *weights)
    return out[:n, :ncls]


def init_raw_params(key, *, f1=8, f2=16, d=2, eeg_channels=25, n_classes=4,
                    kt=250, k2=16, t_len=512, eps=1e-3):
    f1d = f1 * d
    ks = list(jax.random.split(key, 20))

    def nrm(k, shape, s=0.1):
        return (s * jax.random.normal(k, shape)).astype(jnp.float32)

    return dict(
        eps=eps, t_len=t_len,
        w1=nrm(ks[0], (f1, kt), 0.05), b1=nrm(ks[1], (f1,)),
        g1=1.0 + nrm(ks[2], (f1,)), be1=nrm(ks[3], (f1,)),
        m1=nrm(ks[4], (f1,)), v1=0.5 + jnp.abs(nrm(ks[5], (f1,))),
        w2=nrm(ks[6], (f1d, eeg_channels), 0.1), b2=nrm(ks[7], (f1d,)),
        g2=1.0 + nrm(ks[8], (f1d,)), be2=nrm(ks[9], (f1d,)),
        m2=nrm(ks[10], (f1d,)), v2=0.5 + jnp.abs(nrm(ks[11], (f1d,))),
        w3=nrm(ks[12], (f1d, k2), 0.1),
        w4=nrm(ks[13], (f2, f1d), 0.1),
        g3=1.0 + nrm(ks[14], (f2,)), be3=nrm(ks[15], (f2,)),
        m3=nrm(ks[16], (f2,)), v3=0.5 + jnp.abs(nrm(ks[17], (f2,))),
        wfc=nrm(ks[18], (n_classes, f2 * ((((t_len - kt + 1) // 4) - k2 + 1) // 8)), 0.1),
        bfc=nrm(ks[19], (n_classes,)),
    )


def pack_params(raw):
    eps, t_len = raw["eps"], raw["t_len"]
    f1, kt = raw["w1"].shape
    f1d, _ = raw["w2"].shape
    d = f1d // f1
    f2 = raw["w4"].shape[0]
    k2 = raw["w3"].shape[1]
    ncls = raw["wfc"].shape[0]
    w0 = t_len - kt + 1                       # 263
    w1w = w0 // 4                             # 65
    w2a = w1w - k2 + 1                        # 50
    w2f = w2a // 8                            # 6
    w0p = _round_up(w0, 128)                  # 384
    w2ap = _round_up(w2a, 128)                # 128
    w1wp = _round_up(max(w1w, w2ap + k2 - 1), 128)   # 256

    grp = jnp.arange(f1d) // d                # filter group per output channel
    s1 = raw["g1"] / jnp.sqrt(raw["v1"] + eps)
    h1 = raw["be1"] + (raw["b1"] - raw["m1"]) * s1
    s2 = raw["g2"] / jnp.sqrt(raw["v2"] + eps)
    h2 = (raw["b2"] + h1[grp] * jnp.sum(raw["w2"], axis=1) - raw["m2"]) * s2 + raw["be2"]
    s3 = raw["g3"] / jnp.sqrt(raw["v3"] + eps)
    h3 = raw["be3"] - raw["m3"] * s3

    w2s1 = raw["w2"] * s1[grp][:, None]       # BN1 scale folded into spatial mix

    # per-group Toeplitz for the 250-tap temporal conv, lane-padded to w0p
    t_idx = jnp.arange(t_len)[:, None]
    w_idx = jnp.arange(w0p)[None, :]
    k_idx = t_idx - w_idx
    valid = (k_idx >= 0) & (k_idx < kt) & (w_idx < w0)
    toep = jnp.where(valid[None, :, :],
                     raw["w1"][:, jnp.clip(k_idx, 0, kt - 1)], 0.0)  # (f1, T, w0p)

    # avg-pool/4 as a (w0p, w1wp) matrix (zero outside the 65 valid pools)
    r = jnp.arange(w0p)[:, None]
    c = jnp.arange(w1wp)[None, :]
    p1m = jnp.where((c < w1w) & (r >= 4 * c) & (r < 4 * c + 4), 0.25, 0.0)

    # avg-pool/8 + flatten + FC folded: wfold[cls, f, w] = wfc[cls, f*w2f + w//8]/8
    wfc3 = raw["wfc"].reshape(ncls, f2, w2f)
    w_ids = jnp.arange(w2ap)
    wfold = jnp.where((w_ids < 8 * w2f)[None, None, :],
                      wfc3[:, :, jnp.clip(w_ids // 8, 0, w2f - 1)] / 8.0, 0.0)

    return dict(
        w2s1=w2s1.astype(jnp.bfloat16),
        toep=toep.astype(jnp.bfloat16),
        s2=s2.astype(jnp.float32),
        h2=h2.astype(jnp.float32),
        p1m=p1m.astype(jnp.bfloat16),
        w3=raw["w3"].astype(jnp.float32),
        w4s3=(raw["w4"] * s3[:, None]).astype(jnp.float32),
        h3=h3.astype(jnp.float32),
        wfold=wfold.astype(jnp.float32),
        bfc=raw["bfc"].astype(jnp.float32),
    )


def eegnet_ref(x_nchw, raw):
    # Pure-JAX reference mirroring the PyTorch graph exactly (inference mode).
    eps = raw["eps"]
    P = lax.Precision.HIGHEST
    f1, kt = raw["w1"].shape
    f1d, ceeg = raw["w2"].shape
    f2 = raw["w4"].shape[0]
    k2 = raw["w3"].shape[1]

    def bn(x, g, b, m, v):
        return ((x - m[None, :, None, None]) / jnp.sqrt(v + eps)[None, :, None, None]
                * g[None, :, None, None] + b[None, :, None, None])

    def conv(x, w, groups=1):
        return lax.conv_general_dilated(
            x, w, window_strides=(1, 1), padding="VALID",
            dimension_numbers=("NCHW", "OIHW", "NCHW"),
            feature_group_count=groups, precision=P)

    def avgpool_w(x, kk):
        n, c, h, w = x.shape
        wo = w // kk
        return x[..., : wo * kk].reshape(n, c, h, wo, kk).mean(axis=-1)

    x = x_nchw.astype(jnp.float32)
    y = conv(x, raw["w1"].reshape(f1, 1, 1, kt)) + raw["b1"][None, :, None, None]
    y = bn(y, raw["g1"], raw["be1"], raw["m1"], raw["v1"])
    y = conv(y, raw["w2"].reshape(f1d, 1, ceeg, 1), groups=f1) + raw["b2"][None, :, None, None]
    y = bn(y, raw["g2"], raw["be2"], raw["m2"], raw["v2"])
    y = jax.nn.elu(y)
    y = avgpool_w(y, 4)
    y = conv(y, raw["w3"].reshape(f1d, 1, 1, k2), groups=f1d)
    y = conv(y, raw["w4"].reshape(f2, f1d, 1, 1))
    y = bn(y, raw["g3"], raw["be3"], raw["m3"], raw["v3"])
    y = jax.nn.elu(y)
    y = avgpool_w(y, 8)
    flat = y.reshape(y.shape[0], -1)
    logits = jnp.dot(flat, jnp.transpose(raw["wfc"]), precision=P) + raw["bfc"][None, :]
    return jax.nn.softmax(logits, axis=-1)


if __name__ == "__main__":
    N, CEEG, T = 2, 25, 512          # T must exceed the 250-tap temporal kernel
    key = jax.random.PRNGKey(0)
    kx, kp = jax.random.split(key)
    x = jax.random.normal(kx, (N, 1, CEEG, T), dtype=jnp.float32)
    raw = init_raw_params(kp, eeg_channels=CEEG, t_len=T)
    packed = pack_params(raw)

    out = jax.block_until_ready(eegnet_forward(x, packed))
    ref = jax.block_until_ready(eegnet_ref(x, raw))

    assert out.shape == (N, 4), out.shape
    assert bool(jnp.all(jnp.abs(jnp.sum(out, axis=1) - 1.0) < 1e-4))
    # all MXU matmuls use bf16 operands with f32 accumulation -> bf16-class tolerance
    assert bool(jnp.allclose(out, ref, atol=7.5e-3, rtol=2e-2)), (out, ref)
    # TODO(synk): Dropout2d / training-mode BatchNorm statistics are not modeled
    # (inference semantics: dropout = identity, BN uses running stats).
    print("KERNEL_OK")
</pallas_src>

<mosaic_0001>
module attributes {stable_mosaic.version = 11 : i64} {
  func.func @eegnet_kernel(%arg0: i32, %arg1: memref<25x1024xf32, #tpu.memory_space<vmem>>, %arg2: memref<16x25xbf16, #tpu.memory_space<vmem>>, %arg3: memref<8x512x384xbf16, #tpu.memory_space<vmem>>, %arg4: memref<32x1xf32, #tpu.memory_space<vmem>>, %arg5: memref<32x1xf32, #tpu.memory_space<vmem>>, %arg6: memref<384x256xbf16, #tpu.memory_space<vmem>>, %arg7: memref<32x16xf32, #tpu.memory_space<vmem>>, %arg8: memref<32x32xbf16, #tpu.memory_space<vmem>>, %arg9: memref<32x1xf32, #tpu.memory_space<vmem>>, %arg10: memref<4x32x128xf32, #tpu.memory_space<vmem>>, %arg11: memref<2x32xbf16, #tpu.memory_space<vmem>>, %arg12: memref<1x4xf32, #tpu.memory_space<vmem>>, %arg13: memref<2x128xf32, #tpu.memory_space<vmem>>) attributes {dimension_semantics = [#tpu.dimension_semantics<parallel>], iteration_bounds = array<i64: 1>, scalar_prefetch = 0 : i64, scratch_operands = 0 : i64, tpu.core_type = #tpu.core_type<tc>, window_params = [{transform_indices = @transform_0, window_bounds = array<i64: 25, 1024>}, {pipeline_mode = #tpu.pipeline_mode<synchronous>, transform_indices = @transform_1, window_bounds = array<i64: 16, 25>}, {pipeline_mode = #tpu.pipeline_mode<synchronous>, transform_indices = @transform_2, window_bounds = array<i64: 8, 512, 384>}, {pipeline_mode = #tpu.pipeline_mode<synchronous>, transform_indices = @transform_3, window_bounds = array<i64: 32, 1>}, {pipeline_mode = #tpu.pipeline_mode<synchronous>, transform_indices = @transform_4, window_bounds = array<i64: 32, 1>}, {pipeline_mode = #tpu.pipeline_mode<synchronous>, transform_indices = @transform_5, window_bounds = array<i64: 384, 256>}, {pipeline_mode = #tpu.pipeline_mode<synchronous>, transform_indices = @transform_6, window_bounds = array<i64: 32, 16>}, {pipeline_mode = #tpu.pipeline_mode<synchronous>, transform_indices = @transform_7, window_bounds = array<i64: 32, 32>}, {pipeline_mode = #tpu.pipeline_mode<synchronous>, transform_indices = @transform_8, window_bounds = array<i64: 32, 1>}, {pipeline_mode = #tpu.pipeline_mode<synchronous>, transform_indices = @transform_9, window_bounds = array<i64: 4, 32, 128>}, {pipeline_mode = #tpu.pipeline_mode<synchronous>, transform_indices = @transform_10, window_bounds = array<i64: 2, 32>}, {pipeline_mode = #tpu.pipeline_mode<synchronous>, transform_indices = @transform_11, window_bounds = array<i64: 1, 4>}, {transform_indices = @transform_12, window_bounds = array<i64: 2, 128>}]} {
    %c0 = arith.constant 0 : index
    %c0_0 = arith.constant 0 : index
    %0 = vector.load %arg1[%c0, %c0_0] : memref<25x1024xf32, #tpu.memory_space<vmem>>, vector<25x1024xf32>
    %1 = arith.truncf %0 : vector<25x1024xf32> to vector<25x1024xbf16>
    %c0_1 = arith.constant 0 : index
    %c0_2 = arith.constant 0 : index
    %2 = vector.load %arg2[%c0_1, %c0_2] : memref<16x25xbf16, #tpu.memory_space<vmem>>, vector<16x25xbf16>
    %cst = arith.constant dense<0.000000e+00> : vector<16x1024xf32>
    %3 = tpu.matmul %2, %1, %cst {dimension_numbers = #tpu.dot_dimension_numbers<[1], [0], [0], [1], [0, 0, 1, 1], [], []>} : vector<16x25xbf16>, vector<25x1024xbf16>, vector<16x1024xf32> -> vector<16x1024xf32>
    %4 = vector.extract_strided_slice %3 {offsets = [0, 0], sizes = [2, 512], strides = [1, 1]} : vector<16x1024xf32> to vector<2x512xf32>
    %5 = vector.extract_strided_slice %3 {offsets = [0, 512], sizes = [2, 512], strides = [1, 1]} : vector<16x1024xf32> to vector<2x512xf32>
    %6 = tpu.concatenate %4, %5 in 0 : vector<2x512xf32>, vector<2x512xf32> -> vector<4x512xf32>
    %7 = arith.truncf %6 : vector<4x512xf32> to vector<4x512xbf16>
    %c0_3 = arith.constant 0 : index
    %c0_4 = arith.constant 0 : index
    %c0_5 = arith.constant 0 : index
    %8 = vector.load %arg3[%c0_3, %c0_4, %c0_5] : memref<8x512x384xbf16, #tpu.memory_space<vmem>>, vector<1x512x384xbf16>
    %9 = vector.shape_cast %8 : vector<1x512x384xbf16> to vector<512x384xbf16>
    %cst_6 = arith.constant dense<0.000000e+00> : vector<4x384xf32>
    %10 = tpu.matmul %7, %9, %cst_6 {dimension_numbers = #tpu.dot_dimension_numbers<[1], [0], [0], [1], [0, 0, 1, 1], [], []>} : vector<4x512xbf16>, vector<512x384xbf16>, vector<4x384xf32> -> vector<4x384xf32>
    %11 = vector.extract_strided_slice %3 {offsets = [2, 0], sizes = [2, 512], strides = [1, 1]} : vector<16x1024xf32> to vector<2x512xf32>
    %12 = vector.extract_strided_slice %3 {offsets = [2, 512], sizes = [2, 512], strides = [1, 1]} : vector<16x1024xf32> to vector<2x512xf32>
    %13 = tpu.concatenate %11, %12 in 0 : vector<2x512xf32>, vector<2x512xf32> -> vector<4x512xf32>
    %14 = arith.truncf %13 : vector<4x512xf32> to vector<4x512xbf16>
    %c1 = arith.constant 1 : index
    %c0_7 = arith.constant 0 : index
    %c0_8 = arith.constant 0 : index
    %15 = vector.load %arg3[%c1, %c0_7, %c0_8] : memref<8x512x384xbf16, #tpu.memory_space<vmem>>, vector<1x512x384xbf16>
    %16 = vector.shape_cast %15 : vector<1x512x384xbf16> to vector<512x384xbf16>
    %cst_9 = arith.constant dense<0.000000e+00> : vector<4x384xf32>
    %17 = tpu.matmul %14, %16, %cst_9 {dimension_numbers = #tpu.dot_dimension_numbers<[1], [0], [0], [1], [0, 0, 1, 1], [], []>} : vector<4x512xbf16>, vector<512x384xbf16>, vector<4x384xf32> -> vector<4x384xf32>
    %18 = vector.extract_strided_slice %3 {offsets = [4, 0], sizes = [2, 512], strides = [1, 1]} : vector<16x1024xf32> to vector<2x512xf32>
    %19 = vector.extract_strided_slice %3 {offsets = [4, 512], sizes = [2, 512], strides = [1, 1]} : vector<16x1024xf32> to vector<2x512xf32>
    %20 = tpu.concatenate %18, %19 in 0 : vector<2x512xf32>, vector<2x512xf32> -> vector<4x512xf32>
    %21 = arith.truncf %20 : vector<4x512xf32> to vector<4x512xbf16>
    %c2 = arith.constant 2 : index
    %c0_10 = arith.constant 0 : index
    %c0_11 = arith.constant 0 : index
    %22 = vector.load %arg3[%c2, %c0_10, %c0_11] : memref<8x512x384xbf16, #tpu.memory_space<vmem>>, vector<1x512x384xbf16>
    %23 = vector.shape_cast %22 : vector<1x512x384xbf16> to vector<512x384xbf16>
    %cst_12 = arith.constant dense<0.000000e+00> : vector<4x384xf32>
    %24 = tpu.matmul %21, %23, %cst_12 {dimension_numbers = #tpu.dot_dimension_numbers<[1], [0], [0], [1], [0, 0, 1, 1], [], []>} : vector<4x512xbf16>, vector<512x384xbf16>, vector<4x384xf32> -> vector<4x384xf32>
    %25 = vector.extract_strided_slice %3 {offsets = [6, 0], sizes = [2, 512], strides = [1, 1]} : vector<16x1024xf32> to vector<2x512xf32>
    %26 = vector.extract_strided_slice %3 {offsets = [6, 512], sizes = [2, 512], strides = [1, 1]} : vector<16x1024xf32> to vector<2x512xf32>
    %27 = tpu.concatenate %25, %26 in 0 : vector<2x512xf32>, vector<2x512xf32> -> vector<4x512xf32>
    %28 = arith.truncf %27 : vector<4x512xf32> to vector<4x512xbf16>
    %c3 = arith.constant 3 : index
    %c0_13 = arith.constant 0 : index
    %c0_14 = arith.constant 0 : index
    %29 = vector.load %arg3[%c3, %c0_13, %c0_14] : memref<8x512x384xbf16, #tpu.memory_space<vmem>>, vector<1x512x384xbf16>
    %30 = vector.shape_cast %29 : vector<1x512x384xbf16> to vector<512x384xbf16>
    %cst_15 = arith.constant dense<0.000000e+00> : vector<4x384xf32>
    %31 = tpu.matmul %28, %30, %cst_15 {dimension_numbers = #tpu.dot_dimension_numbers<[1], [0], [0], [1], [0, 0, 1, 1], [], []>} : vector<4x512xbf16>, vector<512x384xbf16>, vector<4x384xf32> -> vector<4x384xf32>
    %32 = vector.extract_strided_slice %3 {offsets = [8, 0], sizes = [2, 512], strides = [1, 1]} : vector<16x1024xf32> to vector<2x512xf32>
    %33 = vector.extract_strided_slice %3 {offsets = [8, 512], sizes = [2, 512], strides = [1, 1]} : vector<16x1024xf32> to vector<2x512xf32>
    %34 = tpu.concatenate %32, %33 in 0 : vector<2x512xf32>, vector<2x512xf32> -> vector<4x512xf32>
    %35 = arith.truncf %34 : vector<4x512xf32> to vector<4x512xbf16>
    %c4 = arith.constant 4 : index
    %c0_16 = arith.constant 0 : index
    %c0_17 = arith.constant 0 : index
    %36 = vector.load %arg3[%c4, %c0_16, %c0_17] : memref<8x512x384xbf16, #tpu.memory_space<vmem>>, vector<1x512x384xbf16>
    %37 = vector.shape_cast %36 : vector<1x512x384xbf16> to vector<512x384xbf16>
    %cst_18 = arith.constant dense<0.000000e+00> : vector<4x384xf32>
    %38 = tpu.matmul %35, %37, %cst_18 {dimension_numbers = #tpu.dot_dimension_numbers<[1], [0], [0], [1], [0, 0, 1, 1], [], []>} : vector<4x512xbf16>, vector<512x384xbf16>, vector<4x384xf32> -> vector<4x384xf32>
    %39 = vector.extract_strided_slice %3 {offsets = [10, 0], sizes = [2, 512], strides = [1, 1]} : vector<16x1024xf32> to vector<2x512xf32>
    %40 = vector.extract_strided_slice %3 {offsets = [10, 512], sizes = [2, 512], strides = [1, 1]} : vector<16x1024xf32> to vector<2x512xf32>
    %41 = tpu.concatenate %39, %40 in 0 : vector<2x512xf32>, vector<2x512xf32> -> vector<4x512xf32>
    %42 = arith.truncf %41 : vector<4x512xf32> to vector<4x512xbf16>
    %c5 = arith.constant 5 : index
    %c0_19 = arith.constant 0 : index
    %c0_20 = arith.constant 0 : index
    %43 = vector.load %arg3[%c5, %c0_19, %c0_20] : memref<8x512x384xbf16, #tpu.memory_space<vmem>>, vector<1x512x384xbf16>
    %44 = vector.shape_cast %43 : vector<1x512x384xbf16> to vector<512x384xbf16>
    %cst_21 = arith.constant dense<0.000000e+00> : vector<4x384xf32>
    %45 = tpu.matmul %42, %44, %cst_21 {dimension_numbers = #tpu.dot_dimension_numbers<[1], [0], [0], [1], [0, 0, 1, 1], [], []>} : vector<4x512xbf16>, vector<512x384xbf16>, vector<4x384xf32> -> vector<4x384xf32>
    %46 = vector.extract_strided_slice %3 {offsets = [12, 0], sizes = [2, 512], strides = [1, 1]} : vector<16x1024xf32> to vector<2x512xf32>
    %47 = vector.extract_strided_slice %3 {offsets = [12, 512], sizes = [2, 512], strides = [1, 1]} : vector<16x1024xf32> to vector<2x512xf32>
    %48 = tpu.concatenate %46, %47 in 0 : vector<2x512xf32>, vector<2x512xf32> -> vector<4x512xf32>
    %49 = arith.truncf %48 : vector<4x512xf32> to vector<4x512xbf16>
    %c6 = arith.constant 6 : index
    %c0_22 = arith.constant 0 : index
    %c0_23 = arith.constant 0 : index
    %50 = vector.load %arg3[%c6, %c0_22, %c0_23] : memref<8x512x384xbf16, #tpu.memory_space<vmem>>, vector<1x512x384xbf16>
    %51 = vector.shape_cast %50 : vector<1x512x384xbf16> to vector<512x384xbf16>
    %cst_24 = arith.constant dense<0.000000e+00> : vector<4x384xf32>
    %52 = tpu.matmul %49, %51, %cst_24 {dimension_numbers = #tpu.dot_dimension_numbers<[1], [0], [0], [1], [0, 0, 1, 1], [], []>} : vector<4x512xbf16>, vector<512x384xbf16>, vector<4x384xf32> -> vector<4x384xf32>
    %53 = vector.extract_strided_slice %3 {offsets = [14, 0], sizes = [2, 512], strides = [1, 1]} : vector<16x1024xf32> to vector<2x512xf32>
    %54 = vector.extract_strided_slice %3 {offsets = [14, 512], sizes = [2, 512], strides = [1, 1]} : vector<16x1024xf32> to vector<2x512xf32>
    %55 = tpu.concatenate %53, %54 in 0 : vector<2x512xf32>, vector<2x512xf32> -> vector<4x512xf32>
    %56 = arith.truncf %55 : vector<4x512xf32> to vector<4x512xbf16>
    %c7 = arith.constant 7 : index
    %c0_25 = arith.constant 0 : index
    %c0_26 = arith.constant 0 : index
    %57 = vector.load %arg3[%c7, %c0_25, %c0_26] : memref<8x512x384xbf16, #tpu.memory_space<vmem>>, vector<1x512x384xbf16>
    %58 = vector.shape_cast %57 : vector<1x512x384xbf16> to vector<512x384xbf16>
    %cst_27 = arith.constant dense<0.000000e+00> : vector<4x384xf32>
    %59 = tpu.matmul %56, %58, %cst_27 {dimension_numbers = #tpu.dot_dimension_numbers<[1], [0], [0], [1], [0, 0, 1, 1], [], []>} : vector<4x512xbf16>, vector<512x384xbf16>, vector<4x384xf32> -> vector<4x384xf32>
    %60 = tpu.concatenate %10, %17, %24, %31, %38, %45, %52, %59 in 0 : vector<4x384xf32>, vector<4x384xf32>, vector<4x384xf32>, vector<4x384xf32>, vector<4x384xf32>, vector<4x384xf32>, vector<4x384xf32>, vector<4x384xf32> -> vector<32x384xf32>
    %c0_28 = arith.constant 0 : index
    %c0_29 = arith.constant 0 : index
    %61 = vector.load %arg4[%c0_28, %c0_29] : memref<32x1xf32, #tpu.memory_space<vmem>>, vector<32x1xf32>
    %62 = vector.broadcast %61 : vector<32x1xf32> to vector<32x384xf32>
    %63 = arith.mulf %60, %62 : vector<32x384xf32>
    %c0_30 = arith.constant 0 : index
    %c0_31 = arith.constant 0 : index
    %64 = vector.load %arg5[%c0_30, %c0_31] : memref<32x1xf32, #tpu.memory_space<vmem>>, vector<32x1xf32>
    %65 = vector.broadcast %64 : vector<32x1xf32> to vector<32x384xf32>
    %66 = arith.addf %63, %65 : vector<32x384xf32>
    %cst_32 = arith.constant 0.000000e+00 : f32
    %67 = vector.broadcast %cst_32 : f32 to vector<32x384xf32>
    %68 = arith.cmpf ogt, %66, %67 : vector<32x384xf32>
    %cst_33 = arith.constant 0.000000e+00 : f32
    %69 = vector.broadcast %cst_33 : f32 to vector<32x384xf32>
    %70 = arith.minimumf %66, %69 : vector<32x384xf32>
    %71 = math.exp %70 : vector<32x384xf32>
    %cst_34 = arith.constant 1.000000e+00 : f32
    %72 = vector.broadcast %cst_34 : f32 to vector<32x384xf32>
    %73 = arith.subf %71, %72 : vector<32x384xf32>
    %74 = arith.select %68, %66, %73 : vector<32x384xi1>, vector<32x384xf32>
    %75 = arith.truncf %74 : vector<32x384xf32> to vector<32x384xbf16>
    %c0_35 = arith.constant 0 : index
    %c0_36 = arith.constant 0 : index
    %76 = vector.load %arg6[%c0_35, %c0_36] : memref<384x256xbf16, #tpu.memory_space<vmem>>, vector<384x256xbf16>
    %cst_37 = arith.constant dense<0.000000e+00> : vector<32x256xf32>
    %77 = tpu.matmul %75, %76, %cst_37 {dimension_numbers = #tpu.dot_dimension_numbers<[1], [0], [0], [1], [0, 0, 1, 1], [], []>} : vector<32x384xbf16>, vector<384x256xbf16>, vector<32x256xf32> -> vector<32x256xf32>
    %78 = vector.extract_strided_slice %77 {offsets = [0, 0], sizes = [32, 128], strides = [1, 1]} : vector<32x256xf32> to vector<32x128xf32>
    %c0_38 = arith.constant 0 : index
    %c0_39 = arith.constant 0 : index
    %79 = vector.load %arg7[%c0_38, %c0_39] : memref<32x16xf32, #tpu.memory_space<vmem>>, vector<32x1xf32>
    %80 = vector.broadcast %79 : vector<32x1xf32> to vector<32x128xf32>
    %81 = arith.mulf %78, %80 : vector<32x128xf32>
    %82 = vector.extract_strided_slice %77 {offsets = [0, 1], sizes = [32, 128], strides = [1, 1]} : vector<32x256xf32> to vector<32x128xf32>
    %c0_40 = arith.constant 0 : index
    %c1_41 = arith.constant 1 : index
    %83 = vector.load %arg7[%c0_40, %c1_41] : memref<32x16xf32, #tpu.memory_space<vmem>>, vector<32x1xf32>
    %84 = vector.broadcast %83 : vector<32x1xf32> to vector<32x128xf32>
    %85 = arith.mulf %82, %84 : vector<32x128xf32>
    %86 = arith.addf %81, %85 : vector<32x128xf32>
    %87 = vector.extract_strided_slice %77 {offsets = [0, 2], sizes = [32, 128], strides = [1, 1]} : vector<32x256xf32> to vector<32x128xf32>
    %c0_42 = arith.constant 0 : index
    %c2_43 = arith.constant 2 : index
    %88 = vector.load %arg7[%c0_42, %c2_43] : memref<32x16xf32, #tpu.memory_space<vmem>>, vector<32x1xf32>
    %89 = vector.broadcast %88 : vector<32x1xf32> to vector<32x128xf32>
    %90 = arith.mulf %87, %89 : vector<32x128xf32>
    %91 = arith.addf %86, %90 : vector<32x128xf32>
    %92 = vector.extract_strided_slice %77 {offsets = [0, 3], sizes = [32, 128], strides = [1, 1]} : vector<32x256xf32> to vector<32x128xf32>
    %c0_44 = arith.constant 0 : index
    %c3_45 = arith.constant 3 : index
    %93 = vector.load %arg7[%c0_44, %c3_45] : memref<32x16xf32, #tpu.memory_space<vmem>>, vector<32x1xf32>
    %94 = vector.broadcast %93 : vector<32x1xf32> to vector<32x128xf32>
    %95 = arith.mulf %92, %94 : vector<32x128xf32>
    %96 = arith.addf %91, %95 : vector<32x128xf32>
    %97 = vector.extract_strided_slice %77 {offsets = [0, 4], sizes = [32, 128], strides = [1, 1]} : vector<32x256xf32> to vector<32x128xf32>
    %c0_46 = arith.constant 0 : index
    %c4_47 = arith.constant 4 : index
    %98 = vector.load %arg7[%c0_46, %c4_47] : memref<32x16xf32, #tpu.memory_space<vmem>>, vector<32x1xf32>
    %99 = vector.broadcast %98 : vector<32x1xf32> to vector<32x128xf32>
    %100 = arith.mulf %97, %99 : vector<32x128xf32>
    %101 = arith.addf %96, %100 : vector<32x128xf32>
    %102 = vector.extract_strided_slice %77 {offsets = [0, 5], sizes = [32, 128], strides = [1, 1]} : vector<32x256xf32> to vector<32x128xf32>
    %c0_48 = arith.constant 0 : index
    %c5_49 = arith.constant 5 : index
    %103 = vector.load %arg7[%c0_48, %c5_49] : memref<32x16xf32, #tpu.memory_space<vmem>>, vector<32x1xf32>
    %104 = vector.broadcast %103 : vector<32x1xf32> to vector<32x128xf32>
    %105 = arith.mulf %102, %104 : vector<32x128xf32>
    %106 = arith.addf %101, %105 : vector<32x128xf32>
    %107 = vector.extract_strided_slice %77 {offsets = [0, 6], sizes = [32, 128], strides = [1, 1]} : vector<32x256xf32> to vector<32x128xf32>
    %c0_50 = arith.constant 0 : index
    %c6_51 = arith.constant 6 : index
    %108 = vector.load %arg7[%c0_50, %c6_51] : memref<32x16xf32, #tpu.memory_space<vmem>>, vector<32x1xf32>
    %109 = vector.broadcast %108 : vector<32x1xf32> to vector<32x128xf32>
    %110 = arith.mulf %107, %109 : vector<32x128xf32>
    %111 = arith.addf %106, %110 : vector<32x128xf32>
    %112 = vector.extract_strided_slice %77 {offsets = [0, 7], sizes = [32, 128], strides = [1, 1]} : vector<32x256xf32> to vector<32x128xf32>
    %c0_52 = arith.constant 0 : index
    %c7_53 = arith.constant 7 : index
    %113 = vector.load %arg7[%c0_52, %c7_53] : memref<32x16xf32, #tpu.memory_space<vmem>>, vector<32x1xf32>
    %114 = vector.broadcast %113 : vector<32x1xf32> to vector<32x128xf32>
    %115 = arith.mulf %112, %114 : vector<32x128xf32>
    %116 = arith.addf %111, %115 : vector<32x128xf32>
    %117 = vector.extract_strided_slice %77 {offsets = [0, 8], sizes = [32, 128], strides = [1, 1]} : vector<32x256xf32> to vector<32x128xf32>
    %c0_54 = arith.constant 0 : index
    %c8 = arith.constant 8 : index
    %118 = vector.load %arg7[%c0_54, %c8] : memref<32x16xf32, #tpu.memory_space<vmem>>, vector<32x1xf32>
    %119 = vector.broadcast %118 : vector<32x1xf32> to vector<32x128xf32>
    %120 = arith.mulf %117, %119 : vector<32x128xf32>
    %121 = arith.addf %116, %120 : vector<32x128xf32>
    %122 = vector.extract_strided_slice %77 {offsets = [0, 9], sizes = [32, 128], strides = [1, 1]} : vector<32x256xf32> to vector<32x128xf32>
    %c0_55 = arith.constant 0 : index
    %c9 = arith.constant 9 : index
    %123 = vector.load %arg7[%c0_55, %c9] : memref<32x16xf32, #tpu.memory_space<vmem>>, vector<32x1xf32>
    %124 = vector.broadcast %123 : vector<32x1xf32> to vector<32x128xf32>
    %125 = arith.mulf %122, %124 : vector<32x128xf32>
    %126 = arith.addf %121, %125 : vector<32x128xf32>
    %127 = vector.extract_strided_slice %77 {offsets = [0, 10], sizes = [32, 128], strides = [1, 1]} : vector<32x256xf32> to vector<32x128xf32>
    %c0_56 = arith.constant 0 : index
    %c10 = arith.constant 10 : index
    %128 = vector.load %arg7[%c0_56, %c10] : memref<32x16xf32, #tpu.memory_space<vmem>>, vector<32x1xf32>
    %129 = vector.broadcast %128 : vector<32x1xf32> to vector<32x128xf32>
    %130 = arith.mulf %127, %129 : vector<32x128xf32>
    %131 = arith.addf %126, %130 : vector<32x128xf32>
    %132 = vector.extract_strided_slice %77 {offsets = [0, 11], sizes = [32, 128], strides = [1, 1]} : vector<32x256xf32> to vector<32x128xf32>
    %c0_57 = arith.constant 0 : index
    %c11 = arith.constant 11 : index
    %133 = vector.load %arg7[%c0_57, %c11] : memref<32x16xf32, #tpu.memory_space<vmem>>, vector<32x1xf32>
    %134 = vector.broadcast %133 : vector<32x1xf32> to vector<32x128xf32>
    %135 = arith.mulf %132, %134 : vector<32x128xf32>
    %136 = arith.addf %131, %135 : vector<32x128xf32>
    %137 = vector.extract_strided_slice %77 {offsets = [0, 12], sizes = [32, 128], strides = [1, 1]} : vector<32x256xf32> to vector<32x128xf32>
    %c0_58 = arith.constant 0 : index
    %c12 = arith.constant 12 : index
    %138 = vector.load %arg7[%c0_58, %c12] : memref<32x16xf32, #tpu.memory_space<vmem>>, vector<32x1xf32>
    %139 = vector.broadcast %138 : vector<32x1xf32> to vector<32x128xf32>
    %140 = arith.mulf %137, %139 : vector<32x128xf32>
    %141 = arith.addf %136, %140 : vector<32x128xf32>
    %142 = vector.extract_strided_slice %77 {offsets = [0, 13], sizes = [32, 128], strides = [1, 1]} : vector<32x256xf32> to vector<32x128xf32>
    %c0_59 = arith.constant 0 : index
    %c13 = arith.constant 13 : index
    %143 = vector.load %arg7[%c0_59, %c13] : memref<32x16xf32, #tpu.memory_space<vmem>>, vector<32x1xf32>
    %144 = vector.broadcast %143 : vector<32x1xf32> to vector<32x128xf32>
    %145 = arith.mulf %142, %144 : vector<32x128xf32>
    %146 = arith.addf %141, %145 : vector<32x128xf32>
    %147 = vector.extract_strided_slice %77 {offsets = [0, 14], sizes = [32, 128], strides = [1, 1]} : vector<32x256xf32> to vector<32x128xf32>
    %c0_60 = arith.constant 0 : index
    %c14 = arith.constant 14 : index
    %148 = vector.load %arg7[%c0_60, %c14] : memref<32x16xf32, #tpu.memory_space<vmem>>, vector<32x1xf32>
    %149 = vector.broadcast %148 : vector<32x1xf32> to vector<32x128xf32>
    %150 = arith.mulf %147, %149 : vector<32x128xf32>
    %151 = arith.addf %146, %150 : vector<32x128xf32>
    %152 = vector.extract_strided_slice %77 {offsets = [0, 15], sizes = [32, 128], strides = [1, 1]} : vector<32x256xf32> to vector<32x128xf32>
    %c0_61 = arith.constant 0 : index
    %c15 = arith.constant 15 : index
    %153 = vector.load %arg7[%c0_61, %c15] : memref<32x16xf32, #tpu.memory_space<vmem>>, vector<32x1xf32>
    %154 = vector.broadcast %153 : vector<32x1xf32> to vector<32x128xf32>
    %155 = arith.mulf %152, %154 : vector<32x128xf32>
    %156 = arith.addf %151, %155 : vector<32x128xf32>
    %c0_62 = arith.constant 0 : index
    %c0_63 = arith.constant 0 : index
    %157 = vector.load %arg8[%c0_62, %c0_63] : memref<32x32xbf16, #tpu.memory_space<vmem>>, vector<32x32xbf16>
    %158 = arith.truncf %156 : vector<32x128xf32> to vector<32x128xbf16>
    %cst_64 = arith.constant dense<0.000000e+00> : vector<32x128xf32>
    %159 = tpu.matmul %157, %158, %cst_64 {dimension_numbers = #tpu.dot_dimension_numbers<[1], [0], [0], [1], [0, 0, 1, 1], [], []>} : vector<32x32xbf16>, vector<32x128xbf16>, vector<32x128xf32> -> vector<32x128xf32>
    %c0_65 = arith.constant 0 : index
    %c0_66 = arith.constant 0 : index
    %160 = vector.load %arg9[%c0_65, %c0_66] : memref<32x1xf32, #tpu.memory_space<vmem>>, vector<32x1xf32>
    %161 = vector.broadcast %160 : vector<32x1xf32> to vector<32x128xf32>
    %162 = arith.addf %159, %161 : vector<32x128xf32>
    %cst_67 = arith.constant 0.000000e+00 : f32
    %163 = vector.broadcast %cst_67 : f32 to vector<32x128xf32>
    %164 = arith.cmpf ogt, %162, %163 : vector<32x128xf32>
    %cst_68 = arith.constant 0.000000e+00 : f32
    %165 = vector.broadcast %cst_68 : f32 to vector<32x128xf32>
    %166 = arith.minimumf %162, %165 : vector<32x128xf32>
    %167 = math.exp %166 : vector<32x128xf32>
    %cst_69 = arith.constant 1.000000e+00 : f32
    %168 = vector.broadcast %cst_69 : f32 to vector<32x128xf32>
    %169 = arith.subf %167, %168 : vector<32x128xf32>
    %170 = arith.select %164, %162, %169 : vector<32x128xi1>, vector<32x128xf32>
    %c0_70 = arith.constant 0 : index
    %c0_71 = arith.constant 0 : index
    %c0_72 = arith.constant 0 : index
    %171 = vector.load %arg10[%c0_70, %c0_71, %c0_72] : memref<4x32x128xf32, #tpu.memory_space<vmem>>, vector<1x32x128xf32>
    %172 = vector.shape_cast %171 : vector<1x32x128xf32> to vector<32x128xf32>
    %173 = arith.mulf %170, %172 : vector<32x128xf32>
    %cst_73 = arith.constant dense<0.000000e+00> : vector<32xf32>
    %174 = vector.multi_reduction <add>, %173, %cst_73 [1] : vector<32x128xf32> to vector<32xf32>
    %175 = vector.shape_cast %174 : vector<32xf32> to vector<32x1xf32>
    %c1_74 = arith.constant 1 : index
    %c0_75 = arith.constant 0 : index
    %c0_76 = arith.constant 0 : index
    %176 = vector.load %arg10[%c1_74, %c0_75, %c0_76] : memref<4x32x128xf32, #tpu.memory_space<vmem>>, vector<1x32x128xf32>
    %177 = vector.shape_cast %176 : vector<1x32x128xf32> to vector<32x128xf32>
    %178 = arith.mulf %170, %177 : vector<32x128xf32>
    %cst_77 = arith.constant dense<0.000000e+00> : vector<32xf32>
    %179 = vector.multi_reduction <add>, %178, %cst_77 [1] : vector<32x128xf32> to vector<32xf32>
    %180 = vector.shape_cast %179 : vector<32xf32> to vector<32x1xf32>
    %c2_78 = arith.constant 2 : index
    %c0_79 = arith.constant 0 : index
    %c0_80 = arith.constant 0 : index
    %181 = vector.load %arg10[%c2_78, %c0_79, %c0_80] : memref<4x32x128xf32, #tpu.memory_space<vmem>>, vector<1x32x128xf32>
    %182 = vector.shape_cast %181 : vector<1x32x128xf32> to vector<32x128xf32>
    %183 = arith.mulf %170, %182 : vector<32x128xf32>
    %cst_81 = arith.constant dense<0.000000e+00> : vector<32xf32>
    %184 = vector.multi_reduction <add>, %183, %cst_81 [1] : vector<32x128xf32> to vector<32xf32>
    %185 = vector.shape_cast %184 : vector<32xf32> to vector<32x1xf32>
    %c3_82 = arith.constant 3 : index
    %c0_83 = arith.constant 0 : index
    %c0_84 = arith.constant 0 : index
    %186 = vector.load %arg10[%c3_82, %c0_83, %c0_84] : memref<4x32x128xf32, #tpu.memory_space<vmem>>, vector<1x32x128xf32>
    %187 = vector.shape_cast %186 : vector<1x32x128xf32> to vector<32x128xf32>
    %188 = arith.mulf %170, %187 : vector<32x128xf32>
    %cst_85 = arith.constant dense<0.000000e+00> : vector<32xf32>
    %189 = vector.multi_reduction <add>, %188, %cst_85 [1] : vector<32x128xf32> to vector<32xf32>
    %190 = vector.shape_cast %189 : vector<32xf32> to vector<32x1xf32>
    %191 = tpu.concatenate %175, %180, %185, %190 in 1 : vector<32x1xf32>, vector<32x1xf32>, vector<32x1xf32>, vector<32x1xf32> -> vector<32x4xf32>
    %c0_86 = arith.constant 0 : index
    %c0_87 = arith.constant 0 : index
    %192 = vector.load %arg11[%c0_86, %c0_87] : memref<2x32xbf16, #tpu.memory_space<vmem>>, vector<2x32xbf16>
    %193 = arith.truncf %191 : vector<32x4xf32> to vector<32x4xbf16>
    %cst_88 = arith.constant dense<0.000000e+00> : vector<2x4xf32>
    %194 = tpu.matmul %192, %193, %cst_88 {dimension_numbers = #tpu.dot_dimension_numbers<[1], [0], [0], [1], [0, 0, 1, 1], [], []>} : vector<2x32xbf16>, vector<32x4xbf16>, vector<2x4xf32> -> vector<2x4xf32>
    %c0_89 = arith.constant 0 : index
    %c0_90 = arith.constant 0 : index
    %195 = vector.load %arg12[%c0_89, %c0_90] : memref<1x4xf32, #tpu.memory_space<vmem>>, vector<1x4xf32>
    %196 = vector.broadcast %195 : vector<1x4xf32> to vector<2x4xf32>
    %197 = arith.addf %194, %196 : vector<2x4xf32>
    %cst_91 = arith.constant dense<0xFF800000> : vector<2xf32>
    %198 = vector.multi_reduction <maximumf>, %197, %cst_91 [1] : vector<2x4xf32> to vector<2xf32>
    %199 = vector.shape_cast %198 : vector<2xf32> to vector<2x1xf32>
    %200 = vector.broadcast %199 : vector<2x1xf32> to vector<2x4xf32>
    %201 = arith.subf %197, %200 : vector<2x4xf32>
    %202 = math.exp %201 : vector<2x4xf32>
    %cst_92 = arith.constant dense<0.000000e+00> : vector<2xf32>
    %203 = vector.multi_reduction <add>, %202, %cst_92 [1] : vector<2x4xf32> to vector<2xf32>
    %204 = vector.shape_cast %203 : vector<2xf32> to vector<2x1xf32>
    %205 = vector.broadcast %204 : vector<2x1xf32> to vector<2x4xf32>
    %206 = arith.divf %202, %205 : vector<2x4xf32>
    %cst_93 = arith.constant 0.000000e+00 : f32
    %207 = vector.broadcast %cst_93 : f32 to vector<2x124xf32>
    %208 = tpu.concatenate %206, %207 in 1 : vector<2x4xf32>, vector<2x124xf32> -> vector<2x128xf32>
    %c0_94 = arith.constant 0 : index
    %c0_95 = arith.constant 0 : index
    %209 = vector.load %arg13[%c0_94, %c0_95] : memref<2x128xf32, #tpu.memory_space<vmem>>, vector<2x128xf32>
    tpu.vector_store %arg13[%c0_94, %c0_95], %208 {strides = array<i32>} : memref<2x128xf32, #tpu.memory_space<vmem>>, vector<2x128xf32>,
    return
  }
  func.func @transform_0(%arg0: i32) -> (i32, i32) {
    %c0_i32 = arith.constant 0 : i32
    %c0_i32_0 = arith.constant 0 : i32
    return %c0_i32, %arg0 : i32, i32
  }
  func.func @transform_1(%arg0: i32) -> (i32, i32) {
    %c0_i32 = arith.constant 0 : i32
    %c0_i32_0 = arith.constant 0 : i32
    %c0_i32_1 = arith.constant 0 : i32
    return %c0_i32, %c0_i32_0 : i32, i32
  }
  func.func @transform_2(%arg0: i32) -> (i32, i32, i32) {
    %c0_i32 = arith.constant 0 : i32
    %c0_i32_0 = arith.constant 0 : i32
    %c0_i32_1 = arith.constant 0 : i32
    %c0_i32_2 = arith.constant 0 : i32
    return %c0_i32, %c0_i32_0, %c0_i32_1 : i32, i32, i32
  }
  func.func @transform_3(%arg0: i32) -> (i32, i32) {
    %c0_i32 = arith.constant 0 : i32
    %c0_i32_0 = arith.constant 0 : i32
    %c0_i32_1 = arith.constant 0 : i32
    return %c0_i32, %c0_i32_0 : i32, i32
  }
  func.func @transform_4(%arg0: i32) -> (i32, i32) {
    %c0_i32 = arith.constant 0 : i32
    %c0_i32_0 = arith.constant 0 : i32
    %c0_i32_1 = arith.constant 0 : i32
    return %c0_i32, %c0_i32_0 : i32, i32
  }
  func.func @transform_5(%arg0: i32) -> (i32, i32) {
    %c0_i32 = arith.constant 0 : i32
    %c0_i32_0 = arith.constant 0 : i32
    %c0_i32_1 = arith.constant 0 : i32
    return %c0_i32, %c0_i32_0 : i32, i32
  }
  func.func @transform_6(%arg0: i32) -> (i32, i32) {
    %c0_i32 = arith.constant 0 : i32
    %c0_i32_0 = arith.constant 0 : i32
    %c0_i32_1 = arith.constant 0 : i32
    return %c0_i32, %c0_i32_0 : i32, i32
  }
  func.func @transform_7(%arg0: i32) -> (i32, i32) {
    %c0_i32 = arith.constant 0 : i32
    %c0_i32_0 = arith.constant 0 : i32
    %c0_i32_1 = arith.constant 0 : i32
    return %c0_i32, %c0_i32_0 : i32, i32
  }
  func.func @transform_8(%arg0: i32) -> (i32, i32) {
    %c0_i32 = arith.constant 0 : i32
    %c0_i32_0 = arith.constant 0 : i32
    %c0_i32_1 = arith.constant 0 : i32
    return %c0_i32, %c0_i32_0 : i32, i32
  }
  func.func @transform_9(%arg0: i32) -> (i32, i32, i32) {
    %c0_i32 = arith.constant 0 : i32
    %c0_i32_0 = arith.constant 0 : i32
    %c0_i32_1 = arith.constant 0 : i32
    %c0_i32_2 = arith.constant 0 : i32
    return %c0_i32, %c0_i32_0, %c0_i32_1 : i32, i32, i32
  }
  func.func @transform_10(%arg0: i32) -> (i32, i32) {
    %c0_i32 = arith.constant 0 : i32
    %c0_i32_0 = arith.constant 0 : i32
    %c0_i32_1 = arith.constant 0 : i32
    return %c0_i32, %c0_i32_0 : i32, i32
  }
  func.func @transform_11(%arg0: i32) -> (i32, i32) {
    %c0_i32 = arith.constant 0 : i32
    %c0_i32_0 = arith.constant 0 : i32
    %c0_i32_1 = arith.constant 0 : i32
    return %c0_i32, %c0_i32_0 : i32, i32
  }
  func.func @transform_12(%arg0: i32) -> (i32, i32) {
    %c0_i32 = arith.constant 0 : i32
    %c0_i32_0 = arith.constant 0 : i32
    return %arg0, %c0_i32 : i32, i32
  }
}

</mosaic_0001>

<llo_original>
// kernel: tpu_custom_call.1
$region0: #{tpu_custom_call.1}
  #allocation0 [shape = 'u32[]', space=smem, size = 0x4, offset = 0x4, fixed_abs, tag = 'smem constant byte address 0x4 - core index']
  #allocation1 [shape = 'u32[144,128]{1,0:T(1,128)}', space=vmem, size = 0x12000, scoped, tag = 'internal scratch']
  %s0 = inlined_call_operand.hbm [shape: f32[25,1024], index: 0, kind: input, shape index: {}]
  %s1 = inlined_call_operand.hbm [shape: bf16[16,25], index: 1, kind: input, shape index: {}]
  %s2 = inlined_call_operand.hbm [shape: bf16[8,512,384], index: 2, kind: input, shape index: {}]
  %s3 = inlined_call_operand.vmem [shape: f32[32,1], index: 3, kind: input, shape index: {}]
  %s4 = inlined_call_operand.vmem [shape: f32[32,1], index: 4, kind: input, shape index: {}]
  %s5 = inlined_call_operand.hbm [shape: bf16[384,256], index: 5, kind: input, shape index: {}]
  %s6 = inlined_call_operand.vmem [shape: f32[32,16], index: 6, kind: input, shape index: {}]
  %s7 = inlined_call_operand.hbm [shape: bf16[32,32], index: 7, kind: input, shape index: {}]
  %s8 = inlined_call_operand.vmem [shape: f32[32,1], index: 8, kind: input, shape index: {}]
  %s9 = inlined_call_operand.hbm [shape: f32[4,32,128], index: 9, kind: input, shape index: {}]
  %s10 = inlined_call_operand.hbm [shape: bf16[2,32], index: 10, kind: input, shape index: {}]
  %s11 = inlined_call_operand.hbm [shape: f32[1,4], index: 11, kind: input, shape index: {}]
  %s12 = inlined_call_operand.hbm [shape: f32[2,128], index: 12, kind: output, shape index: {}]
  %s13 = sld [smem:[#allocation0]]
  $region90: #{tpu_custom_call.1} parent=0
    _
  %s15 = ssub.s32 1, %s13
  %s16 = scalar_select 0, %s15, %s13
  $region1: #{tpu_custom_call.1} parent=0
    #allocation2 [shape = 'u8[131072]{0}', space=vmem, size = 0x20000, scoped, tag = 'input window, operand 0, single buffered']
    #allocation3 [shape = 's32[1]{0}', space=sflag, size = 0x4, scoped, tag = 'scoped memory for tpu_custom_call.1']
    #allocation4 [shape = 's32[1]{0}', space=sflag, size = 0x4, scoped, tag = 'scoped memory for tpu_custom_call.1']
    #allocation5 [shape = 'u8[4096]{0}', space=vmem, size = 0x1000, scoped, tag = 'input window, operand 1, single buffered']
    #allocation6 [shape = 's32[1]{0}', space=sflag, size = 0x4, scoped, tag = 'scoped memory for tpu_custom_call.1']
    #allocation7 [shape = 'u8[3145728]{0}', space=vmem, size = 0x300000, scoped, tag = 'input window, operand 2, single buffered']
    #allocation8 [shape = 'u8[196608]{0}', space=vmem, size = 0x30000, scoped, tag = 'input window, operand 5, single buffered']
    #allocation9 [shape = 's32[1]{0}', space=sflag, size = 0x4, scoped, tag = 'scoped memory for tpu_custom_call.1']
    #allocation10 [shape = 'u8[8192]{0}', space=vmem, size = 0x2000, scoped, tag = 'input window, operand 7, single buffered']
    #allocation11 [shape = 'u8[65536]{0}', space=vmem, size = 0x10000, scoped, tag = 'input window, operand 9, single buffered']
    #allocation12 [shape = 's32[1]{0}', space=sflag, size = 0x4, scoped, tag = 'scoped memory for tpu_custom_call.1']
    #allocation13 [shape = 'u8[512]{0}', space=vmem, size = 0x400, scoped, tag = 'input window, operand 10, single buffered']
    #allocation14 [shape = 'u8[512]{0}', space=vmem, size = 0x400, scoped, tag = 'input window, operand 11, single buffered']
    #allocation15 [shape = 's32[1]{0}', space=sflag, size = 0x4, scoped, tag = 'scoped memory for tpu_custom_call.1']
    #allocation16 [shape = 'u8[1024]{0}', space=vmem, size = 0x400, scoped, tag = 'output window, operand 0, single buffered']
    %17 = vsyncpa [#allocation3], 0
    %18 = vsyncpa [#allocation6], 0
    %19 = vsyncpa [#allocation9], 0
    %20 = vsyncpa [#allocation12], 0
    %21 = vsyncpa [#allocation15], 0
    %22 = vsyncpa [#allocation4], 0
    // Predicated region
    $region2: #{tpu_custom_call.1} parent=1 // pred_check
      _
    $region3: #{tpu_custom_call.1} parent=1 // pred_check_branch
      %24 = sbr.rel (0) target = $region5
    $region4: #{tpu_custom_call.1} parent=1 // pred_region
      %s26 = ssub.s32 4096, 4096
      %27 = vsyncadd [#allocation3], %s26
      %s28 = sshll.u32 [#allocation2], 4
      %s29 = int_to_ptr.vmem [resolvable:$true] %s28
      %34 = dma.hbm_to_vmem [thread:$0]  %s0, 4096, %s29, [#allocation3], 1024, 1024, 64
    $region5: #{tpu_custom_call.1} parent=1 // pred_fallthru
      _
    // Predicated region
    $region6: #{tpu_custom_call.1} parent=1 // pred_check
      _
    $region7: #{tpu_custom_call.1} parent=1 // pred_check_branch
      %36 = sbr.rel (0) target = $region9
    $region8: #{tpu_custom_call.1} parent=1 // pred_region
      %s38 = ssub.s32 128, 128
      %39 = vsyncadd [#allocation6], %s38
      %s40 = sshll.u32 [#allocation5], 4
      %s41 = int_to_ptr.vmem [resolvable:$true] %s40
      %46 = dma.hbm_to_vmem [thread:$0]  %s1, 128, %s41, [#allocation6], 64, 64, 4
    $region9: #{tpu_custom_call.1} parent=1 // pred_fallthru
      _
    // Predicated region
    $region10: #{tpu_custom_call.1} parent=1 // pred_check
      _
    $region11: #{tpu_custom_call.1} parent=1 // pred_check_branch
      %48 = sbr.rel (0) target = $region13
    $region12: #{tpu_custom_call.1} parent=1 // pred_region
      %s50 = ssub.s32 98304, 98304
      %51 = vsyncadd [#allocation6], %s50
      %s52 = sshll.u32 [#allocation7], 4
      %s53 = int_to_ptr.vmem [resolvable:$true] %s52
      %58 = dma.hbm_to_vmem [thread:$0]  %s2, 98304, %s53, [#allocation6], 192, 192, 12
    $region13: #{tpu_custom_call.1} parent=1 // pred_fallthru
      _
    // Predicated region
    $region14: #{tpu_custom_call.1} parent=1 // pred_check
      _
    $region15: #{tpu_custom_call.1} parent=1 // pred_check_branch
      %60 = sbr.rel (0) target = $region17
    $region16: #{tpu_custom_call.1} parent=1 // pred_region
      _
    $region17: #{tpu_custom_call.1} parent=1 // pred_fallthru
      _
    // Predicated region
    $region18: #{tpu_custom_call.1} parent=1 // pred_check
      _
    $region19: #{tpu_custom_call.1} parent=1 // pred_check_branch
      %62 = sbr.rel (0) target = $region21
    $region20: #{tpu_custom_call.1} parent=1 // pred_region
      _
    $region21: #{tpu_custom_call.1} parent=1 // pred_fallthru
      _
    // Predicated region
    $region22: #{tpu_custom_call.1} parent=1 // pred_check
      _
    $region23: #{tpu_custom_call.1} parent=1 // pred_check_branch
      %64 = sbr.rel (0) target = $region25
    $region24: #{tpu_custom_call.1} parent=1 // pred_region
      %s66 = ssub.s32 6144, 6144
      %67 = vsyncadd [#allocation9], %s66
      %s68 = sshll.u32 [#allocation8], 4
      %s69 = int_to_ptr.vmem [resolvable:$true] %s68
      %74 = dma.hbm_to_vmem [thread:$0]  %s5, 6144, %s69, [#allocation9], 128, 128, 8
    $region25: #{tpu_custom_call.1} parent=1 // pred_fallthru
      _
    // Predicated region
    $region26: #{tpu_custom_call.1} parent=1 // pred_check
      _
    $region27: #{tpu_custom_call.1} parent=1 // pred_check_branch
      %76 = sbr.rel (0) target = $region29
    $region28: #{tpu_custom_call.1} parent=1 // pred_region
      _
    $region29: #{tpu_custom_call.1} parent=1 // pred_fallthru
      _
    // Predicated region
    $region30: #{tpu_custom_call.1} parent=1 // pred_check
      _
    $region31: #{tpu_custom_call.1} parent=1 // pred_check_branch
      %78 = sbr.rel (0) target = $region33
    $region32: #{tpu_custom_call.1} parent=1 // pred_region
      %s80 = ssub.s32 256, 256
      %81 = vsyncadd [#allocation9], %s80
      %s82 = sshll.u32 [#allocation10], 4
      %s83 = int_to_ptr.vmem [resolvable:$true] %s82
      %88 = dma.hbm_to_vmem [thread:$0]  %s7, 256, %s83, [#allocation9], 64, 64, 4
    $region33: #{tpu_custom_call.1} parent=1 // pred_fallthru
      _
    // Predicated region
    $region34: #{tpu_custom_call.1} parent=1 // pred_check
      _
    $region35: #{tpu_custom_call.1} parent=1 // pred_check_branch
      %90 = sbr.rel (0) target = $region37
    $region36: #{tpu_custom_call.1} parent=1 // pred_region
      _
    $region37: #{tpu_custom_call.1} parent=1 // pred_fallthru
      _
    // Predicated region
    $region38: #{tpu_custom_call.1} parent=1 // pred_check
      _
    $region39: #{tpu_custom_call.1} parent=1 // pred_check_branch
      %92 = sbr.rel (0) target = $region41
    $region40: #{tpu_custom_call.1} parent=1 // pred_region
      %s94 = ssub.s32 2048, 2048
      %95 = vsyncadd [#allocation12], %s94
      %s96 = sshll.u32 [#allocation11], 4
      %s97 = int_to_ptr.vmem [resolvable:$true] %s96
      %102 = dma.hbm_to_vmem [thread:$0]  %s9, 2048, %s97, [#allocation12], 128, 128, 8
    $region41: #{tpu_custom_call.1} parent=1 // pred_fallthru
      _
    // Predicated region
    $region42: #{tpu_custom_call.1} parent=1 // pred_check
      _
    $region43: #{tpu_custom_call.1} parent=1 // pred_check_branch
      %104 = sbr.rel (0) target = $region45
    $region44: #{tpu_custom_call.1} parent=1 // pred_region
      %s106 = ssub.s32 16, 16
      %107 = vsyncadd [#allocation12], %s106
      %s109 = sshll.u32 [#allocation13], 4
      %s110 = int_to_ptr.vmem [resolvable:$true] %s109
      %112 = dma.hbm_to_vmem [thread:$0]  %s10, 16, %s110, [#allocation12]
    $region45: #{tpu_custom_call.1} parent=1 // pred_fallthru
      _
    // Predicated region
    $region46: #{tpu_custom_call.1} parent=1 // pred_check
      _
    $region47: #{tpu_custom_call.1} parent=1 // pred_check_branch
      %114 = sbr.rel (0) target = $region49
    $region48: #{tpu_custom_call.1} parent=1 // pred_region
      %s116 = ssub.s32 16, 16
      %117 = vsyncadd [#allocation15], %s116
      %s119 = sshll.u32 [#allocation14], 4
      %s120 = int_to_ptr.vmem [resolvable:$true] %s119
      %122 = dma.hbm_to_vmem [thread:$0]  %s11, 16, %s120, [#allocation15]
    $region49: #{tpu_custom_call.1} parent=1 // pred_fallthru
      _
    // Predicated region
    $region50: #{tpu_custom_call.1} parent=1 // pred_check
      _
    $region51: #{tpu_custom_call.1} parent=1 // pred_check_branch
      %124 = sbr.rel (0) target = $region53
    $region52: #{tpu_custom_call.1} parent=1 // pred_region
      %125 = dma.done [#allocation3], 4096
    $region53: #{tpu_custom_call.1} parent=1 // pred_fallthru
      _
    // Predicated region
    $region54: #{tpu_custom_call.1} parent=1 // pred_check
      _
    $region55: #{tpu_custom_call.1} parent=1 // pred_check_branch
      %127 = sbr.rel (0) target = $region57
    $region56: #{tpu_custom_call.1} parent=1 // pred_region
      %128 = dma.done [#allocation6], 128
    $region57: #{tpu_custom_call.1} parent=1 // pred_fallthru
      _
    // Predicated region
    $region58: #{tpu_custom_call.1} parent=1 // pred_check
      _
    $region59: #{tpu_custom_call.1} parent=1 // pred_check_branch
      %130 = sbr.rel (0) target = $region61
    $region60: #{tpu_custom_call.1} parent=1 // pred_region
      %131 = dma.done [#allocation6], 98304
    $region61: #{tpu_custom_call.1} parent=1 // pred_fallthru
      _
    // Predicated region
    $region62: #{tpu_custom_call.1} parent=1 // pred_check
      _
    $region63: #{tpu_custom_call.1} parent=1 // pred_check_branch
      %133 = sbr.rel (0) target = $region65
    $region64: #{tpu_custom_call.1} parent=1 // pred_region
      %134 = dma.done [#allocation9], 6144
    $region65: #{tpu_custom_call.1} parent=1 // pred_fallthru
      _
    // Predicated region
    $region66: #{tpu_custom_call.1} parent=1 // pred_check
      _
    $region67: #{tpu_custom_call.1} parent=1 // pred_check_branch
      %136 = sbr.rel (0) target = $region69
    $region68: #{tpu_custom_call.1} parent=1 // pred_region
      %137 = dma.done [#allocation9], 256
    $region69: #{tpu_custom_call.1} parent=1 // pred_fallthru
      _
    // Predicated region
    $region70: #{tpu_custom_call.1} parent=1 // pred_check
      _
    $region71: #{tpu_custom_call.1} parent=1 // pred_check_branch
      %139 = sbr.rel (0) target = $region73
    $region72: #{tpu_custom_call.1} parent=1 // pred_region
      %140 = dma.done [#allocation12], 2048
    $region73: #{tpu_custom_call.1} parent=1 // pred_fallthru
      _
    // Predicated region
    $region74: #{tpu_custom_call.1} parent=1 // pred_check
      _
    $region75: #{tpu_custom_call.1} parent=1 // pred_check_branch
      %142 = sbr.rel (0) target = $region77
    $region76: #{tpu_custom_call.1} parent=1 // pred_region
      %143 = dma.done [#allocation12], 16
    $region77: #{tpu_custom_call.1} parent=1 // pred_fallthru
      _
    // Predicated region
    $region78: #{tpu_custom_call.1} parent=1 // pred_check
      _
    $region79: #{tpu_custom_call.1} parent=1 // pred_check_branch
      %145 = sbr.rel (0) target = $region81
    $region80: #{tpu_custom_call.1} parent=1 // pred_region
      %146 = dma.done [#allocation15], 16
    $region81: #{tpu_custom_call.1} parent=1 // pred_fallthru
      _
    %v148 = vld [vmem:[#allocation2] sm:$0xff]
    %v149 = vld [vmem:[#allocation2 + $0x8] sm:$0xff]
    %v150 = vld [vmem:[#allocation2 + $0x10] sm:$0xff]
    %v151 = vld [vmem:[#allocation2 + $0x18] sm:$0xff]
    %v152 = vld [vmem:[#allocation2 + $0x20] sm:$0xff]
    %v153 = vld [vmem:[#allocation2 + $0x28] sm:$0xff]
    %v154 = vld [vmem:[#allocation2 + $0x30] sm:$0xff]
    %v155 = vld [vmem:[#allocation2 + $0x38] sm:$0xff]
    %v156 = vld [vmem:[#allocation2 + $0x40] sm:$0xff]
    %v157 = vld [vmem:[#allocation2 + $0x48] sm:$0xff]
    %v158 = vld [vmem:[#allocation2 + $0x50] sm:$0xff]
    %v159 = vld [vmem:[#allocation2 + $0x58] sm:$0xff]
    %v160 = vld [vmem:[#allocation2 + $0x60] sm:$0xff]
    %v161 = vld [vmem:[#allocation2 + $0x68] sm:$0xff]
    %v162 = vld [vmem:[#allocation2 + $0x70] sm:$0xff]
    %v163 = vld [vmem:[#allocation2 + $0x78] sm:$0xff]
    %v164 = vld [vmem:[#allocation2 + $0x80] sm:$0xff]
    %v165 = vld [vmem:[#allocation2 + $0x88] sm:$0xff]
    %v166 = vld [vmem:[#allocation2 + $0x90] sm:$0xff]
    %v167 = vld [vmem:[#allocation2 + $0x98] sm:$0xff]
    %v168 = vld [vmem:[#allocation2 + $0xa0] sm:$0xff]
    %v169 = vld [vmem:[#allocation2 + $0xa8] sm:$0xff]
    %v170 = vld [vmem:[#allocation2 + $0xb0] sm:$0xff]
    %v171 = vld [vmem:[#allocation2 + $0xb8] sm:$0xff]
    %v172 = vld [vmem:[#allocation2 + $0xc0] sm:$0x1]
    %v173 = vld [vmem:[#allocation2 + $0xc8] sm:$0x1]
    %v174 = vld [vmem:[#allocation2 + $0xd0] sm:$0x1]
    %v175 = vld [vmem:[#allocation2 + $0xd8] sm:$0x1]
    %v176 = vld [vmem:[#allocation2 + $0xe0] sm:$0x1]
    %v177 = vld [vmem:[#allocation2 + $0xe8] sm:$0x1]
    %v178 = vld [vmem:[#allocation2 + $0xf0] sm:$0x1]
    %v179 = vld [vmem:[#allocation2 + $0xf8] sm:$0x1]
    %v180 = vpack.c.bf16 %v156, %v148
    %v181 = vpack.c.bf16 %v157, %v149
    %v182 = vpack.c.bf16 %v158, %v150
    %v183 = vpack.c.bf16 %v159, %v151
    %v184 = vpack.c.bf16 %v160, %v152
    %v185 = vpack.c.bf16 %v161, %v153
    %v186 = vpack.c.bf16 %v162, %v154
    %v187 = vpack.c.bf16 %v163, %v155
    %v188 = vpack.c.bf16 %v172, %v164
    %v189 = vpack.c.bf16 %v173, %v165
    %v190 = vpack.c.bf16 %v174, %v166
    %v191 = vpack.c.bf16 %v175, %v167
    %v192 = vpack.c.bf16 %v176, %v168
    %v193 = vpack.c.bf16 %v177, %v169
    %v194 = vpack.c.bf16 %v178, %v170
    %v195 = vpack.c.bf16 %v179, %v171
    %v196 = vld [vmem:[#allocation5] sm:$0xf]
    %v197 = vld [vmem:[#allocation5 + $0x4] sm:$0xf]
    %v200 = vunpack.c.l.b16 %v196
    %v201 = vunpack.c.l.b16 %v197
    %v202 = vpack.c.b16 %v201, %v200
    %vm203 = vcmask 203776
    %v205 = vsel %vm203, %v202, 0
    %vm207 = vcmask 1043456
    %vm208 = vcmask 1044480
    %v209 = vsel %vm207, 4294967295, 65535
    %v210 = vsel %vm208, %v209, 0
    %v212 = vand.u32 %v188, %v210
    %v215 = vand.u32 %v189, %v210
    %v218 = vand.u32 %v190, %v210
    %v221 = vand.u32 %v191, %v210
    %v224 = vand.u32 %v192, %v210
    %v227 = vand.u32 %v193, %v210
    %v230 = vand.u32 %v194, %v210
    %v233 = vand.u32 %v195, %v210
    %235 = vmatprep.subr.bf16.mxu0 0
    %236 = vmatpush1.bf16.msra.mxu0 0
    %237 = vmatprep.subr.bf16.mxu0 0
    %238 = vmatpush1.bf16.msra.mxu0 0
    %239 = vmatprep.subr.bf16.mxu0 0
    %240 = vmatpush1.bf16.msra.mxu0 0
    %241 = vmatprep.subr.bf16.mxu0 0
    %242 = vmatpush1.bf16.msra.mxu0 0
    %243 = vmatprep.subr.bf16.mxu0 0
    %244 = vmatpush1.bf16.msra.mxu0 0
    %245 = vmatprep.subr.bf16.mxu0 0
    %246 = vmatpush1.bf16.msra.mxu0 0
    %247 = vmatprep.subr.bf16.mxu0 %v215
    %248 = vmatpush1.bf16.msra.mxu0 %v212
    %249 = vmatprep.subr.bf16.mxu0 %v181
    %250 = vmatpush1.bf16.msra.mxu0 %v180
    %251 = vmatprep.subr.bf16.mxu0 0
    %252 = vmatpush2.bf16.msra.mxu0 0
    %253 = vmatprep.subr.bf16.mxu0 0
    %254 = vmatpush2.bf16.msra.mxu0 0
    %255 = vmatprep.subr.bf16.mxu0 0
    %256 = vmatpush2.bf16.msra.mxu0 0
    %257 = vmatprep.subr.bf16.mxu0 0
    %258 = vmatpush2.bf16.msra.mxu0 0
    %259 = vmatprep.subr.bf16.mxu0 0
    %260 = vmatpush2.bf16.msra.mxu0 0
    %261 = vmatprep.subr.bf16.mxu0 0
    %262 = vmatpush2.bf16.msra.mxu0 0
    %263 = vmatprep.subr.bf16.mxu0 0
    %264 = vmatpush2.bf16.msra.mxu0 0
    %265 = vmatprep.subr.bf16.mxu0 0
    %266 = vmatpush2.bf16.msra.mxu0 0
    %267 = vmatprep.mubr.bf16.mxu0 0
    %268 = vmatmul.mubr.bf16.gmra.mxu0 %v205
    %v269 = vpop.f32.mrf.mxu0
    %v270 = vadd.f32 0.0, %v269
    %v271 = vpop.f32.mrf.mxu0
    %v272 = vadd.f32 0.0, %v271
    %v273 = vpop.f32.mrf.mxu0
    %v274 = vadd.f32 0.0, %v273
    %v275 = vpop.f32.mrf.mxu0
    %v276 = vadd.f32 0.0, %v275
    %277 = vdwg.mxu0
    %278 = vmatprep.subr.bf16.mxu0 0
    %279 = vmatpush1.bf16.msra.mxu0 0
    %280 = vmatprep.subr.bf16.mxu0 0
    %281 = vmatpush1.bf16.msra.mxu0 0
    %282 = vmatprep.subr.bf16.mxu0 0
    %283 = vmatpush1.bf16.msra.mxu0 0
    %284 = vmatprep.subr.bf16.mxu0 0
    %285 = vmatpush1.bf16.msra.mxu0 0
    %286 = vmatprep.subr.bf16.mxu0 0
    %287 = vmatpush1.bf16.msra.mxu0 0
    %288 = vmatprep.subr.bf16.mxu0 0
    %289 = vmatpush1.bf16.msra.mxu0 0
    %290 = vmatprep.subr.bf16.mxu0 %v221
    %291 = vmatpush1.bf16.msra.mxu0 %v218
    %292 = vmatprep.subr.bf16.mxu0 %v183
    %293 = vmatpush1.bf16.msra.mxu0 %v182
    %294 = vmatprep.subr.bf16.mxu0 0
    %295 = vmatpush2.bf16.msra.mxu0 0
    %296 = vmatprep.subr.bf16.mxu0 0
    %297 = vmatpush2.bf16.msra.mxu0 0
    %298 = vmatprep.subr.bf16.mxu0 0
    %299 = vmatpush2.bf16.msra.mxu0 0
    %300 = vmatprep.subr.bf16.mxu0 0
    %301 = vmatpush2.bf16.msra.mxu0 0
    %302 = vmatprep.subr.bf16.mxu0 0
    %303 = vmatpush2.bf16.msra.mxu0 0
    %304 = vmatprep.subr.bf16.mxu0 0
    %305 = vmatpush2.bf16.msra.mxu0 0
    %306 = vmatprep.subr.bf16.mxu0 0
    %307 = vmatpush2.bf16.msra.mxu0 0
    %308 = vmatprep.subr.bf16.mxu0 0
    %309 = vmatpush2.bf16.msra.mxu0 0
    %310 = vmatprep.mubr.bf16.mxu0 0
    %311 = vmatmul.mubr.bf16.gmra.mxu0 %v205
    %v312 = vpop.f32.mrf.mxu0
    %v313 = vadd.f32 0.0, %v312
    %v314 = vpop.f32.mrf.mxu0
    %v315 = vadd.f32 0.0, %v314
    %v316 = vpop.f32.mrf.mxu0
    %v317 = vadd.f32 0.0, %v316
    %v318 = vpop.f32.mrf.mxu0
    %v319 = vadd.f32 0.0, %v318
    %320 = vdwg.mxu0
    %321 = vmatprep.subr.bf16.mxu0 0
    %322 = vmatpush1.bf16.msra.mxu0 0
    %323 = vmatprep.subr.bf16.mxu0 0
    %324 = vmatpush1.bf16.msra.mxu0 0
    %325 = vmatprep.subr.bf16.mxu0 0
    %326 = vmatpush1.bf16.msra.mxu0 0
    %327 = vmatprep.subr.bf16.mxu0 0
    %328 = vmatpush1.bf16.msra.mxu0 0
    %329 = vmatprep.subr.bf16.mxu0 0
    %330 = vmatpush1.bf16.msra.mxu0 0
    %331 = vmatprep.subr.bf16.mxu0 0
    %332 = vmatpush1.bf16.msra.mxu0 0
    %333 = vmatprep.subr.bf16.mxu0 %v227
    %334 = vmatpush1.bf16.msra.mxu0 %v224
    %335 = vmatprep.subr.bf16.mxu0 %v185
    %336 = vmatpush1.bf16.msra.mxu0 %v184
    %337 = vmatprep.subr.bf16.mxu0 0
    %338 = vmatpush2.bf16.msra.mxu0 0
    %339 = vmatprep.subr.bf16.mxu0 0
    %340 = vmatpush2.bf16.msra.mxu0 0
    %341 = vmatprep.subr.bf16.mxu0 0
    %342 = vmatpush2.bf16.msra.mxu0 0
    %343 = vmatprep.subr.bf16.mxu0 0
    %344 = vmatpush2.bf16.msra.mxu0 0
    %345 = vmatprep.subr.bf16.mxu0 0
    %346 = vmatpush2.bf16.msra.mxu0 0
    %347 = vmatprep.subr.bf16.mxu0 0
    %348 = vmatpush2.bf16.msra.mxu0 0
    %349 = vmatprep.subr.bf16.mxu0 0
    %350 = vmatpush2.bf16.msra.mxu0 0
    %351 = vmatprep.subr.bf16.mxu0 0
    %352 = vmatpush2.bf16.msra.mxu0 0
    %353 = vmatprep.mubr.bf16.mxu0 0
    %354 = vmatmul.mubr.bf16.gmra.mxu0 %v205
    %v355 = vpop.f32.mrf.mxu0
    %v356 = vadd.f32 0.0, %v355
    %v357 = vpop.f32.mrf.mxu0
    %v358 = vadd.f32 0.0, %v357
    %v359 = vpop.f32.mrf.mxu0
    %v360 = vadd.f32 0.0, %v359
    %v361 = vpop.f32.mrf.mxu0
    %v362 = vadd.f32 0.0, %v361
    %363 = vdwg.mxu0
    %364 = vmatprep.subr.bf16.mxu0 0
    %365 = vmatpush1.bf16.msra.mxu0 0
    %366 = vmatprep.subr.bf16.mxu0 0
    %367 = vmatpush1.bf16.msra.mxu0 0
    %368 = vmatprep.subr.bf16.mxu0 0
    %369 = vmatpush1.bf16.msra.mxu0 0
    %370 = vmatprep.subr.bf16.mxu0 0
    %371 = vmatpush1.bf16.msra.mxu0 0
    %372 = vmatprep.subr.bf16.mxu0 0
    %373 = vmatpush1.bf16.msra.mxu0 0
    %374 = vmatprep.subr.bf16.mxu0 0
    %375 = vmatpush1.bf16.msra.mxu0 0
    %376 = vmatprep.subr.bf16.mxu0 %v233
    %377 = vmatpush1.bf16.msra.mxu0 %v230
    %378 = vmatprep.subr.bf16.mxu0 %v187
    %379 = vmatpush1.bf16.msra.mxu0 %v186
    %380 = vmatprep.subr.bf16.mxu0 0
    %381 = vmatpush2.bf16.msra.mxu0 0
    %382 = vmatprep.subr.bf16.mxu0 0
    %383 = vmatpush2.bf16.msra.mxu0 0
    %384 = vmatprep.subr.bf16.mxu0 0
    %385 = vmatpush2.bf16.msra.mxu0 0
    %386 = vmatprep.subr.bf16.mxu0 0
    %387 = vmatpush2.bf16.msra.mxu0 0
    %388 = vmatprep.subr.bf16.mxu0 0
    %389 = vmatpush2.bf16.msra.mxu0 0
    %390 = vmatprep.subr.bf16.mxu0 0
    %391 = vmatpush2.bf16.msra.mxu0 0
    %392 = vmatprep.subr.bf16.mxu0 0
    %393 = vmatpush2.bf16.msra.mxu0 0
    %394 = vmatprep.subr.bf16.mxu0 0
    %395 = vmatpush2.bf16.msra.mxu0 0
    %396 = vmatprep.mubr.bf16.mxu0 0
    %397 = vmatmul.mubr.bf16.gmra.mxu0 %v205
    %v398 = vpop.f32.mrf.mxu0
    %v399 = vadd.f32 0.0, %v398
    %v400 = vpop.f32.mrf.mxu0
    %v401 = vadd.f32 0.0, %v400
    %v402 = vpop.f32.mrf.mxu0
    %v403 = vadd.f32 0.0, %v402
    %v404 = vpop.f32.mrf.mxu0
    %v405 = vadd.f32 0.0, %v404
    %406 = vdwg.mxu0
    %v411 = vrot.slane %v356, 6
    %v412 = vrot.slane %v358, 6
    %v413 = vrot.slane %v399, 6
    %v414 = vrot.slane %v401, 6
    %vm419 = vcmask 1041408
    %v420 = vsel %vm419, %v270, %v411
    %v421 = vsel %vm419, %v272, %v412
    %v422 = vsel %vm419, %v313, %v413
    %v423 = vsel %vm419, %v315, %v414
    %v424 = vpack.c.bf16 %v420, %v420
    %v425 = vpack.c.bf16 %v421, %v421
    %v426 = vpack.c.bf16 %v422, %v422
    %v427 = vpack.c.bf16 %v423, %v423
    %v428 = vld [vmem:[#allocation7] sm:$0xff]
    %v429 = vld [vmem:[#allocation7 + $0x8] sm:$0xf]
    %v430 = vld [vmem:[#allocation7 + $0xc] sm:$0xff]
    %v431 = vld [vmem:[#allocation7 + $0x14] sm:$0xf]
    %v432 = vld [vmem:[#allocation7 + $0x18] sm:$0xff]
    %v433 = vld [vmem:[#allocation7 + $0x20] sm:$0xf]
    %v434 = vld [vmem:[#allocation7 + $0x24] sm:$0xff]
    %v435 = vld [vmem:[#allocation7 + $0x2c] sm:$0xf]
    %v436 = vld [vmem:[#allocation7 + $0x30] sm:$0xff]
    %v437 = vld [vmem:[#allocation7 + $0x38] sm:$0xf]
    %v438 = vld [vmem:[#allocation7 + $0x3c] sm:$0xff]
    %v439 = vld [vmem:[#allocation7 + $0x44] sm:$0xf]
    %v440 = vld [vmem:[#allocation7 + $0x48] sm:$0xff]
    %v441 = vld [vmem:[#allocation7 + $0x50] sm:$0xf]
    %v442 = vld [vmem:[#allocation7 + $0x54] sm:$0xff]
    %v443 = vld [vmem:[#allocation7 + $0x5c] sm:$0xf]
    %v444 = vld [vmem:[#allocation7 + $0x60] sm:$0xff]
    %v445 = vld [vmem:[#allocation7 + $0x68] sm:$0xf]
    %v446 = vld [vmem:[#allocation7 + $0x6c] sm:$0xff]
    %v447 = vld [vmem:[#allocation7 + $0x74] sm:$0xf]
    %v448 = vld [vmem:[#allocation7 + $0x78] sm:$0xff]
    %v449 = vld [vmem:[#allocation7 + $0x80] sm:$0xf]
    %v450 = vld [vmem:[#allocation7 + $0x84] sm:$0xff]
    %v451 = vld [vmem:[#allocation7 + $0x8c] sm:$0xf]
    %v452 = vld [vmem:[#allocation7 + $0x90] sm:$0xff]
    %v453 = vld [vmem:[#allocation7 + $0x98] sm:$0xf]
    %v454 = vld [vmem:[#allocation7 + $0x9c] sm:$0xff]
    %v455 = vld [vmem:[#allocation7 + $0xa4] sm:$0xf]
    %v456 = vld [vmem:[#allocation7 + $0xa8] sm:$0xff]
    %v457 = vld [vmem:[#allocation7 + $0xb0] sm:$0xf]
    %v458 = vld [vmem:[#allocation7 + $0xb4] sm:$0xff]
    %v459 = vld [vmem:[#allocation7 + $0xbc] sm:$0xf]
    %v460 = vld [vmem:[#allocation7 + $0xc0] sm:$0xff]
    %v461 = vld [vmem:[#allocation7 + $0xc8] sm:$0xf]
    %v462 = vld [vmem:[#allocation7 + $0xcc] sm:$0xff]
    %v463 = vld [vmem:[#allocation7 + $0xd4] sm:$0xf]
    %v464 = vld [vmem:[#allocation7 + $0xd8] sm:$0xff]
    %v465 = vld [vmem:[#allocation7 + $0xe0] sm:$0xf]
    %v466 = vld [vmem:[#allocation7 + $0xe4] sm:$0xff]
    %v467 = vld [vmem:[#allocation7 + $0xec] sm:$0xf]
    %v468 = vld [vmem:[#allocation7 + $0xf0] sm:$0xff]
    %v469 = vld [vmem:[#allocation7 + $0xf8] sm:$0xf]
    %v470 = vld [vmem:[#allocation7 + $0xfc] sm:$0xff]
    %v471 = vld [vmem:[#allocation7 + $0x104] sm:$0xf]
    %v472 = vld [vmem:[#allocation7 + $0x108] sm:$0xff]
    %v473 = vld [vmem:[#allocation7 + $0x110] sm:$0xf]
    %v474 = vld [vmem:[#allocation7 + $0x114] sm:$0xff]
    %v475 = vld [vmem:[#allocation7 + $0x11c] sm:$0xf]
    %v476 = vld [vmem:[#allocation7 + $0x120] sm:$0xff]
    %v477 = vld [vmem:[#allocation7 + $0x128] sm:$0xf]
    %v478 = vld [vmem:[#allocation7 + $0x12c] sm:$0xff]
    %v479 = vld [vmem:[#allocation7 + $0x134] sm:$0xf]
    %v480 = vld [vmem:[#allocation7 + $0x138] sm:$0xff]
    %v481 = vld [vmem:[#allocation7 + $0x140] sm:$0xf]
    %v482 = vld [vmem:[#allocation7 + $0x144] sm:$0xff]
    %v483 = vld [vmem:[#allocation7 + $0x14c] sm:$0xf]
    %v484 = vld [vmem:[#allocation7 + $0x150] sm:$0xff]
    %v485 = vld [vmem:[#allocation7 + $0x158] sm:$0xf]
    %v486 = vld [vmem:[#allocation7 + $0x15c] sm:$0xff]
    %v487 = vld [vmem:[#allocation7 + $0x164] sm:$0xf]
    %v488 = vld [vmem:[#allocation7 + $0x168] sm:$0xff]
    %v489 = vld [vmem:[#allocation7 + $0x170] sm:$0xf]
    %v490 = vld [vmem:[#allocation7 + $0x174] sm:$0xff]
    %v491 = vld [vmem:[#allocation7 + $0x17c] sm:$0xf]
    %v492 = vld [vmem:[#allocation7 + $0x180] sm:$0xff]
    %v493 = vld [vmem:[#allocation7 + $0x188] sm:$0xf]
    %v494 = vld [vmem:[#allocation7 + $0x18c] sm:$0xff]
    %v495 = vld [vmem:[#allocation7 + $0x194] sm:$0xf]
    %v496 = vld [vmem:[#allocation7 + $0x198] sm:$0xff]
    %v497 = vld [vmem:[#allocation7 + $0x1a0] sm:$0xf]
    %v498 = vld [vmem:[#allocation7 + $0x1a4] sm:$0xff]
    %v499 = vld [vmem:[#allocation7 + $0x1ac] sm:$0xf]
    %v500 = vld [vmem:[#allocation7 + $0x1b0] sm:$0xff]
    %v501 = vld [vmem:[#allocation7 + $0x1b8] sm:$0xf]
    %v502 = vld [vmem:[#allocation7 + $0x1bc] sm:$0xff]
    %v503 = vld [vmem:[#allocation7 + $0x1c4] sm:$0xf]
    %v504 = vld [vmem:[#allocation7 + $0x1c8] sm:$0xff]
    %v505 = vld [vmem:[#allocation7 + $0x1d0] sm:$0xf]
    %v506 = vld [vmem:[#allocation7 + $0x1d4] sm:$0xff]
    %v507 = vld [vmem:[#allocation7 + $0x1dc] sm:$0xf]
    %v508 = vld [vmem:[#allocation7 + $0x1e0] sm:$0xff]
    %v509 = vld [vmem:[#allocation7 + $0x1e8] sm:$0xf]
    %v510 = vld [vmem:[#allocation7 + $0x1ec] sm:$0xff]
    %v511 = vld [vmem:[#allocation7 + $0x1f4] sm:$0xf]
    %v512 = vld [vmem:[#allocation7 + $0x1f8] sm:$0xff]
    %v513 = vld [vmem:[#allocation7 + $0x200] sm:$0xf]
    %v514 = vld [vmem:[#allocation7 + $0x204] sm:$0xff]
    %v515 = vld [vmem:[#allocation7 + $0x20c] sm:$0xf]
    %v516 = vld [vmem:[#allocation7 + $0x210] sm:$0xff]
    %v517 = vld [vmem:[#allocation7 + $0x218] sm:$0xf]
    %v518 = vld [vmem:[#allocation7 + $0x21c] sm:$0xff]
    %v519 = vld [vmem:[#allocation7 + $0x224] sm:$0xf]
    %v520 = vld [vmem:[#allocation7 + $0x228] sm:$0xff]
    %v521 = vld [vmem:[#allocation7 + $0x230] sm:$0xf]
    %v522 = vld [vmem:[#allocation7 + $0x234] sm:$0xff]
    %v523 = vld [vmem:[#allocation7 + $0x23c] sm:$0xf]
    %v524 = vld [vmem:[#allocation7 + $0x240] sm:$0xff]
    %v525 = vld [vmem:[#allocation7 + $0x248] sm:$0xf]
    %v526 = vld [vmem:[#allocation7 + $0x24c] sm:$0xff]
    %v527 = vld [vmem:[#allocation7 + $0x254] sm:$0xf]
    %v528 = vld [vmem:[#allocation7 + $0x258] sm:$0xff]
    %v529 = vld [vmem:[#allocation7 + $0x260] sm:$0xf]
    %v530 = vld [vmem:[#allocation7 + $0x264] sm:$0xff]
    %v531 = vld [vmem:[#allocation7 + $0x26c] sm:$0xf]
    %v532 = vld [vmem:[#allocation7 + $0x270] sm:$0xff]
    %v533 = vld [vmem:[#allocation7 + $0x278] sm:$0xf]
    %v534 = vld [vmem:[#allocation7 + $0x27c] sm:$0xff]
    %v535 = vld [vmem:[#allocation7 + $0x284] sm:$0xf]
    %v536 = vld [vmem:[#allocation7 + $0x288] sm:$0xff]
    %v537 = vld [vmem:[#allocation7 + $0x290] sm:$0xf]
    %v538 = vld [vmem:[#allocation7 + $0x294] sm:$0xff]
    %v539 = vld [vmem:[#allocation7 + $0x29c] sm:$0xf]
    %v540 = vld [vmem:[#allocation7 + $0x2a0] sm:$0xff]
    %v541 = vld [vmem:[#allocation7 + $0x2a8] sm:$0xf]
    %v542 = vld [vmem:[#allocation7 + $0x2ac] sm:$0xff]
    %v543 = vld [vmem:[#allocation7 + $0x2b4] sm:$0xf]
    %v544 = vld [vmem:[#allocation7 + $0x2b8] sm:$0xff]
    %v545 = vld [vmem:[#allocation7 + $0x2c0] sm:$0xf]
    %v546 = vld [vmem:[#allocation7 + $0x2c4] sm:$0xff]
    %v547 = vld [vmem:[#allocation7 + $0x2cc] sm:$0xf]
    %v548 = vld [vmem:[#allocation7 + $0x2d0] sm:$0xff]
    %v549 = vld [vmem:[#allocation7 + $0x2d8] sm:$0xf]
    %v550 = vld [vmem:[#allocation7 + $0x2dc] sm:$0xff]
    %v551 = vld [vmem:[#allocation7 + $0x2e4] sm:$0xf]
    %v552 = vld [vmem:[#allocation7 + $0x2e8] sm:$0xff]
    %v553 = vld [vmem:[#allocation7 + $0x2f0] sm:$0xf]
    %v554 = vld [vmem:[#allocation7 + $0x2f4] sm:$0xff]
    %v555 = vld [vmem:[#allocation7 + $0x2fc] sm:$0xf]
    %v684 = vunpack.c.l.b16 %v428
    %v685 = vunpack.c.h.b16 %v428
    %v686 = vunpack.c.l.b16 %v429
    %v687 = vunpack.c.l.b16 %v430
    %v688 = vunpack.c.h.b16 %v430
    %v689 = vunpack.c.l.b16 %v431
    %v690 = vunpack.c.l.b16 %v432
    %v691 = vunpack.c.h.b16 %v432
    %v692 = vunpack.c.l.b16 %v433
    %v693 = vunpack.c.l.b16 %v434
    %v694 = vunpack.c.h.b16 %v434
    %v695 = vunpack.c.l.b16 %v435
    %v696 = vunpack.c.l.b16 %v436
    %v697 = vunpack.c.h.b16 %v436
    %v698 = vunpack.c.l.b16 %v437
    %v699 = vunpack.c.l.b16 %v438
    %v700 = vunpack.c.h.b16 %v438
    %v701 = vunpack.c.l.b16 %v439
    %v702 = vunpack.c.l.b16 %v440
    %v703 = vunpack.c.h.b16 %v440
    %v704 = vunpack.c.l.b16 %v441
    %v705 = vunpack.c.l.b16 %v442
    %v706 = vunpack.c.h.b16 %v442
    %v707 = vunpack.c.l.b16 %v443
    %v708 = vunpack.c.l.b16 %v444
    %v709 = vunpack.c.h.b16 %v444
    %v710 = vunpack.c.l.b16 %v445
    %v711 = vunpack.c.l.b16 %v446
    %v712 = vunpack.c.h.b16 %v446
    %v713 = vunpack.c.l.b16 %v447
    %v714 = vunpack.c.l.b16 %v448
    %v715 = vunpack.c.h.b16 %v448
    %v716 = vunpack.c.l.b16 %v449
    %v717 = vunpack.c.l.b16 %v450
    %v718 = vunpack.c.h.b16 %v450
    %v719 = vunpack.c.l.b16 %v451
    %v720 = vunpack.c.l.b16 %v452
    %v721 = vunpack.c.h.b16 %v452
    %v722 = vunpack.c.l.b16 %v453
    %v723 = vunpack.c.l.b16 %v454
    %v724 = vunpack.c.h.b16 %v454
    %v725 = vunpack.c.l.b16 %v455
    %v726 = vunpack.c.l.b16 %v456
    %v727 = vunpack.c.h.b16 %v456
    %v728 = vunpack.c.l.b16 %v457
    %v729 = vunpack.c.l.b16 %v458
    %v730 = vunpack.c.h.b16 %v458
    %v731 = vunpack.c.l.b16 %v459
    %v732 = vunpack.c.l.b16 %v460
    %v733 = vunpack.c.h.b16 %v460
    %v734 = vunpack.c.l.b16 %v461
    %v735 = vunpack.c.l.b16 %v462
    %v736 = vunpack.c.h.b16 %v462
    %v737 = vunpack.c.l.b16 %v463
    %v738 = vunpack.c.l.b16 %v464
    %v739 = vunpack.c.h.b16 %v464
    %v740 = vunpack.c.l.b16 %v465
    %v741 = vunpack.c.l.b16 %v466
    %v742 = vunpack.c.h.b16 %v466
    %v743 = vunpack.c.l.b16 %v467
    %v744 = vunpack.c.l.b16 %v468
    %v745 = vunpack.c.h.b16 %v468
    %v746 = vunpack.c.l.b16 %v469
    %v747 = vunpack.c.l.b16 %v470
    %v748 = vunpack.c.h.b16 %v470
    %v749 = vunpack.c.l.b16 %v471
    %v750 = vunpack.c.l.b16 %v472
    %v751 = vunpack.c.h.b16 %v472
    %v752 = vunpack.c.l.b16 %v473
    %v753 = vunpack.c.l.b16 %v474
    %v754 = vunpack.c.h.b16 %v474
    %v755 = vunpack.c.l.b16 %v475
    %v756 = vunpack.c.l.b16 %v476
    %v757 = vunpack.c.h.b16 %v476
    %v758 = vunpack.c.l.b16 %v477
    %v759 = vunpack.c.l.b16 %v478
    %v760 = vunpack.c.h.b16 %v478
    %v761 = vunpack.c.l.b16 %v479
    %v762 = vunpack.c.l.b16 %v480
    %v763 = vunpack.c.h.b16 %v480
    %v764 = vunpack.c.l.b16 %v481
    %v765 = vunpack.c.l.b16 %v482
    %v766 = vunpack.c.h.b16 %v482
    %v767 = vunpack.c.l.b16 %v483
    %v768 = vunpack.c.l.b16 %v484
    %v769 = vunpack.c.h.b16 %v484
    %v770 = vunpack.c.l.b16 %v485
    %v771 = vunpack.c.l.b16 %v486
    %v772 = vunpack.c.h.b16 %v486
    %v773 = vunpack.c.l.b16 %v487
    %v774 = vunpack.c.l.b16 %v488
    %v775 = vunpack.c.h.b16 %v488
    %v776 = vunpack.c.l.b16 %v489
    %v777 = vunpack.c.l.b16 %v490
    %v778 = vunpack.c.h.b16 %v490
    %v779 = vunpack.c.l.b16 %v491
    %v780 = vunpack.c.l.b16 %v492
    %v781 = vunpack.c.h.b16 %v492
    %v782 = vunpack.c.l.b16 %v493
    %v783 = vunpack.c.l.b16 %v494
    %v784 = vunpack.c.h.b16 %v494
    %v785 = vunpack.c.l.b16 %v495
    %v786 = vunpack.c.l.b16 %v496
    %v787 = vunpack.c.h.b16 %v496
    %v788 = vunpack.c.l.b16 %v497
    %v789 = vunpack.c.l.b16 %v498
    %v790 = vunpack.c.h.b16 %v498
    %v791 = vunpack.c.l.b16 %v499
    %v792 = vunpack.c.l.b16 %v500
    %v793 = vunpack.c.h.b16 %v500
    %v794 = vunpack.c.l.b16 %v501
    %v795 = vunpack.c.l.b16 %v502
    %v796 = vunpack.c.h.b16 %v502
    %v797 = vunpack.c.l.b16 %v503
    %v798 = vunpack.c.l.b16 %v504
    %v799 = vunpack.c.h.b16 %v504
    %v800 = vunpack.c.l.b16 %v505
    %v801 = vunpack.c.l.b16 %v506
    %v802 = vunpack.c.h.b16 %v506
    %v803 = vunpack.c.l.b16 %v507
    %v804 = vunpack.c.l.b16 %v508
    %v805 = vunpack.c.h.b16 %v508
    %v806 = vunpack.c.l.b16 %v509
    %v807 = vunpack.c.l.b16 %v510
    %v808 = vunpack.c.h.b16 %v510
    %v809 = vunpack.c.l.b16 %v511
    %v810 = vunpack.c.l.b16 %v512
    %v811 = vunpack.c.h.b16 %v512
    %v812 = vunpack.c.l.b16 %v513
    %v813 = vunpack.c.l.b16 %v514
    %v814 = vunpack.c.h.b16 %v514
    %v815 = vunpack.c.l.b16 %v515
    %v816 = vunpack.c.l.b16 %v516
    %v817 = vunpack.c.h.b16 %v516
    %v818 = vunpack.c.l.b16 %v517
    %v819 = vunpack.c.l.b16 %v518
    %v820 = vunpack.c.h.b16 %v518
    %v821 = vunpack.c.l.b16 %v519
    %v822 = vunpack.c.l.b16 %v520
    %v823 = vunpack.c.h.b16 %v520
    %v824 = vunpack.c.l.b16 %v521
    %v825 = vunpack.c.l.b16 %v522
    %v826 = vunpack.c.h.b16 %v522
    %v827 = vunpack.c.l.b16 %v523
    %v828 = vunpack.c.l.b16 %v524
    %v829 = vunpack.c.h.b16 %v524
    %v830 = vunpack.c.l.b16 %v525
    %v831 = vunpack.c.l.b16 %v526
    %v832 = vunpack.c.h.b16 %v526
    %v833 = vunpack.c.l.b16 %v527
    %v834 = vunpack.c.l.b16 %v528
    %v835 = vunpack.c.h.b16 %v528
    %v836 = vunpack.c.l.b16 %v529
    %v837 = vunpack.c.l.b16 %v530
    %v838 = vunpack.c.h.b16 %v530
    %v839 = vunpack.c.l.b16 %v531
    %v840 = vunpack.c.l.b16 %v532
    %v841 = vunpack.c.h.b16 %v532
    %v842 = vunpack.c.l.b16 %v533
    %v843 = vunpack.c.l.b16 %v534
    %v844 = vunpack.c.h.b16 %v534
    %v845 = vunpack.c.l.b16 %v535
    %v846 = vunpack.c.l.b16 %v536
    %v847 = vunpack.c.h.b16 %v536
    %v848 = vunpack.c.l.b16 %v537
    %v849 = vunpack.c.l.b16 %v538
    %v850 = vunpack.c.h.b16 %v538
    %v851 = vunpack.c.l.b16 %v539
    %v852 = vunpack.c.l.b16 %v540
    %v853 = vunpack.c.h.b16 %v540
    %v854 = vunpack.c.l.b16 %v541
    %v855 = vunpack.c.l.b16 %v542
    %v856 = vunpack.c.h.b16 %v542
    %v857 = vunpack.c.l.b16 %v543
    %v858 = vunpack.c.l.b16 %v544
    %v859 = vunpack.c.h.b16 %v544
    %v860 = vunpack.c.l.b16 %v545
    %v861 = vunpack.c.l.b16 %v546
    %v862 = vunpack.c.h.b16 %v546
    %v863 = vunpack.c.l.b16 %v547
    %v864 = vunpack.c.l.b16 %v548
    %v865 = vunpack.c.h.b16 %v548
    %v866 = vunpack.c.l.b16 %v549
    %v867 = vunpack.c.l.b16 %v550
    %v868 = vunpack.c.h.b16 %v550
    %v869 = vunpack.c.l.b16 %v551
    %v870 = vunpack.c.l.b16 %v552
    %v871 = vunpack.c.h.b16 %v552
    %v872 = vunpack.c.l.b16 %v553
    %v873 = vunpack.c.l.b16 %v554
    %v874 = vunpack.c.h.b16 %v554
    %v875 = vunpack.c.l.b16 %v555
    %v876 = vpack.c.b16 %v687, %v684
    %v877 = vpack.c.b16 %v688, %v685
    %v878 = vpack.c.b16 %v689, %v686
    %v879 = vpack.c.b16 %v693, %v690
    %v880 = vpack.c.b16 %v694, %v691
    %v881 = vpack.c.b16 %v695, %v692
    %v882 = vpack.c.b16 %v699, %v696
    %v883 = vpack.c.b16 %v700, %v697
    %v884 = vpack.c.b16 %v701, %v698
    %v885 = vpack.c.b16 %v705, %v702
    %v886 = vpack.c.b16 %v706, %v703
    %v887 = vpack.c.b16 %v707, %v704
    %v888 = vpack.c.b16 %v711, %v708
    %v889 = vpack.c.b16 %v712, %v709
    %v890 = vpack.c.b16 %v713, %v710
    %v891 = vpack.c.b16 %v717, %v714
    %v892 = vpack.c.b16 %v718, %v715
    %v893 = vpack.c.b16 %v719, %v716
    %v894 = vpack.c.b16 %v723, %v720
    %v895 = vpack.c.b16 %v724, %v721
    %v896 = vpack.c.b16 %v725, %v722
    %v897 = vpack.c.b16 %v729, %v726
    %v898 = vpack.c.b16 %v730, %v727
    %v899 = vpack.c.b16 %v731, %v728
    %v900 = vpack.c.b16 %v735, %v732
    %v901 = vpack.c.b16 %v736, %v733
    %v902 = vpack.c.b16 %v737, %v734
    %v903 = vpack.c.b16 %v741, %v738
    %v904 = vpack.c.b16 %v742, %v739
    %v905 = vpack.c.b16 %v743, %v740
    %v906 = vpack.c.b16 %v747, %v744
    %v907 = vpack.c.b16 %v748, %v745
    %v908 = vpack.c.b16 %v749, %v746
    %v909 = vpack.c.b16 %v753, %v750
    %v910 = vpack.c.b16 %v754, %v751
    %v911 = vpack.c.b16 %v755, %v752
    %v912 = vpack.c.b16 %v759, %v756
    %v913 = vpack.c.b16 %v760, %v757
    %v914 = vpack.c.b16 %v761, %v758
    %v915 = vpack.c.b16 %v765, %v762
    %v916 = vpack.c.b16 %v766, %v763
    %v917 = vpack.c.b16 %v767, %v764
    %v918 = vpack.c.b16 %v771, %v768
    %v919 = vpack.c.b16 %v772, %v769
    %v920 = vpack.c.b16 %v773, %v770
    %v921 = vpack.c.b16 %v777, %v774
    %v922 = vpack.c.b16 %v778, %v775
    %v923 = vpack.c.b16 %v779, %v776
    %v924 = vpack.c.b16 %v783, %v780
    %v925 = vpack.c.b16 %v784, %v781
    %v926 = vpack.c.b16 %v785, %v782
    %v927 = vpack.c.b16 %v789, %v786
    %v928 = vpack.c.b16 %v790, %v787
    %v929 = vpack.c.b16 %v791, %v788
    %v930 = vpack.c.b16 %v795, %v792
    %v931 = vpack.c.b16 %v796, %v793
    %v932 = vpack.c.b16 %v797, %v794
    %v933 = vpack.c.b16 %v801, %v798
    %v934 = vpack.c.b16 %v802, %v799
    %v935 = vpack.c.b16 %v803, %v800
    %v936 = vpack.c.b16 %v807, %v804
    %v937 = vpack.c.b16 %v808, %v805
    %v938 = vpack.c.b16 %v809, %v806
    %v939 = vpack.c.b16 %v813, %v810
    %v940 = vpack.c.b16 %v814, %v811
    %v941 = vpack.c.b16 %v815, %v812
    %v942 = vpack.c.b16 %v819, %v816
    %v943 = vpack.c.b16 %v820, %v817
    %v944 = vpack.c.b16 %v821, %v818
    %v945 = vpack.c.b16 %v825, %v822
    %v946 = vpack.c.b16 %v826, %v823
    %v947 = vpack.c.b16 %v827, %v824
    %v948 = vpack.c.b16 %v831, %v828
    %v949 = vpack.c.b16 %v832, %v829
    %v950 = vpack.c.b16 %v833, %v830
    %v951 = vpack.c.b16 %v837, %v834
    %v952 = vpack.c.b16 %v838, %v835
    %v953 = vpack.c.b16 %v839, %v836
    %v954 = vpack.c.b16 %v843, %v840
    %v955 = vpack.c.b16 %v844, %v841
    %v956 = vpack.c.b16 %v845, %v842
    %v957 = vpack.c.b16 %v849, %v846
    %v958 = vpack.c.b16 %v850, %v847
    %v959 = vpack.c.b16 %v851, %v848
    %v960 = vpack.c.b16 %v855, %v852
    %v961 = vpack.c.b16 %v856, %v853
    %v962 = vpack.c.b16 %v857, %v854
    %v963 = vpack.c.b16 %v861, %v858
    %v964 = vpack.c.b16 %v862, %v859
    %v965 = vpack.c.b16 %v863, %v860
    %v966 = vpack.c.b16 %v867, %v864
    %v967 = vpack.c.b16 %v868, %v865
    %v968 = vpack.c.b16 %v869, %v866
    %v969 = vpack.c.b16 %v873, %v870
    %v970 = vpack.c.b16 %v874, %v871
    %v971 = vpack.c.b16 %v875, %v872
    %1068 = vmatprep.subr.bf16.mxu0 %v898
    %1069 = vmatpush1.bf16.msra.mxu0 %v897
    %1070 = vmatprep.subr.bf16.mxu0 %v895
    %1071 = vmatpush1.bf16.msra.mxu0 %v894
    %1072 = vmatprep.subr.bf16.mxu0 %v892
    %1073 = vmatpush1.bf16.msra.mxu0 %v891
    %1074 = vmatprep.subr.bf16.mxu0 %v889
    %1075 = vmatpush1.bf16.msra.mxu0 %v888
    %1076 = vmatprep.subr.bf16.mxu0 %v886
    %1077 = vmatpush1.bf16.msra.mxu0 %v885
    %1078 = vmatprep.subr.bf16.mxu0 %v883
    %1079 = vmatpush1.bf16.msra.mxu0 %v882
    %1080 = vmatprep.subr.bf16.mxu0 %v880
    %1081 = vmatpush1.bf16.msra.mxu0 %v879
    %1082 = vmatprep.subr.bf16.mxu0 %v877
    %1083 = vmatpush1.bf16.msra.mxu0 %v876
    %1084 = vmatprep.subr.bf16.mxu0 %v922
    %1085 = vmatpush2.bf16.msra.mxu0 %v921
    %1086 = vmatprep.subr.bf16.mxu0 %v919
    %1087 = vmatpush2.bf16.msra.mxu0 %v918
    %1088 = vmatprep.subr.bf16.mxu0 %v916
    %1089 = vmatpush2.bf16.msra.mxu0 %v915
    %1090 = vmatprep.subr.bf16.mxu0 %v913
    %1091 = vmatpush2.bf16.msra.mxu0 %v912
    %1092 = vmatprep.subr.bf16.mxu0 %v910
    %1093 = vmatpush2.bf16.msra.mxu0 %v909
    %1094 = vmatprep.subr.bf16.mxu0 %v907
    %1095 = vmatpush2.bf16.msra.mxu0 %v906
    %1096 = vmatprep.subr.bf16.mxu0 %v904
    %1097 = vmatpush2.bf16.msra.mxu0 %v903
    %1098 = vmatprep.subr.bf16.mxu0 %v901
    %1099 = vmatpush2.bf16.msra.mxu0 %v900
    %1100 = vmatprep.mubr.bf16.mxu0 %v425
    %1101 = vmatmul.mubr.bf16.gmra.mxu0 %v424
    %v1102 = vpop.f32.mrf.mxu0
    %v1103 = vadd.f32 0.0, %v1102
    %v1104 = vpop.f32.mrf.mxu0
    %v1105 = vadd.f32 0.0, %v1104
    %v1106 = vpop.f32.mrf.mxu0
    %v1107 = vpop.f32.mrf.mxu0
    %1108 = vdwg.mxu0
    %1109 = vmatprep.subr.bf16.mxu0 %v946
    %1110 = vmatpush1.bf16.msra.mxu0 %v945
    %1111 = vmatprep.subr.bf16.mxu0 %v943
    %1112 = vmatpush1.bf16.msra.mxu0 %v942
    %1113 = vmatprep.subr.bf16.mxu0 %v940
    %1114 = vmatpush1.bf16.msra.mxu0 %v939
    %1115 = vmatprep.subr.bf16.mxu0 %v937
    %1116 = vmatpush1.bf16.msra.mxu0 %v936
    %1117 = vmatprep.subr.bf16.mxu0 %v934
    %1118 = vmatpush1.bf16.msra.mxu0 %v933
    %1119 = vmatprep.subr.bf16.mxu0 %v931
    %1120 = vmatpush1.bf16.msra.mxu0 %v930
    %1121 = vmatprep.subr.bf16.mxu0 %v928
    %1122 = vmatpush1.bf16.msra.mxu0 %v927
    %1123 = vmatprep.subr.bf16.mxu0 %v925
    %1124 = vmatpush1.bf16.msra.mxu0 %v924
    %1125 = vmatprep.subr.bf16.mxu0 %v970
    %1126 = vmatpush2.bf16.msra.mxu0 %v969
    %1127 = vmatprep.subr.bf16.mxu0 %v967
    %1128 = vmatpush2.bf16.msra.mxu0 %v966
    %1129 = vmatprep.subr.bf16.mxu0 %v964
    %1130 = vmatpush2.bf16.msra.mxu0 %v963
    %1131 = vmatprep.subr.bf16.mxu0 %v961
    %1132 = vmatpush2.bf16.msra.mxu0 %v960
    %1133 = vmatprep.subr.bf16.mxu0 %v958
    %1134 = vmatpush2.bf16.msra.mxu0 %v957
    %1135 = vmatprep.subr.bf16.mxu0 %v955
    %1136 = vmatpush2.bf16.msra.mxu0 %v954
    %1137 = vmatprep.subr.bf16.mxu0 %v952
    %1138 = vmatpush2.bf16.msra.mxu0 %v951
    %1139 = vmatprep.subr.bf16.mxu0 %v949
    %1140 = vmatpush2.bf16.msra.mxu0 %v948
    %1141 = vmatprep.mubr.bf16.mxu0 %v427
    %1142 = vmatmul.mubr.bf16.gmra.mxu0 %v426
    %v1143 = vpop.f32.mrf.mxu0
    %v1144 = vadd.f32 %v1103, %v1143
    %v1145 = vpop.f32.mrf.mxu0
    %v1146 = vadd.f32 %v1105, %v1145
    %v1147 = vpop.f32.mrf.mxu0
    %v1148 = vpop.f32.mrf.mxu0
    %1149 = vdwg.mxu0
    %1150 = vmatprep.subr.bf16.mxu0 0
    %1151 = vmatpush1.bf16.msra.mxu0 %v899
    %1152 = vmatprep.subr.bf16.mxu0 0
    %1153 = vmatpush1.bf16.msra.mxu0 %v896
    %1154 = vmatprep.subr.bf16.mxu0 0
    %1155 = vmatpush1.bf16.msra.mxu0 %v893
    %1156 = vmatprep.subr.bf16.mxu0 0
    %1157 = vmatpush1.bf16.msra.mxu0 %v890
    %1158 = vmatprep.subr.bf16.mxu0 0
    %1159 = vmatpush1.bf16.msra.mxu0 %v887
    %1160 = vmatprep.subr.bf16.mxu0 0
    %1161 = vmatpush1.bf16.msra.mxu0 %v884
    %1162 = vmatprep.subr.bf16.mxu0 0
    %1163 = vmatpush1.bf16.msra.mxu0 %v881
    %1164 = vmatprep.subr.bf16.mxu0 0
    %1165 = vmatpush1.bf16.msra.mxu0 %v878
    %1166 = vmatprep.subr.bf16.mxu0 0
    %1167 = vmatpush2.bf16.msra.mxu0 %v923
    %1168 = vmatprep.subr.bf16.mxu0 0
    %1169 = vmatpush2.bf16.msra.mxu0 %v920
    %1170 = vmatprep.subr.bf16.mxu0 0
    %1171 = vmatpush2.bf16.msra.mxu0 %v917
    %1172 = vmatprep.subr.bf16.mxu0 0
    %1173 = vmatpush2.bf16.msra.mxu0 %v914
    %1174 = vmatprep.subr.bf16.mxu0 0
    %1175 = vmatpush2.bf16.msra.mxu0 %v911
    %1176 = vmatprep.subr.bf16.mxu0 0
    %1177 = vmatpush2.bf16.msra.mxu0 %v908
    %1178 = vmatprep.subr.bf16.mxu0 0
    %1179 = vmatpush2.bf16.msra.mxu0 %v905
    %1180 = vmatprep.subr.bf16.mxu0 0
    %1181 = vmatpush2.bf16.msra.mxu0 %v902
    %1182 = vmatprep.mubr.bf16.mxu0 %v425
    %1183 = vmatmul.mubr.bf16.gmra.mxu0 %v424
    %v1184 = vpop.f32.mrf.mxu0
    %v1185 = vadd.f32 0.0, %v1184
    %v1186 = vpop.f32.mrf.mxu0
    %v1187 = vpop.f32.mrf.mxu0
    %v1188 = vpop.f32.mrf.mxu0
    %1189 = vdwg.mxu0
    %1190 = vmatprep.subr.bf16.mxu0 0
    %1191 = vmatpush1.bf16.msra.mxu0 %v947
    %1192 = vmatprep.subr.bf16.mxu0 0
    %1193 = vmatpush1.bf16.msra.mxu0 %v944
    %1194 = vmatprep.subr.bf16.mxu0 0
    %1195 = vmatpush1.bf16.msra.mxu0 %v941
    %1196 = vmatprep.subr.bf16.mxu0 0
    %1197 = vmatpush1.bf16.msra.mxu0 %v938
    %1198 = vmatprep.subr.bf16.mxu0 0
    %1199 = vmatpush1.bf16.msra.mxu0 %v935
    %1200 = vmatprep.subr.bf16.mxu0 0
    %1201 = vmatpush1.bf16.msra.mxu0 %v932
    %1202 = vmatprep.subr.bf16.mxu0 0
    %1203 = vmatpush1.bf16.msra.mxu0 %v929
    %1204 = vmatprep.subr.bf16.mxu0 0
    %1205 = vmatpush1.bf16.msra.mxu0 %v926
    %1206 = vmatprep.subr.bf16.mxu0 0
    %1207 = vmatpush2.bf16.msra.mxu0 %v971
    %1208 = vmatprep.subr.bf16.mxu0 0
    %1209 = vmatpush2.bf16.msra.mxu0 %v968
    %1210 = vmatprep.subr.bf16.mxu0 0
    %1211 = vmatpush2.bf16.msra.mxu0 %v965
    %1212 = vmatprep.subr.bf16.mxu0 0
    %1213 = vmatpush2.bf16.msra.mxu0 %v962
    %1214 = vmatprep.subr.bf16.mxu0 0
    %1215 = vmatpush2.bf16.msra.mxu0 %v959
    %1216 = vmatprep.subr.bf16.mxu0 0
    %1217 = vmatpush2.bf16.msra.mxu0 %v956
    %1218 = vmatprep.subr.bf16.mxu0 0
    %1219 = vmatpush2.bf16.msra.mxu0 %v953
    %1220 = vmatprep.subr.bf16.mxu0 0
    %1221 = vmatpush2.bf16.msra.mxu0 %v950
    %1222 = vmatprep.mubr.bf16.mxu0 %v427
    %1223 = vmatmul.mubr.bf16.gmra.mxu0 %v426
    %v1224 = vpop.f32.mrf.mxu0
    %v1225 = vadd.f32 %v1185, %v1224
    %v1226 = vpop.f32.mrf.mxu0
    %v1227 = vpop.f32.mrf.mxu0
    %v1228 = vpop.f32.mrf.mxu0
    %1229 = vdwg.mxu0
    %v1234 = vrot.slane %v270, 2
    %v1235 = vrot.slane %v272, 2
    %v1236 = vrot.slane %v313, 2
    %v1237 = vrot.slane %v315, 2
    %v1242 = vsel %vm419, %v1234, %v356
    %v1243 = vsel %vm419, %v1235, %v358
    %v1244 = vsel %vm419, %v1236, %v399
    %v1245 = vsel %vm419, %v1237, %v401
    %v1246 = vpack.c.bf16 %v1242, %v1242
    %v1247 = vpack.c.bf16 %v1243, %v1243
    %v1248 = vpack.c.bf16 %v1244, %v1244
    %v1249 = vpack.c.bf16 %v1245, %v1245
    %s1250 = scalar_lea.vmem [#allocation7], 768
    %v1251 = vld [vmem:[%s1250] sm:$0xff]
    %v1252 = vld [vmem:[%s1250 + $0x8] sm:$0xf]
    %v1253 = vld [vmem:[%s1250 + $0xc] sm:$0xff]
    %v1254 = vld [vmem:[%s1250 + $0x14] sm:$0xf]
    %v1255 = vld [vmem:[%s1250 + $0x18] sm:$0xff]
    %v1256 = vld [vmem:[%s1250 + $0x20] sm:$0xf]
    %v1257 = vld [vmem:[%s1250 + $0x24] sm:$0xff]
    %v1258 = vld [vmem:[%s1250 + $0x2c] sm:$0xf]
    %v1259 = vld [vmem:[%s1250 + $0x30] sm:$0xff]
    %v1260 = vld [vmem:[%s1250 + $0x38] sm:$0xf]
    %v1261 = vld [vmem:[%s1250 + $0x3c] sm:$0xff]
    %v1262 = vld [vmem:[%s1250 + $0x44] sm:$0xf]
    %v1263 = vld [vmem:[%s1250 + $0x48] sm:$0xff]
    %v1264 = vld [vmem:[%s1250 + $0x50] sm:$0xf]
    %v1265 = vld [vmem:[%s1250 + $0x54] sm:$0xff]
    %v1266 = vld [vmem:[%s1250 + $0x5c] sm:$0xf]
    %v1267 = vld [vmem:[%s1250 + $0x60] sm:$0xff]
    %v1268 = vld [vmem:[%s1250 + $0x68] sm:$0xf]
    %v1269 = vld [vmem:[%s1250 + $0x6c] sm:$0xff]
    %v1270 = vld [vmem:[%s1250 + $0x74] sm:$0xf]
    %v1271 = vld [vmem:[%s1250 + $0x78] sm:$0xff]
    %v1272 = vld [vmem:[%s1250 + $0x80] sm:$0xf]
    %v1273 = vld [vmem:[%s1250 + $0x84] sm:$0xff]
    %v1274 = vld [vmem:[%s1250 + $0x8c] sm:$0xf]
    %v1275 = vld [vmem:[%s1250 + $0x90] sm:$0xff]
    %v1276 = vld [vmem:[%s1250 + $0x98] sm:$0xf]
    %v1277 = vld [vmem:[%s1250 + $0x9c] sm:$0xff]
    %v1278 = vld [vmem:[%s1250 + $0xa4] sm:$0xf]
    %v1279 = vld [vmem:[%s1250 + $0xa8] sm:$0xff]
    %v1280 = vld [vmem:[%s1250 + $0xb0] sm:$0xf]
    %v1281 = vld [vmem:[%s1250 + $0xb4] sm:$0xff]
    %v1282 = vld [vmem:[%s1250 + $0xbc] sm:$0xf]
    %v1283 = vld [vmem:[%s1250 + $0xc0] sm:$0xff]
    %v1284 = vld [vmem:[%s1250 + $0xc8] sm:$0xf]
    %v1285 = vld [vmem:[%s1250 + $0xcc] sm:$0xff]
    %v1286 = vld [vmem:[%s1250 + $0xd4] sm:$0xf]
    %v1287 = vld [vmem:[%s1250 + $0xd8] sm:$0xff]
    %v1288 = vld [vmem:[%s1250 + $0xe0] sm:$0xf]
    %v1289 = vld [vmem:[%s1250 + $0xe4] sm:$0xff]
    %v1290 = vld [vmem:[%s1250 + $0xec] sm:$0xf]
    %v1291 = vld [vmem:[%s1250 + $0xf0] sm:$0xff]
    %v1292 = vld [vmem:[%s1250 + $0xf8] sm:$0xf]
    %v1293 = vld [vmem:[%s1250 + $0xfc] sm:$0xff]
    %v1294 = vld [vmem:[%s1250 + $0x104] sm:$0xf]
    %v1295 = vld [vmem:[%s1250 + $0x108] sm:$0xff]
    %v1296 = vld [vmem:[%s1250 + $0x110] sm:$0xf]
    %v1297 = vld [vmem:[%s1250 + $0x114] sm:$0xff]
    %v1298 = vld [vmem:[%s1250 + $0x11c] sm:$0xf]
    %v1299 = vld [vmem:[%s1250 + $0x120] sm:$0xff]
    %v1300 = vld [vmem:[%s1250 + $0x128] sm:$0xf]
    %v1301 = vld [vmem:[%s1250 + $0x12c] sm:$0xff]
    %v1302 = vld [vmem:[%s1250 + $0x134] sm:$0xf]
    %v1303 = vld [vmem:[%s1250 + $0x138] sm:$0xff]
    %v1304 = vld [vmem:[%s1250 + $0x140] sm:$0xf]
    %v1305 = vld [vmem:[%s1250 + $0x144] sm:$0xff]
    %v1306 = vld [vmem:[%s1250 + $0x14c] sm:$0xf]
    %v1307 = vld [vmem:[%s1250 + $0x150] sm:$0xff]
    %v1308 = vld [vmem:[%s1250 + $0x158] sm:$0xf]
    %v1309 = vld [vmem:[%s1250 + $0x15c] sm:$0xff]
    %v1310 = vld [vmem:[%s1250 + $0x164] sm:$0xf]
    %v1311 = vld [vmem:[%s1250 + $0x168] sm:$0xff]
    %v1312 = vld [vmem:[%s1250 + $0x170] sm:$0xf]
    %v1313 = vld [vmem:[%s1250 + $0x174] sm:$0xff]
    %v1314 = vld [vmem:[%s1250 + $0x17c] sm:$0xf]
    %v1315 = vld [vmem:[%s1250 + $0x180] sm:$0xff]
    %v1316 = vld [vmem:[%s1250 + $0x188] sm:$0xf]
    %v1317 = vld [vmem:[%s1250 + $0x18c] sm:$0xff]
    %v1318 = vld [vmem:[%s1250 + $0x194] sm:$0xf]
    %v1319 = vld [vmem:[%s1250 + $0x198] sm:$0xff]
    %v1320 = vld [vmem:[%s1250 + $0x1a0] sm:$0xf]
    %v1321 = vld [vmem:[%s1250 + $0x1a4] sm:$0xff]
    %v1322 = vld [vmem:[%s1250 + $0x1ac] sm:$0xf]
    %v1323 = vld [vmem:[%s1250 + $0x1b0] sm:$0xff]
    %v1324 = vld [vmem:[%s1250 + $0x1b8] sm:$0xf]
    %v1325 = vld [vmem:[%s1250 + $0x1bc] sm:$0xff]
    %v1326 = vld [vmem:[%s1250 + $0x1c4] sm:$0xf]
    %v1327 = vld [vmem:[%s1250 + $0x1c8] sm:$0xff]
    %v1328 = vld [vmem:[%s1250 + $0x1d0] sm:$0xf]
    %v1329 = vld [vmem:[%s1250 + $0x1d4] sm:$0xff]
    %v1330 = vld [vmem:[%s1250 + $0x1dc] sm:$0xf]
    %v1331 = vld [vmem:[%s1250 + $0x1e0] sm:$0xff]
    %v1332 = vld [vmem:[%s1250 + $0x1e8] sm:$0xf]
    %v1333 = vld [vmem:[%s1250 + $0x1ec] sm:$0xff]
    %v1334 = vld [vmem:[%s1250 + $0x1f4] sm:$0xf]
    %v1335 = vld [vmem:[%s1250 + $0x1f8] sm:$0xff]
    %v1336 = vld [vmem:[%s1250 + $0x200] sm:$0xf]
    %v1337 = vld [vmem:[%s1250 + $0x204] sm:$0xff]
    %v1338 = vld [vmem:[%s1250 + $0x20c] sm:$0xf]
    %v1339 = vld [vmem:[%s1250 + $0x210] sm:$0xff]
    %v1340 = vld [vmem:[%s1250 + $0x218] sm:$0xf]
    %v1341 = vld [vmem:[%s1250 + $0x21c] sm:$0xff]
    %v1342 = vld [vmem:[%s1250 + $0x224] sm:$0xf]
    %v1343 = vld [vmem:[%s1250 + $0x228] sm:$0xff]
    %v1344 = vld [vmem:[%s1250 + $0x230] sm:$0xf]
    %v1345 = vld [vmem:[%s1250 + $0x234] sm:$0xff]
    %v1346 = vld [vmem:[%s1250 + $0x23c] sm:$0xf]
    %v1347 = vld [vmem:[%s1250 + $0x240] sm:$0xff]
    %v1348 = vld [vmem:[%s1250 + $0x248] sm:$0xf]
    %v1349 = vld [vmem:[%s1250 + $0x24c] sm:$0xff]
    %v1350 = vld [vmem:[%s1250 + $0x254] sm:$0xf]
    %v1351 = vld [vmem:[%s1250 + $0x258] sm:$0xff]
    %v1352 = vld [vmem:[%s1250 + $0x260] sm:$0xf]
    %v1353 = vld [vmem:[%s1250 + $0x264] sm:$0xff]
    %v1354 = vld [vmem:[%s1250 + $0x26c] sm:$0xf]
    %v1355 = vld [vmem:[%s1250 + $0x270] sm:$0xff]
    %v1356 = vld [vmem:[%s1250 + $0x278] sm:$0xf]
    %v1357 = vld [vmem:[%s1250 + $0x27c] sm:$0xff]
    %v1358 = vld [vmem:[%s1250 + $0x284] sm:$0xf]
    %v1359 = vld [vmem:[%s1250 + $0x288] sm:$0xff]
    %v1360 = vld [vmem:[%s1250 + $0x290] sm:$0xf]
    %v1361 = vld [vmem:[%s1250 + $0x294] sm:$0xff]
    %v1362 = vld [vmem:[%s1250 + $0x29c] sm:$0xf]
    %v1363 = vld [vmem:[%s1250 + $0x2a0] sm:$0xff]
    %v1364 = vld [vmem:[%s1250 + $0x2a8] sm:$0xf]
    %v1365 = vld [vmem:[%s1250 + $0x2ac] sm:$0xff]
    %v1366 = vld [vmem:[%s1250 + $0x2b4] sm:$0xf]
    %v1367 = vld [vmem:[%s1250 + $0x2b8] sm:$0xff]
    %v1368 = vld [vmem:[%s1250 + $0x2c0] sm:$0xf]
    %v1369 = vld [vmem:[%s1250 + $0x2c4] sm:$0xff]
    %v1370 = vld [vmem:[%s1250 + $0x2cc] sm:$0xf]
    %v1371 = vld [vmem:[%s1250 + $0x2d0] sm:$0xff]
    %v1372 = vld [vmem:[%s1250 + $0x2d8] sm:$0xf]
    %v1373 = vld [vmem:[%s1250 + $0x2dc] sm:$0xff]
    %v1374 = vld [vmem:[%s1250 + $0x2e4] sm:$0xf]
    %v1375 = vld [vmem:[%s1250 + $0x2e8] sm:$0xff]
    %v1376 = vld [vmem:[%s1250 + $0x2f0] sm:$0xf]
    %v1377 = vld [vmem:[%s1250 + $0x2f4] sm:$0xff]
    %v1378 = vld [vmem:[%s1250 + $0x2fc] sm:$0xf]
    %v1507 = vunpack.c.l.b16 %v1251
    %v1508 = vunpack.c.h.b16 %v1251
    %v1509 = vunpack.c.l.b16 %v1252
    %v1510 = vunpack.c.l.b16 %v1253
    %v1511 = vunpack.c.h.b16 %v1253
    %v1512 = vunpack.c.l.b16 %v1254
    %v1513 = vunpack.c.l.b16 %v1255
    %v1514 = vunpack.c.h.b16 %v1255
    %v1515 = vunpack.c.l.b16 %v1256
    %v1516 = vunpack.c.l.b16 %v1257
    %v1517 = vunpack.c.h.b16 %v1257
    %v1518 = vunpack.c.l.b16 %v1258
    %v1519 = vunpack.c.l.b16 %v1259
    %v1520 = vunpack.c.h.b16 %v1259
    %v1521 = vunpack.c.l.b16 %v1260
    %v1522 = vunpack.c.l.b16 %v1261
    %v1523 = vunpack.c.h.b16 %v1261
    %v1524 = vunpack.c.l.b16 %v1262
    %v1525 = vunpack.c.l.b16 %v1263
    %v1526 = vunpack.c.h.b16 %v1263
    %v1527 = vunpack.c.l.b16 %v1264
    %v1528 = vunpack.c.l.b16 %v1265
    %v1529 = vunpack.c.h.b16 %v1265
    %v1530 = vunpack.c.l.b16 %v1266
    %v1531 = vunpack.c.l.b16 %v1267
    %v1532 = vunpack.c.h.b16 %v1267
    %v1533 = vunpack.c.l.b16 %v1268
    %v1534 = vunpack.c.l.b16 %v1269
    %v1535 = vunpack.c.h.b16 %v1269
    %v1536 = vunpack.c.l.b16 %v1270
    %v1537 = vunpack.c.l.b16 %v1271
    %v1538 = vunpack.c.h.b16 %v1271
    %v1539 = vunpack.c.l.b16 %v1272
    %v1540 = vunpack.c.l.b16 %v1273
    %v1541 = vunpack.c.h.b16 %v1273
    %v1542 = vunpack.c.l.b16 %v1274
    %v1543 = vunpack.c.l.b16 %v1275
    %v1544 = vunpack.c.h.b16 %v1275
    %v1545 = vunpack.c.l.b16 %v1276
    %v1546 = vunpack.c.l.b16 %v1277
    %v1547 = vunpack.c.h.b16 %v1277
    %v1548 = vunpack.c.l.b16 %v1278
    %v1549 = vunpack.c.l.b16 %v1279
    %v1550 = vunpack.c.h.b16 %v1279
    %v1551 = vunpack.c.l.b16 %v1280
    %v1552 = vunpack.c.l.b16 %v1281
    %v1553 = vunpack.c.h.b16 %v1281
    %v1554 = vunpack.c.l.b16 %v1282
    %v1555 = vunpack.c.l.b16 %v1283
    %v1556 = vunpack.c.h.b16 %v1283
    %v1557 = vunpack.c.l.b16 %v1284
    %v1558 = vunpack.c.l.b16 %v1285
    %v1559 = vunpack.c.h.b16 %v1285
    %v1560 = vunpack.c.l.b16 %v1286
    %v1561 = vunpack.c.l.b16 %v1287
    %v1562 = vunpack.c.h.b16 %v1287
    %v1563 = vunpack.c.l.b16 %v1288
    %v1564 = vunpack.c.l.b16 %v1289
    %v1565 = vunpack.c.h.b16 %v1289
    %v1566 = vunpack.c.l.b16 %v1290
    %v1567 = vunpack.c.l.b16 %v1291
    %v1568 = vunpack.c.h.b16 %v1291
    %v1569 = vunpack.c.l.b16 %v1292
    %v1570 = vunpack.c.l.b16 %v1293
    %v1571 = vunpack.c.h.b16 %v1293
    %v1572 = vunpack.c.l.b16 %v1294
    %v1573 = vunpack.c.l.b16 %v1295
    %v1574 = vunpack.c.h.b16 %v1295
    %v1575 = vunpack.c.l.b16 %v1296
    %v1576 = vunpack.c.l.b16 %v1297
    %v1577 = vunpack.c.h.b16 %v1297
    %v1578 = vunpack.c.l.b16 %v1298
    %v1579 = vunpack.c.l.b16 %v1299
    %v1580 = vunpack.c.h.b16 %v1299
    %v1581 = vunpack.c.l.b16 %v1300
    %v1582 = vunpack.c.l.b16 %v1301
    %v1583 = vunpack.c.h.b16 %v1301
    %v1584 = vunpack.c.l.b16 %v1302
    %v1585 = vunpack.c.l.b16 %v1303
    %v1586 = vunpack.c.h.b16 %v1303
    %v1587 = vunpack.c.l.b16 %v1304
    %v1588 = vunpack.c.l.b16 %v1305
    %v1589 = vunpack.c.h.b16 %v1305
    %v1590 = vunpack.c.l.b16 %v1306
    %v1591 = vunpack.c.l.b16 %v1307
    %v1592 = vunpack.c.h.b16 %v1307
    %v1593 = vunpack.c.l.b16 %v1308
    %v1594 = vunpack.c.l.b16 %v1309
    %v1595 = vunpack.c.h.b16 %v1309
    %v1596 = vunpack.c.l.b16 %v1310
    %v1597 = vunpack.c.l.b16 %v1311
    %v1598 = vunpack.c.h.b16 %v1311
    %v1599 = vunpack.c.l.b16 %v1312
    %v1600 = vunpack.c.l.b16 %v1313
    %v1601 = vunpack.c.h.b16 %v1313
    %v1602 = vunpack.c.l.b16 %v1314
    %v1603 = vunpack.c.l.b16 %v1315
    %v1604 = vunpack.c.h.b16 %v1315
    %v1605 = vunpack.c.l.b16 %v1316
    %v1606 = vunpack.c.l.b16 %v1317
    %v1607 = vunpack.c.h.b16 %v1317
    %v1608 = vunpack.c.l.b16 %v1318
    %v1609 = vunpack.c.l.b16 %v1319
    %v1610 = vunpack.c.h.b16 %v1319
    %v1611 = vunpack.c.l.b16 %v1320
    %v1612 = vunpack.c.l.b16 %v1321
    %v1613 = vunpack.c.h.b16 %v1321
    %v1614 = vunpack.c.l.b16 %v1322
    %v1615 = vunpack.c.l.b16 %v1323
    %v1616 = vunpack.c.h.b16 %v1323
    %v1617 = vunpack.c.l.b16 %v1324
    %v1618 = vunpack.c.l.b16 %v1325
    %v1619 = vunpack.c.h.b16 %v1325
    %v1620 = vunpack.c.l.b16 %v1326
    %v1621 = vunpack.c.l.b16 %v1327
    %v1622 = vunpack.c.h.b16 %v1327
    %v1623 = vunpack.c.l.b16 %v1328
    %v1624 = vunpack.c.l.b16 %v1329
    %v1625 = vunpack.c.h.b16 %v1329
    %v1626 = vunpack.c.l.b16 %v1330
    %v1627 = vunpack.c.l.b16 %v1331
    %v1628 = vunpack.c.h.b16 %v1331
    %v1629 = vunpack.c.l.b16 %v1332
    %v1630 = vunpack.c.l.b16 %v1333
    %v1631 = vunpack.c.h.b16 %v1333
    %v1632 = vunpack.c.l.b16 %v1334
    %v1633 = vunpack.c.l.b16 %v1335
    %v1634 = vunpack.c.h.b16 %v1335
    %v1635 = vunpack.c.l.b16 %v1336
    %v1636 = vunpack.c.l.b16 %v1337
    %v1637 = vunpack.c.h.b16 %v1337
    %v1638 = vunpack.c.l.b16 %v1338
    %v1639 = vunpack.c.l.b16 %v1339
    %v1640 = vunpack.c.h.b16 %v1339
    %v1641 = vunpack.c.l.b16 %v1340
    %v1642 = vunpack.c.l.b16 %v1341
    %v1643 = vunpack.c.h.b16 %v1341
    %v1644 = vunpack.c.l.b16 %v1342
    %v1645 = vunpack.c.l.b16 %v1343
    %v1646 = vunpack.c.h.b16 %v1343
    %v1647 = vunpack.c.l.b16 %v1344
    %v1648 = vunpack.c.l.b16 %v1345
    %v1649 = vunpack.c.h.b16 %v1345
    %v1650 = vunpack.c.l.b16 %v1346
    %v1651 = vunpack.c.l.b16 %v1347
    %v1652 = vunpack.c.h.b16 %v1347
    %v1653 = vunpack.c.l.b16 %v1348
    %v1654 = vunpack.c.l.b16 %v1349
    %v1655 = vunpack.c.h.b16 %v1349
    %v1656 = vunpack.c.l.b16 %v1350
    %v1657 = vunpack.c.l.b16 %v1351
    %v1658 = vunpack.c.h.b16 %v1351
    %v1659 = vunpack.c.l.b16 %v1352
    %v1660 = vunpack.c.l.b16 %v1353
    %v1661 = vunpack.c.h.b16 %v1353
    %v1662 = vunpack.c.l.b16 %v1354
    %v1663 = vunpack.c.l.b16 %v1355
    %v1664 = vunpack.c.h.b16 %v1355
    %v1665 = vunpack.c.l.b16 %v1356
    %v1666 = vunpack.c.l.b16 %v1357
    %v1667 = vunpack.c.h.b16 %v1357
    %v1668 = vunpack.c.l.b16 %v1358
    %v1669 = vunpack.c.l.b16 %v1359
    %v1670 = vunpack.c.h.b16 %v1359
    %v1671 = vunpack.c.l.b16 %v1360
    %v1672 = vunpack.c.l.b16 %v1361
    %v1673 = vunpack.c.h.b16 %v1361
    %v1674 = vunpack.c.l.b16 %v1362
    %v1675 = vunpack.c.l.b16 %v1363
    %v1676 = vunpack.c.h.b16 %v1363
    %v1677 = vunpack.c.l.b16 %v1364
    %v1678 = vunpack.c.l.b16 %v1365
    %v1679 = vunpack.c.h.b16 %v1365
    %v1680 = vunpack.c.l.b16 %v1366
    %v1681 = vunpack.c.l.b16 %v1367
    %v1682 = vunpack.c.h.b16 %v1367
    %v1683 = vunpack.c.l.b16 %v1368
    %v1684 = vunpack.c.l.b16 %v1369
    %v1685 = vunpack.c.h.b16 %v1369
    %v1686 = vunpack.c.l.b16 %v1370
    %v1687 = vunpack.c.l.b16 %v1371
    %v1688 = vunpack.c.h.b16 %v1371
    %v1689 = vunpack.c.l.b16 %v1372
    %v1690 = vunpack.c.l.b16 %v1373
    %v1691 = vunpack.c.h.b16 %v1373
    %v1692 = vunpack.c.l.b16 %v1374
    %v1693 = vunpack.c.l.b16 %v1375
    %v1694 = vunpack.c.h.b16 %v1375
    %v1695 = vunpack.c.l.b16 %v1376
    %v1696 = vunpack.c.l.b16 %v1377
    %v1697 = vunpack.c.h.b16 %v1377
    %v1698 = vunpack.c.l.b16 %v1378
    %v1699 = vpack.c.b16 %v1510, %v1507
    %v1700 = vpack.c.b16 %v1511, %v1508
    %v1701 = vpack.c.b16 %v1512, %v1509
    %v1702 = vpack.c.b16 %v1516, %v1513
    %v1703 = vpack.c.b16 %v1517, %v1514
    %v1704 = vpack.c.b16 %v1518, %v1515
    %v1705 = vpack.c.b16 %v1522, %v1519
    %v1706 = vpack.c.b16 %v1523, %v1520
    %v1707 = vpack.c.b16 %v1524, %v1521
    %v1708 = vpack.c.b16 %v1528, %v1525
    %v1709 = vpack.c.b16 %v1529, %v1526
    %v1710 = vpack.c.b16 %v1530, %v1527
    %v1711 = vpack.c.b16 %v1534, %v1531
    %v1712 = vpack.c.b16 %v1535, %v1532
    %v1713 = vpack.c.b16 %v1536, %v1533
    %v1714 = vpack.c.b16 %v1540, %v1537
    %v1715 = vpack.c.b16 %v1541, %v1538
    %v1716 = vpack.c.b16 %v1542, %v1539
    %v1717 = vpack.c.b16 %v1546, %v1543
    %v1718 = vpack.c.b16 %v1547, %v1544
    %v1719 = vpack.c.b16 %v1548, %v1545
    %v1720 = vpack.c.b16 %v1552, %v1549
    %v1721 = vpack.c.b16 %v1553, %v1550
    %v1722 = vpack.c.b16 %v1554, %v1551
    %v1723 = vpack.c.b16 %v1558, %v1555
    %v1724 = vpack.c.b16 %v1559, %v1556
    %v1725 = vpack.c.b16 %v1560, %v1557
    %v1726 = vpack.c.b16 %v1564, %v1561
    %v1727 = vpack.c.b16 %v1565, %v1562
    %v1728 = vpack.c.b16 %v1566, %v1563
    %v1729 = vpack.c.b16 %v1570, %v1567
    %v1730 = vpack.c.b16 %v1571, %v1568
    %v1731 = vpack.c.b16 %v1572, %v1569
    %v1732 = vpack.c.b16 %v1576, %v1573
    %v1733 = vpack.c.b16 %v1577, %v1574
    %v1734 = vpack.c.b16 %v1578, %v1575
    %v1735 = vpack.c.b16 %v1582, %v1579
    %v1736 = vpack.c.b16 %v1583, %v1580
    %v1737 = vpack.c.b16 %v1584, %v1581
    %v1738 = vpack.c.b16 %v1588, %v1585
    %v1739 = vpack.c.b16 %v1589, %v1586
    %v1740 = vpack.c.b16 %v1590, %v1587
    %v1741 = vpack.c.b16 %v1594, %v1591
    %v1742 = vpack.c.b16 %v1595, %v1592
    %v1743 = vpack.c.b16 %v1596, %v1593
    %v1744 = vpack.c.b16 %v1600, %v1597
    %v1745 = vpack.c.b16 %v1601, %v1598
    %v1746 = vpack.c.b16 %v1602, %v1599
    %v1747 = vpack.c.b16 %v1606, %v1603
    %v1748 = vpack.c.b16 %v1607, %v1604
    %v1749 = vpack.c.b16 %v1608, %v1605
    %v1750 = vpack.c.b16 %v1612, %v1609
    %v1751 = vpack.c.b16 %v1613, %v1610
    %v1752 = vpack.c.b16 %v1614, %v1611
    %v1753 = vpack.c.b16 %v1618, %v1615
    %v1754 = vpack.c.b16 %v1619, %v1616
    %v1755 = vpack.c.b16 %v1620, %v1617
    %v1756 = vpack.c.b16 %v1624, %v1621
    %v1757 = vpack.c.b16 %v1625, %v1622
    %v1758 = vpack.c.b16 %v1626, %v1623
    %v1759 = vpack.c.b16 %v1630, %v1627
    %v1760 = vpack.c.b16 %v1631, %v1628
    %v1761 = vpack.c.b16 %v1632, %v1629
    %v1762 = vpack.c.b16 %v1636, %v1633
    %v1763 = vpack.c.b16 %v1637, %v1634
    %v1764 = vpack.c.b16 %v1638, %v1635
    %v1765 = vpack.c.b16 %v1642, %v1639
    %v1766 = vpack.c.b16 %v1643, %v1640
    %v1767 = vpack.c.b16 %v1644, %v1641
    %v1768 = vpack.c.b16 %v1648, %v1645
    %v1769 = vpack.c.b16 %v1649, %v1646
    %v1770 = vpack.c.b16 %v1650, %v1647
    %v1771 = vpack.c.b16 %v1654, %v1651
    %v1772 = vpack.c.b16 %v1655, %v1652
    %v1773 = vpack.c.b16 %v1656, %v1653
    %v1774 = vpack.c.b16 %v1660, %v1657
    %v1775 = vpack.c.b16 %v1661, %v1658
    %v1776 = vpack.c.b16 %v1662, %v1659
    %v1777 = vpack.c.b16 %v1666, %v1663
    %v1778 = vpack.c.b16 %v1667, %v1664
    %v1779 = vpack.c.b16 %v1668, %v1665
    %v1780 = vpack.c.b16 %v1672, %v1669
    %v1781 = vpack.c.b16 %v1673, %v1670
    %v1782 = vpack.c.b16 %v1674, %v1671
    %v1783 = vpack.c.b16 %v1678, %v1675
    %v1784 = vpack.c.b16 %v1679, %v1676
    %v1785 = vpack.c.b16 %v1680, %v1677
    %v1786 = vpack.c.b16 %v1684, %v1681
    %v1787 = vpack.c.b16 %v1685, %v1682
    %v1788 = vpack.c.b16 %v1686, %v1683
    %v1789 = vpack.c.b16 %v1690, %v1687
    %v1790 = vpack.c.b16 %v1691, %v1688
    %v1791 = vpack.c.b16 %v1692, %v1689
    %v1792 = vpack.c.b16 %v1696, %v1693
    %v1793 = vpack.c.b16 %v1697, %v1694
    %v1794 = vpack.c.b16 %v1698, %v1695
    %1891 = vmatprep.subr.bf16.mxu0 %v1721
    %1892 = vmatpush1.bf16.msra.mxu0 %v1720
    %1893 = vmatprep.subr.bf16.mxu0 %v1718
    %1894 = vmatpush1.bf16.msra.mxu0 %v1717
    %1895 = vmatprep.subr.bf16.mxu0 %v1715
    %1896 = vmatpush1.bf16.msra.mxu0 %v1714
    %1897 = vmatprep.subr.bf16.mxu0 %v1712
    %1898 = vmatpush1.bf16.msra.mxu0 %v1711
    %1899 = vmatprep.subr.bf16.mxu0 %v1709
    %1900 = vmatpush1.bf16.msra.mxu0 %v1708
    %1901 = vmatprep.subr.bf16.mxu0 %v1706
    %1902 = vmatpush1.bf16.msra.mxu0 %v1705
    %1903 = vmatprep.subr.bf16.mxu0 %v1703
    %1904 = vmatpush1.bf16.msra.mxu0 %v1702
    %1905 = vmatprep.subr.bf16.mxu0 %v1700
    %1906 = vmatpush1.bf16.msra.mxu0 %v1699
    %1907 = vmatprep.subr.bf16.mxu0 %v1745
    %1908 = vmatpush2.bf16.msra.mxu0 %v1744
    %1909 = vmatprep.subr.bf16.mxu0 %v1742
    %1910 = vmatpush2.bf16.msra.mxu0 %v1741
    %1911 = vmatprep.subr.bf16.mxu0 %v1739
    %1912 = vmatpush2.bf16.msra.mxu0 %v1738
    %1913 = vmatprep.subr.bf16.mxu0 %v1736
    %1914 = vmatpush2.bf16.msra.mxu0 %v1735
    %1915 = vmatprep.subr.bf16.mxu0 %v1733
    %1916 = vmatpush2.bf16.msra.mxu0 %v1732
    %1917 = vmatprep.subr.bf16.mxu0 %v1730
    %1918 = vmatpush2.bf16.msra.mxu0 %v1729
    %1919 = vmatprep.subr.bf16.mxu0 %v1727
    %1920 = vmatpush2.bf16.msra.mxu0 %v1726
    %1921 = vmatprep.subr.bf16.mxu0 %v1724
    %1922 = vmatpush2.bf16.msra.mxu0 %v1723
    %1923 = vmatprep.mubr.bf16.mxu0 %v1247
    %1924 = vmatmul.mubr.bf16.gmra.mxu0 %v1246
    %v1925 = vpop.f32.mrf.mxu0
    %v1926 = vadd.f32 0.0, %v1925
    %v1927 = vpop.f32.mrf.mxu0
    %v1928 = vadd.f32 0.0, %v1927
    %v1929 = vpop.f32.mrf.mxu0
    %v1930 = vpop.f32.mrf.mxu0
    %1931 = vdwg.mxu0
    %1932 = vmatprep.subr.bf16.mxu0 %v1769
    %1933 = vmatpush1.bf16.msra.mxu0 %v1768
    %1934 = vmatprep.subr.bf16.mxu0 %v1766
    %1935 = vmatpush1.bf16.msra.mxu0 %v1765
    %1936 = vmatprep.subr.bf16.mxu0 %v1763
    %1937 = vmatpush1.bf16.msra.mxu0 %v1762
    %1938 = vmatprep.subr.bf16.mxu0 %v1760
    %1939 = vmatpush1.bf16.msra.mxu0 %v1759
    %1940 = vmatprep.subr.bf16.mxu0 %v1757
    %1941 = vmatpush1.bf16.msra.mxu0 %v1756
    %1942 = vmatprep.subr.bf16.mxu0 %v1754
    %1943 = vmatpush1.bf16.msra.mxu0 %v1753
    %1944 = vmatprep.subr.bf16.mxu0 %v1751
    %1945 = vmatpush1.bf16.msra.mxu0 %v1750
    %1946 = vmatprep.subr.bf16.mxu0 %v1748
    %1947 = vmatpush1.bf16.msra.mxu0 %v1747
    %1948 = vmatprep.subr.bf16.mxu0 %v1793
    %1949 = vmatpush2.bf16.msra.mxu0 %v1792
    %1950 = vmatprep.subr.bf16.mxu0 %v1790
    %1951 = vmatpush2.bf16.msra.mxu0 %v1789
    %1952 = vmatprep.subr.bf16.mxu0 %v1787
    %1953 = vmatpush2.bf16.msra.mxu0 %v1786
    %1954 = vmatprep.subr.bf16.mxu0 %v1784
    %1955 = vmatpush2.bf16.msra.mxu0 %v1783
    %1956 = vmatprep.subr.bf16.mxu0 %v1781
    %1957 = vmatpush2.bf16.msra.mxu0 %v1780
    %1958 = vmatprep.subr.bf16.mxu0 %v1778
    %1959 = vmatpush2.bf16.msra.mxu0 %v1777
    %1960 = vmatprep.subr.bf16.mxu0 %v1775
    %1961 = vmatpush2.bf16.msra.mxu0 %v1774
    %1962 = vmatprep.subr.bf16.mxu0 %v1772
    %1963 = vmatpush2.bf16.msra.mxu0 %v1771
    %1964 = vmatprep.mubr.bf16.mxu0 %v1249
    %1965 = vmatmul.mubr.bf16.gmra.mxu0 %v1248
    %v1966 = vpop.f32.mrf.mxu0
    %v1967 = vadd.f32 %v1926, %v1966
    %v1968 = vpop.f32.mrf.mxu0
    %v1969 = vadd.f32 %v1928, %v1968
    %v1970 = vpop.f32.mrf.mxu0
    %v1971 = vpop.f32.mrf.mxu0
    %1972 = vdwg.mxu0
    %1973 = vmatprep.subr.bf16.mxu0 0
    %1974 = vmatpush1.bf16.msra.mxu0 %v1722
    %1975 = vmatprep.subr.bf16.mxu0 0
    %1976 = vmatpush1.bf16.msra.mxu0 %v1719
    %1977 = vmatprep.subr.bf16.mxu0 0
    %1978 = vmatpush1.bf16.msra.mxu0 %v1716
    %1979 = vmatprep.subr.bf16.mxu0 0
    %1980 = vmatpush1.bf16.msra.mxu0 %v1713
    %1981 = vmatprep.subr.bf16.mxu0 0
    %1982 = vmatpush1.bf16.msra.mxu0 %v1710
    %1983 = vmatprep.subr.bf16.mxu0 0
    %1984 = vmatpush1.bf16.msra.mxu0 %v1707
    %1985 = vmatprep.subr.bf16.mxu0 0
    %1986 = vmatpush1.bf16.msra.mxu0 %v1704
    %1987 = vmatprep.subr.bf16.mxu0 0
    %1988 = vmatpush1.bf16.msra.mxu0 %v1701
    %1989 = vmatprep.subr.bf16.mxu0 0
    %1990 = vmatpush2.bf16.msra.mxu0 %v1746
    %1991 = vmatprep.subr.bf16.mxu0 0
    %1992 = vmatpush2.bf16.msra.mxu0 %v1743
    %1993 = vmatprep.subr.bf16.mxu0 0
    %1994 = vmatpush2.bf16.msra.mxu0 %v1740
    %1995 = vmatprep.subr.bf16.mxu0 0
    %1996 = vmatpush2.bf16.msra.mxu0 %v1737
    %1997 = vmatprep.subr.bf16.mxu0 0
    %1998 = vmatpush2.bf16.msra.mxu0 %v1734
    %1999 = vmatprep.subr.bf16.mxu0 0
    %2000 = vmatpush2.bf16.msra.mxu0 %v1731
    %2001 = vmatprep.subr.bf16.mxu0 0
    %2002 = vmatpush2.bf16.msra.mxu0 %v1728
    %2003 = vmatprep.subr.bf16.mxu0 0
    %2004 = vmatpush2.bf16.msra.mxu0 %v1725
    %2005 = vmatprep.mubr.bf16.mxu0 %v1247
    %2006 = vmatmul.mubr.bf16.gmra.mxu0 %v1246
    %v2007 = vpop.f32.mrf.mxu0
    %v2008 = vadd.f32 0.0, %v2007
    %v2009 = vpop.f32.mrf.mxu0
    %v2010 = vpop.f32.mrf.mxu0
    %v2011 = vpop.f32.mrf.mxu0
    %2012 = vdwg.mxu0
    %2013 = vmatprep.subr.bf16.mxu0 0
    %2014 = vmatpush1.bf16.msra.mxu0 %v1770
    %2015 = vmatprep.subr.bf16.mxu0 0
    %2016 = vmatpush1.bf16.msra.mxu0 %v1767
    %2017 = vmatprep.subr.bf16.mxu0 0
    %2018 = vmatpush1.bf16.msra.mxu0 %v1764
    %2019 = vmatprep.subr.bf16.mxu0 0
    %2020 = vmatpush1.bf16.msra.mxu0 %v1761
    %2021 = vmatprep.subr.bf16.mxu0 0
    %2022 = vmatpush1.bf16.msra.mxu0 %v1758
    %2023 = vmatprep.subr.bf16.mxu0 0
    %2024 = vmatpush1.bf16.msra.mxu0 %v1755
    %2025 = vmatprep.subr.bf16.mxu0 0
    %2026 = vmatpush1.bf16.msra.mxu0 %v1752
    %2027 = vmatprep.subr.bf16.mxu0 0
    %2028 = vmatpush1.bf16.msra.mxu0 %v1749
    %2029 = vmatprep.subr.bf16.mxu0 0
    %2030 = vmatpush2.bf16.msra.mxu0 %v1794
    %2031 = vmatprep.subr.bf16.mxu0 0
    %2032 = vmatpush2.bf16.msra.mxu0 %v1791
    %2033 = vmatprep.subr.bf16.mxu0 0
    %2034 = vmatpush2.bf16.msra.mxu0 %v1788
    %2035 = vmatprep.subr.bf16.mxu0 0
    %2036 = vmatpush2.bf16.msra.mxu0 %v1785
    %2037 = vmatprep.subr.bf16.mxu0 0
    %2038 = vmatpush2.bf16.msra.mxu0 %v1782
    %2039 = vmatprep.subr.bf16.mxu0 0
    %2040 = vmatpush2.bf16.msra.mxu0 %v1779
    %2041 = vmatprep.subr.bf16.mxu0 0
    %2042 = vmatpush2.bf16.msra.mxu0 %v1776
    %2043 = vmatprep.subr.bf16.mxu0 0
    %2044 = vmatpush2.bf16.msra.mxu0 %v1773
    %2045 = vmatprep.mubr.bf16.mxu0 %v1249
    %2046 = vmatmul.mubr.bf16.gmra.mxu0 %v1248
    %v2047 = vpop.f32.mrf.mxu0
    %v2048 = vadd.f32 %v2008, %v2047
    %v2049 = vpop.f32.mrf.mxu0
    %v2050 = vpop.f32.mrf.mxu0
    %v2051 = vpop.f32.mrf.mxu0
    %2052 = vdwg.mxu0
    %v2053 = vrot.slane %v270, 4
    %v2054 = vrot.slane %v272, 4
    %v2055 = vrot.slane %v313, 4
    %v2056 = vrot.slane %v315, 4
    %v2061 = vrot.slane %v356, 2
    %v2062 = vrot.slane %v358, 2
    %v2063 = vrot.slane %v399, 2
    %v2064 = vrot.slane %v401, 2
    %v2069 = vsel %vm419, %v2053, %v2061
    %v2070 = vsel %vm419, %v2054, %v2062
    %v2071 = vsel %vm419, %v2055, %v2063
    %v2072 = vsel %vm419, %v2056, %v2064
    %v2073 = vpack.c.bf16 %v2069, %v2069
    %v2074 = vpack.c.bf16 %v2070, %v2070
    %v2075 = vpack.c.bf16 %v2071, %v2071
    %v2076 = vpack.c.bf16 %v2072, %v2072
    %s2077 = scalar_lea.vmem [#allocation7], 1536
    %v2078 = vld [vmem:[%s2077] sm:$0xff]
    %v2079 = vld [vmem:[%s2077 + $0x8] sm:$0xf]
    %v2080 = vld [vmem:[%s2077 + $0xc] sm:$0xff]
    %v2081 = vld [vmem:[%s2077 + $0x14] sm:$0xf]
    %v2082 = vld [vmem:[%s2077 + $0x18] sm:$0xff]
    %v2083 = vld [vmem:[%s2077 + $0x20] sm:$0xf]
    %v2084 = vld [vmem:[%s2077 + $0x24] sm:$0xff]
    %v2085 = vld [vmem:[%s2077 + $0x2c] sm:$0xf]
    %v2086 = vld [vmem:[%s2077 + $0x30] sm:$0xff]
    %v2087 = vld [vmem:[%s2077 + $0x38] sm:$0xf]
    %v2088 = vld [vmem:[%s2077 + $0x3c] sm:$0xff]
    %v2089 = vld [vmem:[%s2077 + $0x44] sm:$0xf]
    %v2090 = vld [vmem:[%s2077 + $0x48] sm:$0xff]
    %v2091 = vld [vmem:[%s2077 + $0x50] sm:$0xf]
    %v2092 = vld [vmem:[%s2077 + $0x54] sm:$0xff]
    %v2093 = vld [vmem:[%s2077 + $0x5c] sm:$0xf]
    %v2094 = vld [vmem:[%s2077 + $0x60] sm:$0xff]
    %v2095 = vld [vmem:[%s2077 + $0x68] sm:$0xf]
    %v2096 = vld [vmem:[%s2077 + $0x6c] sm:$0xff]
    %v2097 = vld [vmem:[%s2077 + $0x74] sm:$0xf]
    %v2098 = vld [vmem:[%s2077 + $0x78] sm:$0xff]
    %v2099 = vld [vmem:[%s2077 + $0x80] sm:$0xf]
    %v2100 = vld [vmem:[%s2077 + $0x84] sm:$0xff]
    %v2101 = vld [vmem:[%s2077 + $0x8c] sm:$0xf]
    %v2102 = vld [vmem:[%s2077 + $0x90] sm:$0xff]
    %v2103 = vld [vmem:[%s2077 + $0x98] sm:$0xf]
    %v2104 = vld [vmem:[%s2077 + $0x9c] sm:$0xff]
    %v2105 = vld [vmem:[%s2077 + $0xa4] sm:$0xf]
    %v2106 = vld [vmem:[%s2077 + $0xa8] sm:$0xff]
    %v2107 = vld [vmem:[%s2077 + $0xb0] sm:$0xf]
    %v2108 = vld [vmem:[%s2077 + $0xb4] sm:$0xff]
    %v2109 = vld [vmem:[%s2077 + $0xbc] sm:$0xf]
    %v2110 = vld [vmem:[%s2077 + $0xc0] sm:$0xff]
    %v2111 = vld [vmem:[%s2077 + $0xc8] sm:$0xf]
    %v2112 = vld [vmem:[%s2077 + $0xcc] sm:$0xff]
    %v2113 = vld [vmem:[%s2077 + $0xd4] sm:$0xf]
    %v2114 = vld [vmem:[%s2077 + $0xd8] sm:$0xff]
    %v2115 = vld [vmem:[%s2077 + $0xe0] sm:$0xf]
    %v2116 = vld [vmem:[%s2077 + $0xe4] sm:$0xff]
    %v2117 = vld [vmem:[%s2077 + $0xec] sm:$0xf]
    %v2118 = vld [vmem:[%s2077 + $0xf0] sm:$0xff]
    %v2119 = vld [vmem:[%s2077 + $0xf8] sm:$0xf]
    %v2120 = vld [vmem:[%s2077 + $0xfc] sm:$0xff]
    %v2121 = vld [vmem:[%s2077 + $0x104] sm:$0xf]
    %v2122 = vld [vmem:[%s2077 + $0x108] sm:$0xff]
    %v2123 = vld [vmem:[%s2077 + $0x110] sm:$0xf]
    %v2124 = vld [vmem:[%s2077 + $0x114] sm:$0xff]
    %v2125 = vld [vmem:[%s2077 + $0x11c] sm:$0xf]
    %v2126 = vld [vmem:[%s2077 + $0x120] sm:$0xff]
    %v2127 = vld [vmem:[%s2077 + $0x128] sm:$0xf]
    %v2128 = vld [vmem:[%s2077 + $0x12c] sm:$0xff]
    %v2129 = vld [vmem:[%s2077 + $0x134] sm:$0xf]
    %v2130 = vld [vmem:[%s2077 + $0x138] sm:$0xff]
    %v2131 = vld [vmem:[%s2077 + $0x140] sm:$0xf]
    %v2132 = vld [vmem:[%s2077 + $0x144] sm:$0xff]
    %v2133 = vld [vmem:[%s2077 + $0x14c] sm:$0xf]
    %v2134 = vld [vmem:[%s2077 + $0x150] sm:$0xff]
    %v2135 = vld [vmem:[%s2077 + $0x158] sm:$0xf]
    %v2136 = vld [vmem:[%s2077 + $0x15c] sm:$0xff]
    %v2137 = vld [vmem:[%s2077 + $0x164] sm:$0xf]
    %v2138 = vld [vmem:[%s2077 + $0x168] sm:$0xff]
    %v2139 = vld [vmem:[%s2077 + $0x170] sm:$0xf]
    %v2140 = vld [vmem:[%s2077 + $0x174] sm:$0xff]
    %v2141 = vld [vmem:[%s2077 + $0x17c] sm:$0xf]
    %v2142 = vld [vmem:[%s2077 + $0x180] sm:$0xff]
    %v2143 = vld [vmem:[%s2077 + $0x188] sm:$0xf]
    %v2144 = vld [vmem:[%s2077 + $0x18c] sm:$0xff]
    %v2145 = vld [vmem:[%s2077 + $0x194] sm:$0xf]
    %v2146 = vld [vmem:[%s2077 + $0x198] sm:$0xff]
    %v2147 = vld [vmem:[%s2077 + $0x1a0] sm:$0xf]
    %v2148 = vld [vmem:[%s2077 + $0x1a4] sm:$0xff]
    %v2149 = vld [vmem:[%s2077 + $0x1ac] sm:$0xf]
    %v2150 = vld [vmem:[%s2077 + $0x1b0] sm:$0xff]
    %v2151 = vld [vmem:[%s2077 + $0x1b8] sm:$0xf]
    %v2152 = vld [vmem:[%s2077 + $0x1bc] sm:$0xff]
    %v2153 = vld [vmem:[%s2077 + $0x1c4] sm:$0xf]
    %v2154 = vld [vmem:[%s2077 + $0x1c8] sm:$0xff]
    %v2155 = vld [vmem:[%s2077 + $0x1d0] sm:$0xf]
    %v2156 = vld [vmem:[%s2077 + $0x1d4] sm:$0xff]
    %v2157 = vld [vmem:[%s2077 + $0x1dc] sm:$0xf]
    %v2158 = vld [vmem:[%s2077 + $0x1e0] sm:$0xff]
    %v2159 = vld [vmem:[%s2077 + $0x1e8] sm:$0xf]
    %v2160 = vld [vmem:[%s2077 + $0x1ec] sm:$0xff]
    %v2161 = vld [vmem:[%s2077 + $0x1f4] sm:$0xf]
    %v2162 = vld [vmem:[%s2077 + $0x1f8] sm:$0xff]
    %v2163 = vld [vmem:[%s2077 + $0x200] sm:$0xf]
    %v2164 = vld [vmem:[%s2077 + $0x204] sm:$0xff]
    %v2165 = vld [vmem:[%s2077 + $0x20c] sm:$0xf]
    %v2166 = vld [vmem:[%s2077 + $0x210] sm:$0xff]
    %v2167 = vld [vmem:[%s2077 + $0x218] sm:$0xf]
    %v2168 = vld [vmem:[%s2077 + $0x21c] sm:$0xff]
    %v2169 = vld [vmem:[%s2077 + $0x224] sm:$0xf]
    %v2170 = vld [vmem:[%s2077 + $0x228] sm:$0xff]
    %v2171 = vld [vmem:[%s2077 + $0x230] sm:$0xf]
    %v2172 = vld [vmem:[%s2077 + $0x234] sm:$0xff]
    %v2173 = vld [vmem:[%s2077 + $0x23c] sm:$0xf]
    %v2174 = vld [vmem:[%s2077 + $0x240] sm:$0xff]
    %v2175 = vld [vmem:[%s2077 + $0x248] sm:$0xf]
    %v2176 = vld [vmem:[%s2077 + $0x24c] sm:$0xff]
    %v2177 = vld [vmem:[%s2077 + $0x254] sm:$0xf]
    %v2178 = vld [vmem:[%s2077 + $0x258] sm:$0xff]
    %v2179 = vld [vmem:[%s2077 + $0x260] sm:$0xf]
    %v2180 = vld [vmem:[%s2077 + $0x264] sm:$0xff]
    %v2181 = vld [vmem:[%s2077 + $0x26c] sm:$0xf]
    %v2182 = vld [vmem:[%s2077 + $0x270] sm:$0xff]
    %v2183 = vld [vmem:[%s2077 + $0x278] sm:$0xf]
    %v2184 = vld [vmem:[%s2077 + $0x27c] sm:$0xff]
    %v2185 = vld [vmem:[%s2077 + $0x284] sm:$0xf]
    %v2186 = vld [vmem:[%s2077 + $0x288] sm:$0xff]
    %v2187 = vld [vmem:[%s2077 + $0x290] sm:$0xf]
    %v2188 = vld [vmem:[%s2077 + $0x294] sm:$0xff]
    %v2189 = vld [vmem:[%s2077 + $0x29c] sm:$0xf]
    %v2190 = vld [vmem:[%s2077 + $0x2a0] sm:$0xff]
    %v2191 = vld [vmem:[%s2077 + $0x2a8] sm:$0xf]
    %v2192 = vld [vmem:[%s2077 + $0x2ac] sm:$0xff]
    %v2193 = vld [vmem:[%s2077 + $0x2b4] sm:$0xf]
    %v2194 = vld [vmem:[%s2077 + $0x2b8] sm:$0xff]
    %v2195 = vld [vmem:[%s2077 + $0x2c0] sm:$0xf]
    %v2196 = vld [vmem:[%s2077 + $0x2c4] sm:$0xff]
    %v2197 = vld [vmem:[%s2077 + $0x2cc] sm:$0xf]
    %v2198 = vld [vmem:[%s2077 + $0x2d0] sm:$0xff]
    %v2199 = vld [vmem:[%s2077 + $0x2d8] sm:$0xf]
    %v2200 = vld [vmem:[%s2077 + $0x2dc] sm:$0xff]
    %v2201 = vld [vmem:[%s2077 + $0x2e4] sm:$0xf]
    %v2202 = vld [vmem:[%s2077 + $0x2e8] sm:$0xff]
    %v2203 = vld [vmem:[%s2077 + $0x2f0] sm:$0xf]
    %v2204 = vld [vmem:[%s2077 + $0x2f4] sm:$0xff]
    %v2205 = vld [vmem:[%s2077 + $0x2fc] sm:$0xf]
    %v2334 = vunpack.c.l.b16 %v2078
    %v2335 = vunpack.c.h.b16 %v2078
    %v2336 = vunpack.c.l.b16 %v2079
    %v2337 = vunpack.c.l.b16 %v2080
    %v2338 = vunpack.c.h.b16 %v2080
    %v2339 = vunpack.c.l.b16 %v2081
    %v2340 = vunpack.c.l.b16 %v2082
    %v2341 = vunpack.c.h.b16 %v2082
    %v2342 = vunpack.c.l.b16 %v2083
    %v2343 = vunpack.c.l.b16 %v2084
    %v2344 = vunpack.c.h.b16 %v2084
    %v2345 = vunpack.c.l.b16 %v2085
    %v2346 = vunpack.c.l.b16 %v2086
    %v2347 = vunpack.c.h.b16 %v2086
    %v2348 = vunpack.c.l.b16 %v2087
    %v2349 = vunpack.c.l.b16 %v2088
    %v2350 = vunpack.c.h.b16 %v2088
    %v2351 = vunpack.c.l.b16 %v2089
    %v2352 = vunpack.c.l.b16 %v2090
    %v2353 = vunpack.c.h.b16 %v2090
    %v2354 = vunpack.c.l.b16 %v2091
    %v2355 = vunpack.c.l.b16 %v2092
    %v2356 = vunpack.c.h.b16 %v2092
    %v2357 = vunpack.c.l.b16 %v2093
    %v2358 = vunpack.c.l.b16 %v2094
    %v2359 = vunpack.c.h.b16 %v2094
    %v2360 = vunpack.c.l.b16 %v2095
    %v2361 = vunpack.c.l.b16 %v2096
    %v2362 = vunpack.c.h.b16 %v2096
    %v2363 = vunpack.c.l.b16 %v2097
    %v2364 = vunpack.c.l.b16 %v2098
    %v2365 = vunpack.c.h.b16 %v2098
    %v2366 = vunpack.c.l.b16 %v2099
    %v2367 = vunpack.c.l.b16 %v2100
    %v2368 = vunpack.c.h.b16 %v2100
    %v2369 = vunpack.c.l.b16 %v2101
    %v2370 = vunpack.c.l.b16 %v2102
    %v2371 = vunpack.c.h.b16 %v2102
    %v2372 = vunpack.c.l.b16 %v2103
    %v2373 = vunpack.c.l.b16 %v2104
    %v2374 = vunpack.c.h.b16 %v2104
    %v2375 = vunpack.c.l.b16 %v2105
    %v2376 = vunpack.c.l.b16 %v2106
    %v2377 = vunpack.c.h.b16 %v2106
    %v2378 = vunpack.c.l.b16 %v2107
    %v2379 = vunpack.c.l.b16 %v2108
    %v2380 = vunpack.c.h.b16 %v2108
    %v2381 = vunpack.c.l.b16 %v2109
    %v2382 = vunpack.c.l.b16 %v2110
    %v2383 = vunpack.c.h.b16 %v2110
    %v2384 = vunpack.c.l.b16 %v2111
    %v2385 = vunpack.c.l.b16 %v2112
    %v2386 = vunpack.c.h.b16 %v2112
    %v2387 = vunpack.c.l.b16 %v2113
    %v2388 = vunpack.c.l.b16 %v2114
    %v2389 = vunpack.c.h.b16 %v2114
    %v2390 = vunpack.c.l.b16 %v2115
    %v2391 = vunpack.c.l.b16 %v2116
    %v2392 = vunpack.c.h.b16 %v2116
    %v2393 = vunpack.c.l.b16 %v2117
    %v2394 = vunpack.c.l.b16 %v2118
    %v2395 = vunpack.c.h.b16 %v2118
    %v2396 = vunpack.c.l.b16 %v2119
    %v2397 = vunpack.c.l.b16 %v2120
    %v2398 = vunpack.c.h.b16 %v2120
    %v2399 = vunpack.c.l.b16 %v2121
    %v2400 = vunpack.c.l.b16 %v2122
    %v2401 = vunpack.c.h.b16 %v2122
    %v2402 = vunpack.c.l.b16 %v2123
    %v2403 = vunpack.c.l.b16 %v2124
    %v2404 = vunpack.c.h.b16 %v2124
    %v2405 = vunpack.c.l.b16 %v2125
    %v2406 = vunpack.c.l.b16 %v2126
    %v2407 = vunpack.c.h.b16 %v2126
    %v2408 = vunpack.c.l.b16 %v2127
    %v2409 = vunpack.c.l.b16 %v2128
    %v2410 = vunpack.c.h.b16 %v2128
    %v2411 = vunpack.c.l.b16 %v2129
    %v2412 = vunpack.c.l.b16 %v2130
    %v2413 = vunpack.c.h.b16 %v2130
    %v2414 = vunpack.c.l.b16 %v2131
    %v2415 = vunpack.c.l.b16 %v2132
    %v2416 = vunpack.c.h.b16 %v2132
    %v2417 = vunpack.c.l.b16 %v2133
    %v2418 = vunpack.c.l.b16 %v2134
    %v2419 = vunpack.c.h.b16 %v2134
    %v2420 = vunpack.c.l.b16 %v2135
    %v2421 = vunpack.c.l.b16 %v2136
    %v2422 = vunpack.c.h.b16 %v2136
    %v2423 = vunpack.c.l.b16 %v2137
    %v2424 = vunpack.c.l.b16 %v2138
    %v2425 = vunpack.c.h.b16 %v2138
    %v2426 = vunpack.c.l.b16 %v2139
    %v2427 = vunpack.c.l.b16 %v2140
    %v2428 = vunpack.c.h.b16 %v2140
    %v2429 = vunpack.c.l.b16 %v2141
    %v2430 = vunpack.c.l.b16 %v2142
    %v2431 = vunpack.c.h.b16 %v2142
    %v2432 = vunpack.c.l.b16 %v2143
    %v2433 = vunpack.c.l.b16 %v2144
    %v2434 = vunpack.c.h.b16 %v2144
    %v2435 = vunpack.c.l.b16 %v2145
    %v2436 = vunpack.c.l.b16 %v2146
    %v2437 = vunpack.c.h.b16 %v2146
    %v2438 = vunpack.c.l.b16 %v2147
    %v2439 = vunpack.c.l.b16 %v2148
    %v2440 = vunpack.c.h.b16 %v2148
    %v2441 = vunpack.c.l.b16 %v2149
    %v2442 = vunpack.c.l.b16 %v2150
    %v2443 = vunpack.c.h.b16 %v2150
    %v2444 = vunpack.c.l.b16 %v2151
    %v2445 = vunpack.c.l.b16 %v2152
    %v2446 = vunpack.c.h.b16 %v2152
    %v2447 = vunpack.c.l.b16 %v2153
    %v2448 = vunpack.c.l.b16 %v2154
    %v2449 = vunpack.c.h.b16 %v2154
    %v2450 = vunpack.c.l.b16 %v2155
    %v2451 = vunpack.c.l.b16 %v2156
    %v2452 = vunpack.c.h.b16 %v2156
    %v2453 = vunpack.c.l.b16 %v2157
    %v2454 = vunpack.c.l.b16 %v2158
    %v2455 = vunpack.c.h.b16 %v2158
    %v2456 = vunpack.c.l.b16 %v2159
    %v2457 = vunpack.c.l.b16 %v2160
    %v2458 = vunpack.c.h.b16 %v2160
    %v2459 = vunpack.c.l.b16 %v2161
    %v2460 = vunpack.c.l.b16 %v2162
    %v2461 = vunpack.c.h.b16 %v2162
    %v2462 = vunpack.c.l.b16 %v2163
    %v2463 = vunpack.c.l.b16 %v2164
    %v2464 = vunpack.c.h.b16 %v2164
    %v2465 = vunpack.c.l.b16 %v2165
    %v2466 = vunpack.c.l.b16 %v2166
    %v2467 = vunpack.c.h.b16 %v2166
    %v2468 = vunpack.c.l.b16 %v2167
    %v2469 = vunpack.c.l.b16 %v2168
    %v2470 = vunpack.c.h.b16 %v2168
    %v2471 = vunpack.c.l.b16 %v2169
    %v2472 = vunpack.c.l.b16 %v2170
    %v2473 = vunpack.c.h.b16 %v2170
    %v2474 = vunpack.c.l.b16 %v2171
    %v2475 = vunpack.c.l.b16 %v2172
    %v2476 = vunpack.c.h.b16 %v2172
    %v2477 = vunpack.c.l.b16 %v2173
    %v2478 = vunpack.c.l.b16 %v2174
    %v2479 = vunpack.c.h.b16 %v2174
    %v2480 = vunpack.c.l.b16 %v2175
    %v2481 = vunpack.c.l.b16 %v2176
    %v2482 = vunpack.c.h.b16 %v2176
    %v2483 = vunpack.c.l.b16 %v2177
    %v2484 = vunpack.c.l.b16 %v2178
    %v2485 = vunpack.c.h.b16 %v2178
    %v2486 = vunpack.c.l.b16 %v2179
    %v2487 = vunpack.c.l.b16 %v2180
    %v2488 = vunpack.c.h.b16 %v2180
    %v2489 = vunpack.c.l.b16 %v2181
    %v2490 = vunpack.c.l.b16 %v2182
    %v2491 = vunpack.c.h.b16 %v2182
    %v2492 = vunpack.c.l.b16 %v2183
    %v2493 = vunpack.c.l.b16 %v2184
    %v2494 = vunpack.c.h.b16 %v2184
    %v2495 = vunpack.c.l.b16 %v2185
    %v2496 = vunpack.c.l.b16 %v2186
    %v2497 = vunpack.c.h.b16 %v2186
    %v2498 = vunpack.c.l.b16 %v2187
    %v2499 = vunpack.c.l.b16 %v2188
    %v2500 = vunpack.c.h.b16 %v2188
    %v2501 = vunpack.c.l.b16 %v2189
    %v2502 = vunpack.c.l.b16 %v2190
    %v2503 = vunpack.c.h.b16 %v2190
    %v2504 = vunpack.c.l.b16 %v2191
    %v2505 = vunpack.c.l.b16 %v2192
    %v2506 = vunpack.c.h.b16 %v2192
    %v2507 = vunpack.c.l.b16 %v2193
    %v2508 = vunpack.c.l.b16 %v2194
    %v2509 = vunpack.c.h.b16 %v2194
    %v2510 = vunpack.c.l.b16 %v2195
    %v2511 = vunpack.c.l.b16 %v2196
    %v2512 = vunpack.c.h.b16 %v2196
    %v2513 = vunpack.c.l.b16 %v2197
    %v2514 = vunpack.c.l.b16 %v2198
    %v2515 = vunpack.c.h.b16 %v2198
    %v2516 = vunpack.c.l.b16 %v2199
    %v2517 = vunpack.c.l.b16 %v2200
    %v2518 = vunpack.c.h.b16 %v2200
    %v2519 = vunpack.c.l.b16 %v2201
    %v2520 = vunpack.c.l.b16 %v2202
    %v2521 = vunpack.c.h.b16 %v2202
    %v2522 = vunpack.c.l.b16 %v2203
    %v2523 = vunpack.c.l.b16 %v2204
    %v2524 = vunpack.c.h.b16 %v2204
    %v2525 = vunpack.c.l.b16 %v2205
    %v2526 = vpack.c.b16 %v2337, %v2334
    %v2527 = vpack.c.b16 %v2338, %v2335
    %v2528 = vpack.c.b16 %v2339, %v2336
    %v2529 = vpack.c.b16 %v2343, %v2340
    %v2530 = vpack.c.b16 %v2344, %v2341
    %v2531 = vpack.c.b16 %v2345, %v2342
    %v2532 = vpack.c.b16 %v2349, %v2346
    %v2533 = vpack.c.b16 %v2350, %v2347
    %v2534 = vpack.c.b16 %v2351, %v2348
    %v2535 = vpack.c.b16 %v2355, %v2352
    %v2536 = vpack.c.b16 %v2356, %v2353
    %v2537 = vpack.c.b16 %v2357, %v2354
    %v2538 = vpack.c.b16 %v2361, %v2358
    %v2539 = vpack.c.b16 %v2362, %v2359
    %v2540 = vpack.c.b16 %v2363, %v2360
    %v2541 = vpack.c.b16 %v2367, %v2364
    %v2542 = vpack.c.b16 %v2368, %v2365
    %v2543 = vpack.c.b16 %v2369, %v2366
    %v2544 = vpack.c.b16 %v2373, %v2370
    %v2545 = vpack.c.b16 %v2374, %v2371
    %v2546 = vpack.c.b16 %v2375, %v2372
    %v2547 = vpack.c.b16 %v2379, %v2376
    %v2548 = vpack.c.b16 %v2380, %v2377
    %v2549 = vpack.c.b16 %v2381, %v2378
    %v2550 = vpack.c.b16 %v2385, %v2382
    %v2551 = vpack.c.b16 %v2386, %v2383
    %v2552 = vpack.c.b16 %v2387, %v2384
    %v2553 = vpack.c.b16 %v2391, %v2388
    %v2554 = vpack.c.b16 %v2392, %v2389
    %v2555 = vpack.c.b16 %v2393, %v2390
    %v2556 = vpack.c.b16 %v2397, %v2394
    %v2557 = vpack.c.b16 %v2398, %v2395
    %v2558 = vpack.c.b16 %v2399, %v2396
    %v2559 = vpack.c.b16 %v2403, %v2400
    %v2560 = vpack.c.b16 %v2404, %v2401
    %v2561 = vpack.c.b16 %v2405, %v2402
    %v2562 = vpack.c.b16 %v2409, %v2406
    %v2563 = vpack.c.b16 %v2410, %v2407
    %v2564 = vpack.c.b16 %v2411, %v2408
    %v2565 = vpack.c.b16 %v2415, %v2412
    %v2566 = vpack.c.b16 %v2416, %v2413
    %v2567 = vpack.c.b16 %v2417, %v2414
    %v2568 = vpack.c.b16 %v2421, %v2418
    %v2569 = vpack.c.b16 %v2422, %v2419
    %v2570 = vpack.c.b16 %v2423, %v2420
    %v2571 = vpack.c.b16 %v2427, %v2424
    %v2572 = vpack.c.b16 %v2428, %v2425
    %v2573 = vpack.c.b16 %v2429, %v2426
    %v2574 = vpack.c.b16 %v2433, %v2430
    %v2575 = vpack.c.b16 %v2434, %v2431
    %v2576 = vpack.c.b16 %v2435, %v2432
    %v2577 = vpack.c.b16 %v2439, %v2436
    %v2578 = vpack.c.b16 %v2440, %v2437
    %v2579 = vpack.c.b16 %v2441, %v2438
    %v2580 = vpack.c.b16 %v2445, %v2442
    %v2581 = vpack.c.b16 %v2446, %v2443
    %v2582 = vpack.c.b16 %v2447, %v2444
    %v2583 = vpack.c.b16 %v2451, %v2448
    %v2584 = vpack.c.b16 %v2452, %v2449
    %v2585 = vpack.c.b16 %v2453, %v2450
    %v2586 = vpack.c.b16 %v2457, %v2454
    %v2587 = vpack.c.b16 %v2458, %v2455
    %v2588 = vpack.c.b16 %v2459, %v2456
    %v2589 = vpack.c.b16 %v2463, %v2460
    %v2590 = vpack.c.b16 %v2464, %v2461
    %v2591 = vpack.c.b16 %v2465, %v2462
    %v2592 = vpack.c.b16 %v2469, %v2466
    %v2593 = vpack.c.b16 %v2470, %v2467
    %v2594 = vpack.c.b16 %v2471, %v2468
    %v2595 = vpack.c.b16 %v2475, %v2472
    %v2596 = vpack.c.b16 %v2476, %v2473
    %v2597 = vpack.c.b16 %v2477, %v2474
    %v2598 = vpack.c.b16 %v2481, %v2478
    %v2599 = vpack.c.b16 %v2482, %v2479
    %v2600 = vpack.c.b16 %v2483, %v2480
    %v2601 = vpack.c.b16 %v2487, %v2484
    %v2602 = vpack.c.b16 %v2488, %v2485
    %v2603 = vpack.c.b16 %v2489, %v2486
    %v2604 = vpack.c.b16 %v2493, %v2490
    %v2605 = vpack.c.b16 %v2494, %v2491
    %v2606 = vpack.c.b16 %v2495, %v2492
    %v2607 = vpack.c.b16 %v2499, %v2496
    %v2608 = vpack.c.b16 %v2500, %v2497
    %v2609 = vpack.c.b16 %v2501, %v2498
    %v2610 = vpack.c.b16 %v2505, %v2502
    %v2611 = vpack.c.b16 %v2506, %v2503
    %v2612 = vpack.c.b16 %v2507, %v2504
    %v2613 = vpack.c.b16 %v2511, %v2508
    %v2614 = vpack.c.b16 %v2512, %v2509
    %v2615 = vpack.c.b16 %v2513, %v2510
    %v2616 = vpack.c.b16 %v2517, %v2514
    %v2617 = vpack.c.b16 %v2518, %v2515
    %v2618 = vpack.c.b16 %v2519, %v2516
    %v2619 = vpack.c.b16 %v2523, %v2520
    %v2620 = vpack.c.b16 %v2524, %v2521
    %v2621 = vpack.c.b16 %v2525, %v2522
    %2718 = vmatprep.subr.bf16.mxu0 %v2548
    %2719 = vmatpush1.bf16.msra.mxu0 %v2547
    %2720 = vmatprep.subr.bf16.mxu0 %v2545
    %2721 = vmatpush1.bf16.msra.mxu0 %v2544
    %2722 = vmatprep.subr.bf16.mxu0 %v2542
    %2723 = vmatpush1.bf16.msra.mxu0 %v2541
    %2724 = vmatprep.subr.bf16.mxu0 %v2539
    %2725 = vmatpush1.bf16.msra.mxu0 %v2538
    %2726 = vmatprep.subr.bf16.mxu0 %v2536
    %2727 = vmatpush1.bf16.msra.mxu0 %v2535
    %2728 = vmatprep.subr.bf16.mxu0 %v2533
    %2729 = vmatpush1.bf16.msra.mxu0 %v2532
    %2730 = vmatprep.subr.bf16.mxu0 %v2530
    %2731 = vmatpush1.bf16.msra.mxu0 %v2529
    %2732 = vmatprep.subr.bf16.mxu0 %v2527
    %2733 = vmatpush1.bf16.msra.mxu0 %v2526
    %2734 = vmatprep.subr.bf16.mxu0 %v2572
    %2735 = vmatpush2.bf16.msra.mxu0 %v2571
    %2736 = vmatprep.subr.bf16.mxu0 %v2569
    %2737 = vmatpush2.bf16.msra.mxu0 %v2568
    %2738 = vmatprep.subr.bf16.mxu0 %v2566
    %2739 = vmatpush2.bf16.msra.mxu0 %v2565
    %2740 = vmatprep.subr.bf16.mxu0 %v2563
    %2741 = vmatpush2.bf16.msra.mxu0 %v2562
    %2742 = vmatprep.subr.bf16.mxu0 %v2560
    %2743 = vmatpush2.bf16.msra.mxu0 %v2559
    %2744 = vmatprep.subr.bf16.mxu0 %v2557
    %2745 = vmatpush2.bf16.msra.mxu0 %v2556
    %2746 = vmatprep.subr.bf16.mxu0 %v2554
    %2747 = vmatpush2.bf16.msra.mxu0 %v2553
    %2748 = vmatprep.subr.bf16.mxu0 %v2551
    %2749 = vmatpush2.bf16.msra.mxu0 %v2550
    %2750 = vmatprep.mubr.bf16.mxu0 %v2074
    %2751 = vmatmul.mubr.bf16.gmra.mxu0 %v2073
    %v2752 = vpop.f32.mrf.mxu0
    %v2753 = vadd.f32 0.0, %v2752
    %v2754 = vpop.f32.mrf.mxu0
    %v2755 = vadd.f32 0.0, %v2754
    %v2756 = vpop.f32.mrf.mxu0
    %v2757 = vpop.f32.mrf.mxu0
    %2758 = vdwg.mxu0
    %2759 = vmatprep.subr.bf16.mxu0 %v2596
    %2760 = vmatpush1.bf16.msra.mxu0 %v2595
    %2761 = vmatprep.subr.bf16.mxu0 %v2593
    %2762 = vmatpush1.bf16.msra.mxu0 %v2592
    %2763 = vmatprep.subr.bf16.mxu0 %v2590
    %2764 = vmatpush1.bf16.msra.mxu0 %v2589
    %2765 = vmatprep.subr.bf16.mxu0 %v2587
    %2766 = vmatpush1.bf16.msra.mxu0 %v2586
    %2767 = vmatprep.subr.bf16.mxu0 %v2584
    %2768 = vmatpush1.bf16.msra.mxu0 %v2583
    %2769 = vmatprep.subr.bf16.mxu0 %v2581
    %2770 = vmatpush1.bf16.msra.mxu0 %v2580
    %2771 = vmatprep.subr.bf16.mxu0 %v2578
    %2772 = vmatpush1.bf16.msra.mxu0 %v2577
    %2773 = vmatprep.subr.bf16.mxu0 %v2575
    %2774 = vmatpush1.bf16.msra.mxu0 %v2574
    %2775 = vmatprep.subr.bf16.mxu0 %v2620
    %2776 = vmatpush2.bf16.msra.mxu0 %v2619
    %2777 = vmatprep.subr.bf16.mxu0 %v2617
    %2778 = vmatpush2.bf16.msra.mxu0 %v2616
    %2779 = vmatprep.subr.bf16.mxu0 %v2614
    %2780 = vmatpush2.bf16.msra.mxu0 %v2613
    %2781 = vmatprep.subr.bf16.mxu0 %v2611
    %2782 = vmatpush2.bf16.msra.mxu0 %v2610
    %2783 = vmatprep.subr.bf16.mxu0 %v2608
    %2784 = vmatpush2.bf16.msra.mxu0 %v2607
    %2785 = vmatprep.subr.bf16.mxu0 %v2605
    %2786 = vmatpush2.bf16.msra.mxu0 %v2604
    %2787 = vmatprep.subr.bf16.mxu0 %v2602
    %2788 = vmatpush2.bf16.msra.mxu0 %v2601
    %2789 = vmatprep.subr.bf16.mxu0 %v2599
    %2790 = vmatpush2.bf16.msra.mxu0 %v2598
    %2791 = vmatprep.mubr.bf16.mxu0 %v2076
    %2792 = vmatmul.mubr.bf16.gmra.mxu0 %v2075
    %v2793 = vpop.f32.mrf.mxu0
    %v2794 = vadd.f32 %v2753, %v2793
    %v2795 = vpop.f32.mrf.mxu0
    %v2796 = vadd.f32 %v2755, %v2795
    %v2797 = vpop.f32.mrf.mxu0
    %v2798 = vpop.f32.mrf.mxu0
    %2799 = vdwg.mxu0
    %2800 = vmatprep.subr.bf16.mxu0 0
    %2801 = vmatpush1.bf16.msra.mxu0 %v2549
    %2802 = vmatprep.subr.bf16.mxu0 0
    %2803 = vmatpush1.bf16.msra.mxu0 %v2546
    %2804 = vmatprep.subr.bf16.mxu0 0
    %2805 = vmatpush1.bf16.msra.mxu0 %v2543
    %2806 = vmatprep.subr.bf16.mxu0 0
    %2807 = vmatpush1.bf16.msra.mxu0 %v2540
    %2808 = vmatprep.subr.bf16.mxu0 0
    %2809 = vmatpush1.bf16.msra.mxu0 %v2537
    %2810 = vmatprep.subr.bf16.mxu0 0
    %2811 = vmatpush1.bf16.msra.mxu0 %v2534
    %2812 = vmatprep.subr.bf16.mxu0 0
    %2813 = vmatpush1.bf16.msra.mxu0 %v2531
    %2814 = vmatprep.subr.bf16.mxu0 0
    %2815 = vmatpush1.bf16.msra.mxu0 %v2528
    %2816 = vmatprep.subr.bf16.mxu0 0
    %2817 = vmatpush2.bf16.msra.mxu0 %v2573
    %2818 = vmatprep.subr.bf16.mxu0 0
    %2819 = vmatpush2.bf16.msra.mxu0 %v2570
    %2820 = vmatprep.subr.bf16.mxu0 0
    %2821 = vmatpush2.bf16.msra.mxu0 %v2567
    %2822 = vmatprep.subr.bf16.mxu0 0
    %2823 = vmatpush2.bf16.msra.mxu0 %v2564
    %2824 = vmatprep.subr.bf16.mxu0 0
    %2825 = vmatpush2.bf16.msra.mxu0 %v2561
    %2826 = vmatprep.subr.bf16.mxu0 0
    %2827 = vmatpush2.bf16.msra.mxu0 %v2558
    %2828 = vmatprep.subr.bf16.mxu0 0
    %2829 = vmatpush2.bf16.msra.mxu0 %v2555
    %2830 = vmatprep.subr.bf16.mxu0 0
    %2831 = vmatpush2.bf16.msra.mxu0 %v2552
    %2832 = vmatprep.mubr.bf16.mxu0 %v2074
    %2833 = vmatmul.mubr.bf16.gmra.mxu0 %v2073
    %v2834 = vpop.f32.mrf.mxu0
    %v2835 = vadd.f32 0.0, %v2834
    %v2836 = vpop.f32.mrf.mxu0
    %v2837 = vpop.f32.mrf.mxu0
    %v2838 = vpop.f32.mrf.mxu0
    %2839 = vdwg.mxu0
    %2840 = vmatprep.subr.bf16.mxu0 0
    %2841 = vmatpush1.bf16.msra.mxu0 %v2597
    %2842 = vmatprep.subr.bf16.mxu0 0
    %2843 = vmatpush1.bf16.msra.mxu0 %v2594
    %2844 = vmatprep.subr.bf16.mxu0 0
    %2845 = vmatpush1.bf16.msra.mxu0 %v2591
    %2846 = vmatprep.subr.bf16.mxu0 0
    %2847 = vmatpush1.bf16.msra.mxu0 %v2588
    %2848 = vmatprep.subr.bf16.mxu0 0
    %2849 = vmatpush1.bf16.msra.mxu0 %v2585
    %2850 = vmatprep.subr.bf16.mxu0 0
    %2851 = vmatpush1.bf16.msra.mxu0 %v2582
    %2852 = vmatprep.subr.bf16.mxu0 0
    %2853 = vmatpush1.bf16.msra.mxu0 %v2579
    %2854 = vmatprep.subr.bf16.mxu0 0
    %2855 = vmatpush1.bf16.msra.mxu0 %v2576
    %2856 = vmatprep.subr.bf16.mxu0 0
    %2857 = vmatpush2.bf16.msra.mxu0 %v2621
    %2858 = vmatprep.subr.bf16.mxu0 0
    %2859 = vmatpush2.bf16.msra.mxu0 %v2618
    %2860 = vmatprep.subr.bf16.mxu0 0
    %2861 = vmatpush2.bf16.msra.mxu0 %v2615
    %2862 = vmatprep.subr.bf16.mxu0 0
    %2863 = vmatpush2.bf16.msra.mxu0 %v2612
    %2864 = vmatprep.subr.bf16.mxu0 0
    %2865 = vmatpush2.bf16.msra.mxu0 %v2609
    %2866 = vmatprep.subr.bf16.mxu0 0
    %2867 = vmatpush2.bf16.msra.mxu0 %v2606
    %2868 = vmatprep.subr.bf16.mxu0 0
    %2869 = vmatpush2.bf16.msra.mxu0 %v2603
    %2870 = vmatprep.subr.bf16.mxu0 0
    %2871 = vmatpush2.bf16.msra.mxu0 %v2600
    %2872 = vmatprep.mubr.bf16.mxu0 %v2076
    %2873 = vmatmul.mubr.bf16.gmra.mxu0 %v2075
    %v2874 = vpop.f32.mrf.mxu0
    %v2875 = vadd.f32 %v2835, %v2874
    %v2876 = vpop.f32.mrf.mxu0
    %v2877 = vpop.f32.mrf.mxu0
    %v2878 = vpop.f32.mrf.mxu0
    %2879 = vdwg.mxu0
    %v2880 = vrot.slane %v270, 6
    %v2881 = vrot.slane %v272, 6
    %v2882 = vrot.slane %v313, 6
    %v2883 = vrot.slane %v315, 6
    %v2888 = vrot.slane %v356, 4
    %v2889 = vrot.slane %v358, 4
    %v2890 = vrot.slane %v399, 4
    %v2891 = vrot.slane %v401, 4
    %v2896 = vsel %vm419, %v2880, %v2888
    %v2897 = vsel %vm419, %v2881, %v2889
    %v2898 = vsel %vm419, %v2882, %v2890
    %v2899 = vsel %vm419, %v2883, %v2891
    %v2900 = vpack.c.bf16 %v2896, %v2896
    %v2901 = vpack.c.bf16 %v2897, %v2897
    %v2902 = vpack.c.bf16 %v2898, %v2898
    %v2903 = vpack.c.bf16 %v2899, %v2899
    %s2904 = scalar_lea.vmem [#allocation7], 2304
    %v2905 = vld [vmem:[%s2904] sm:$0xff]
    %v2906 = vld [vmem:[%s2904 + $0x8] sm:$0xf]
    %v2907 = vld [vmem:[%s2904 + $0xc] sm:$0xff]
    %v2908 = vld [vmem:[%s2904 + $0x14] sm:$0xf]
    %v2909 = vld [vmem:[%s2904 + $0x18] sm:$0xff]
    %v2910 = vld [vmem:[%s2904 + $0x20] sm:$0xf]
    %v2911 = vld [vmem:[%s2904 + $0x24] sm:$0xff]
    %v2912 = vld [vmem:[%s2904 + $0x2c] sm:$0xf]
    %v2913 = vld [vmem:[%s2904 + $0x30] sm:$0xff]
    %v2914 = vld [vmem:[%s2904 + $0x38] sm:$0xf]
    %v2915 = vld [vmem:[%s2904 + $0x3c] sm:$0xff]
    %v2916 = vld [vmem:[%s2904 + $0x44] sm:$0xf]
    %v2917 = vld [vmem:[%s2904 + $0x48] sm:$0xff]
    %v2918 = vld [vmem:[%s2904 + $0x50] sm:$0xf]
    %v2919 = vld [vmem:[%s2904 + $0x54] sm:$0xff]
    %v2920 = vld [vmem:[%s2904 + $0x5c] sm:$0xf]
    %v2921 = vld [vmem:[%s2904 + $0x60] sm:$0xff]
    %v2922 = vld [vmem:[%s2904 + $0x68] sm:$0xf]
    %v2923 = vld [vmem:[%s2904 + $0x6c] sm:$0xff]
    %v2924 = vld [vmem:[%s2904 + $0x74] sm:$0xf]
    %v2925 = vld [vmem:[%s2904 + $0x78] sm:$0xff]
    %v2926 = vld [vmem:[%s2904 + $0x80] sm:$0xf]
    %v2927 = vld [vmem:[%s2904 + $0x84] sm:$0xff]
    %v2928 = vld [vmem:[%s2904 + $0x8c] sm:$0xf]
    %v2929 = vld [vmem:[%s2904 + $0x90] sm:$0xff]
    %v2930 = vld [vmem:[%s2904 + $0x98] sm:$0xf]
    %v2931 = vld [vmem:[%s2904 + $0x9c] sm:$0xff]
    %v2932 = vld [vmem:[%s2904 + $0xa4] sm:$0xf]
    %v2933 = vld [vmem:[%s2904 + $0xa8] sm:$0xff]
    %v2934 = vld [vmem:[%s2904 + $0xb0] sm:$0xf]
    %v2935 = vld [vmem:[%s2904 + $0xb4] sm:$0xff]
    %v2936 = vld [vmem:[%s2904 + $0xbc] sm:$0xf]
    %v2937 = vld [vmem:[%s2904 + $0xc0] sm:$0xff]
    %v2938 = vld [vmem:[%s2904 + $0xc8] sm:$0xf]
    %v2939 = vld [vmem:[%s2904 + $0xcc] sm:$0xff]
    %v2940 = vld [vmem:[%s2904 + $0xd4] sm:$0xf]
    %v2941 = vld [vmem:[%s2904 + $0xd8] sm:$0xff]
    %v2942 = vld [vmem:[%s2904 + $0xe0] sm:$0xf]
    %v2943 = vld [vmem:[%s2904 + $0xe4] sm:$0xff]
    %v2944 = vld [vmem:[%s2904 + $0xec] sm:$0xf]
    %v2945 = vld [vmem:[%s2904 + $0xf0] sm:$0xff]
    %v2946 = vld [vmem:[%s2904 + $0xf8] sm:$0xf]
    %v2947 = vld [vmem:[%s2904 + $0xfc] sm:$0xff]
    %v2948 = vld [vmem:[%s2904 + $0x104] sm:$0xf]
    %v2949 = vld [vmem:[%s2904 + $0x108] sm:$0xff]
    %v2950 = vld [vmem:[%s2904 + $0x110] sm:$0xf]
    %v2951 = vld [vmem:[%s2904 + $0x114] sm:$0xff]
    %v2952 = vld [vmem:[%s2904 + $0x11c] sm:$0xf]
    %v2953 = vld [vmem:[%s2904 + $0x120] sm:$0xff]
    %v2954 = vld [vmem:[%s2904 + $0x128] sm:$0xf]
    %v2955 = vld [vmem:[%s2904 + $0x12c] sm:$0xff]
    %v2956 = vld [vmem:[%s2904 + $0x134] sm:$0xf]
    %v2957 = vld [vmem:[%s2904 + $0x138] sm:$0xff]
    %v2958 = vld [vmem:[%s2904 + $0x140] sm:$0xf]
    %v2959 = vld [vmem:[%s2904 + $0x144] sm:$0xff]
    %v2960 = vld [vmem:[%s2904 + $0x14c] sm:$0xf]
    %v2961 = vld [vmem:[%s2904 + $0x150] sm:$0xff]
    %v2962 = vld [vmem:[%s2904 + $0x158] sm:$0xf]
    %v2963 = vld [vmem:[%s2904 + $0x15c] sm:$0xff]
    %v2964 = vld [vmem:[%s2904 + $0x164] sm:$0xf]
    %v2965 = vld [vmem:[%s2904 + $0x168] sm:$0xff]
    %v2966 = vld [vmem:[%s2904 + $0x170] sm:$0xf]
    %v2967 = vld [vmem:[%s2904 + $0x174] sm:$0xff]
    %v2968 = vld [vmem:[%s2904 + $0x17c] sm:$0xf]
    %v2969 = vld [vmem:[%s2904 + $0x180] sm:$0xff]
    %v2970 = vld [vmem:[%s2904 + $0x188] sm:$0xf]
    %v2971 = vld [vmem:[%s2904 + $0x18c] sm:$0xff]
    %v2972 = vld [vmem:[%s2904 + $0x194] sm:$0xf]
    %v2973 = vld [vmem:[%s2904 + $0x198] sm:$0xff]
    %v2974 = vld [vmem:[%s2904 + $0x1a0] sm:$0xf]
    %v2975 = vld [vmem:[%s2904 + $0x1a4] sm:$0xff]
    %v2976 = vld [vmem:[%s2904 + $0x1ac] sm:$0xf]
    %v2977 = vld [vmem:[%s2904 + $0x1b0] sm:$0xff]
    %v2978 = vld [vmem:[%s2904 + $0x1b8] sm:$0xf]
    %v2979 = vld [vmem:[%s2904 + $0x1bc] sm:$0xff]
    %v2980 = vld [vmem:[%s2904 + $0x1c4] sm:$0xf]
    %v2981 = vld [vmem:[%s2904 + $0x1c8] sm:$0xff]
    %v2982 = vld [vmem:[%s2904 + $0x1d0] sm:$0xf]
    %v2983 = vld [vmem:[%s2904 + $0x1d4] sm:$0xff]
    %v2984 = vld [vmem:[%s2904 + $0x1dc] sm:$0xf]
    %v2985 = vld [vmem:[%s2904 + $0x1e0] sm:$0xff]
    %v2986 = vld [vmem:[%s2904 + $0x1e8] sm:$0xf]
    %v2987 = vld [vmem:[%s2904 + $0x1ec] sm:$0xff]
    %v2988 = vld [vmem:[%s2904 + $0x1f4] sm:$0xf]
    %v2989 = vld [vmem:[%s2904 + $0x1f8] sm:$0xff]
    %v2990 = vld [vmem:[%s2904 + $0x200] sm:$0xf]
    %v2991 = vld [vmem:[%s2904 + $0x204] sm:$0xff]
    %v2992 = vld [vmem:[%s2904 + $0x20c] sm:$0xf]
    %v2993 = vld [vmem:[%s2904 + $0x210] sm:$0xff]
    %v2994 = vld [vmem:[%s2904 + $0x218] sm:$0xf]
    %v2995 = vld [vmem:[%s2904 + $0x21c] sm:$0xff]
    %v2996 = vld [vmem:[%s2904 + $0x224] sm:$0xf]
    %v2997 = vld [vmem:[%s2904 + $0x228] sm:$0xff]
    %v2998 = vld [vmem:[%s2904 + $0x230] sm:$0xf]
    %v2999 = vld [vmem:[%s2904 + $0x234] sm:$0xff]
    %v3000 = vld [vmem:[%s2904 + $0x23c] sm:$0xf]
    %v3001 = vld [vmem:[%s2904 + $0x240] sm:$0xff]
    %v3002 = vld [vmem:[%s2904 + $0x248] sm:$0xf]
    %v3003 = vld [vmem:[%s2904 + $0x24c] sm:$0xff]
    %v3004 = vld [vmem:[%s2904 + $0x254] sm:$0xf]
    %v3005 = vld [vmem:[%s2904 + $0x258] sm:$0xff]
    %v3006 = vld [vmem:[%s2904 + $0x260] sm:$0xf]
    %v3007 = vld [vmem:[%s2904 + $0x264] sm:$0xff]
    %v3008 = vld [vmem:[%s2904 + $0x26c] sm:$0xf]
    %v3009 = vld [vmem:[%s2904 + $0x270] sm:$0xff]
    %v3010 = vld [vmem:[%s2904 + $0x278] sm:$0xf]
    %v3011 = vld [vmem:[%s2904 + $0x27c] sm:$0xff]
    %v3012 = vld [vmem:[%s2904 + $0x284] sm:$0xf]
    %v3013 = vld [vmem:[%s2904 + $0x288] sm:$0xff]
    %v3014 = vld [vmem:[%s2904 + $0x290] sm:$0xf]
    %v3015 = vld [vmem:[%s2904 + $0x294] sm:$0xff]
    %v3016 = vld [vmem:[%s2904 + $0x29c] sm:$0xf]
    %v3017 = vld [vmem:[%s2904 + $0x2a0] sm:$0xff]
    %v3018 = vld [vmem:[%s2904 + $0x2a8] sm:$0xf]
    %v3019 = vld [vmem:[%s2904 + $0x2ac] sm:$0xff]
    %v3020 = vld [vmem:[%s2904 + $0x2b4] sm:$0xf]
    %v3021 = vld [vmem:[%s2904 + $0x2b8] sm:$0xff]
    %v3022 = vld [vmem:[%s2904 + $0x2c0] sm:$0xf]
    %v3023 = vld [vmem:[%s2904 + $0x2c4] sm:$0xff]
    %v3024 = vld [vmem:[%s2904 + $0x2cc] sm:$0xf]
    %v3025 = vld [vmem:[%s2904 + $0x2d0] sm:$0xff]
    %v3026 = vld [vmem:[%s2904 + $0x2d8] sm:$0xf]
    %v3027 = vld [vmem:[%s2904 + $0x2dc] sm:$0xff]
    %v3028 = vld [vmem:[%s2904 + $0x2e4] sm:$0xf]
    %v3029 = vld [vmem:[%s2904 + $0x2e8] sm:$0xff]
    %v3030 = vld [vmem:[%s2904 + $0x2f0] sm:$0xf]
    %v3031 = vld [vmem:[%s2904 + $0x2f4] sm:$0xff]
    %v3032 = vld [vmem:[%s2904 + $0x2fc] sm:$0xf]
    %v3161 = vunpack.c.l.b16 %v2905
    %v3162 = vunpack.c.h.b16 %v2905
    %v3163 = vunpack.c.l.b16 %v2906
    %v3164 = vunpack.c.l.b16 %v2907
    %v3165 = vunpack.c.h.b16 %v2907
    %v3166 = vunpack.c.l.b16 %v2908
    %v3167 = vunpack.c.l.b16 %v2909
    %v3168 = vunpack.c.h.b16 %v2909
    %v3169 = vunpack.c.l.b16 %v2910
    %v3170 = vunpack.c.l.b16 %v2911
    %v3171 = vunpack.c.h.b16 %v2911
    %v3172 = vunpack.c.l.b16 %v2912
    %v3173 = vunpack.c.l.b16 %v2913
    %v3174 = vunpack.c.h.b16 %v2913
    %v3175 = vunpack.c.l.b16 %v2914
    %v3176 = vunpack.c.l.b16 %v2915
    %v3177 = vunpack.c.h.b16 %v2915
    %v3178 = vunpack.c.l.b16 %v2916
    %v3179 = vunpack.c.l.b16 %v2917
    %v3180 = vunpack.c.h.b16 %v2917
    %v3181 = vunpack.c.l.b16 %v2918
    %v3182 = vunpack.c.l.b16 %v2919
    %v3183 = vunpack.c.h.b16 %v2919
    %v3184 = vunpack.c.l.b16 %v2920
    %v3185 = vunpack.c.l.b16 %v2921
    %v3186 = vunpack.c.h.b16 %v2921
    %v3187 = vunpack.c.l.b16 %v2922
    %v3188 = vunpack.c.l.b16 %v2923
    %v3189 = vunpack.c.h.b16 %v2923
    %v3190 = vunpack.c.l.b16 %v2924
    %v3191 = vunpack.c.l.b16 %v2925
    %v3192 = vunpack.c.h.b16 %v2925
    %v3193 = vunpack.c.l.b16 %v2926
    %v3194 = vunpack.c.l.b16 %v2927
    %v3195 = vunpack.c.h.b16 %v2927
    %v3196 = vunpack.c.l.b16 %v2928
    %v3197 = vunpack.c.l.b16 %v2929
    %v3198 = vunpack.c.h.b16 %v2929
    %v3199 = vunpack.c.l.b16 %v2930
    %v3200 = vunpack.c.l.b16 %v2931
    %v3201 = vunpack.c.h.b16 %v2931
    %v3202 = vunpack.c.l.b16 %v2932
    %v3203 = vunpack.c.l.b16 %v2933
    %v3204 = vunpack.c.h.b16 %v2933
    %v3205 = vunpack.c.l.b16 %v2934
    %v3206 = vunpack.c.l.b16 %v2935
    %v3207 = vunpack.c.h.b16 %v2935
    %v3208 = vunpack.c.l.b16 %v2936
    %v3209 = vunpack.c.l.b16 %v2937
    %v3210 = vunpack.c.h.b16 %v2937
    %v3211 = vunpack.c.l.b16 %v2938
    %v3212 = vunpack.c.l.b16 %v2939
    %v3213 = vunpack.c.h.b16 %v2939
    %v3214 = vunpack.c.l.b16 %v2940
    %v3215 = vunpack.c.l.b16 %v2941
    %v3216 = vunpack.c.h.b16 %v2941
    %v3217 = vunpack.c.l.b16 %v2942
    %v3218 = vunpack.c.l.b16 %v2943
    %v3219 = vunpack.c.h.b16 %v2943
    %v3220 = vunpack.c.l.b16 %v2944
    %v3221 = vunpack.c.l.b16 %v2945
    %v3222 = vunpack.c.h.b16 %v2945
    %v3223 = vunpack.c.l.b16 %v2946
    %v3224 = vunpack.c.l.b16 %v2947
    %v3225 = vunpack.c.h.b16 %v2947
    %v3226 = vunpack.c.l.b16 %v2948
    %v3227 = vunpack.c.l.b16 %v2949
    %v3228 = vunpack.c.h.b16 %v2949
    %v3229 = vunpack.c.l.b16 %v2950
    %v3230 = vunpack.c.l.b16 %v2951
    %v3231 = vunpack.c.h.b16 %v2951
    %v3232 = vunpack.c.l.b16 %v2952
    %v3233 = vunpack.c.l.b16 %v2953
    %v3234 = vunpack.c.h.b16 %v2953
    %v3235 = vunpack.c.l.b16 %v2954
    %v3236 = vunpack.c.l.b16 %v2955
    %v3237 = vunpack.c.h.b16 %v2955
    %v3238 = vunpack.c.l.b16 %v2956
    %v3239 = vunpack.c.l.b16 %v2957
    %v3240 = vunpack.c.h.b16 %v2957
    %v3241 = vunpack.c.l.b16 %v2958
    %v3242 = vunpack.c.l.b16 %v2959
    %v3243 = vunpack.c.h.b16 %v2959
    %v3244 = vunpack.c.l.b16 %v2960
    %v3245 = vunpack.c.l.b16 %v2961
    %v3246 = vunpack.c.h.b16 %v2961
    %v3247 = vunpack.c.l.b16 %v2962
    %v3248 = vunpack.c.l.b16 %v2963
    %v3249 = vunpack.c.h.b16 %v2963
    %v3250 = vunpack.c.l.b16 %v2964
    %v3251 = vunpack.c.l.b16 %v2965
    %v3252 = vunpack.c.h.b16 %v2965
    %v3253 = vunpack.c.l.b16 %v2966
    %v3254 = vunpack.c.l.b16 %v2967
    %v3255 = vunpack.c.h.b16 %v2967
    %v3256 = vunpack.c.l.b16 %v2968
    %v3257 = vunpack.c.l.b16 %v2969
    %v3258 = vunpack.c.h.b16 %v2969
    %v3259 = vunpack.c.l.b16 %v2970
    %v3260 = vunpack.c.l.b16 %v2971
    %v3261 = vunpack.c.h.b16 %v2971
    %v3262 = vunpack.c.l.b16 %v2972
    %v3263 = vunpack.c.l.b16 %v2973
    %v3264 = vunpack.c.h.b16 %v2973
    %v3265 = vunpack.c.l.b16 %v2974
    %v3266 = vunpack.c.l.b16 %v2975
    %v3267 = vunpack.c.h.b16 %v2975
    %v3268 = vunpack.c.l.b16 %v2976
    %v3269 = vunpack.c.l.b16 %v2977
    %v3270 = vunpack.c.h.b16 %v2977
    %v3271 = vunpack.c.l.b16 %v2978
    %v3272 = vunpack.c.l.b16 %v2979
    %v3273 = vunpack.c.h.b16 %v2979
    %v3274 = vunpack.c.l.b16 %v2980
    %v3275 = vunpack.c.l.b16 %v2981
    %v3276 = vunpack.c.h.b16 %v2981
    %v3277 = vunpack.c.l.b16 %v2982
    %v3278 = vunpack.c.l.b16 %v2983
    %v3279 = vunpack.c.h.b16 %v2983
    %v3280 = vunpack.c.l.b16 %v2984
    %v3281 = vunpack.c.l.b16 %v2985
    %v3282 = vunpack.c.h.b16 %v2985
    %v3283 = vunpack.c.l.b16 %v2986
    %v3284 = vunpack.c.l.b16 %v2987
    %v3285 = vunpack.c.h.b16 %v2987
    %v3286 = vunpack.c.l.b16 %v2988
    %v3287 = vunpack.c.l.b16 %v2989
    %v3288 = vunpack.c.h.b16 %v2989
    %v3289 = vunpack.c.l.b16 %v2990
    %v3290 = vunpack.c.l.b16 %v2991
    %v3291 = vunpack.c.h.b16 %v2991
    %v3292 = vunpack.c.l.b16 %v2992
    %v3293 = vunpack.c.l.b16 %v2993
    %v3294 = vunpack.c.h.b16 %v2993
    %v3295 = vunpack.c.l.b16 %v2994
    %v3296 = vunpack.c.l.b16 %v2995
    %v3297 = vunpack.c.h.b16 %v2995
    %v3298 = vunpack.c.l.b16 %v2996
    %v3299 = vunpack.c.l.b16 %v2997
    %v3300 = vunpack.c.h.b16 %v2997
    %v3301 = vunpack.c.l.b16 %v2998
    %v3302 = vunpack.c.l.b16 %v2999
    %v3303 = vunpack.c.h.b16 %v2999
    %v3304 = vunpack.c.l.b16 %v3000
    %v3305 = vunpack.c.l.b16 %v3001
    %v3306 = vunpack.c.h.b16 %v3001
    %v3307 = vunpack.c.l.b16 %v3002
    %v3308 = vunpack.c.l.b16 %v3003
    %v3309 = vunpack.c.h.b16 %v3003
    %v3310 = vunpack.c.l.b16 %v3004
    %v3311 = vunpack.c.l.b16 %v3005
    %v3312 = vunpack.c.h.b16 %v3005
    %v3313 = vunpack.c.l.b16 %v3006
    %v3314 = vunpack.c.l.b16 %v3007
    %v3315 = vunpack.c.h.b16 %v3007
    %v3316 = vunpack.c.l.b16 %v3008
    %v3317 = vunpack.c.l.b16 %v3009
    %v3318 = vunpack.c.h.b16 %v3009
    %v3319 = vunpack.c.l.b16 %v3010
    %v3320 = vunpack.c.l.b16 %v3011
    %v3321 = vunpack.c.h.b16 %v3011
    %v3322 = vunpack.c.l.b16 %v3012
    %v3323 = vunpack.c.l.b16 %v3013
    %v3324 = vunpack.c.h.b16 %v3013
    %v3325 = vunpack.c.l.b16 %v3014
    %v3326 = vunpack.c.l.b16 %v3015
    %v3327 = vunpack.c.h.b16 %v3015
    %v3328 = vunpack.c.l.b16 %v3016
    %v3329 = vunpack.c.l.b16 %v3017
    %v3330 = vunpack.c.h.b16 %v3017
    %v3331 = vunpack.c.l.b16 %v3018
    %v3332 = vunpack.c.l.b16 %v3019
    %v3333 = vunpack.c.h.b16 %v3019
    %v3334 = vunpack.c.l.b16 %v3020
    %v3335 = vunpack.c.l.b16 %v3021
    %v3336 = vunpack.c.h.b16 %v3021
    %v3337 = vunpack.c.l.b16 %v3022
    %v3338 = vunpack.c.l.b16 %v3023
    %v3339 = vunpack.c.h.b16 %v3023
    %v3340 = vunpack.c.l.b16 %v3024
    %v3341 = vunpack.c.l.b16 %v3025
    %v3342 = vunpack.c.h.b16 %v3025
    %v3343 = vunpack.c.l.b16 %v3026
    %v3344 = vunpack.c.l.b16 %v3027
    %v3345 = vunpack.c.h.b16 %v3027
    %v3346 = vunpack.c.l.b16 %v3028
    %v3347 = vunpack.c.l.b16 %v3029
    %v3348 = vunpack.c.h.b16 %v3029
    %v3349 = vunpack.c.l.b16 %v3030
    %v3350 = vunpack.c.l.b16 %v3031
    %v3351 = vunpack.c.h.b16 %v3031
    %v3352 = vunpack.c.l.b16 %v3032
    %v3353 = vpack.c.b16 %v3164, %v3161
    %v3354 = vpack.c.b16 %v3165, %v3162
    %v3355 = vpack.c.b16 %v3166, %v3163
    %v3356 = vpack.c.b16 %v3170, %v3167
    %v3357 = vpack.c.b16 %v3171, %v3168
    %v3358 = vpack.c.b16 %v3172, %v3169
    %v3359 = vpack.c.b16 %v3176, %v3173
    %v3360 = vpack.c.b16 %v3177, %v3174
    %v3361 = vpack.c.b16 %v3178, %v3175
    %v3362 = vpack.c.b16 %v3182, %v3179
    %v3363 = vpack.c.b16 %v3183, %v3180
    %v3364 = vpack.c.b16 %v3184, %v3181
    %v3365 = vpack.c.b16 %v3188, %v3185
    %v3366 = vpack.c.b16 %v3189, %v3186
    %v3367 = vpack.c.b16 %v3190, %v3187
    %v3368 = vpack.c.b16 %v3194, %v3191
    %v3369 = vpack.c.b16 %v3195, %v3192
    %v3370 = vpack.c.b16 %v3196, %v3193
    %v3371 = vpack.c.b16 %v3200, %v3197
    %v3372 = vpack.c.b16 %v3201, %v3198
    %v3373 = vpack.c.b16 %v3202, %v3199
    %v3374 = vpack.c.b16 %v3206, %v3203
    %v3375 = vpack.c.b16 %v3207, %v3204
    %v3376 = vpack.c.b16 %v3208, %v3205
    %v3377 = vpack.c.b16 %v3212, %v3209
    %v3378 = vpack.c.b16 %v3213, %v3210
    %v3379 = vpack.c.b16 %v3214, %v3211
    %v3380 = vpack.c.b16 %v3218, %v3215
    %v3381 = vpack.c.b16 %v3219, %v3216
    %v3382 = vpack.c.b16 %v3220, %v3217
    %v3383 = vpack.c.b16 %v3224, %v3221
    %v3384 = vpack.c.b16 %v3225, %v3222
    %v3385 = vpack.c.b16 %v3226, %v3223
    %v3386 = vpack.c.b16 %v3230, %v3227
    %v3387 = vpack.c.b16 %v3231, %v3228
    %v3388 = vpack.c.b16 %v3232, %v3229
    %v3389 = vpack.c.b16 %v3236, %v3233
    %v3390 = vpack.c.b16 %v3237, %v3234
    %v3391 = vpack.c.b16 %v3238, %v3235
    %v3392 = vpack.c.b16 %v3242, %v3239
    %v3393 = vpack.c.b16 %v3243, %v3240
    %v3394 = vpack.c.b16 %v3244, %v3241
    %v3395 = vpack.c.b16 %v3248, %v3245
    %v3396 = vpack.c.b16 %v3249, %v3246
    %v3397 = vpack.c.b16 %v3250, %v3247
    %v3398 = vpack.c.b16 %v3254, %v3251
    %v3399 = vpack.c.b16 %v3255, %v3252
    %v3400 = vpack.c.b16 %v3256, %v3253
    %v3401 = vpack.c.b16 %v3260, %v3257
    %v3402 = vpack.c.b16 %v3261, %v3258
    %v3403 = vpack.c.b16 %v3262, %v3259
    %v3404 = vpack.c.b16 %v3266, %v3263
    %v3405 = vpack.c.b16 %v3267, %v3264
    %v3406 = vpack.c.b16 %v3268, %v3265
    %v3407 = vpack.c.b16 %v3272, %v3269
    %v3408 = vpack.c.b16 %v3273, %v3270
    %v3409 = vpack.c.b16 %v3274, %v3271
    %v3410 = vpack.c.b16 %v3278, %v3275
    %v3411 = vpack.c.b16 %v3279, %v3276
    %v3412 = vpack.c.b16 %v3280, %v3277
    %v3413 = vpack.c.b16 %v3284, %v3281
    %v3414 = vpack.c.b16 %v3285, %v3282
    %v3415 = vpack.c.b16 %v3286, %v3283
    %v3416 = vpack.c.b16 %v3290, %v3287
    %v3417 = vpack.c.b16 %v3291, %v3288
    %v3418 = vpack.c.b16 %v3292, %v3289
    %v3419 = vpack.c.b16 %v3296, %v3293
    %v3420 = vpack.c.b16 %v3297, %v3294
    %v3421 = vpack.c.b16 %v3298, %v3295
    %v3422 = vpack.c.b16 %v3302, %v3299
    %v3423 = vpack.c.b16 %v3303, %v3300
    %v3424 = vpack.c.b16 %v3304, %v3301
    %v3425 = vpack.c.b16 %v3308, %v3305
    %v3426 = vpack.c.b16 %v3309, %v3306
    %v3427 = vpack.c.b16 %v3310, %v3307
    %v3428 = vpack.c.b16 %v3314, %v3311
    %v3429 = vpack.c.b16 %v3315, %v3312
    %v3430 = vpack.c.b16 %v3316, %v3313
    %v3431 = vpack.c.b16 %v3320, %v3317
    %v3432 = vpack.c.b16 %v3321, %v3318
    %v3433 = vpack.c.b16 %v3322, %v3319
    %v3434 = vpack.c.b16 %v3326, %v3323
    %v3435 = vpack.c.b16 %v3327, %v3324
    %v3436 = vpack.c.b16 %v3328, %v3325
    %v3437 = vpack.c.b16 %v3332, %v3329
    %v3438 = vpack.c.b16 %v3333, %v3330
    %v3439 = vpack.c.b16 %v3334, %v3331
    %v3440 = vpack.c.b16 %v3338, %v3335
    %v3441 = vpack.c.b16 %v3339, %v3336
    %v3442 = vpack.c.b16 %v3340, %v3337
    %v3443 = vpack.c.b16 %v3344, %v3341
    %v3444 = vpack.c.b16 %v3345, %v3342
    %v3445 = vpack.c.b16 %v3346, %v3343
    %v3446 = vpack.c.b16 %v3350, %v3347
    %v3447 = vpack.c.b16 %v3351, %v3348
    %v3448 = vpack.c.b16 %v3352, %v3349
    %3545 = vmatprep.subr.bf16.mxu0 %v3375
    %3546 = vmatpush1.bf16.msra.mxu0 %v3374
    %3547 = vmatprep.subr.bf16.mxu0 %v3372
    %3548 = vmatpush1.bf16.msra.mxu0 %v3371
    %3549 = vmatprep.subr.bf16.mxu0 %v3369
    %3550 = vmatpush1.bf16.msra.mxu0 %v3368
    %3551 = vmatprep.subr.bf16.mxu0 %v3366
    %3552 = vmatpush1.bf16.msra.mxu0 %v3365
    %3553 = vmatprep.subr.bf16.mxu0 %v3363
    %3554 = vmatpush1.bf16.msra.mxu0 %v3362
    %3555 = vmatprep.subr.bf16.mxu0 %v3360
    %3556 = vmatpush1.bf16.msra.mxu0 %v3359
    %3557 = vmatprep.subr.bf16.mxu0 %v3357
    %3558 = vmatpush1.bf16.msra.mxu0 %v3356
    %3559 = vmatprep.subr.bf16.mxu0 %v3354
    %3560 = vmatpush1.bf16.msra.mxu0 %v3353
    %3561 = vmatprep.subr.bf16.mxu0 %v3399
    %3562 = vmatpush2.bf16.msra.mxu0 %v3398
    %3563 = vmatprep.subr.bf16.mxu0 %v3396
    %3564 = vmatpush2.bf16.msra.mxu0 %v3395
    %3565 = vmatprep.subr.bf16.mxu0 %v3393
    %3566 = vmatpush2.bf16.msra.mxu0 %v3392
    %3567 = vmatprep.subr.bf16.mxu0 %v3390
    %3568 = vmatpush2.bf16.msra.mxu0 %v3389
    %3569 = vmatprep.subr.bf16.mxu0 %v3387
    %3570 = vmatpush2.bf16.msra.mxu0 %v3386
    %3571 = vmatprep.subr.bf16.mxu0 %v3384
    %3572 = vmatpush2.bf16.msra.mxu0 %v3383
    %3573 = vmatprep.subr.bf16.mxu0 %v3381
    %3574 = vmatpush2.bf16.msra.mxu0 %v3380
    %3575 = vmatprep.subr.bf16.mxu0 %v3378
    %3576 = vmatpush2.bf16.msra.mxu0 %v3377
    %3577 = vmatprep.mubr.bf16.mxu0 %v2901
    %3578 = vmatmul.mubr.bf16.gmra.mxu0 %v2900
    %v3579 = vpop.f32.mrf.mxu0
    %v3580 = vadd.f32 0.0, %v3579
    %v3581 = vpop.f32.mrf.mxu0
    %v3582 = vadd.f32 0.0, %v3581
    %v3583 = vpop.f32.mrf.mxu0
    %v3584 = vpop.f32.mrf.mxu0
    %3585 = vdwg.mxu0
    %3586 = vmatprep.subr.bf16.mxu0 %v3423
    %3587 = vmatpush1.bf16.msra.mxu0 %v3422
    %3588 = vmatprep.subr.bf16.mxu0 %v3420
    %3589 = vmatpush1.bf16.msra.mxu0 %v3419
    %3590 = vmatprep.subr.bf16.mxu0 %v3417
    %3591 = vmatpush1.bf16.msra.mxu0 %v3416
    %3592 = vmatprep.subr.bf16.mxu0 %v3414
    %3593 = vmatpush1.bf16.msra.mxu0 %v3413
    %3594 = vmatprep.subr.bf16.mxu0 %v3411
    %3595 = vmatpush1.bf16.msra.mxu0 %v3410
    %3596 = vmatprep.subr.bf16.mxu0 %v3408
    %3597 = vmatpush1.bf16.msra.mxu0 %v3407
    %3598 = vmatprep.subr.bf16.mxu0 %v3405
    %3599 = vmatpush1.bf16.msra.mxu0 %v3404
    %3600 = vmatprep.subr.bf16.mxu0 %v3402
    %3601 = vmatpush1.bf16.msra.mxu0 %v3401
    %3602 = vmatprep.subr.bf16.mxu0 %v3447
    %3603 = vmatpush2.bf16.msra.mxu0 %v3446
    %3604 = vmatprep.subr.bf16.mxu0 %v3444
    %3605 = vmatpush2.bf16.msra.mxu0 %v3443
    %3606 = vmatprep.subr.bf16.mxu0 %v3441
    %3607 = vmatpush2.bf16.msra.mxu0 %v3440
    %3608 = vmatprep.subr.bf16.mxu0 %v3438
    %3609 = vmatpush2.bf16.msra.mxu0 %v3437
    %3610 = vmatprep.subr.bf16.mxu0 %v3435
    %3611 = vmatpush2.bf16.msra.mxu0 %v3434
    %3612 = vmatprep.subr.bf16.mxu0 %v3432
    %3613 = vmatpush2.bf16.msra.mxu0 %v3431
    %3614 = vmatprep.subr.bf16.mxu0 %v3429
    %3615 = vmatpush2.bf16.msra.mxu0 %v3428
    %3616 = vmatprep.subr.bf16.mxu0 %v3426
    %3617 = vmatpush2.bf16.msra.mxu0 %v3425
    %3618 = vmatprep.mubr.bf16.mxu0 %v2903
    %3619 = vmatmul.mubr.bf16.gmra.mxu0 %v2902
    %v3620 = vpop.f32.mrf.mxu0
    %v3621 = vadd.f32 %v3580, %v3620
    %v3622 = vpop.f32.mrf.mxu0
    %v3623 = vadd.f32 %v3582, %v3622
    %v3624 = vpop.f32.mrf.mxu0
    %v3625 = vpop.f32.mrf.mxu0
    %3626 = vdwg.mxu0
    %3627 = vmatprep.subr.bf16.mxu0 0
    %3628 = vmatpush1.bf16.msra.mxu0 %v3376
    %3629 = vmatprep.subr.bf16.mxu0 0
    %3630 = vmatpush1.bf16.msra.mxu0 %v3373
    %3631 = vmatprep.subr.bf16.mxu0 0
    %3632 = vmatpush1.bf16.msra.mxu0 %v3370
    %3633 = vmatprep.subr.bf16.mxu0 0
    %3634 = vmatpush1.bf16.msra.mxu0 %v3367
    %3635 = vmatprep.subr.bf16.mxu0 0
    %3636 = vmatpush1.bf16.msra.mxu0 %v3364
    %3637 = vmatprep.subr.bf16.mxu0 0
    %3638 = vmatpush1.bf16.msra.mxu0 %v3361
    %3639 = vmatprep.subr.bf16.mxu0 0
    %3640 = vmatpush1.bf16.msra.mxu0 %v3358
    %3641 = vmatprep.subr.bf16.mxu0 0
    %3642 = vmatpush1.bf16.msra.mxu0 %v3355
    %3643 = vmatprep.subr.bf16.mxu0 0
    %3644 = vmatpush2.bf16.msra.mxu0 %v3400
    %3645 = vmatprep.subr.bf16.mxu0 0
    %3646 = vmatpush2.bf16.msra.mxu0 %v3397
    %3647 = vmatprep.subr.bf16.mxu0 0
    %3648 = vmatpush2.bf16.msra.mxu0 %v3394
    %3649 = vmatprep.subr.bf16.mxu0 0
    %3650 = vmatpush2.bf16.msra.mxu0 %v3391
    %3651 = vmatprep.subr.bf16.mxu0 0
    %3652 = vmatpush2.bf16.msra.mxu0 %v3388
    %3653 = vmatprep.subr.bf16.mxu0 0
    %3654 = vmatpush2.bf16.msra.mxu0 %v3385
    %3655 = vmatprep.subr.bf16.mxu0 0
    %3656 = vmatpush2.bf16.msra.mxu0 %v3382
    %3657 = vmatprep.subr.bf16.mxu0 0
    %3658 = vmatpush2.bf16.msra.mxu0 %v3379
    %3659 = vmatprep.mubr.bf16.mxu0 %v2901
    %3660 = vmatmul.mubr.bf16.gmra.mxu0 %v2900
    %v3661 = vpop.f32.mrf.mxu0
    %v3662 = vadd.f32 0.0, %v3661
    %v3663 = vpop.f32.mrf.mxu0
    %v3664 = vpop.f32.mrf.mxu0
    %v3665 = vpop.f32.mrf.mxu0
    %3666 = vdwg.mxu0
    %3667 = vmatprep.subr.bf16.mxu0 0
    %3668 = vmatpush1.bf16.msra.mxu0 %v3424
    %3669 = vmatprep.subr.bf16.mxu0 0
    %3670 = vmatpush1.bf16.msra.mxu0 %v3421
    %3671 = vmatprep.subr.bf16.mxu0 0
    %3672 = vmatpush1.bf16.msra.mxu0 %v3418
    %3673 = vmatprep.subr.bf16.mxu0 0
    %3674 = vmatpush1.bf16.msra.mxu0 %v3415
    %3675 = vmatprep.subr.bf16.mxu0 0
    %3676 = vmatpush1.bf16.msra.mxu0 %v3412
    %3677 = vmatprep.subr.bf16.mxu0 0
    %3678 = vmatpush1.bf16.msra.mxu0 %v3409
    %3679 = vmatprep.subr.bf16.mxu0 0
    %3680 = vmatpush1.bf16.msra.mxu0 %v3406
    %3681 = vmatprep.subr.bf16.mxu0 0
    %3682 = vmatpush1.bf16.msra.mxu0 %v3403
    %3683 = vmatprep.subr.bf16.mxu0 0
    %3684 = vmatpush2.bf16.msra.mxu0 %v3448
    %3685 = vmatprep.subr.bf16.mxu0 0
    %3686 = vmatpush2.bf16.msra.mxu0 %v3445
    %3687 = vmatprep.subr.bf16.mxu0 0
    %3688 = vmatpush2.bf16.msra.mxu0 %v3442
    %3689 = vmatprep.subr.bf16.mxu0 0
    %3690 = vmatpush2.bf16.msra.mxu0 %v3439
    %3691 = vmatprep.subr.bf16.mxu0 0
    %3692 = vmatpush2.bf16.msra.mxu0 %v3436
    %3693 = vmatprep.subr.bf16.mxu0 0
    %3694 = vmatpush2.bf16.msra.mxu0 %v3433
    %3695 = vmatprep.subr.bf16.mxu0 0
    %3696 = vmatpush2.bf16.msra.mxu0 %v3430
    %3697 = vmatprep.subr.bf16.mxu0 0
    %3698 = vmatpush2.bf16.msra.mxu0 %v3427
    %3699 = vmatprep.mubr.bf16.mxu0 %v2903
    %3700 = vmatmul.mubr.bf16.gmra.mxu0 %v2902
    %v3701 = vpop.f32.mrf.mxu0
    %v3702 = vadd.f32 %v3662, %v3701
    %v3703 = vpop.f32.mrf.mxu0
    %v3704 = vpop.f32.mrf.mxu0
    %v3705 = vpop.f32.mrf.mxu0
    %3706 = vdwg.mxu0
    %v3711 = vrot.slane %v360, 6
    %v3712 = vrot.slane %v362, 6
    %v3713 = vrot.slane %v403, 6
    %v3714 = vrot.slane %v405, 6
    %v3719 = vsel %vm419, %v274, %v3711
    %v3720 = vsel %vm419, %v276, %v3712
    %v3721 = vsel %vm419, %v317, %v3713
    %v3722 = vsel %vm419, %v319, %v3714
    %v3723 = vpack.c.bf16 %v3719, %v3719
    %v3724 = vpack.c.bf16 %v3720, %v3720
    %v3725 = vpack.c.bf16 %v3721, %v3721
    %v3726 = vpack.c.bf16 %v3722, %v3722
    %s3727 = scalar_lea.vmem [#allocation7], 3072
    %v3728 = vld [vmem:[%s3727] sm:$0xff]
    %v3729 = vld [vmem:[%s3727 + $0x8] sm:$0xf]
    %v3730 = vld [vmem:[%s3727 + $0xc] sm:$0xff]
    %v3731 = vld [vmem:[%s3727 + $0x14] sm:$0xf]
    %v3732 = vld [vmem:[%s3727 + $0x18] sm:$0xff]
    %v3733 = vld [vmem:[%s3727 + $0x20] sm:$0xf]
    %v3734 = vld [vmem:[%s3727 + $0x24] sm:$0xff]
    %v3735 = vld [vmem:[%s3727 + $0x2c] sm:$0xf]
    %v3736 = vld [vmem:[%s3727 + $0x30] sm:$0xff]
    %v3737 = vld [vmem:[%s3727 + $0x38] sm:$0xf]
    %v3738 = vld [vmem:[%s3727 + $0x3c] sm:$0xff]
    %v3739 = vld [vmem:[%s3727 + $0x44] sm:$0xf]
    %v3740 = vld [vmem:[%s3727 + $0x48] sm:$0xff]
    %v3741 = vld [vmem:[%s3727 + $0x50] sm:$0xf]
    %v3742 = vld [vmem:[%s3727 + $0x54] sm:$0xff]
    %v3743 = vld [vmem:[%s3727 + $0x5c] sm:$0xf]
    %v3744 = vld [vmem:[%s3727 + $0x60] sm:$0xff]
    %v3745 = vld [vmem:[%s3727 + $0x68] sm:$0xf]
    %v3746 = vld [vmem:[%s3727 + $0x6c] sm:$0xff]
    %v3747 = vld [vmem:[%s3727 + $0x74] sm:$0xf]
    %v3748 = vld [vmem:[%s3727 + $0x78] sm:$0xff]
    %v3749 = vld [vmem:[%s3727 + $0x80] sm:$0xf]
    %v3750 = vld [vmem:[%s3727 + $0x84] sm:$0xff]
    %v3751 = vld [vmem:[%s3727 + $0x8c] sm:$0xf]
    %v3752 = vld [vmem:[%s3727 + $0x90] sm:$0xff]
    %v3753 = vld [vmem:[%s3727 + $0x98] sm:$0xf]
    %v3754 = vld [vmem:[%s3727 + $0x9c] sm:$0xff]
    %v3755 = vld [vmem:[%s3727 + $0xa4] sm:$0xf]
    %v3756 = vld [vmem:[%s3727 + $0xa8] sm:$0xff]
    %v3757 = vld [vmem:[%s3727 + $0xb0] sm:$0xf]
    %v3758 = vld [vmem:[%s3727 + $0xb4] sm:$0xff]
    %v3759 = vld [vmem:[%s3727 + $0xbc] sm:$0xf]
    %v3760 = vld [vmem:[%s3727 + $0xc0] sm:$0xff]
    %v3761 = vld [vmem:[%s3727 + $0xc8] sm:$0xf]
    %v3762 = vld [vmem:[%s3727 + $0xcc] sm:$0xff]
    %v3763 = vld [vmem:[%s3727 + $0xd4] sm:$0xf]
    %v3764 = vld [vmem:[%s3727 + $0xd8] sm:$0xff]
    %v3765 = vld [vmem:[%s3727 + $0xe0] sm:$0xf]
    %v3766 = vld [vmem:[%s3727 + $0xe4] sm:$0xff]
    %v3767 = vld [vmem:[%s3727 + $0xec] sm:$0xf]
    %v3768 = vld [vmem:[%s3727 + $0xf0] sm:$0xff]
    %v3769 = vld [vmem:[%s3727 + $0xf8] sm:$0xf]
    %v3770 = vld [vmem:[%s3727 + $0xfc] sm:$0xff]
    %v3771 = vld [vmem:[%s3727 + $0x104] sm:$0xf]
    %v3772 = vld [vmem:[%s3727 + $0x108] sm:$0xff]
    %v3773 = vld [vmem:[%s3727 + $0x110] sm:$0xf]
    %v3774 = vld [vmem:[%s3727 + $0x114] sm:$0xff]
    %v3775 = vld [vmem:[%s3727 + $0x11c] sm:$0xf]
    %v3776 = vld [vmem:[%s3727 + $0x120] sm:$0xff]
    %v3777 = vld [vmem:[%s3727 + $0x128] sm:$0xf]
    %v3778 = vld [vmem:[%s3727 + $0x12c] sm:$0xff]
    %v3779 = vld [vmem:[%s3727 + $0x134] sm:$0xf]
    %v3780 = vld [vmem:[%s3727 + $0x138] sm:$0xff]
    %v3781 = vld [vmem:[%s3727 + $0x140] sm:$0xf]
    %v3782 = vld [vmem:[%s3727 + $0x144] sm:$0xff]
    %v3783 = vld [vmem:[%s3727 + $0x14c] sm:$0xf]
    %v3784 = vld [vmem:[%s3727 + $0x150] sm:$0xff]
    %v3785 = vld [vmem:[%s3727 + $0x158] sm:$0xf]
    %v3786 = vld [vmem:[%s3727 + $0x15c] sm:$0xff]
    %v3787 = vld [vmem:[%s3727 + $0x164] sm:$0xf]
    %v3788 = vld [vmem:[%s3727 + $0x168] sm:$0xff]
    %v3789 = vld [vmem:[%s3727 + $0x170] sm:$0xf]
    %v3790 = vld [vmem:[%s3727 + $0x174] sm:$0xff]
    %v3791 = vld [vmem:[%s3727 + $0x17c] sm:$0xf]
    %v3792 = vld [vmem:[%s3727 + $0x180] sm:$0xff]
    %v3793 = vld [vmem:[%s3727 + $0x188] sm:$0xf]
    %v3794 = vld [vmem:[%s3727 + $0x18c] sm:$0xff]
    %v3795 = vld [vmem:[%s3727 + $0x194] sm:$0xf]
    %v3796 = vld [vmem:[%s3727 + $0x198] sm:$0xff]
    %v3797 = vld [vmem:[%s3727 + $0x1a0] sm:$0xf]
    %v3798 = vld [vmem:[%s3727 + $0x1a4] sm:$0xff]
    %v3799 = vld [vmem:[%s3727 + $0x1ac] sm:$0xf]
    %v3800 = vld [vmem:[%s3727 + $0x1b0] sm:$0xff]
    %v3801 = vld [vmem:[%s3727 + $0x1b8] sm:$0xf]
    %v3802 = vld [vmem:[%s3727 + $0x1bc] sm:$0xff]
    %v3803 = vld [vmem:[%s3727 + $0x1c4] sm:$0xf]
    %v3804 = vld [vmem:[%s3727 + $0x1c8] sm:$0xff]
    %v3805 = vld [vmem:[%s3727 + $0x1d0] sm:$0xf]
    %v3806 = vld [vmem:[%s3727 + $0x1d4] sm:$0xff]
    %v3807 = vld [vmem:[%s3727 + $0x1dc] sm:$0xf]
    %v3808 = vld [vmem:[%s3727 + $0x1e0] sm:$0xff]
    %v3809 = vld [vmem:[%s3727 + $0x1e8] sm:$0xf]
    %v3810 = vld [vmem:[%s3727 + $0x1ec] sm:$0xff]
    %v3811 = vld [vmem:[%s3727 + $0x1f4] sm:$0xf]
    %v3812 = vld [vmem:[%s3727 + $0x1f8] sm:$0xff]
    %v3813 = vld [vmem:[%s3727 + $0x200] sm:$0xf]
    %v3814 = vld [vmem:[%s3727 + $0x204] sm:$0xff]
    %v3815 = vld [vmem:[%s3727 + $0x20c] sm:$0xf]
    %v3816 = vld [vmem:[%s3727 + $0x210] sm:$0xff]
    %v3817 = vld [vmem:[%s3727 + $0x218] sm:$0xf]
    %v3818 = vld [vmem:[%s3727 + $0x21c] sm:$0xff]
    %v3819 = vld [vmem:[%s3727 + $0x224] sm:$0xf]
    %v3820 = vld [vmem:[%s3727 + $0x228] sm:$0xff]
    %v3821 = vld [vmem:[%s3727 + $0x230] sm:$0xf]
    %v3822 = vld [vmem:[%s3727 + $0x234] sm:$0xff]
    %v3823 = vld [vmem:[%s3727 + $0x23c] sm:$0xf]
    %v3824 = vld [vmem:[%s3727 + $0x240] sm:$0xff]
    %v3825 = vld [vmem:[%s3727 + $0x248] sm:$0xf]
    %v3826 = vld [vmem:[%s3727 + $0x24c] sm:$0xff]
    %v3827 = vld [vmem:[%s3727 + $0x254] sm:$0xf]
    %v3828 = vld [vmem:[%s3727 + $0x258] sm:$0xff]
    %v3829 = vld [vmem:[%s3727 + $0x260] sm:$0xf]
    %v3830 = vld [vmem:[%s3727 + $0x264] sm:$0xff]
    %v3831 = vld [vmem:[%s3727 + $0x26c] sm:$0xf]
    %v3832 = vld [vmem:[%s3727 + $0x270] sm:$0xff]
    %v3833 = vld [vmem:[%s3727 + $0x278] sm:$0xf]
    %v3834 = vld [vmem:[%s3727 + $0x27c] sm:$0xff]
    %v3835 = vld [vmem:[%s3727 + $0x284] sm:$0xf]
    %v3836 = vld [vmem:[%s3727 + $0x288] sm:$0xff]
    %v3837 = vld [vmem:[%s3727 + $0x290] sm:$0xf]
    %v3838 = vld [vmem:[%s3727 + $0x294] sm:$0xff]
    %v3839 = vld [vmem:[%s3727 + $0x29c] sm:$0xf]
    %v3840 = vld [vmem:[%s3727 + $0x2a0] sm:$0xff]
    %v3841 = vld [vmem:[%s3727 + $0x2a8] sm:$0xf]
    %v3842 = vld [vmem:[%s3727 + $0x2ac] sm:$0xff]
    %v3843 = vld [vmem:[%s3727 + $0x2b4] sm:$0xf]
    %v3844 = vld [vmem:[%s3727 + $0x2b8] sm:$0xff]
    %v3845 = vld [vmem:[%s3727 + $0x2c0] sm:$0xf]
    %v3846 = vld [vmem:[%s3727 + $0x2c4] sm:$0xff]
    %v3847 = vld [vmem:[%s3727 + $0x2cc] sm:$0xf]
    %v3848 = vld [vmem:[%s3727 + $0x2d0] sm:$0xff]
    %v3849 = vld [vmem:[%s3727 + $0x2d8] sm:$0xf]
    %v3850 = vld [vmem:[%s3727 + $0x2dc] sm:$0xff]
    %v3851 = vld [vmem:[%s3727 + $0x2e4] sm:$0xf]
    %v3852 = vld [vmem:[%s3727 + $0x2e8] sm:$0xff]
    %v3853 = vld [vmem:[%s3727 + $0x2f0] sm:$0xf]
    %v3854 = vld [vmem:[%s3727 + $0x2f4] sm:$0xff]
    %v3855 = vld [vmem:[%s3727 + $0x2fc] sm:$0xf]
    %v3984 = vunpack.c.l.b16 %v3728
    %v3985 = vunpack.c.h.b16 %v3728
    %v3986 = vunpack.c.l.b16 %v3729
    %v3987 = vunpack.c.l.b16 %v3730
    %v3988 = vunpack.c.h.b16 %v3730
    %v3989 = vunpack.c.l.b16 %v3731
    %v3990 = vunpack.c.l.b16 %v3732
    %v3991 = vunpack.c.h.b16 %v3732
    %v3992 = vunpack.c.l.b16 %v3733
    %v3993 = vunpack.c.l.b16 %v3734
    %v3994 = vunpack.c.h.b16 %v3734
    %v3995 = vunpack.c.l.b16 %v3735
    %v3996 = vunpack.c.l.b16 %v3736
    %v3997 = vunpack.c.h.b16 %v3736
    %v3998 = vunpack.c.l.b16 %v3737
    %v3999 = vunpack.c.l.b16 %v3738
    %v4000 = vunpack.c.h.b16 %v3738
    %v4001 = vunpack.c.l.b16 %v3739
    %v4002 = vunpack.c.l.b16 %v3740
    %v4003 = vunpack.c.h.b16 %v3740
    %v4004 = vunpack.c.l.b16 %v3741
    %v4005 = vunpack.c.l.b16 %v3742
    %v4006 = vunpack.c.h.b16 %v3742
    %v4007 = vunpack.c.l.b16 %v3743
    %v4008 = vunpack.c.l.b16 %v3744
    %v4009 = vunpack.c.h.b16 %v3744
    %v4010 = vunpack.c.l.b16 %v3745
    %v4011 = vunpack.c.l.b16 %v3746
    %v4012 = vunpack.c.h.b16 %v3746
    %v4013 = vunpack.c.l.b16 %v3747
    %v4014 = vunpack.c.l.b16 %v3748
    %v4015 = vunpack.c.h.b16 %v3748
    %v4016 = vunpack.c.l.b16 %v3749
    %v4017 = vunpack.c.l.b16 %v3750
    %v4018 = vunpack.c.h.b16 %v3750
    %v4019 = vunpack.c.l.b16 %v3751
    %v4020 = vunpack.c.l.b16 %v3752
    %v4021 = vunpack.c.h.b16 %v3752
    %v4022 = vunpack.c.l.b16 %v3753
    %v4023 = vunpack.c.l.b16 %v3754
    %v4024 = vunpack.c.h.b16 %v3754
    %v4025 = vunpack.c.l.b16 %v3755
    %v4026 = vunpack.c.l.b16 %v3756
    %v4027 = vunpack.c.h.b16 %v3756
    %v4028 = vunpack.c.l.b16 %v3757
    %v4029 = vunpack.c.l.b16 %v3758
    %v4030 = vunpack.c.h.b16 %v3758
    %v4031 = vunpack.c.l.b16 %v3759
    %v4032 = vunpack.c.l.b16 %v3760
    %v4033 = vunpack.c.h.b16 %v3760
    %v4034 = vunpack.c.l.b16 %v3761
    %v4035 = vunpack.c.l.b16 %v3762
    %v4036 = vunpack.c.h.b16 %v3762
    %v4037 = vunpack.c.l.b16 %v3763
    %v4038 = vunpack.c.l.b16 %v3764
    %v4039 = vunpack.c.h.b16 %v3764
    %v4040 = vunpack.c.l.b16 %v3765
    %v4041 = vunpack.c.l.b16 %v3766
    %v4042 = vunpack.c.h.b16 %v3766
    %v4043 = vunpack.c.l.b16 %v3767
    %v4044 = vunpack.c.l.b16 %v3768
    %v4045 = vunpack.c.h.b16 %v3768
    %v4046 = vunpack.c.l.b16 %v3769
    %v4047 = vunpack.c.l.b16 %v3770
    %v4048 = vunpack.c.h.b16 %v3770
    %v4049 = vunpack.c.l.b16 %v3771
    %v4050 = vunpack.c.l.b16 %v3772
    %v4051 = vunpack.c.h.b16 %v3772
    %v4052 = vunpack.c.l.b16 %v3773
    %v4053 = vunpack.c.l.b16 %v3774
    %v4054 = vunpack.c.h.b16 %v3774
    %v4055 = vunpack.c.l.b16 %v3775
    %v4056 = vunpack.c.l.b16 %v3776
    %v4057 = vunpack.c.h.b16 %v3776
    %v4058 = vunpack.c.l.b16 %v3777
    %v4059 = vunpack.c.l.b16 %v3778
    %v4060 = vunpack.c.h.b16 %v3778
    %v4061 = vunpack.c.l.b16 %v3779
    %v4062 = vunpack.c.l.b16 %v3780
    %v4063 = vunpack.c.h.b16 %v3780
    %v4064 = vunpack.c.l.b16 %v3781
    %v4065 = vunpack.c.l.b16 %v3782
    %v4066 = vunpack.c.h.b16 %v3782
    %v4067 = vunpack.c.l.b16 %v3783
    %v4068 = vunpack.c.l.b16 %v3784
    %v4069 = vunpack.c.h.b16 %v3784
    %v4070 = vunpack.c.l.b16 %v3785
    %v4071 = vunpack.c.l.b16 %v3786
    %v4072 = vunpack.c.h.b16 %v3786
    %v4073 = vunpack.c.l.b16 %v3787
    %v4074 = vunpack.c.l.b16 %v3788
    %v4075 = vunpack.c.h.b16 %v3788
    %v4076 = vunpack.c.l.b16 %v3789
    %v4077 = vunpack.c.l.b16 %v3790
    %v4078 = vunpack.c.h.b16 %v3790
    %v4079 = vunpack.c.l.b16 %v3791
    %v4080 = vunpack.c.l.b16 %v3792
    %v4081 = vunpack.c.h.b16 %v3792
    %v4082 = vunpack.c.l.b16 %v3793
    %v4083 = vunpack.c.l.b16 %v3794
    %v4084 = vunpack.c.h.b16 %v3794
    %v4085 = vunpack.c.l.b16 %v3795
    %v4086 = vunpack.c.l.b16 %v3796
    %v4087 = vunpack.c.h.b16 %v3796
    %v4088 = vunpack.c.l.b16 %v3797
    %v4089 = vunpack.c.l.b16 %v3798
    %v4090 = vunpack.c.h.b16 %v3798
    %v4091 = vunpack.c.l.b16 %v3799
    %v4092 = vunpack.c.l.b16 %v3800
    %v4093 = vunpack.c.h.b16 %v3800
    %v4094 = vunpack.c.l.b16 %v3801
    %v4095 = vunpack.c.l.b16 %v3802
    %v4096 = vunpack.c.h.b16 %v3802
    %v4097 = vunpack.c.l.b16 %v3803
    %v4098 = vunpack.c.l.b16 %v3804
    %v4099 = vunpack.c.h.b16 %v3804
    %v4100 = vunpack.c.l.b16 %v3805
    %v4101 = vunpack.c.l.b16 %v3806
    %v4102 = vunpack.c.h.b16 %v3806
    %v4103 = vunpack.c.l.b16 %v3807
    %v4104 = vunpack.c.l.b16 %v3808
    %v4105 = vunpack.c.h.b16 %v3808
    %v4106 = vunpack.c.l.b16 %v3809
    %v4107 = vunpack.c.l.b16 %v3810
    %v4108 = vunpack.c.h.b16 %v3810
    %v4109 = vunpack.c.l.b16 %v3811
    %v4110 = vunpack.c.l.b16 %v3812
    %v4111 = vunpack.c.h.b16 %v3812
    %v4112 = vunpack.c.l.b16 %v3813
    %v4113 = vunpack.c.l.b16 %v3814
    %v4114 = vunpack.c.h.b16 %v3814
    %v4115 = vunpack.c.l.b16 %v3815
    %v4116 = vunpack.c.l.b16 %v3816
    %v4117 = vunpack.c.h.b16 %v3816
    %v4118 = vunpack.c.l.b16 %v3817
    %v4119 = vunpack.c.l.b16 %v3818
    %v4120 = vunpack.c.h.b16 %v3818
    %v4121 = vunpack.c.l.b16 %v3819
    %v4122 = vunpack.c.l.b16 %v3820
    %v4123 = vunpack.c.h.b16 %v3820
    %v4124 = vunpack.c.l.b16 %v3821
    %v4125 = vunpack.c.l.b16 %v3822
    %v4126 = vunpack.c.h.b16 %v3822
    %v4127 = vunpack.c.l.b16 %v3823
    %v4128 = vunpack.c.l.b16 %v3824
    %v4129 = vunpack.c.h.b16 %v3824
    %v4130 = vunpack.c.l.b16 %v3825
    %v4131 = vunpack.c.l.b16 %v3826
    %v4132 = vunpack.c.h.b16 %v3826
    %v4133 = vunpack.c.l.b16 %v3827
    %v4134 = vunpack.c.l.b16 %v3828
    %v4135 = vunpack.c.h.b16 %v3828
    %v4136 = vunpack.c.l.b16 %v3829
    %v4137 = vunpack.c.l.b16 %v3830
    %v4138 = vunpack.c.h.b16 %v3830
    %v4139 = vunpack.c.l.b16 %v3831
    %v4140 = vunpack.c.l.b16 %v3832
    %v4141 = vunpack.c.h.b16 %v3832
    %v4142 = vunpack.c.l.b16 %v3833
    %v4143 = vunpack.c.l.b16 %v3834
    %v4144 = vunpack.c.h.b16 %v3834
    %v4145 = vunpack.c.l.b16 %v3835
    %v4146 = vunpack.c.l.b16 %v3836
    %v4147 = vunpack.c.h.b16 %v3836
    %v4148 = vunpack.c.l.b16 %v3837
    %v4149 = vunpack.c.l.b16 %v3838
    %v4150 = vunpack.c.h.b16 %v3838
    %v4151 = vunpack.c.l.b16 %v3839
    %v4152 = vunpack.c.l.b16 %v3840
    %v4153 = vunpack.c.h.b16 %v3840
    %v4154 = vunpack.c.l.b16 %v3841
    %v4155 = vunpack.c.l.b16 %v3842
    %v4156 = vunpack.c.h.b16 %v3842
    %v4157 = vunpack.c.l.b16 %v3843
    %v4158 = vunpack.c.l.b16 %v3844
    %v4159 = vunpack.c.h.b16 %v3844
    %v4160 = vunpack.c.l.b16 %v3845
    %v4161 = vunpack.c.l.b16 %v3846
    %v4162 = vunpack.c.h.b16 %v3846
    %v4163 = vunpack.c.l.b16 %v3847
    %v4164 = vunpack.c.l.b16 %v3848
    %v4165 = vunpack.c.h.b16 %v3848
    %v4166 = vunpack.c.l.b16 %v3849
    %v4167 = vunpack.c.l.b16 %v3850
    %v4168 = vunpack.c.h.b16 %v3850
    %v4169 = vunpack.c.l.b16 %v3851
    %v4170 = vunpack.c.l.b16 %v3852
    %v4171 = vunpack.c.h.b16 %v3852
    %v4172 = vunpack.c.l.b16 %v3853
    %v4173 = vunpack.c.l.b16 %v3854
    %v4174 = vunpack.c.h.b16 %v3854
    %v4175 = vunpack.c.l.b16 %v3855
    %v4176 = vpack.c.b16 %v3987, %v3984
    %v4177 = vpack.c.b16 %v3988, %v3985
    %v4178 = vpack.c.b16 %v3989, %v3986
    %v4179 = vpack.c.b16 %v3993, %v3990
    %v4180 = vpack.c.b16 %v3994, %v3991
    %v4181 = vpack.c.b16 %v3995, %v3992
    %v4182 = vpack.c.b16 %v3999, %v3996
    %v4183 = vpack.c.b16 %v4000, %v3997
    %v4184 = vpack.c.b16 %v4001, %v3998
    %v4185 = vpack.c.b16 %v4005, %v4002
    %v4186 = vpack.c.b16 %v4006, %v4003
    %v4187 = vpack.c.b16 %v4007, %v4004
    %v4188 = vpack.c.b16 %v4011, %v4008
    %v4189 = vpack.c.b16 %v4012, %v4009
    %v4190 = vpack.c.b16 %v4013, %v4010
    %v4191 = vpack.c.b16 %v4017, %v4014
    %v4192 = vpack.c.b16 %v4018, %v4015
    %v4193 = vpack.c.b16 %v4019, %v4016
    %v4194 = vpack.c.b16 %v4023, %v4020
    %v4195 = vpack.c.b16 %v4024, %v4021
    %v4196 = vpack.c.b16 %v4025, %v4022
    %v4197 = vpack.c.b16 %v4029, %v4026
    %v4198 = vpack.c.b16 %v4030, %v4027
    %v4199 = vpack.c.b16 %v4031, %v4028
    %v4200 = vpack.c.b16 %v4035, %v4032
    %v4201 = vpack.c.b16 %v4036, %v4033
    %v4202 = vpack.c.b16 %v4037, %v4034
    %v4203 = vpack.c.b16 %v4041, %v4038
    %v4204 = vpack.c.b16 %v4042, %v4039
    %v4205 = vpack.c.b16 %v4043, %v4040
    %v4206 = vpack.c.b16 %v4047, %v4044
    %v4207 = vpack.c.b16 %v4048, %v4045
    %v4208 = vpack.c.b16 %v4049, %v4046
    %v4209 = vpack.c.b16 %v4053, %v4050
    %v4210 = vpack.c.b16 %v4054, %v4051
    %v4211 = vpack.c.b16 %v4055, %v4052
    %v4212 = vpack.c.b16 %v4059, %v4056
    %v4213 = vpack.c.b16 %v4060, %v4057
    %v4214 = vpack.c.b16 %v4061, %v4058
    %v4215 = vpack.c.b16 %v4065, %v4062
    %v4216 = vpack.c.b16 %v4066, %v4063
    %v4217 = vpack.c.b16 %v4067, %v4064
    %v4218 = vpack.c.b16 %v4071, %v4068
    %v4219 = vpack.c.b16 %v4072, %v4069
    %v4220 = vpack.c.b16 %v4073, %v4070
    %v4221 = vpack.c.b16 %v4077, %v4074
    %v4222 = vpack.c.b16 %v4078, %v4075
    %v4223 = vpack.c.b16 %v4079, %v4076
    %v4224 = vpack.c.b16 %v4083, %v4080
    %v4225 = vpack.c.b16 %v4084, %v4081
    %v4226 = vpack.c.b16 %v4085, %v4082
    %v4227 = vpack.c.b16 %v4089, %v4086
    %v4228 = vpack.c.b16 %v4090, %v4087
    %v4229 = vpack.c.b16 %v4091, %v4088
    %v4230 = vpack.c.b16 %v4095, %v4092
    %v4231 = vpack.c.b16 %v4096, %v4093
    %v4232 = vpack.c.b16 %v4097, %v4094
    %v4233 = vpack.c.b16 %v4101, %v4098
    %v4234 = vpack.c.b16 %v4102, %v4099
    %v4235 = vpack.c.b16 %v4103, %v4100
    %v4236 = vpack.c.b16 %v4107, %v4104
    %v4237 = vpack.c.b16 %v4108, %v4105
    %v4238 = vpack.c.b16 %v4109, %v4106
    %v4239 = vpack.c.b16 %v4113, %v4110
    %v4240 = vpack.c.b16 %v4114, %v4111
    %v4241 = vpack.c.b16 %v4115, %v4112
    %v4242 = vpack.c.b16 %v4119, %v4116
    %v4243 = vpack.c.b16 %v4120, %v4117
    %v4244 = vpack.c.b16 %v4121, %v4118
    %v4245 = vpack.c.b16 %v4125, %v4122
    %v4246 = vpack.c.b16 %v4126, %v4123
    %v4247 = vpack.c.b16 %v4127, %v4124
    %v4248 = vpack.c.b16 %v4131, %v4128
    %v4249 = vpack.c.b16 %v4132, %v4129
    %v4250 = vpack.c.b16 %v4133, %v4130
    %v4251 = vpack.c.b16 %v4137, %v4134
    %v4252 = vpack.c.b16 %v4138, %v4135
    %v4253 = vpack.c.b16 %v4139, %v4136
    %v4254 = vpack.c.b16 %v4143, %v4140
    %v4255 = vpack.c.b16 %v4144, %v4141
    %v4256 = vpack.c.b16 %v4145, %v4142
    %v4257 = vpack.c.b16 %v4149, %v4146
    %v4258 = vpack.c.b16 %v4150, %v4147
    %v4259 = vpack.c.b16 %v4151, %v4148
    %v4260 = vpack.c.b16 %v4155, %v4152
    %v4261 = vpack.c.b16 %v4156, %v4153
    %v4262 = vpack.c.b16 %v4157, %v4154
    %v4263 = vpack.c.b16 %v4161, %v4158
    %v4264 = vpack.c.b16 %v4162, %v4159
    %v4265 = vpack.c.b16 %v4163, %v4160
    %v4266 = vpack.c.b16 %v4167, %v4164
    %v4267 = vpack.c.b16 %v4168, %v4165
    %v4268 = vpack.c.b16 %v4169, %v4166
    %v4269 = vpack.c.b16 %v4173, %v4170
    %v4270 = vpack.c.b16 %v4174, %v4171
    %v4271 = vpack.c.b16 %v4175, %v4172
    %4368 = vmatprep.subr.bf16.mxu0 %v4198
    %4369 = vmatpush1.bf16.msra.mxu0 %v4197
    %4370 = vmatprep.subr.bf16.mxu0 %v4195
    %4371 = vmatpush1.bf16.msra.mxu0 %v4194
    %4372 = vmatprep.subr.bf16.mxu0 %v4192
    %4373 = vmatpush1.bf16.msra.mxu0 %v4191
    %4374 = vmatprep.subr.bf16.mxu0 %v4189
    %4375 = vmatpush1.bf16.msra.mxu0 %v4188
    %4376 = vmatprep.subr.bf16.mxu0 %v4186
    %4377 = vmatpush1.bf16.msra.mxu0 %v4185
    %4378 = vmatprep.subr.bf16.mxu0 %v4183
    %4379 = vmatpush1.bf16.msra.mxu0 %v4182
    %4380 = vmatprep.subr.bf16.mxu0 %v4180
    %4381 = vmatpush1.bf16.msra.mxu0 %v4179
    %4382 = vmatprep.subr.bf16.mxu0 %v4177
    %4383 = vmatpush1.bf16.msra.mxu0 %v4176
    %4384 = vmatprep.subr.bf16.mxu0 %v4222
    %4385 = vmatpush2.bf16.msra.mxu0 %v4221
    %4386 = vmatprep.subr.bf16.mxu0 %v4219
    %4387 = vmatpush2.bf16.msra.mxu0 %v4218
    %4388 = vmatprep.subr.bf16.mxu0 %v4216
    %4389 = vmatpush2.bf16.msra.mxu0 %v4215
    %4390 = vmatprep.subr.bf16.mxu0 %v4213
    %4391 = vmatpush2.bf16.msra.mxu0 %v4212
    %4392 = vmatprep.subr.bf16.mxu0 %v4210
    %4393 = vmatpush2.bf16.msra.mxu0 %v4209
    %4394 = vmatprep.subr.bf16.mxu0 %v4207
    %4395 = vmatpush2.bf16.msra.mxu0 %v4206
    %4396 = vmatprep.subr.bf16.mxu0 %v4204
    %4397 = vmatpush2.bf16.msra.mxu0 %v4203
    %4398 = vmatprep.subr.bf16.mxu0 %v4201
    %4399 = vmatpush2.bf16.msra.mxu0 %v4200
    %4400 = vmatprep.mubr.bf16.mxu0 %v3724
    %4401 = vmatmul.mubr.bf16.gmra.mxu0 %v3723
    %v4402 = vpop.f32.mrf.mxu0
    %v4403 = vadd.f32 0.0, %v4402
    %v4404 = vpop.f32.mrf.mxu0
    %v4405 = vadd.f32 0.0, %v4404
    %v4406 = vpop.f32.mrf.mxu0
    %v4407 = vpop.f32.mrf.mxu0
    %4408 = vdwg.mxu0
    %4409 = vmatprep.subr.bf16.mxu0 %v4246
    %4410 = vmatpush1.bf16.msra.mxu0 %v4245
    %4411 = vmatprep.subr.bf16.mxu0 %v4243
    %4412 = vmatpush1.bf16.msra.mxu0 %v4242
    %4413 = vmatprep.subr.bf16.mxu0 %v4240
    %4414 = vmatpush1.bf16.msra.mxu0 %v4239
    %4415 = vmatprep.subr.bf16.mxu0 %v4237
    %4416 = vmatpush1.bf16.msra.mxu0 %v4236
    %4417 = vmatprep.subr.bf16.mxu0 %v4234
    %4418 = vmatpush1.bf16.msra.mxu0 %v4233
    %4419 = vmatprep.subr.bf16.mxu0 %v4231
    %4420 = vmatpush1.bf16.msra.mxu0 %v4230
    %4421 = vmatprep.subr.bf16.mxu0 %v4228
    %4422 = vmatpush1.bf16.msra.mxu0 %v4227
    %4423 = vmatprep.subr.bf16.mxu0 %v4225
    %4424 = vmatpush1.bf16.msra.mxu0 %v4224
    %4425 = vmatprep.subr.bf16.mxu0 %v4270
    %4426 = vmatpush2.bf16.msra.mxu0 %v4269
    %4427 = vmatprep.subr.bf16.mxu0 %v4267
    %4428 = vmatpush2.bf16.msra.mxu0 %v4266
    %4429 = vmatprep.subr.bf16.mxu0 %v4264
    %4430 = vmatpush2.bf16.msra.mxu0 %v4263
    %4431 = vmatprep.subr.bf16.mxu0 %v4261
    %4432 = vmatpush2.bf16.msra.mxu0 %v4260
    %4433 = vmatprep.subr.bf16.mxu0 %v4258
    %4434 = vmatpush2.bf16.msra.mxu0 %v4257
    %4435 = vmatprep.subr.bf16.mxu0 %v4255
    %4436 = vmatpush2.bf16.msra.mxu0 %v4254
    %4437 = vmatprep.subr.bf16.mxu0 %v4252
    %4438 = vmatpush2.bf16.msra.mxu0 %v4251
    %4439 = vmatprep.subr.bf16.mxu0 %v4249
    %4440 = vmatpush2.bf16.msra.mxu0 %v4248
    %4441 = vmatprep.mubr.bf16.mxu0 %v3726
    %4442 = vmatmul.mubr.bf16.gmra.mxu0 %v3725
    %v4443 = vpop.f32.mrf.mxu0
    %v4444 = vadd.f32 %v4403, %v4443
    %v4445 = vpop.f32.mrf.mxu0
    %v4446 = vadd.f32 %v4405, %v4445
    %v4447 = vpop.f32.mrf.mxu0
    %v4448 = vpop.f32.mrf.mxu0
    %4449 = vdwg.mxu0
    %4450 = vmatprep.subr.bf16.mxu0 0
    %4451 = vmatpush1.bf16.msra.mxu0 %v4199
    %4452 = vmatprep.subr.bf16.mxu0 0
    %4453 = vmatpush1.bf16.msra.mxu0 %v4196
    %4454 = vmatprep.subr.bf16.mxu0 0
    %4455 = vmatpush1.bf16.msra.mxu0 %v4193
    %4456 = vmatprep.subr.bf16.mxu0 0
    %4457 = vmatpush1.bf16.msra.mxu0 %v4190
    %4458 = vmatprep.subr.bf16.mxu0 0
    %4459 = vmatpush1.bf16.msra.mxu0 %v4187
    %4460 = vmatprep.subr.bf16.mxu0 0
    %4461 = vmatpush1.bf16.msra.mxu0 %v4184
    %4462 = vmatprep.subr.bf16.mxu0 0
    %4463 = vmatpush1.bf16.msra.mxu0 %v4181
    %4464 = vmatprep.subr.bf16.mxu0 0
    %4465 = vmatpush1.bf16.msra.mxu0 %v4178
    %4466 = vmatprep.subr.bf16.mxu0 0
    %4467 = vmatpush2.bf16.msra.mxu0 %v4223
    %4468 = vmatprep.subr.bf16.mxu0 0
    %4469 = vmatpush2.bf16.msra.mxu0 %v4220
    %4470 = vmatprep.subr.bf16.mxu0 0
    %4471 = vmatpush2.bf16.msra.mxu0 %v4217
    %4472 = vmatprep.subr.bf16.mxu0 0
    %4473 = vmatpush2.bf16.msra.mxu0 %v4214
    %4474 = vmatprep.subr.bf16.mxu0 0
    %4475 = vmatpush2.bf16.msra.mxu0 %v4211
    %4476 = vmatprep.subr.bf16.mxu0 0
    %4477 = vmatpush2.bf16.msra.mxu0 %v4208
    %4478 = vmatprep.subr.bf16.mxu0 0
    %4479 = vmatpush2.bf16.msra.mxu0 %v4205
    %4480 = vmatprep.subr.bf16.mxu0 0
    %4481 = vmatpush2.bf16.msra.mxu0 %v4202
    %4482 = vmatprep.mubr.bf16.mxu0 %v3724
    %4483 = vmatmul.mubr.bf16.gmra.mxu0 %v3723
    %v4484 = vpop.f32.mrf.mxu0
    %v4485 = vadd.f32 0.0, %v4484
    %v4486 = vpop.f32.mrf.mxu0
    %v4487 = vpop.f32.mrf.mxu0
    %v4488 = vpop.f32.mrf.mxu0
    %4489 = vdwg.mxu0
    %4490 = vmatprep.subr.bf16.mxu0 0
    %4491 = vmatpush1.bf16.msra.mxu0 %v4247
    %4492 = vmatprep.subr.bf16.mxu0 0
    %4493 = vmatpush1.bf16.msra.mxu0 %v4244
    %4494 = vmatprep.subr.bf16.mxu0 0
    %4495 = vmatpush1.bf16.msra.mxu0 %v4241
    %4496 = vmatprep.subr.bf16.mxu0 0
    %4497 = vmatpush1.bf16.msra.mxu0 %v4238
    %4498 = vmatprep.subr.bf16.mxu0 0
    %4499 = vmatpush1.bf16.msra.mxu0 %v4235
    %4500 = vmatprep.subr.bf16.mxu0 0
    %4501 = vmatpush1.bf16.msra.mxu0 %v4232
    %4502 = vmatprep.subr.bf16.mxu0 0
    %4503 = vmatpush1.bf16.msra.mxu0 %v4229
    %4504 = vmatprep.subr.bf16.mxu0 0
    %4505 = vmatpush1.bf16.msra.mxu0 %v4226
    %4506 = vmatprep.subr.bf16.mxu0 0
    %4507 = vmatpush2.bf16.msra.mxu0 %v4271
    %4508 = vmatprep.subr.bf16.mxu0 0
    %4509 = vmatpush2.bf16.msra.mxu0 %v4268
    %4510 = vmatprep.subr.bf16.mxu0 0
    %4511 = vmatpush2.bf16.msra.mxu0 %v4265
    %4512 = vmatprep.subr.bf16.mxu0 0
    %4513 = vmatpush2.bf16.msra.mxu0 %v4262
    %4514 = vmatprep.subr.bf16.mxu0 0
    %4515 = vmatpush2.bf16.msra.mxu0 %v4259
    %4516 = vmatprep.subr.bf16.mxu0 0
    %4517 = vmatpush2.bf16.msra.mxu0 %v4256
    %4518 = vmatprep.subr.bf16.mxu0 0
    %4519 = vmatpush2.bf16.msra.mxu0 %v4253
    %4520 = vmatprep.subr.bf16.mxu0 0
    %4521 = vmatpush2.bf16.msra.mxu0 %v4250
    %4522 = vmatprep.mubr.bf16.mxu0 %v3726
    %4523 = vmatmul.mubr.bf16.gmra.mxu0 %v3725
    %v4524 = vpop.f32.mrf.mxu0
    %v4525 = vadd.f32 %v4485, %v4524
    %v4526 = vpop.f32.mrf.mxu0
    %v4527 = vpop.f32.mrf.mxu0
    %v4528 = vpop.f32.mrf.mxu0
    %4529 = vdwg.mxu0
    %v4534 = vrot.slane %v274, 2
    %v4535 = vrot.slane %v276, 2
    %v4536 = vrot.slane %v317, 2
    %v4537 = vrot.slane %v319, 2
    %v4542 = vsel %vm419, %v4534, %v360
    %v4543 = vsel %vm419, %v4535, %v362
    %v4544 = vsel %vm419, %v4536, %v403
    %v4545 = vsel %vm419, %v4537, %v405
    %v4546 = vpack.c.bf16 %v4542, %v4542
    %v4547 = vpack.c.bf16 %v4543, %v4543
    %v4548 = vpack.c.bf16 %v4544, %v4544
    %v4549 = vpack.c.bf16 %v4545, %v4545
    %s4550 = scalar_lea.vmem [#allocation7], 3840
    %v4551 = vld [vmem:[%s4550] sm:$0xff]
    %v4552 = vld [vmem:[%s4550 + $0x8] sm:$0xf]
    %v4553 = vld [vmem:[%s4550 + $0xc] sm:$0xff]
    %v4554 = vld [vmem:[%s4550 + $0x14] sm:$0xf]
    %v4555 = vld [vmem:[%s4550 + $0x18] sm:$0xff]
    %v4556 = vld [vmem:[%s4550 + $0x20] sm:$0xf]
    %v4557 = vld [vmem:[%s4550 + $0x24] sm:$0xff]
    %v4558 = vld [vmem:[%s4550 + $0x2c] sm:$0xf]
    %v4559 = vld [vmem:[%s4550 + $0x30] sm:$0xff]
    %v4560 = vld [vmem:[%s4550 + $0x38] sm:$0xf]
    %v4561 = vld [vmem:[%s4550 + $0x3c] sm:$0xff]
    %v4562 = vld [vmem:[%s4550 + $0x44] sm:$0xf]
    %v4563 = vld [vmem:[%s4550 + $0x48] sm:$0xff]
    %v4564 = vld [vmem:[%s4550 + $0x50] sm:$0xf]
    %v4565 = vld [vmem:[%s4550 + $0x54] sm:$0xff]
    %v4566 = vld [vmem:[%s4550 + $0x5c] sm:$0xf]
    %v4567 = vld [vmem:[%s4550 + $0x60] sm:$0xff]
    %v4568 = vld [vmem:[%s4550 + $0x68] sm:$0xf]
    %v4569 = vld [vmem:[%s4550 + $0x6c] sm:$0xff]
    %v4570 = vld [vmem:[%s4550 + $0x74] sm:$0xf]
    %v4571 = vld [vmem:[%s4550 + $0x78] sm:$0xff]
    %v4572 = vld [vmem:[%s4550 + $0x80] sm:$0xf]
    %v4573 = vld [vmem:[%s4550 + $0x84] sm:$0xff]
    %v4574 = vld [vmem:[%s4550 + $0x8c] sm:$0xf]
    %v4575 = vld [vmem:[%s4550 + $0x90] sm:$0xff]
    %v4576 = vld [vmem:[%s4550 + $0x98] sm:$0xf]
    %v4577 = vld [vmem:[%s4550 + $0x9c] sm:$0xff]
    %v4578 = vld [vmem:[%s4550 + $0xa4] sm:$0xf]
    %v4579 = vld [vmem:[%s4550 + $0xa8] sm:$0xff]
    %v4580 = vld [vmem:[%s4550 + $0xb0] sm:$0xf]
    %v4581 = vld [vmem:[%s4550 + $0xb4] sm:$0xff]
    %v4582 = vld [vmem:[%s4550 + $0xbc] sm:$0xf]
    %v4583 = vld [vmem:[%s4550 + $0xc0] sm:$0xff]
    %v4584 = vld [vmem:[%s4550 + $0xc8] sm:$0xf]
    %v4585 = vld [vmem:[%s4550 + $0xcc] sm:$0xff]
    %v4586 = vld [vmem:[%s4550 + $0xd4] sm:$0xf]
    %v4587 = vld [vmem:[%s4550 + $0xd8] sm:$0xff]
    %v4588 = vld [vmem:[%s4550 + $0xe0] sm:$0xf]
    %v4589 = vld [vmem:[%s4550 + $0xe4] sm:$0xff]
    %v4590 = vld [vmem:[%s4550 + $0xec] sm:$0xf]
    %v4591 = vld [vmem:[%s4550 + $0xf0] sm:$0xff]
    %v4592 = vld [vmem:[%s4550 + $0xf8] sm:$0xf]
    %v4593 = vld [vmem:[%s4550 + $0xfc] sm:$0xff]
    %v4594 = vld [vmem:[%s4550 + $0x104] sm:$0xf]
    %v4595 = vld [vmem:[%s4550 + $0x108] sm:$0xff]
    %v4596 = vld [vmem:[%s4550 + $0x110] sm:$0xf]
    %v4597 = vld [vmem:[%s4550 + $0x114] sm:$0xff]
    %v4598 = vld [vmem:[%s4550 + $0x11c] sm:$0xf]
    %v4599 = vld [vmem:[%s4550 + $0x120] sm:$0xff]
    %v4600 = vld [vmem:[%s4550 + $0x128] sm:$0xf]
    %v4601 = vld [vmem:[%s4550 + $0x12c] sm:$0xff]
    %v4602 = vld [vmem:[%s4550 + $0x134] sm:$0xf]
    %v4603 = vld [vmem:[%s4550 + $0x138] sm:$0xff]
    %v4604 = vld [vmem:[%s4550 + $0x140] sm:$0xf]
    %v4605 = vld [vmem:[%s4550 + $0x144] sm:$0xff]
    %v4606 = vld [vmem:[%s4550 + $0x14c] sm:$0xf]
    %v4607 = vld [vmem:[%s4550 + $0x150] sm:$0xff]
    %v4608 = vld [vmem:[%s4550 + $0x158] sm:$0xf]
    %v4609 = vld [vmem:[%s4550 + $0x15c] sm:$0xff]
    %v4610 = vld [vmem:[%s4550 + $0x164] sm:$0xf]
    %v4611 = vld [vmem:[%s4550 + $0x168] sm:$0xff]
    %v4612 = vld [vmem:[%s4550 + $0x170] sm:$0xf]
    %v4613 = vld [vmem:[%s4550 + $0x174] sm:$0xff]
    %v4614 = vld [vmem:[%s4550 + $0x17c] sm:$0xf]
    %v4615 = vld [vmem:[%s4550 + $0x180] sm:$0xff]
    %v4616 = vld [vmem:[%s4550 + $0x188] sm:$0xf]
    %v4617 = vld [vmem:[%s4550 + $0x18c] sm:$0xff]
    %v4618 = vld [vmem:[%s4550 + $0x194] sm:$0xf]
    %v4619 = vld [vmem:[%s4550 + $0x198] sm:$0xff]
    %v4620 = vld [vmem:[%s4550 + $0x1a0] sm:$0xf]
    %v4621 = vld [vmem:[%s4550 + $0x1a4] sm:$0xff]
    %v4622 = vld [vmem:[%s4550 + $0x1ac] sm:$0xf]
    %v4623 = vld [vmem:[%s4550 + $0x1b0] sm:$0xff]
    %v4624 = vld [vmem:[%s4550 + $0x1b8] sm:$0xf]
    %v4625 = vld [vmem:[%s4550 + $0x1bc] sm:$0xff]
    %v4626 = vld [vmem:[%s4550 + $0x1c4] sm:$0xf]
    %v4627 = vld [vmem:[%s4550 + $0x1c8] sm:$0xff]
    %v4628 = vld [vmem:[%s4550 + $0x1d0] sm:$0xf]
    %v4629 = vld [vmem:[%s4550 + $0x1d4] sm:$0xff]
    %v4630 = vld [vmem:[%s4550 + $0x1dc] sm:$0xf]
    %v4631 = vld [vmem:[%s4550 + $0x1e0] sm:$0xff]
    %v4632 = vld [vmem:[%s4550 + $0x1e8] sm:$0xf]
    %v4633 = vld [vmem:[%s4550 + $0x1ec] sm:$0xff]
    %v4634 = vld [vmem:[%s4550 + $0x1f4] sm:$0xf]
    %v4635 = vld [vmem:[%s4550 + $0x1f8] sm:$0xff]
    %v4636 = vld [vmem:[%s4550 + $0x200] sm:$0xf]
    %v4637 = vld [vmem:[%s4550 + $0x204] sm:$0xff]
    %v4638 = vld [vmem:[%s4550 + $0x20c] sm:$0xf]
    %v4639 = vld [vmem:[%s4550 + $0x210] sm:$0xff]
    %v4640 = vld [vmem:[%s4550 + $0x218] sm:$0xf]
    %v4641 = vld [vmem:[%s4550 + $0x21c] sm:$0xff]
    %v4642 = vld [vmem:[%s4550 + $0x224] sm:$0xf]
    %v4643 = vld [vmem:[%s4550 + $0x228] sm:$0xff]
    %v4644 = vld [vmem:[%s4550 + $0x230] sm:$0xf]
    %v4645 = vld [vmem:[%s4550 + $0x234] sm:$0xff]
    %v4646 = vld [vmem:[%s4550 + $0x23c] sm:$0xf]
    %v4647 = vld [vmem:[%s4550 + $0x240] sm:$0xff]
    %v4648 = vld [vmem:[%s4550 + $0x248] sm:$0xf]
    %v4649 = vld [vmem:[%s4550 + $0x24c] sm:$0xff]
    %v4650 = vld [vmem:[%s4550 + $0x254] sm:$0xf]
    %v4651 = vld [vmem:[%s4550 + $0x258] sm:$0xff]
    %v4652 = vld [vmem:[%s4550 + $0x260] sm:$0xf]
    %v4653 = vld [vmem:[%s4550 + $0x264] sm:$0xff]
    %v4654 = vld [vmem:[%s4550 + $0x26c] sm:$0xf]
    %v4655 = vld [vmem:[%s4550 + $0x270] sm:$0xff]
    %v4656 = vld [vmem:[%s4550 + $0x278] sm:$0xf]
    %v4657 = vld [vmem:[%s4550 + $0x27c] sm:$0xff]
    %v4658 = vld [vmem:[%s4550 + $0x284] sm:$0xf]
    %v4659 = vld [vmem:[%s4550 + $0x288] sm:$0xff]
    %v4660 = vld [vmem:[%s4550 + $0x290] sm:$0xf]
    %v4661 = vld [vmem:[%s4550 + $0x294] sm:$0xff]
    %v4662 = vld [vmem:[%s4550 + $0x29c] sm:$0xf]
    %v4663 = vld [vmem:[%s4550 + $0x2a0] sm:$0xff]
    %v4664 = vld [vmem:[%s4550 + $0x2a8] sm:$0xf]
    %v4665 = vld [vmem:[%s4550 + $0x2ac] sm:$0xff]
    %v4666 = vld [vmem:[%s4550 + $0x2b4] sm:$0xf]
    %v4667 = vld [vmem:[%s4550 + $0x2b8] sm:$0xff]
    %v4668 = vld [vmem:[%s4550 + $0x2c0] sm:$0xf]
    %v4669 = vld [vmem:[%s4550 + $0x2c4] sm:$0xff]
    %v4670 = vld [vmem:[%s4550 + $0x2cc] sm:$0xf]
    %v4671 = vld [vmem:[%s4550 + $0x2d0] sm:$0xff]
    %v4672 = vld [vmem:[%s4550 + $0x2d8] sm:$0xf]
    %v4673 = vld [vmem:[%s4550 + $0x2dc] sm:$0xff]
    %v4674 = vld [vmem:[%s4550 + $0x2e4] sm:$0xf]
    %v4675 = vld [vmem:[%s4550 + $0x2e8] sm:$0xff]
    %v4676 = vld [vmem:[%s4550 + $0x2f0] sm:$0xf]
    %v4677 = vld [vmem:[%s4550 + $0x2f4] sm:$0xff]
    %v4678 = vld [vmem:[%s4550 + $0x2fc] sm:$0xf]
    %v4807 = vunpack.c.l.b16 %v4551
    %v4808 = vunpack.c.h.b16 %v4551
    %v4809 = vunpack.c.l.b16 %v4552
    %v4810 = vunpack.c.l.b16 %v4553
    %v4811 = vunpack.c.h.b16 %v4553
    %v4812 = vunpack.c.l.b16 %v4554
    %v4813 = vunpack.c.l.b16 %v4555
    %v4814 = vunpack.c.h.b16 %v4555
    %v4815 = vunpack.c.l.b16 %v4556
    %v4816 = vunpack.c.l.b16 %v4557
    %v4817 = vunpack.c.h.b16 %v4557
    %v4818 = vunpack.c.l.b16 %v4558
    %v4819 = vunpack.c.l.b16 %v4559
    %v4820 = vunpack.c.h.b16 %v4559
    %v4821 = vunpack.c.l.b16 %v4560
    %v4822 = vunpack.c.l.b16 %v4561
    %v4823 = vunpack.c.h.b16 %v4561
    %v4824 = vunpack.c.l.b16 %v4562
    %v4825 = vunpack.c.l.b16 %v4563
    %v4826 = vunpack.c.h.b16 %v4563
    %v4827 = vunpack.c.l.b16 %v4564
    %v4828 = vunpack.c.l.b16 %v4565
    %v4829 = vunpack.c.h.b16 %v4565
    %v4830 = vunpack.c.l.b16 %v4566
    %v4831 = vunpack.c.l.b16 %v4567
    %v4832 = vunpack.c.h.b16 %v4567
    %v4833 = vunpack.c.l.b16 %v4568
    %v4834 = vunpack.c.l.b16 %v4569
    %v4835 = vunpack.c.h.b16 %v4569
    %v4836 = vunpack.c.l.b16 %v4570
    %v4837 = vunpack.c.l.b16 %v4571
    %v4838 = vunpack.c.h.b16 %v4571
    %v4839 = vunpack.c.l.b16 %v4572
    %v4840 = vunpack.c.l.b16 %v4573
    %v4841 = vunpack.c.h.b16 %v4573
    %v4842 = vunpack.c.l.b16 %v4574
    %v4843 = vunpack.c.l.b16 %v4575
    %v4844 = vunpack.c.h.b16 %v4575
    %v4845 = vunpack.c.l.b16 %v4576
    %v4846 = vunpack.c.l.b16 %v4577
    %v4847 = vunpack.c.h.b16 %v4577
    %v4848 = vunpack.c.l.b16 %v4578
    %v4849 = vunpack.c.l.b16 %v4579
    %v4850 = vunpack.c.h.b16 %v4579
    %v4851 = vunpack.c.l.b16 %v4580
    %v4852 = vunpack.c.l.b16 %v4581
    %v4853 = vunpack.c.h.b16 %v4581
    %v4854 = vunpack.c.l.b16 %v4582
    %v4855 = vunpack.c.l.b16 %v4583
    %v4856 = vunpack.c.h.b16 %v4583
    %v4857 = vunpack.c.l.b16 %v4584
    %v4858 = vunpack.c.l.b16 %v4585
    %v4859 = vunpack.c.h.b16 %v4585
    %v4860 = vunpack.c.l.b16 %v4586
    %v4861 = vunpack.c.l.b16 %v4587
    %v4862 = vunpack.c.h.b16 %v4587
    %v4863 = vunpack.c.l.b16 %v4588
    %v4864 = vunpack.c.l.b16 %v4589
    %v4865 = vunpack.c.h.b16 %v4589
    %v4866 = vunpack.c.l.b16 %v4590
    %v4867 = vunpack.c.l.b16 %v4591
    %v4868 = vunpack.c.h.b16 %v4591
    %v4869 = vunpack.c.l.b16 %v4592
    %v4870 = vunpack.c.l.b16 %v4593
    %v4871 = vunpack.c.h.b16 %v4593
    %v4872 = vunpack.c.l.b16 %v4594
    %v4873 = vunpack.c.l.b16 %v4595
    %v4874 = vunpack.c.h.b16 %v4595
    %v4875 = vunpack.c.l.b16 %v4596
    %v4876 = vunpack.c.l.b16 %v4597
    %v4877 = vunpack.c.h.b16 %v4597
    %v4878 = vunpack.c.l.b16 %v4598
    %v4879 = vunpack.c.l.b16 %v4599
    %v4880 = vunpack.c.h.b16 %v4599
    %v4881 = vunpack.c.l.b16 %v4600
    %v4882 = vunpack.c.l.b16 %v4601
    %v4883 = vunpack.c.h.b16 %v4601
    %v4884 = vunpack.c.l.b16 %v4602
    %v4885 = vunpack.c.l.b16 %v4603
    %v4886 = vunpack.c.h.b16 %v4603
    %v4887 = vunpack.c.l.b16 %v4604
    %v4888 = vunpack.c.l.b16 %v4605
    %v4889 = vunpack.c.h.b16 %v4605
    %v4890 = vunpack.c.l.b16 %v4606
    %v4891 = vunpack.c.l.b16 %v4607
    %v4892 = vunpack.c.h.b16 %v4607
    %v4893 = vunpack.c.l.b16 %v4608
    %v4894 = vunpack.c.l.b16 %v4609
    %v4895 = vunpack.c.h.b16 %v4609
    %v4896 = vunpack.c.l.b16 %v4610
    %v4897 = vunpack.c.l.b16 %v4611
    %v4898 = vunpack.c.h.b16 %v4611
    %v4899 = vunpack.c.l.b16 %v4612
    %v4900 = vunpack.c.l.b16 %v4613
    %v4901 = vunpack.c.h.b16 %v4613
    %v4902 = vunpack.c.l.b16 %v4614
    %v4903 = vunpack.c.l.b16 %v4615
    %v4904 = vunpack.c.h.b16 %v4615
    %v4905 = vunpack.c.l.b16 %v4616
    %v4906 = vunpack.c.l.b16 %v4617
    %v4907 = vunpack.c.h.b16 %v4617
    %v4908 = vunpack.c.l.b16 %v4618
    %v4909 = vunpack.c.l.b16 %v4619
    %v4910 = vunpack.c.h.b16 %v4619
    %v4911 = vunpack.c.l.b16 %v4620
    %v4912 = vunpack.c.l.b16 %v4621
    %v4913 = vunpack.c.h.b16 %v4621
    %v4914 = vunpack.c.l.b16 %v4622
    %v4915 = vunpack.c.l.b16 %v4623
    %v4916 = vunpack.c.h.b16 %v4623
    %v4917 = vunpack.c.l.b16 %v4624
    %v4918 = vunpack.c.l.b16 %v4625
    %v4919 = vunpack.c.h.b16 %v4625
    %v4920 = vunpack.c.l.b16 %v4626
    %v4921 = vunpack.c.l.b16 %v4627
    %v4922 = vunpack.c.h.b16 %v4627
    %v4923 = vunpack.c.l.b16 %v4628
    %v4924 = vunpack.c.l.b16 %v4629
    %v4925 = vunpack.c.h.b16 %v4629
    %v4926 = vunpack.c.l.b16 %v4630
    %v4927 = vunpack.c.l.b16 %v4631
    %v4928 = vunpack.c.h.b16 %v4631
    %v4929 = vunpack.c.l.b16 %v4632
    %v4930 = vunpack.c.l.b16 %v4633
    %v4931 = vunpack.c.h.b16 %v4633
    %v4932 = vunpack.c.l.b16 %v4634
    %v4933 = vunpack.c.l.b16 %v4635
    %v4934 = vunpack.c.h.b16 %v4635
    %v4935 = vunpack.c.l.b16 %v4636
    %v4936 = vunpack.c.l.b16 %v4637
    %v4937 = vunpack.c.h.b16 %v4637
    %v4938 = vunpack.c.l.b16 %v4638
    %v4939 = vunpack.c.l.b16 %v4639
    %v4940 = vunpack.c.h.b16 %v4639
    %v4941 = vunpack.c.l.b16 %v4640
    %v4942 = vunpack.c.l.b16 %v4641
    %v4943 = vunpack.c.h.b16 %v4641
    %v4944 = vunpack.c.l.b16 %v4642
    %v4945 = vunpack.c.l.b16 %v4643
    %v4946 = vunpack.c.h.b16 %v4643
    %v4947 = vunpack.c.l.b16 %v4644
    %v4948 = vunpack.c.l.b16 %v4645
    %v4949 = vunpack.c.h.b16 %v4645
    %v4950 = vunpack.c.l.b16 %v4646
    %v4951 = vunpack.c.l.b16 %v4647
    %v4952 = vunpack.c.h.b16 %v4647
    %v4953 = vunpack.c.l.b16 %v4648
    %v4954 = vunpack.c.l.b16 %v4649
    %v4955 = vunpack.c.h.b16 %v4649
    %v4956 = vunpack.c.l.b16 %v4650
    %v4957 = vunpack.c.l.b16 %v4651
    %v4958 = vunpack.c.h.b16 %v4651
    %v4959 = vunpack.c.l.b16 %v4652
    %v4960 = vunpack.c.l.b16 %v4653
    %v4961 = vunpack.c.h.b16 %v4653
    %v4962 = vunpack.c.l.b16 %v4654
    %v4963 = vunpack.c.l.b16 %v4655
    %v4964 = vunpack.c.h.b16 %v4655
    %v4965 = vunpack.c.l.b16 %v4656
    %v4966 = vunpack.c.l.b16 %v4657
    %v4967 = vunpack.c.h.b16 %v4657
    %v4968 = vunpack.c.l.b16 %v4658
    %v4969 = vunpack.c.l.b16 %v4659
    %v4970 = vunpack.c.h.b16 %v4659
    %v4971 = vunpack.c.l.b16 %v4660
    %v4972 = vunpack.c.l.b16 %v4661
    %v4973 = vunpack.c.h.b16 %v4661
    %v4974 = vunpack.c.l.b16 %v4662
    %v4975 = vunpack.c.l.b16 %v4663
    %v4976 = vunpack.c.h.b16 %v4663
    %v4977 = vunpack.c.l.b16 %v4664
    %v4978 = vunpack.c.l.b16 %v4665
    %v4979 = vunpack.c.h.b16 %v4665
    %v4980 = vunpack.c.l.b16 %v4666
    %v4981 = vunpack.c.l.b16 %v4667
    %v4982 = vunpack.c.h.b16 %v4667
    %v4983 = vunpack.c.l.b16 %v4668
    %v4984 = vunpack.c.l.b16 %v4669
    %v4985 = vunpack.c.h.b16 %v4669
    %v4986 = vunpack.c.l.b16 %v4670
    %v4987 = vunpack.c.l.b16 %v4671
    %v4988 = vunpack.c.h.b16 %v4671
    %v4989 = vunpack.c.l.b16 %v4672
    %v4990 = vunpack.c.l.b16 %v4673
    %v4991 = vunpack.c.h.b16 %v4673
    %v4992 = vunpack.c.l.b16 %v4674
    %v4993 = vunpack.c.l.b16 %v4675
    %v4994 = vunpack.c.h.b16 %v4675
    %v4995 = vunpack.c.l.b16 %v4676
    %v4996 = vunpack.c.l.b16 %v4677
    %v4997 = vunpack.c.h.b16 %v4677
    %v4998 = vunpack.c.l.b16 %v4678
    %v4999 = vpack.c.b16 %v4810, %v4807
    %v5000 = vpack.c.b16 %v4811, %v4808
    %v5001 = vpack.c.b16 %v4812, %v4809
    %v5002 = vpack.c.b16 %v4816, %v4813
    %v5003 = vpack.c.b16 %v4817, %v4814
    %v5004 = vpack.c.b16 %v4818, %v4815
    %v5005 = vpack.c.b16 %v4822, %v4819
    %v5006 = vpack.c.b16 %v4823, %v4820
    %v5007 = vpack.c.b16 %v4824, %v4821
    %v5008 = vpack.c.b16 %v4828, %v4825
    %v5009 = vpack.c.b16 %v4829, %v4826
    %v5010 = vpack.c.b16 %v4830, %v4827
    %v5011 = vpack.c.b16 %v4834, %v4831
    %v5012 = vpack.c.b16 %v4835, %v4832
    %v5013 = vpack.c.b16 %v4836, %v4833
    %v5014 = vpack.c.b16 %v4840, %v4837
    %v5015 = vpack.c.b16 %v4841, %v4838
    %v5016 = vpack.c.b16 %v4842, %v4839
    %v5017 = vpack.c.b16 %v4846, %v4843
    %v5018 = vpack.c.b16 %v4847, %v4844
    %v5019 = vpack.c.b16 %v4848, %v4845
    %v5020 = vpack.c.b16 %v4852, %v4849
    %v5021 = vpack.c.b16 %v4853, %v4850
    %v5022 = vpack.c.b16 %v4854, %v4851
    %v5023 = vpack.c.b16 %v4858, %v4855
    %v5024 = vpack.c.b16 %v4859, %v4856
    %v5025 = vpack.c.b16 %v4860, %v4857
    %v5026 = vpack.c.b16 %v4864, %v4861
    %v5027 = vpack.c.b16 %v4865, %v4862
    %v5028 = vpack.c.b16 %v4866, %v4863
    %v5029 = vpack.c.b16 %v4870, %v4867
    %v5030 = vpack.c.b16 %v4871, %v4868
    %v5031 = vpack.c.b16 %v4872, %v4869
    %v5032 = vpack.c.b16 %v4876, %v4873
    %v5033 = vpack.c.b16 %v4877, %v4874
    %v5034 = vpack.c.b16 %v4878, %v4875
    %v5035 = vpack.c.b16 %v4882, %v4879
    %v5036 = vpack.c.b16 %v4883, %v4880
    %v5037 = vpack.c.b16 %v4884, %v4881
    %v5038 = vpack.c.b16 %v4888, %v4885
    %v5039 = vpack.c.b16 %v4889, %v4886
    %v5040 = vpack.c.b16 %v4890, %v4887
    %v5041 = vpack.c.b16 %v4894, %v4891
    %v5042 = vpack.c.b16 %v4895, %v4892
    %v5043 = vpack.c.b16 %v4896, %v4893
    %v5044 = vpack.c.b16 %v4900, %v4897
    %v5045 = vpack.c.b16 %v4901, %v4898
    %v5046 = vpack.c.b16 %v4902, %v4899
    %v5047 = vpack.c.b16 %v4906, %v4903
    %v5048 = vpack.c.b16 %v4907, %v4904
    %v5049 = vpack.c.b16 %v4908, %v4905
    %v5050 = vpack.c.b16 %v4912, %v4909
    %v5051 = vpack.c.b16 %v4913, %v4910
    %v5052 = vpack.c.b16 %v4914, %v4911
    %v5053 = vpack.c.b16 %v4918, %v4915
    %v5054 = vpack.c.b16 %v4919, %v4916
    %v5055 = vpack.c.b16 %v4920, %v4917
    %v5056 = vpack.c.b16 %v4924, %v4921
    %v5057 = vpack.c.b16 %v4925, %v4922
    %v5058 = vpack.c.b16 %v4926, %v4923
    %v5059 = vpack.c.b16 %v4930, %v4927
    %v5060 = vpack.c.b16 %v4931, %v4928
    %v5061 = vpack.c.b16 %v4932, %v4929
    %v5062 = vpack.c.b16 %v4936, %v4933
    %v5063 = vpack.c.b16 %v4937, %v4934
    %v5064 = vpack.c.b16 %v4938, %v4935
    %v5065 = vpack.c.b16 %v4942, %v4939
    %v5066 = vpack.c.b16 %v4943, %v4940
    %v5067 = vpack.c.b16 %v4944, %v4941
    %v5068 = vpack.c.b16 %v4948, %v4945
    %v5069 = vpack.c.b16 %v4949, %v4946
    %v5070 = vpack.c.b16 %v4950, %v4947
    %v5071 = vpack.c.b16 %v4954, %v4951
    %v5072 = vpack.c.b16 %v4955, %v4952
    %v5073 = vpack.c.b16 %v4956, %v4953
    %v5074 = vpack.c.b16 %v4960, %v4957
    %v5075 = vpack.c.b16 %v4961, %v4958
    %v5076 = vpack.c.b16 %v4962, %v4959
    %v5077 = vpack.c.b16 %v4966, %v4963
    %v5078 = vpack.c.b16 %v4967, %v4964
    %v5079 = vpack.c.b16 %v4968, %v4965
    %v5080 = vpack.c.b16 %v4972, %v4969
    %v5081 = vpack.c.b16 %v4973, %v4970
    %v5082 = vpack.c.b16 %v4974, %v4971
    %v5083 = vpack.c.b16 %v4978, %v4975
    %v5084 = vpack.c.b16 %v4979, %v4976
    %v5085 = vpack.c.b16 %v4980, %v4977
    %v5086 = vpack.c.b16 %v4984, %v4981
    %v5087 = vpack.c.b16 %v4985, %v4982
    %v5088 = vpack.c.b16 %v4986, %v4983
    %v5089 = vpack.c.b16 %v4990, %v4987
    %v5090 = vpack.c.b16 %v4991, %v4988
    %v5091 = vpack.c.b16 %v4992, %v4989
    %v5092 = vpack.c.b16 %v4996, %v4993
    %v5093 = vpack.c.b16 %v4997, %v4994
    %v5094 = vpack.c.b16 %v4998, %v4995
    %5191 = vmatprep.subr.bf16.mxu0 %v5021
    %5192 = vmatpush1.bf16.msra.mxu0 %v5020
    %5193 = vmatprep.subr.bf16.mxu0 %v5018
    %5194 = vmatpush1.bf16.msra.mxu0 %v5017
    %5195 = vmatprep.subr.bf16.mxu0 %v5015
    %5196 = vmatpush1.bf16.msra.mxu0 %v5014
    %5197 = vmatprep.subr.bf16.mxu0 %v5012
    %5198 = vmatpush1.bf16.msra.mxu0 %v5011
    %5199 = vmatprep.subr.bf16.mxu0 %v5009
    %5200 = vmatpush1.bf16.msra.mxu0 %v5008
    %5201 = vmatprep.subr.bf16.mxu0 %v5006
    %5202 = vmatpush1.bf16.msra.mxu0 %v5005
    %5203 = vmatprep.subr.bf16.mxu0 %v5003
    %5204 = vmatpush1.bf16.msra.mxu0 %v5002
    %5205 = vmatprep.subr.bf16.mxu0 %v5000
    %5206 = vmatpush1.bf16.msra.mxu0 %v4999
    %5207 = vmatprep.subr.bf16.mxu0 %v5045
    %5208 = vmatpush2.bf16.msra.mxu0 %v5044
    %5209 = vmatprep.subr.bf16.mxu0 %v5042
    %5210 = vmatpush2.bf16.msra.mxu0 %v5041
    %5211 = vmatprep.subr.bf16.mxu0 %v5039
    %5212 = vmatpush2.bf16.msra.mxu0 %v5038
    %5213 = vmatprep.subr.bf16.mxu0 %v5036
    %5214 = vmatpush2.bf16.msra.mxu0 %v5035
    %5215 = vmatprep.subr.bf16.mxu0 %v5033
    %5216 = vmatpush2.bf16.msra.mxu0 %v5032
    %5217 = vmatprep.subr.bf16.mxu0 %v5030
    %5218 = vmatpush2.bf16.msra.mxu0 %v5029
    %5219 = vmatprep.subr.bf16.mxu0 %v5027
    %5220 = vmatpush2.bf16.msra.mxu0 %v5026
    %5221 = vmatprep.subr.bf16.mxu0 %v5024
    %5222 = vmatpush2.bf16.msra.mxu0 %v5023
    %5223 = vmatprep.mubr.bf16.mxu0 %v4547
    %5224 = vmatmul.mubr.bf16.gmra.mxu0 %v4546
    %v5225 = vpop.f32.mrf.mxu0
    %v5226 = vadd.f32 0.0, %v5225
    %v5227 = vpop.f32.mrf.mxu0
    %v5228 = vadd.f32 0.0, %v5227
    %v5229 = vpop.f32.mrf.mxu0
    %v5230 = vpop.f32.mrf.mxu0
    %5231 = vdwg.mxu0
    %5232 = vmatprep.subr.bf16.mxu0 %v5069
    %5233 = vmatpush1.bf16.msra.mxu0 %v5068
    %5234 = vmatprep.subr.bf16.mxu0 %v5066
    %5235 = vmatpush1.bf16.msra.mxu0 %v5065
    %5236 = vmatprep.subr.bf16.mxu0 %v5063
    %5237 = vmatpush1.bf16.msra.mxu0 %v5062
    %5238 = vmatprep.subr.bf16.mxu0 %v5060
    %5239 = vmatpush1.bf16.msra.mxu0 %v5059
    %5240 = vmatprep.subr.bf16.mxu0 %v5057
    %5241 = vmatpush1.bf16.msra.mxu0 %v5056
    %5242 = vmatprep.subr.bf16.mxu0 %v5054
    %5243 = vmatpush1.bf16.msra.mxu0 %v5053
    %5244 = vmatprep.subr.bf16.mxu0 %v5051
    %5245 = vmatpush1.bf16.msra.mxu0 %v5050
    %5246 = vmatprep.subr.bf16.mxu0 %v5048
    %5247 = vmatpush1.bf16.msra.mxu0 %v5047
    %5248 = vmatprep.subr.bf16.mxu0 %v5093
    %5249 = vmatpush2.bf16.msra.mxu0 %v5092
    %5250 = vmatprep.subr.bf16.mxu0 %v5090
    %5251 = vmatpush2.bf16.msra.mxu0 %v5089
    %5252 = vmatprep.subr.bf16.mxu0 %v5087
    %5253 = vmatpush2.bf16.msra.mxu0 %v5086
    %5254 = vmatprep.subr.bf16.mxu0 %v5084
    %5255 = vmatpush2.bf16.msra.mxu0 %v5083
    %5256 = vmatprep.subr.bf16.mxu0 %v5081
    %5257 = vmatpush2.bf16.msra.mxu0 %v5080
    %5258 = vmatprep.subr.bf16.mxu0 %v5078
    %5259 = vmatpush2.bf16.msra.mxu0 %v5077
    %5260 = vmatprep.subr.bf16.mxu0 %v5075
    %5261 = vmatpush2.bf16.msra.mxu0 %v5074
    %5262 = vmatprep.subr.bf16.mxu0 %v5072
    %5263 = vmatpush2.bf16.msra.mxu0 %v5071
    %5264 = vmatprep.mubr.bf16.mxu0 %v4549
    %5265 = vmatmul.mubr.bf16.gmra.mxu0 %v4548
    %v5266 = vpop.f32.mrf.mxu0
    %v5267 = vadd.f32 %v5226, %v5266
    %v5268 = vpop.f32.mrf.mxu0
    %v5269 = vadd.f32 %v5228, %v5268
    %v5270 = vpop.f32.mrf.mxu0
    %v5271 = vpop.f32.mrf.mxu0
    %5272 = vdwg.mxu0
    %5273 = vmatprep.subr.bf16.mxu0 0
    %5274 = vmatpush1.bf16.msra.mxu0 %v5022
    %5275 = vmatprep.subr.bf16.mxu0 0
    %5276 = vmatpush1.bf16.msra.mxu0 %v5019
    %5277 = vmatprep.subr.bf16.mxu0 0
    %5278 = vmatpush1.bf16.msra.mxu0 %v5016
    %5279 = vmatprep.subr.bf16.mxu0 0
    %5280 = vmatpush1.bf16.msra.mxu0 %v5013
    %5281 = vmatprep.subr.bf16.mxu0 0
    %5282 = vmatpush1.bf16.msra.mxu0 %v5010
    %5283 = vmatprep.subr.bf16.mxu0 0
    %5284 = vmatpush1.bf16.msra.mxu0 %v5007
    %5285 = vmatprep.subr.bf16.mxu0 0
    %5286 = vmatpush1.bf16.msra.mxu0 %v5004
    %5287 = vmatprep.subr.bf16.mxu0 0
    %5288 = vmatpush1.bf16.msra.mxu0 %v5001
    %5289 = vmatprep.subr.bf16.mxu0 0
    %5290 = vmatpush2.bf16.msra.mxu0 %v5046
    %5291 = vmatprep.subr.bf16.mxu0 0
    %5292 = vmatpush2.bf16.msra.mxu0 %v5043
    %5293 = vmatprep.subr.bf16.mxu0 0
    %5294 = vmatpush2.bf16.msra.mxu0 %v5040
    %5295 = vmatprep.subr.bf16.mxu0 0
    %5296 = vmatpush2.bf16.msra.mxu0 %v5037
    %5297 = vmatprep.subr.bf16.mxu0 0
    %5298 = vmatpush2.bf16.msra.mxu0 %v5034
    %5299 = vmatprep.subr.bf16.mxu0 0
    %5300 = vmatpush2.bf16.msra.mxu0 %v5031
    %5301 = vmatprep.subr.bf16.mxu0 0
    %5302 = vmatpush2.bf16.msra.mxu0 %v5028
    %5303 = vmatprep.subr.bf16.mxu0 0
    %5304 = vmatpush2.bf16.msra.mxu0 %v5025
    %5305 = vmatprep.mubr.bf16.mxu0 %v4547
    %5306 = vmatmul.mubr.bf16.gmra.mxu0 %v4546
    %v5307 = vpop.f32.mrf.mxu0
    %v5308 = vadd.f32 0.0, %v5307
    %v5309 = vpop.f32.mrf.mxu0
    %v5310 = vpop.f32.mrf.mxu0
    %v5311 = vpop.f32.mrf.mxu0
    %5312 = vdwg.mxu0
    %5313 = vmatprep.subr.bf16.mxu0 0
    %5314 = vmatpush1.bf16.msra.mxu0 %v5070
    %5315 = vmatprep.subr.bf16.mxu0 0
    %5316 = vmatpush1.bf16.msra.mxu0 %v5067
    %5317 = vmatprep.subr.bf16.mxu0 0
    %5318 = vmatpush1.bf16.msra.mxu0 %v5064
    %5319 = vmatprep.subr.bf16.mxu0 0
    %5320 = vmatpush1.bf16.msra.mxu0 %v5061
    %5321 = vmatprep.subr.bf16.mxu0 0
    %5322 = vmatpush1.bf16.msra.mxu0 %v5058
    %5323 = vmatprep.subr.bf16.mxu0 0
    %5324 = vmatpush1.bf16.msra.mxu0 %v5055
    %5325 = vmatprep.subr.bf16.mxu0 0
    %5326 = vmatpush1.bf16.msra.mxu0 %v5052
    %5327 = vmatprep.subr.bf16.mxu0 0
    %5328 = vmatpush1.bf16.msra.mxu0 %v5049
    %5329 = vmatprep.subr.bf16.mxu0 0
    %5330 = vmatpush2.bf16.msra.mxu0 %v5094
    %5331 = vmatprep.subr.bf16.mxu0 0
    %5332 = vmatpush2.bf16.msra.mxu0 %v5091
    %5333 = vmatprep.subr.bf16.mxu0 0
    %5334 = vmatpush2.bf16.msra.mxu0 %v5088
    %5335 = vmatprep.subr.bf16.mxu0 0
    %5336 = vmatpush2.bf16.msra.mxu0 %v5085
    %5337 = vmatprep.subr.bf16.mxu0 0
    %5338 = vmatpush2.bf16.msra.mxu0 %v5082
    %5339 = vmatprep.subr.bf16.mxu0 0
    %5340 = vmatpush2.bf16.msra.mxu0 %v5079
    %5341 = vmatprep.subr.bf16.mxu0 0
    %5342 = vmatpush2.bf16.msra.mxu0 %v5076
    %5343 = vmatprep.subr.bf16.mxu0 0
    %5344 = vmatpush2.bf16.msra.mxu0 %v5073
    %5345 = vmatprep.mubr.bf16.mxu0 %v4549
    %5346 = vmatmul.mubr.bf16.gmra.mxu0 %v4548
    %v5347 = vpop.f32.mrf.mxu0
    %v5348 = vadd.f32 %v5308, %v5347
    %v5349 = vpop.f32.mrf.mxu0
    %v5350 = vpop.f32.mrf.mxu0
    %v5351 = vpop.f32.mrf.mxu0
    %5352 = vdwg.mxu0
    %v5353 = vrot.slane %v274, 4
    %v5354 = vrot.slane %v276, 4
    %v5355 = vrot.slane %v317, 4
    %v5356 = vrot.slane %v319, 4
    %v5361 = vrot.slane %v360, 2
    %v5362 = vrot.slane %v362, 2
    %v5363 = vrot.slane %v403, 2
    %v5364 = vrot.slane %v405, 2
    %v5369 = vsel %vm419, %v5353, %v5361
    %v5370 = vsel %vm419, %v5354, %v5362
    %v5371 = vsel %vm419, %v5355, %v5363
    %v5372 = vsel %vm419, %v5356, %v5364
    %v5373 = vpack.c.bf16 %v5369, %v5369
    %v5374 = vpack.c.bf16 %v5370, %v5370
    %v5375 = vpack.c.bf16 %v5371, %v5371
    %v5376 = vpack.c.bf16 %v5372, %v5372
    %s5377 = scalar_lea.vmem [#allocation7], 4608
    %v5378 = vld [vmem:[%s5377] sm:$0xff]
    %v5379 = vld [vmem:[%s5377 + $0x8] sm:$0xf]
    %v5380 = vld [vmem:[%s5377 + $0xc] sm:$0xff]
    %v5381 = vld [vmem:[%s5377 + $0x14] sm:$0xf]
    %v5382 = vld [vmem:[%s5377 + $0x18] sm:$0xff]
    %v5383 = vld [vmem:[%s5377 + $0x20] sm:$0xf]
    %v5384 = vld [vmem:[%s5377 + $0x24] sm:$0xff]
    %v5385 = vld [vmem:[%s5377 + $0x2c] sm:$0xf]
    %v5386 = vld [vmem:[%s5377 + $0x30] sm:$0xff]
    %v5387 = vld [vmem:[%s5377 + $0x38] sm:$0xf]
    %v5388 = vld [vmem:[%s5377 + $0x3c] sm:$0xff]
    %v5389 = vld [vmem:[%s5377 + $0x44] sm:$0xf]
    %v5390 = vld [vmem:[%s5377 + $0x48] sm:$0xff]
    %v5391 = vld [vmem:[%s5377 + $0x50] sm:$0xf]
    %v5392 = vld [vmem:[%s5377 + $0x54] sm:$0xff]
    %v5393 = vld [vmem:[%s5377 + $0x5c] sm:$0xf]
    %v5394 = vld [vmem:[%s5377 + $0x60] sm:$0xff]
    %v5395 = vld [vmem:[%s5377 + $0x68] sm:$0xf]
    %v5396 = vld [vmem:[%s5377 + $0x6c] sm:$0xff]
    %v5397 = vld [vmem:[%s5377 + $0x74] sm:$0xf]
    %v5398 = vld [vmem:[%s5377 + $0x78] sm:$0xff]
    %v5399 = vld [vmem:[%s5377 + $0x80] sm:$0xf]
    %v5400 = vld [vmem:[%s5377 + $0x84] sm:$0xff]
    %v5401 = vld [vmem:[%s5377 + $0x8c] sm:$0xf]
    %v5402 = vld [vmem:[%s5377 + $0x90] sm:$0xff]
    %v5403 = vld [vmem:[%s5377 + $0x98] sm:$0xf]
    %v5404 = vld [vmem:[%s5377 + $0x9c] sm:$0xff]
    %v5405 = vld [vmem:[%s5377 + $0xa4] sm:$0xf]
    %v5406 = vld [vmem:[%s5377 + $0xa8] sm:$0xff]
    %v5407 = vld [vmem:[%s5377 + $0xb0] sm:$0xf]
    %v5408 = vld [vmem:[%s5377 + $0xb4] sm:$0xff]
    %v5409 = vld [vmem:[%s5377 + $0xbc] sm:$0xf]
    %v5410 = vld [vmem:[%s5377 + $0xc0] sm:$0xff]
    %v5411 = vld [vmem:[%s5377 + $0xc8] sm:$0xf]
    %v5412 = vld [vmem:[%s5377 + $0xcc] sm:$0xff]
    %v5413 = vld [vmem:[%s5377 + $0xd4] sm:$0xf]
    %v5414 = vld [vmem:[%s5377 + $0xd8] sm:$0xff]
    %v5415 = vld [vmem:[%s5377 + $0xe0] sm:$0xf]
    %v5416 = vld [vmem:[%s5377 + $0xe4] sm:$0xff]
    %v5417 = vld [vmem:[%s5377 + $0xec] sm:$0xf]
    %v5418 = vld [vmem:[%s5377 + $0xf0] sm:$0xff]
    %v5419 = vld [vmem:[%s5377 + $0xf8] sm:$0xf]
    %v5420 = vld [vmem:[%s5377 + $0xfc] sm:$0xff]
    %v5421 = vld [vmem:[%s5377 + $0x104] sm:$0xf]
    %v5422 = vld [vmem:[%s5377 + $0x108] sm:$0xff]
    %v5423 = vld [vmem:[%s5377 + $0x110] sm:$0xf]
    %v5424 = vld [vmem:[%s5377 + $0x114] sm:$0xff]
    %v5425 = vld [vmem:[%s5377 + $0x11c] sm:$0xf]
    %v5426 = vld [vmem:[%s5377 + $0x120] sm:$0xff]
    %v5427 = vld [vmem:[%s5377 + $0x128] sm:$0xf]
    %v5428 = vld [vmem:[%s5377 + $0x12c] sm:$0xff]
    %v5429 = vld [vmem:[%s5377 + $0x134] sm:$0xf]
    %v5430 = vld [vmem:[%s5377 + $0x138] sm:$0xff]
    %v5431 = vld [vmem:[%s5377 + $0x140] sm:$0xf]
    %v5432 = vld [vmem:[%s5377 + $0x144] sm:$0xff]
    %v5433 = vld [vmem:[%s5377 + $0x14c] sm:$0xf]
    %v5434 = vld [vmem:[%s5377 + $0x150] sm:$0xff]
    %v5435 = vld [vmem:[%s5377 + $0x158] sm:$0xf]
    %v5436 = vld [vmem:[%s5377 + $0x15c] sm:$0xff]
    %v5437 = vld [vmem:[%s5377 + $0x164] sm:$0xf]
    %v5438 = vld [vmem:[%s5377 + $0x168] sm:$0xff]
    %v5439 = vld [vmem:[%s5377 + $0x170] sm:$0xf]
    %v5440 = vld [vmem:[%s5377 + $0x174] sm:$0xff]
    %v5441 = vld [vmem:[%s5377 + $0x17c] sm:$0xf]
    %v5442 = vld [vmem:[%s5377 + $0x180] sm:$0xff]
    %v5443 = vld [vmem:[%s5377 + $0x188] sm:$0xf]
    %v5444 = vld [vmem:[%s5377 + $0x18c] sm:$0xff]
    %v5445 = vld [vmem:[%s5377 + $0x194] sm:$0xf]
    %v5446 = vld [vmem:[%s5377 + $0x198] sm:$0xff]
    %v5447 = vld [vmem:[%s5377 + $0x1a0] sm:$0xf]
    %v5448 = vld [vmem:[%s5377 + $0x1a4] sm:$0xff]
    %v5449 = vld [vmem:[%s5377 + $0x1ac] sm:$0xf]
    %v5450 = vld [vmem:[%s5377 + $0x1b0] sm:$0xff]
    %v5451 = vld [vmem:[%s5377 + $0x1b8] sm:$0xf]
    %v5452 = vld [vmem:[%s5377 + $0x1bc] sm:$0xff]
    %v5453 = vld [vmem:[%s5377 + $0x1c4] sm:$0xf]
    %v5454 = vld [vmem:[%s5377 + $0x1c8] sm:$0xff]
    %v5455 = vld [vmem:[%s5377 + $0x1d0] sm:$0xf]
    %v5456 = vld [vmem:[%s5377 + $0x1d4] sm:$0xff]
    %v5457 = vld [vmem:[%s5377 + $0x1dc] sm:$0xf]
    %v5458 = vld [vmem:[%s5377 + $0x1e0] sm:$0xff]
    %v5459 = vld [vmem:[%s5377 + $0x1e8] sm:$0xf]
    %v5460 = vld [vmem:[%s5377 + $0x1ec] sm:$0xff]
    %v5461 = vld [vmem:[%s5377 + $0x1f4] sm:$0xf]
    %v5462 = vld [vmem:[%s5377 + $0x1f8] sm:$0xff]
    %v5463 = vld [vmem:[%s5377 + $0x200] sm:$0xf]
    %v5464 = vld [vmem:[%s5377 + $0x204] sm:$0xff]
    %v5465 = vld [vmem:[%s5377 + $0x20c] sm:$0xf]
    %v5466 = vld [vmem:[%s5377 + $0x210] sm:$0xff]
    %v5467 = vld [vmem:[%s5377 + $0x218] sm:$0xf]
    %v5468 = vld [vmem:[%s5377 + $0x21c] sm:$0xff]
    %v5469 = vld [vmem:[%s5377 + $0x224] sm:$0xf]
    %v5470 = vld [vmem:[%s5377 + $0x228] sm:$0xff]
    %v5471 = vld [vmem:[%s5377 + $0x230] sm:$0xf]
    %v5472 = vld [vmem:[%s5377 + $0x234] sm:$0xff]
    %v5473 = vld [vmem:[%s5377 + $0x23c] sm:$0xf]
    %v5474 = vld [vmem:[%s5377 + $0x240] sm:$0xff]
    %v5475 = vld [vmem:[%s5377 + $0x248] sm:$0xf]
    %v5476 = vld [vmem:[%s5377 + $0x24c] sm:$0xff]
    %v5477 = vld [vmem:[%s5377 + $0x254] sm:$0xf]
    %v5478 = vld [vmem:[%s5377 + $0x258] sm:$0xff]
    %v5479 = vld [vmem:[%s5377 + $0x260] sm:$0xf]
    %v5480 = vld [vmem:[%s5377 + $0x264] sm:$0xff]
    %v5481 = vld [vmem:[%s5377 + $0x26c] sm:$0xf]
    %v5482 = vld [vmem:[%s5377 + $0x270] sm:$0xff]
    %v5483 = vld [vmem:[%s5377 + $0x278] sm:$0xf]
    %v5484 = vld [vmem:[%s5377 + $0x27c] sm:$0xff]
    %v5485 = vld [vmem:[%s5377 + $0x284] sm:$0xf]
    %v5486 = vld [vmem:[%s5377 + $0x288] sm:$0xff]
    %v5487 = vld [vmem:[%s5377 + $0x290] sm:$0xf]
    %v5488 = vld [vmem:[%s5377 + $0x294] sm:$0xff]
    %v5489 = vld [vmem:[%s5377 + $0x29c] sm:$0xf]
    %v5490 = vld [vmem:[%s5377 + $0x2a0] sm:$0xff]
    %v5491 = vld [vmem:[%s5377 + $0x2a8] sm:$0xf]
    %v5492 = vld [vmem:[%s5377 + $0x2ac] sm:$0xff]
    %v5493 = vld [vmem:[%s5377 + $0x2b4] sm:$0xf]
    %v5494 = vld [vmem:[%s5377 + $0x2b8] sm:$0xff]
    %v5495 = vld [vmem:[%s5377 + $0x2c0] sm:$0xf]
    %v5496 = vld [vmem:[%s5377 + $0x2c4] sm:$0xff]
    %v5497 = vld [vmem:[%s5377 + $0x2cc] sm:$0xf]
    %v5498 = vld [vmem:[%s5377 + $0x2d0] sm:$0xff]
    %v5499 = vld [vmem:[%s5377 + $0x2d8] sm:$0xf]
    %v5500 = vld [vmem:[%s5377 + $0x2dc] sm:$0xff]
    %v5501 = vld [vmem:[%s5377 + $0x2e4] sm:$0xf]
    %v5502 = vld [vmem:[%s5377 + $0x2e8] sm:$0xff]
    %v5503 = vld [vmem:[%s5377 + $0x2f0] sm:$0xf]
    %v5504 = vld [vmem:[%s5377 + $0x2f4] sm:$0xff]
    %v5505 = vld [vmem:[%s5377 + $0x2fc] sm:$0xf]
    %v5634 = vunpack.c.l.b16 %v5378
    %v5635 = vunpack.c.h.b16 %v5378
    %v5636 = vunpack.c.l.b16 %v5379
    %v5637 = vunpack.c.l.b16 %v5380
    %v5638 = vunpack.c.h.b16 %v5380
    %v5639 = vunpack.c.l.b16 %v5381
    %v5640 = vunpack.c.l.b16 %v5382
    %v5641 = vunpack.c.h.b16 %v5382
    %v5642 = vunpack.c.l.b16 %v5383
    %v5643 = vunpack.c.l.b16 %v5384
    %v5644 = vunpack.c.h.b16 %v5384
    %v5645 = vunpack.c.l.b16 %v5385
    %v5646 = vunpack.c.l.b16 %v5386
    %v5647 = vunpack.c.h.b16 %v5386
    %v5648 = vunpack.c.l.b16 %v5387
    %v5649 = vunpack.c.l.b16 %v5388
    %v5650 = vunpack.c.h.b16 %v5388
    %v5651 = vunpack.c.l.b16 %v5389
    %v5652 = vunpack.c.l.b16 %v5390
    %v5653 = vunpack.c.h.b16 %v5390
    %v5654 = vunpack.c.l.b16 %v5391
    %v5655 = vunpack.c.l.b16 %v5392
    %v5656 = vunpack.c.h.b16 %v5392
    %v5657 = vunpack.c.l.b16 %v5393
    %v5658 = vunpack.c.l.b16 %v5394
    %v5659 = vunpack.c.h.b16 %v5394
    %v5660 = vunpack.c.l.b16 %v5395
    %v5661 = vunpack.c.l.b16 %v5396
    %v5662 = vunpack.c.h.b16 %v5396
    %v5663 = vunpack.c.l.b16 %v5397
    %v5664 = vunpack.c.l.b16 %v5398
    %v5665 = vunpack.c.h.b16 %v5398
    %v5666 = vunpack.c.l.b16 %v5399
    %v5667 = vunpack.c.l.b16 %v5400
    %v5668 = vunpack.c.h.b16 %v5400
    %v5669 = vunpack.c.l.b16 %v5401
    %v5670 = vunpack.c.l.b16 %v5402
    %v5671 = vunpack.c.h.b16 %v5402
    %v5672 = vunpack.c.l.b16 %v5403
    %v5673 = vunpack.c.l.b16 %v5404
    %v5674 = vunpack.c.h.b16 %v5404
    %v5675 = vunpack.c.l.b16 %v5405
    %v5676 = vunpack.c.l.b16 %v5406
    %v5677 = vunpack.c.h.b16 %v5406
    %v5678 = vunpack.c.l.b16 %v5407
    %v5679 = vunpack.c.l.b16 %v5408
    %v5680 = vunpack.c.h.b16 %v5408
    %v5681 = vunpack.c.l.b16 %v5409
    %v5682 = vunpack.c.l.b16 %v5410
    %v5683 = vunpack.c.h.b16 %v5410
    %v5684 = vunpack.c.l.b16 %v5411
    %v5685 = vunpack.c.l.b16 %v5412
    %v5686 = vunpack.c.h.b16 %v5412
    %v5687 = vunpack.c.l.b16 %v5413
    %v5688 = vunpack.c.l.b16 %v5414
    %v5689 = vunpack.c.h.b16 %v5414
    %v5690 = vunpack.c.l.b16 %v5415
    %v5691 = vunpack.c.l.b16 %v5416
    %v5692 = vunpack.c.h.b16 %v5416
    %v5693 = vunpack.c.l.b16 %v5417
    %v5694 = vunpack.c.l.b16 %v5418
    %v5695 = vunpack.c.h.b16 %v5418
    %v5696 = vunpack.c.l.b16 %v5419
    %v5697 = vunpack.c.l.b16 %v5420
    %v5698 = vunpack.c.h.b16 %v5420
    %v5699 = vunpack.c.l.b16 %v5421
    %v5700 = vunpack.c.l.b16 %v5422
    %v5701 = vunpack.c.h.b16 %v5422
    %v5702 = vunpack.c.l.b16 %v5423
    %v5703 = vunpack.c.l.b16 %v5424
    %v5704 = vunpack.c.h.b16 %v5424
    %v5705 = vunpack.c.l.b16 %v5425
    %v5706 = vunpack.c.l.b16 %v5426
    %v5707 = vunpack.c.h.b16 %v5426
    %v5708 = vunpack.c.l.b16 %v5427
    %v5709 = vunpack.c.l.b16 %v5428
    %v5710 = vunpack.c.h.b16 %v5428
    %v5711 = vunpack.c.l.b16 %v5429
    %v5712 = vunpack.c.l.b16 %v5430
    %v5713 = vunpack.c.h.b16 %v5430
    %v5714 = vunpack.c.l.b16 %v5431
    %v5715 = vunpack.c.l.b16 %v5432
    %v5716 = vunpack.c.h.b16 %v5432
    %v5717 = vunpack.c.l.b16 %v5433
    %v5718 = vunpack.c.l.b16 %v5434
    %v5719 = vunpack.c.h.b16 %v5434
    %v5720 = vunpack.c.l.b16 %v5435
    %v5721 = vunpack.c.l.b16 %v5436
    %v5722 = vunpack.c.h.b16 %v5436
    %v5723 = vunpack.c.l.b16 %v5437
    %v5724 = vunpack.c.l.b16 %v5438
    %v5725 = vunpack.c.h.b16 %v5438
    %v5726 = vunpack.c.l.b16 %v5439
    %v5727 = vunpack.c.l.b16 %v5440
    %v5728 = vunpack.c.h.b16 %v5440
    %v5729 = vunpack.c.l.b16 %v5441
    %v5730 = vunpack.c.l.b16 %v5442
    %v5731 = vunpack.c.h.b16 %v5442
    %v5732 = vunpack.c.l.b16 %v5443
    %v5733 = vunpack.c.l.b16 %v5444
    %v5734 = vunpack.c.h.b16 %v5444
    %v5735 = vunpack.c.l.b16 %v5445
    %v5736 = vunpack.c.l.b16 %v5446
    %v5737 = vunpack.c.h.b16 %v5446
    %v5738 = vunpack.c.l.b16 %v5447
    %v5739 = vunpack.c.l.b16 %v5448
    %v5740 = vunpack.c.h.b16 %v5448
    %v5741 = vunpack.c.l.b16 %v5449
    %v5742 = vunpack.c.l.b16 %v5450
    %v5743 = vunpack.c.h.b16 %v5450
    %v5744 = vunpack.c.l.b16 %v5451
    %v5745 = vunpack.c.l.b16 %v5452
    %v5746 = vunpack.c.h.b16 %v5452
    %v5747 = vunpack.c.l.b16 %v5453
    %v5748 = vunpack.c.l.b16 %v5454
    %v5749 = vunpack.c.h.b16 %v5454
    %v5750 = vunpack.c.l.b16 %v5455
    %v5751 = vunpack.c.l.b16 %v5456
    %v5752 = vunpack.c.h.b16 %v5456
    %v5753 = vunpack.c.l.b16 %v5457
    %v5754 = vunpack.c.l.b16 %v5458
    %v5755 = vunpack.c.h.b16 %v5458
    %v5756 = vunpack.c.l.b16 %v5459
    %v5757 = vunpack.c.l.b16 %v5460
    %v5758 = vunpack.c.h.b16 %v5460
    %v5759 = vunpack.c.l.b16 %v5461
    %v5760 = vunpack.c.l.b16 %v5462
    %v5761 = vunpack.c.h.b16 %v5462
    %v5762 = vunpack.c.l.b16 %v5463
    %v5763 = vunpack.c.l.b16 %v5464
    %v5764 = vunpack.c.h.b16 %v5464
    %v5765 = vunpack.c.l.b16 %v5465
    %v5766 = vunpack.c.l.b16 %v5466
    %v5767 = vunpack.c.h.b16 %v5466
    %v5768 = vunpack.c.l.b16 %v5467
    %v5769 = vunpack.c.l.b16 %v5468
    %v5770 = vunpack.c.h.b16 %v5468
    %v5771 = vunpack.c.l.b16 %v5469
    %v5772 = vunpack.c.l.b16 %v5470
    %v5773 = vunpack.c.h.b16 %v5470
    %v5774 = vunpack.c.l.b16 %v5471
    %v5775 = vunpack.c.l.b16 %v5472
    %v5776 = vunpack.c.h.b16 %v5472
    %v5777 = vunpack.c.l.b16 %v5473
    %v5778 = vunpack.c.l.b16 %v5474
    %v5779 = vunpack.c.h.b16 %v5474
    %v5780 = vunpack.c.l.b16 %v5475
    %v5781 = vunpack.c.l.b16 %v5476
    %v5782 = vunpack.c.h.b16 %v5476
    %v5783 = vunpack.c.l.b16 %v5477
    %v5784 = vunpack.c.l.b16 %v5478
    %v5785 = vunpack.c.h.b16 %v5478
    %v5786 = vunpack.c.l.b16 %v5479
    %v5787 = vunpack.c.l.b16 %v5480
    %v5788 = vunpack.c.h.b16 %v5480
    %v5789 = vunpack.c.l.b16 %v5481
    %v5790 = vunpack.c.l.b16 %v5482
    %v5791 = vunpack.c.h.b16 %v5482
    %v5792 = vunpack.c.l.b16 %v5483
    %v5793 = vunpack.c.l.b16 %v5484
    %v5794 = vunpack.c.h.b16 %v5484
    %v5795 = vunpack.c.l.b16 %v5485
    %v5796 = vunpack.c.l.b16 %v5486
    %v5797 = vunpack.c.h.b16 %v5486
    %v5798 = vunpack.c.l.b16 %v5487
    %v5799 = vunpack.c.l.b16 %v5488
    %v5800 = vunpack.c.h.b16 %v5488
    %v5801 = vunpack.c.l.b16 %v5489
    %v5802 = vunpack.c.l.b16 %v5490
    %v5803 = vunpack.c.h.b16 %v5490
    %v5804 = vunpack.c.l.b16 %v5491
    %v5805 = vunpack.c.l.b16 %v5492
    %v5806 = vunpack.c.h.b16 %v5492
    %v5807 = vunpack.c.l.b16 %v5493
    %v5808 = vunpack.c.l.b16 %v5494
    %v5809 = vunpack.c.h.b16 %v5494
    %v5810 = vunpack.c.l.b16 %v5495
    %v5811 = vunpack.c.l.b16 %v5496
    %v5812 = vunpack.c.h.b16 %v5496
    %v5813 = vunpack.c.l.b16 %v5497
    %v5814 = vunpack.c.l.b16 %v5498
    %v5815 = vunpack.c.h.b16 %v5498
    %v5816 = vunpack.c.l.b16 %v5499
    %v5817 = vunpack.c.l.b16 %v5500
    %v5818 = vunpack.c.h.b16 %v5500
    %v5819 = vunpack.c.l.b16 %v5501
    %v5820 = vunpack.c.l.b16 %v5502
    %v5821 = vunpack.c.h.b16 %v5502
    %v5822 = vunpack.c.l.b16 %v5503
    %v5823 = vunpack.c.l.b16 %v5504
    %v5824 = vunpack.c.h.b16 %v5504
    %v5825 = vunpack.c.l.b16 %v5505
    %v5826 = vpack.c.b16 %v5637, %v5634
    %v5827 = vpack.c.b16 %v5638, %v5635
    %v5828 = vpack.c.b16 %v5639, %v5636
    %v5829 = vpack.c.b16 %v5643, %v5640
    %v5830 = vpack.c.b16 %v5644, %v5641
    %v5831 = vpack.c.b16 %v5645, %v5642
    %v5832 = vpack.c.b16 %v5649, %v5646
    %v5833 = vpack.c.b16 %v5650, %v5647
    %v5834 = vpack.c.b16 %v5651, %v5648
    %v5835 = vpack.c.b16 %v5655, %v5652
    %v5836 = vpack.c.b16 %v5656, %v5653
    %v5837 = vpack.c.b16 %v5657, %v5654
    %v5838 = vpack.c.b16 %v5661, %v5658
    %v5839 = vpack.c.b16 %v5662, %v5659
    %v5840 = vpack.c.b16 %v5663, %v5660
    %v5841 = vpack.c.b16 %v5667, %v5664
    %v5842 = vpack.c.b16 %v5668, %v5665
    %v5843 = vpack.c.b16 %v5669, %v5666
    %v5844 = vpack.c.b16 %v5673, %v5670
    %v5845 = vpack.c.b16 %v5674, %v5671
    %v5846 = vpack.c.b16 %v5675, %v5672
    %v5847 = vpack.c.b16 %v5679, %v5676
    %v5848 = vpack.c.b16 %v5680, %v5677
    %v5849 = vpack.c.b16 %v5681, %v5678
    %v5850 = vpack.c.b16 %v5685, %v5682
    %v5851 = vpack.c.b16 %v5686, %v5683
    %v5852 = vpack.c.b16 %v5687, %v5684
    %v5853 = vpack.c.b16 %v5691, %v5688
    %v5854 = vpack.c.b16 %v5692, %v5689
    %v5855 = vpack.c.b16 %v5693, %v5690
    %v5856 = vpack.c.b16 %v5697, %v5694
    %v5857 = vpack.c.b16 %v5698, %v5695
    %v5858 = vpack.c.b16 %v5699, %v5696
    %v5859 = vpack.c.b16 %v5703, %v5700
    %v5860 = vpack.c.b16 %v5704, %v5701
    %v5861 = vpack.c.b16 %v5705, %v5702
    %v5862 = vpack.c.b16 %v5709, %v5706
    %v5863 = vpack.c.b16 %v5710, %v5707
    %v5864 = vpack.c.b16 %v5711, %v5708
    %v5865 = vpack.c.b16 %v5715, %v5712
    %v5866 = vpack.c.b16 %v5716, %v5713
    %v5867 = vpack.c.b16 %v5717, %v5714
    %v5868 = vpack.c.b16 %v5721, %v5718
    %v5869 = vpack.c.b16 %v5722, %v5719
    %v5870 = vpack.c.b16 %v5723, %v5720
    %v5871 = vpack.c.b16 %v5727, %v5724
    %v5872 = vpack.c.b16 %v5728, %v5725
    %v5873 = vpack.c.b16 %v5729, %v5726
    %v5874 = vpack.c.b16 %v5733, %v5730
    %v5875 = vpack.c.b16 %v5734, %v5731
    %v5876 = vpack.c.b16 %v5735, %v5732
    %v5877 = vpack.c.b16 %v5739, %v5736
    %v5878 = vpack.c.b16 %v5740, %v5737
    %v5879 = vpack.c.b16 %v5741, %v5738
    %v5880 = vpack.c.b16 %v5745, %v5742
    %v5881 = vpack.c.b16 %v5746, %v5743
    %v5882 = vpack.c.b16 %v5747, %v5744
    %v5883 = vpack.c.b16 %v5751, %v5748
    %v5884 = vpack.c.b16 %v5752, %v5749
    %v5885 = vpack.c.b16 %v5753, %v5750
    %v5886 = vpack.c.b16 %v5757, %v5754
    %v5887 = vpack.c.b16 %v5758, %v5755
    %v5888 = vpack.c.b16 %v5759, %v5756
    %v5889 = vpack.c.b16 %v5763, %v5760
    %v5890 = vpack.c.b16 %v5764, %v5761
    %v5891 = vpack.c.b16 %v5765, %v5762
    %v5892 = vpack.c.b16 %v5769, %v5766
    %v5893 = vpack.c.b16 %v5770, %v5767
    %v5894 = vpack.c.b16 %v5771, %v5768
    %v5895 = vpack.c.b16 %v5775, %v5772
    %v5896 = vpack.c.b16 %v5776, %v5773
    %v5897 = vpack.c.b16 %v5777, %v5774
    %v5898 = vpack.c.b16 %v5781, %v5778
    %v5899 = vpack.c.b16 %v5782, %v5779
    %v5900 = vpack.c.b16 %v5783, %v5780
    %v5901 = vpack.c.b16 %v5787, %v5784
    %v5902 = vpack.c.b16 %v5788, %v5785
    %v5903 = vpack.c.b16 %v5789, %v5786
    %v5904 = vpack.c.b16 %v5793, %v5790
    %v5905 = vpack.c.b16 %v5794, %v5791
    %v5906 = vpack.c.b16 %v5795, %v5792
    %v5907 = vpack.c.b16 %v5799, %v5796
    %v5908 = vpack.c.b16 %v5800, %v5797
    %v5909 = vpack.c.b16 %v5801, %v5798
    %v5910 = vpack.c.b16 %v5805, %v5802
    %v5911 = vpack.c.b16 %v5806, %v5803
    %v5912 = vpack.c.b16 %v5807, %v5804
    %v5913 = vpack.c.b16 %v5811, %v5808
    %v5914 = vpack.c.b16 %v5812, %v5809
    %v5915 = vpack.c.b16 %v5813, %v5810
    %v5916 = vpack.c.b16 %v5817, %v5814
    %v5917 = vpack.c.b16 %v5818, %v5815
    %v5918 = vpack.c.b16 %v5819, %v5816
    %v5919 = vpack.c.b16 %v5823, %v5820
    %v5920 = vpack.c.b16 %v5824, %v5821
    %v5921 = vpack.c.b16 %v5825, %v5822
    %6018 = vmatprep.subr.bf16.mxu0 %v5848
    %6019 = vmatpush1.bf16.msra.mxu0 %v5847
    %6020 = vmatprep.subr.bf16.mxu0 %v5845
    %6021 = vmatpush1.bf16.msra.mxu0 %v5844
    %6022 = vmatprep.subr.bf16.mxu0 %v5842
    %6023 = vmatpush1.bf16.msra.mxu0 %v5841
    %6024 = vmatprep.subr.bf16.mxu0 %v5839
    %6025 = vmatpush1.bf16.msra.mxu0 %v5838
    %6026 = vmatprep.subr.bf16.mxu0 %v5836
    %6027 = vmatpush1.bf16.msra.mxu0 %v5835
    %6028 = vmatprep.subr.bf16.mxu0 %v5833
    %6029 = vmatpush1.bf16.msra.mxu0 %v5832
    %6030 = vmatprep.subr.bf16.mxu0 %v5830
    %6031 = vmatpush1.bf16.msra.mxu0 %v5829
    %6032 = vmatprep.subr.bf16.mxu0 %v5827
    %6033 = vmatpush1.bf16.msra.mxu0 %v5826
    %6034 = vmatprep.subr.bf16.mxu0 %v5872
    %6035 = vmatpush2.bf16.msra.mxu0 %v5871
    %6036 = vmatprep.subr.bf16.mxu0 %v5869
    %6037 = vmatpush2.bf16.msra.mxu0 %v5868
    %6038 = vmatprep.subr.bf16.mxu0 %v5866
    %6039 = vmatpush2.bf16.msra.mxu0 %v5865
    %6040 = vmatprep.subr.bf16.mxu0 %v5863
    %6041 = vmatpush2.bf16.msra.mxu0 %v5862
    %6042 = vmatprep.subr.bf16.mxu0 %v5860
    %6043 = vmatpush2.bf16.msra.mxu0 %v5859
    %6044 = vmatprep.subr.bf16.mxu0 %v5857
    %6045 = vmatpush2.bf16.msra.mxu0 %v5856
    %6046 = vmatprep.subr.bf16.mxu0 %v5854
    %6047 = vmatpush2.bf16.msra.mxu0 %v5853
    %6048 = vmatprep.subr.bf16.mxu0 %v5851
    %6049 = vmatpush2.bf16.msra.mxu0 %v5850
    %6050 = vmatprep.mubr.bf16.mxu0 %v5374
    %6051 = vmatmul.mubr.bf16.gmra.mxu0 %v5373
    %v6052 = vpop.f32.mrf.mxu0
    %v6053 = vadd.f32 0.0, %v6052
    %v6054 = vpop.f32.mrf.mxu0
    %v6055 = vadd.f32 0.0, %v6054
    %v6056 = vpop.f32.mrf.mxu0
    %v6057 = vpop.f32.mrf.mxu0
    %6058 = vdwg.mxu0
    %6059 = vmatprep.subr.bf16.mxu0 %v5896
    %6060 = vmatpush1.bf16.msra.mxu0 %v5895
    %6061 = vmatprep.subr.bf16.mxu0 %v5893
    %6062 = vmatpush1.bf16.msra.mxu0 %v5892
    %6063 = vmatprep.subr.bf16.mxu0 %v5890
    %6064 = vmatpush1.bf16.msra.mxu0 %v5889
    %6065 = vmatprep.subr.bf16.mxu0 %v5887
    %6066 = vmatpush1.bf16.msra.mxu0 %v5886
    %6067 = vmatprep.subr.bf16.mxu0 %v5884
    %6068 = vmatpush1.bf16.msra.mxu0 %v5883
    %6069 = vmatprep.subr.bf16.mxu0 %v5881
    %6070 = vmatpush1.bf16.msra.mxu0 %v5880
    %6071 = vmatprep.subr.bf16.mxu0 %v5878
    %6072 = vmatpush1.bf16.msra.mxu0 %v5877
    %6073 = vmatprep.subr.bf16.mxu0 %v5875
    %6074 = vmatpush1.bf16.msra.mxu0 %v5874
    %6075 = vmatprep.subr.bf16.mxu0 %v5920
    %6076 = vmatpush2.bf16.msra.mxu0 %v5919
    %6077 = vmatprep.subr.bf16.mxu0 %v5917
    %6078 = vmatpush2.bf16.msra.mxu0 %v5916
    %6079 = vmatprep.subr.bf16.mxu0 %v5914
    %6080 = vmatpush2.bf16.msra.mxu0 %v5913
    %6081 = vmatprep.subr.bf16.mxu0 %v5911
    %6082 = vmatpush2.bf16.msra.mxu0 %v5910
    %6083 = vmatprep.subr.bf16.mxu0 %v5908
    %6084 = vmatpush2.bf16.msra.mxu0 %v5907
    %6085 = vmatprep.subr.bf16.mxu0 %v5905
    %6086 = vmatpush2.bf16.msra.mxu0 %v5904
    %6087 = vmatprep.subr.bf16.mxu0 %v5902
    %6088 = vmatpush2.bf16.msra.mxu0 %v5901
    %6089 = vmatprep.subr.bf16.mxu0 %v5899
    %6090 = vmatpush2.bf16.msra.mxu0 %v5898
    %6091 = vmatprep.mubr.bf16.mxu0 %v5376
    %6092 = vmatmul.mubr.bf16.gmra.mxu0 %v5375
    %v6093 = vpop.f32.mrf.mxu0
    %v6094 = vadd.f32 %v6053, %v6093
    %v6095 = vpop.f32.mrf.mxu0
    %v6096 = vadd.f32 %v6055, %v6095
    %v6097 = vpop.f32.mrf.mxu0
    %v6098 = vpop.f32.mrf.mxu0
    %6099 = vdwg.mxu0
    %6100 = vmatprep.subr.bf16.mxu0 0
    %6101 = vmatpush1.bf16.msra.mxu0 %v5849
    %6102 = vmatprep.subr.bf16.mxu0 0
    %6103 = vmatpush1.bf16.msra.mxu0 %v5846
    %6104 = vmatprep.subr.bf16.mxu0 0
    %6105 = vmatpush1.bf16.msra.mxu0 %v5843
    %6106 = vmatprep.subr.bf16.mxu0 0
    %6107 = vmatpush1.bf16.msra.mxu0 %v5840
    %6108 = vmatprep.subr.bf16.mxu0 0
    %6109 = vmatpush1.bf16.msra.mxu0 %v5837
    %6110 = vmatprep.subr.bf16.mxu0 0
    %6111 = vmatpush1.bf16.msra.mxu0 %v5834
    %6112 = vmatprep.subr.bf16.mxu0 0
    %6113 = vmatpush1.bf16.msra.mxu0 %v5831
    %6114 = vmatprep.subr.bf16.mxu0 0
    %6115 = vmatpush1.bf16.msra.mxu0 %v5828
    %6116 = vmatprep.subr.bf16.mxu0 0
    %6117 = vmatpush2.bf16.msra.mxu0 %v5873
    %6118 = vmatprep.subr.bf16.mxu0 0
    %6119 = vmatpush2.bf16.msra.mxu0 %v5870
    %6120 = vmatprep.subr.bf16.mxu0 0
    %6121 = vmatpush2.bf16.msra.mxu0 %v5867
    %6122 = vmatprep.subr.bf16.mxu0 0
    %6123 = vmatpush2.bf16.msra.mxu0 %v5864
    %6124 = vmatprep.subr.bf16.mxu0 0
    %6125 = vmatpush2.bf16.msra.mxu0 %v5861
    %6126 = vmatprep.subr.bf16.mxu0 0
    %6127 = vmatpush2.bf16.msra.mxu0 %v5858
    %6128 = vmatprep.subr.bf16.mxu0 0
    %6129 = vmatpush2.bf16.msra.mxu0 %v5855
    %6130 = vmatprep.subr.bf16.mxu0 0
    %6131 = vmatpush2.bf16.msra.mxu0 %v5852
    %6132 = vmatprep.mubr.bf16.mxu0 %v5374
    %6133 = vmatmul.mubr.bf16.gmra.mxu0 %v5373
    %v6134 = vpop.f32.mrf.mxu0
    %v6135 = vadd.f32 0.0, %v6134
    %v6136 = vpop.f32.mrf.mxu0
    %v6137 = vpop.f32.mrf.mxu0
    %v6138 = vpop.f32.mrf.mxu0
    %6139 = vdwg.mxu0
    %6140 = vmatprep.subr.bf16.mxu0 0
    %6141 = vmatpush1.bf16.msra.mxu0 %v5897
    %6142 = vmatprep.subr.bf16.mxu0 0
    %6143 = vmatpush1.bf16.msra.mxu0 %v5894
    %6144 = vmatprep.subr.bf16.mxu0 0
    %6145 = vmatpush1.bf16.msra.mxu0 %v5891
    %6146 = vmatprep.subr.bf16.mxu0 0
    %6147 = vmatpush1.bf16.msra.mxu0 %v5888
    %6148 = vmatprep.subr.bf16.mxu0 0
    %6149 = vmatpush1.bf16.msra.mxu0 %v5885
    %6150 = vmatprep.subr.bf16.mxu0 0
    %6151 = vmatpush1.bf16.msra.mxu0 %v5882
    %6152 = vmatprep.subr.bf16.mxu0 0
    %6153 = vmatpush1.bf16.msra.mxu0 %v5879
    %6154 = vmatprep.subr.bf16.mxu0 0
    %6155 = vmatpush1.bf16.msra.mxu0 %v5876
    %6156 = vmatprep.subr.bf16.mxu0 0
    %6157 = vmatpush2.bf16.msra.mxu0 %v5921
    %6158 = vmatprep.subr.bf16.mxu0 0
    %6159 = vmatpush2.bf16.msra.mxu0 %v5918
    %6160 = vmatprep.subr.bf16.mxu0 0
    %6161 = vmatpush2.bf16.msra.mxu0 %v5915
    %6162 = vmatprep.subr.bf16.mxu0 0
    %6163 = vmatpush2.bf16.msra.mxu0 %v5912
    %6164 = vmatprep.subr.bf16.mxu0 0
    %6165 = vmatpush2.bf16.msra.mxu0 %v5909
    %6166 = vmatprep.subr.bf16.mxu0 0
    %6167 = vmatpush2.bf16.msra.mxu0 %v5906
    %6168 = vmatprep.subr.bf16.mxu0 0
    %6169 = vmatpush2.bf16.msra.mxu0 %v5903
    %6170 = vmatprep.subr.bf16.mxu0 0
    %6171 = vmatpush2.bf16.msra.mxu0 %v5900
    %6172 = vmatprep.mubr.bf16.mxu0 %v5376
    %6173 = vmatmul.mubr.bf16.gmra.mxu0 %v5375
    %v6174 = vpop.f32.mrf.mxu0
    %v6175 = vadd.f32 %v6135, %v6174
    %v6176 = vpop.f32.mrf.mxu0
    %v6177 = vpop.f32.mrf.mxu0
    %v6178 = vpop.f32.mrf.mxu0
    %6179 = vdwg.mxu0
    %v6180 = vrot.slane %v274, 6
    %v6181 = vrot.slane %v276, 6
    %v6182 = vrot.slane %v317, 6
    %v6183 = vrot.slane %v319, 6
    %v6188 = vrot.slane %v360, 4
    %v6189 = vrot.slane %v362, 4
    %v6190 = vrot.slane %v403, 4
    %v6191 = vrot.slane %v405, 4
    %v6196 = vsel %vm419, %v6180, %v6188
    %v6197 = vsel %vm419, %v6181, %v6189
    %v6198 = vsel %vm419, %v6182, %v6190
    %v6199 = vsel %vm419, %v6183, %v6191
    %v6200 = vpack.c.bf16 %v6196, %v6196
    %v6201 = vpack.c.bf16 %v6197, %v6197
    %v6202 = vpack.c.bf16 %v6198, %v6198
    %v6203 = vpack.c.bf16 %v6199, %v6199
    %s6204 = scalar_lea.vmem [#allocation7], 5376
    %v6205 = vld [vmem:[%s6204] sm:$0xff]
    %v6206 = vld [vmem:[%s6204 + $0x8] sm:$0xf]
    %v6207 = vld [vmem:[%s6204 + $0xc] sm:$0xff]
    %v6208 = vld [vmem:[%s6204 + $0x14] sm:$0xf]
    %v6209 = vld [vmem:[%s6204 + $0x18] sm:$0xff]
    %v6210 = vld [vmem:[%s6204 + $0x20] sm:$0xf]
    %v6211 = vld [vmem:[%s6204 + $0x24] sm:$0xff]
    %v6212 = vld [vmem:[%s6204 + $0x2c] sm:$0xf]
    %v6213 = vld [vmem:[%s6204 + $0x30] sm:$0xff]
    %v6214 = vld [vmem:[%s6204 + $0x38] sm:$0xf]
    %v6215 = vld [vmem:[%s6204 + $0x3c] sm:$0xff]
    %v6216 = vld [vmem:[%s6204 + $0x44] sm:$0xf]
    %v6217 = vld [vmem:[%s6204 + $0x48] sm:$0xff]
    %v6218 = vld [vmem:[%s6204 + $0x50] sm:$0xf]
    %v6219 = vld [vmem:[%s6204 + $0x54] sm:$0xff]
    %v6220 = vld [vmem:[%s6204 + $0x5c] sm:$0xf]
    %v6221 = vld [vmem:[%s6204 + $0x60] sm:$0xff]
    %v6222 = vld [vmem:[%s6204 + $0x68] sm:$0xf]
    %v6223 = vld [vmem:[%s6204 + $0x6c] sm:$0xff]
    %v6224 = vld [vmem:[%s6204 + $0x74] sm:$0xf]
    %v6225 = vld [vmem:[%s6204 + $0x78] sm:$0xff]
    %v6226 = vld [vmem:[%s6204 + $0x80] sm:$0xf]
    %v6227 = vld [vmem:[%s6204 + $0x84] sm:$0xff]
    %v6228 = vld [vmem:[%s6204 + $0x8c] sm:$0xf]
    %v6229 = vld [vmem:[%s6204 + $0x90] sm:$0xff]
    %v6230 = vld [vmem:[%s6204 + $0x98] sm:$0xf]
    %v6231 = vld [vmem:[%s6204 + $0x9c] sm:$0xff]
    %v6232 = vld [vmem:[%s6204 + $0xa4] sm:$0xf]
    %v6233 = vld [vmem:[%s6204 + $0xa8] sm:$0xff]
    %v6234 = vld [vmem:[%s6204 + $0xb0] sm:$0xf]
    %v6235 = vld [vmem:[%s6204 + $0xb4] sm:$0xff]
    %v6236 = vld [vmem:[%s6204 + $0xbc] sm:$0xf]
    %v6237 = vld [vmem:[%s6204 + $0xc0] sm:$0xff]
    %v6238 = vld [vmem:[%s6204 + $0xc8] sm:$0xf]
    %v6239 = vld [vmem:[%s6204 + $0xcc] sm:$0xff]
    %v6240 = vld [vmem:[%s6204 + $0xd4] sm:$0xf]
    %v6241 = vld [vmem:[%s6204 + $0xd8] sm:$0xff]
    %v6242 = vld [vmem:[%s6204 + $0xe0] sm:$0xf]
    %v6243 = vld [vmem:[%s6204 + $0xe4] sm:$0xff]
    %v6244 = vld [vmem:[%s6204 + $0xec] sm:$0xf]
    %v6245 = vld [vmem:[%s6204 + $0xf0] sm:$0xff]
    %v6246 = vld [vmem:[%s6204 + $0xf8] sm:$0xf]
    %v6247 = vld [vmem:[%s6204 + $0xfc] sm:$0xff]
    %v6248 = vld [vmem:[%s6204 + $0x104] sm:$0xf]
    %v6249 = vld [vmem:[%s6204 + $0x108] sm:$0xff]
    %v6250 = vld [vmem:[%s6204 + $0x110] sm:$0xf]
    %v6251 = vld [vmem:[%s6204 + $0x114] sm:$0xff]
    %v6252 = vld [vmem:[%s6204 + $0x11c] sm:$0xf]
    %v6253 = vld [vmem:[%s6204 + $0x120] sm:$0xff]
    %v6254 = vld [vmem:[%s6204 + $0x128] sm:$0xf]
    %v6255 = vld [vmem:[%s6204 + $0x12c] sm:$0xff]
    %v6256 = vld [vmem:[%s6204 + $0x134] sm:$0xf]
    %v6257 = vld [vmem:[%s6204 + $0x138] sm:$0xff]
    %v6258 = vld [vmem:[%s6204 + $0x140] sm:$0xf]
    %v6259 = vld [vmem:[%s6204 + $0x144] sm:$0xff]
    %v6260 = vld [vmem:[%s6204 + $0x14c] sm:$0xf]
    %v6261 = vld [vmem:[%s6204 + $0x150] sm:$0xff]
    %v6262 = vld [vmem:[%s6204 + $0x158] sm:$0xf]
    %v6263 = vld [vmem:[%s6204 + $0x15c] sm:$0xff]
    %v6264 = vld [vmem:[%s6204 + $0x164] sm:$0xf]
    %v6265 = vld [vmem:[%s6204 + $0x168] sm:$0xff]
    %v6266 = vld [vmem:[%s6204 + $0x170] sm:$0xf]
    %v6267 = vld [vmem:[%s6204 + $0x174] sm:$0xff]
    %v6268 = vld [vmem:[%s6204 + $0x17c] sm:$0xf]
    %v6269 = vld [vmem:[%s6204 + $0x180] sm:$0xff]
    %v6270 = vld [vmem:[%s6204 + $0x188] sm:$0xf]
    %v6271 = vld [vmem:[%s6204 + $0x18c] sm:$0xff]
    %v6272 = vld [vmem:[%s6204 + $0x194] sm:$0xf]
    %v6273 = vld [vmem:[%s6204 + $0x198] sm:$0xff]
    %v6274 = vld [vmem:[%s6204 + $0x1a0] sm:$0xf]
    %v6275 = vld [vmem:[%s6204 + $0x1a4] sm:$0xff]
    %v6276 = vld [vmem:[%s6204 + $0x1ac] sm:$0xf]
    %v6277 = vld [vmem:[%s6204 + $0x1b0] sm:$0xff]
    %v6278 = vld [vmem:[%s6204 + $0x1b8] sm:$0xf]
    %v6279 = vld [vmem:[%s6204 + $0x1bc] sm:$0xff]
    %v6280 = vld [vmem:[%s6204 + $0x1c4] sm:$0xf]
    %v6281 = vld [vmem:[%s6204 + $0x1c8] sm:$0xff]
    %v6282 = vld [vmem:[%s6204 + $0x1d0] sm:$0xf]
    %v6283 = vld [vmem:[%s6204 + $0x1d4] sm:$0xff]
    %v6284 = vld [vmem:[%s6204 + $0x1dc] sm:$0xf]
    %v6285 = vld [vmem:[%s6204 + $0x1e0] sm:$0xff]
    %v6286 = vld [vmem:[%s6204 + $0x1e8] sm:$0xf]
    %v6287 = vld [vmem:[%s6204 + $0x1ec] sm:$0xff]
    %v6288 = vld [vmem:[%s6204 + $0x1f4] sm:$0xf]
    %v6289 = vld [vmem:[%s6204 + $0x1f8] sm:$0xff]
    %v6290 = vld [vmem:[%s6204 + $0x200] sm:$0xf]
    %v6291 = vld [vmem:[%s6204 + $0x204] sm:$0xff]
    %v6292 = vld [vmem:[%s6204 + $0x20c] sm:$0xf]
    %v6293 = vld [vmem:[%s6204 + $0x210] sm:$0xff]
    %v6294 = vld [vmem:[%s6204 + $0x218] sm:$0xf]
    %v6295 = vld [vmem:[%s6204 + $0x21c] sm:$0xff]
    %v6296 = vld [vmem:[%s6204 + $0x224] sm:$0xf]
    %v6297 = vld [vmem:[%s6204 + $0x228] sm:$0xff]
    %v6298 = vld [vmem:[%s6204 + $0x230] sm:$0xf]
    %v6299 = vld [vmem:[%s6204 + $0x234] sm:$0xff]
    %v6300 = vld [vmem:[%s6204 + $0x23c] sm:$0xf]
    %v6301 = vld [vmem:[%s6204 + $0x240] sm:$0xff]
    %v6302 = vld [vmem:[%s6204 + $0x248] sm:$0xf]
    %v6303 = vld [vmem:[%s6204 + $0x24c] sm:$0xff]
    %v6304 = vld [vmem:[%s6204 + $0x254] sm:$0xf]
    %v6305 = vld [vmem:[%s6204 + $0x258] sm:$0xff]
    %v6306 = vld [vmem:[%s6204 + $0x260] sm:$0xf]
    %v6307 = vld [vmem:[%s6204 + $0x264] sm:$0xff]
    %v6308 = vld [vmem:[%s6204 + $0x26c] sm:$0xf]
    %v6309 = vld [vmem:[%s6204 + $0x270] sm:$0xff]
    %v6310 = vld [vmem:[%s6204 + $0x278] sm:$0xf]
    %v6311 = vld [vmem:[%s6204 + $0x27c] sm:$0xff]
    %v6312 = vld [vmem:[%s6204 + $0x284] sm:$0xf]
    %v6313 = vld [vmem:[%s6204 + $0x288] sm:$0xff]
    %v6314 = vld [vmem:[%s6204 + $0x290] sm:$0xf]
    %v6315 = vld [vmem:[%s6204 + $0x294] sm:$0xff]
    %v6316 = vld [vmem:[%s6204 + $0x29c] sm:$0xf]
    %v6317 = vld [vmem:[%s6204 + $0x2a0] sm:$0xff]
    %v6318 = vld [vmem:[%s6204 + $0x2a8] sm:$0xf]
    %v6319 = vld [vmem:[%s6204 + $0x2ac] sm:$0xff]
    %v6320 = vld [vmem:[%s6204 + $0x2b4] sm:$0xf]
    %v6321 = vld [vmem:[%s6204 + $0x2b8] sm:$0xff]
    %v6322 = vld [vmem:[%s6204 + $0x2c0] sm:$0xf]
    %v6323 = vld [vmem:[%s6204 + $0x2c4] sm:$0xff]
    %v6324 = vld [vmem:[%s6204 + $0x2cc] sm:$0xf]
    %v6325 = vld [vmem:[%s6204 + $0x2d0] sm:$0xff]
    %v6326 = vld [vmem:[%s6204 + $0x2d8] sm:$0xf]
    %v6327 = vld [vmem:[%s6204 + $0x2dc] sm:$0xff]
    %v6328 = vld [vmem:[%s6204 + $0x2e4] sm:$0xf]
    %v6329 = vld [vmem:[%s6204 + $0x2e8] sm:$0xff]
    %v6330 = vld [vmem:[%s6204 + $0x2f0] sm:$0xf]
    %v6331 = vld [vmem:[%s6204 + $0x2f4] sm:$0xff]
    %v6332 = vld [vmem:[%s6204 + $0x2fc] sm:$0xf]
    %v6461 = vunpack.c.l.b16 %v6205
    %v6462 = vunpack.c.h.b16 %v6205
    %v6463 = vunpack.c.l.b16 %v6206
    %v6464 = vunpack.c.l.b16 %v6207
    %v6465 = vunpack.c.h.b16 %v6207
    %v6466 = vunpack.c.l.b16 %v6208
    %v6467 = vunpack.c.l.b16 %v6209
    %v6468 = vunpack.c.h.b16 %v6209
    %v6469 = vunpack.c.l.b16 %v6210
    %v6470 = vunpack.c.l.b16 %v6211
    %v6471 = vunpack.c.h.b16 %v6211
    %v6472 = vunpack.c.l.b16 %v6212
    %v6473 = vunpack.c.l.b16 %v6213
    %v6474 = vunpack.c.h.b16 %v6213
    %v6475 = vunpack.c.l.b16 %v6214
    %v6476 = vunpack.c.l.b16 %v6215
    %v6477 = vunpack.c.h.b16 %v6215
    %v6478 = vunpack.c.l.b16 %v6216
    %v6479 = vunpack.c.l.b16 %v6217
    %v6480 = vunpack.c.h.b16 %v6217
    %v6481 = vunpack.c.l.b16 %v6218
    %v6482 = vunpack.c.l.b16 %v6219
    %v6483 = vunpack.c.h.b16 %v6219
    %v6484 = vunpack.c.l.b16 %v6220
    %v6485 = vunpack.c.l.b16 %v6221
    %v6486 = vunpack.c.h.b16 %v6221
    %v6487 = vunpack.c.l.b16 %v6222
    %v6488 = vunpack.c.l.b16 %v6223
    %v6489 = vunpack.c.h.b16 %v6223
    %v6490 = vunpack.c.l.b16 %v6224
    %v6491 = vunpack.c.l.b16 %v6225
    %v6492 = vunpack.c.h.b16 %v6225
    %v6493 = vunpack.c.l.b16 %v6226
    %v6494 = vunpack.c.l.b16 %v6227
    %v6495 = vunpack.c.h.b16 %v6227
    %v6496 = vunpack.c.l.b16 %v6228
    %v6497 = vunpack.c.l.b16 %v6229
    %v6498 = vunpack.c.h.b16 %v6229
    %v6499 = vunpack.c.l.b16 %v6230
    %v6500 = vunpack.c.l.b16 %v6231
    %v6501 = vunpack.c.h.b16 %v6231
    %v6502 = vunpack.c.l.b16 %v6232
    %v6503 = vunpack.c.l.b16 %v6233
    %v6504 = vunpack.c.h.b16 %v6233
    %v6505 = vunpack.c.l.b16 %v6234
    %v6506 = vunpack.c.l.b16 %v6235
    %v6507 = vunpack.c.h.b16 %v6235
    %v6508 = vunpack.c.l.b16 %v6236
    %v6509 = vunpack.c.l.b16 %v6237
    %v6510 = vunpack.c.h.b16 %v6237
    %v6511 = vunpack.c.l.b16 %v6238
    %v6512 = vunpack.c.l.b16 %v6239
    %v6513 = vunpack.c.h.b16 %v6239
    %v6514 = vunpack.c.l.b16 %v6240
    %v6515 = vunpack.c.l.b16 %v6241
    %v6516 = vunpack.c.h.b16 %v6241
    %v6517 = vunpack.c.l.b16 %v6242
    %v6518 = vunpack.c.l.b16 %v6243
    %v6519 = vunpack.c.h.b16 %v6243
    %v6520 = vunpack.c.l.b16 %v6244
    %v6521 = vunpack.c.l.b16 %v6245
    %v6522 = vunpack.c.h.b16 %v6245
    %v6523 = vunpack.c.l.b16 %v6246
    %v6524 = vunpack.c.l.b16 %v6247
    %v6525 = vunpack.c.h.b16 %v6247
    %v6526 = vunpack.c.l.b16 %v6248
    %v6527 = vunpack.c.l.b16 %v6249
    %v6528 = vunpack.c.h.b16 %v6249
    %v6529 = vunpack.c.l.b16 %v6250
    %v6530 = vunpack.c.l.b16 %v6251
    %v6531 = vunpack.c.h.b16 %v6251
    %v6532 = vunpack.c.l.b16 %v6252
    %v6533 = vunpack.c.l.b16 %v6253
    %v6534 = vunpack.c.h.b16 %v6253
    %v6535 = vunpack.c.l.b16 %v6254
    %v6536 = vunpack.c.l.b16 %v6255
    %v6537 = vunpack.c.h.b16 %v6255
    %v6538 = vunpack.c.l.b16 %v6256
    %v6539 = vunpack.c.l.b16 %v6257
    %v6540 = vunpack.c.h.b16 %v6257
    %v6541 = vunpack.c.l.b16 %v6258
    %v6542 = vunpack.c.l.b16 %v6259
    %v6543 = vunpack.c.h.b16 %v6259
    %v6544 = vunpack.c.l.b16 %v6260
    %v6545 = vunpack.c.l.b16 %v6261
    %v6546 = vunpack.c.h.b16 %v6261
    %v6547 = vunpack.c.l.b16 %v6262
    %v6548 = vunpack.c.l.b16 %v6263
    %v6549 = vunpack.c.h.b16 %v6263
    %v6550 = vunpack.c.l.b16 %v6264
    %v6551 = vunpack.c.l.b16 %v6265
    %v6552 = vunpack.c.h.b16 %v6265
    %v6553 = vunpack.c.l.b16 %v6266
    %v6554 = vunpack.c.l.b16 %v6267
    %v6555 = vunpack.c.h.b16 %v6267
    %v6556 = vunpack.c.l.b16 %v6268
    %v6557 = vunpack.c.l.b16 %v6269
    %v6558 = vunpack.c.h.b16 %v6269
    %v6559 = vunpack.c.l.b16 %v6270
    %v6560 = vunpack.c.l.b16 %v6271
    %v6561 = vunpack.c.h.b16 %v6271
    %v6562 = vunpack.c.l.b16 %v6272
    %v6563 = vunpack.c.l.b16 %v6273
    %v6564 = vunpack.c.h.b16 %v6273
    %v6565 = vunpack.c.l.b16 %v6274
    %v6566 = vunpack.c.l.b16 %v6275
    %v6567 = vunpack.c.h.b16 %v6275
    %v6568 = vunpack.c.l.b16 %v6276
    %v6569 = vunpack.c.l.b16 %v6277
    %v6570 = vunpack.c.h.b16 %v6277
    %v6571 = vunpack.c.l.b16 %v6278
    %v6572 = vunpack.c.l.b16 %v6279
    %v6573 = vunpack.c.h.b16 %v6279
    %v6574 = vunpack.c.l.b16 %v6280
    %v6575 = vunpack.c.l.b16 %v6281
    %v6576 = vunpack.c.h.b16 %v6281
    %v6577 = vunpack.c.l.b16 %v6282
    %v6578 = vunpack.c.l.b16 %v6283
    %v6579 = vunpack.c.h.b16 %v6283
    %v6580 = vunpack.c.l.b16 %v6284
    %v6581 = vunpack.c.l.b16 %v6285
    %v6582 = vunpack.c.h.b16 %v6285
    %v6583 = vunpack.c.l.b16 %v6286
    %v6584 = vunpack.c.l.b16 %v6287
    %v6585 = vunpack.c.h.b16 %v6287
    %v6586 = vunpack.c.l.b16 %v6288
    %v6587 = vunpack.c.l.b16 %v6289
    %v6588 = vunpack.c.h.b16 %v6289
    %v6589 = vunpack.c.l.b16 %v6290
    %v6590 = vunpack.c.l.b16 %v6291
    %v6591 = vunpack.c.h.b16 %v6291
    %v6592 = vunpack.c.l.b16 %v6292
    %v6593 = vunpack.c.l.b16 %v6293
    %v6594 = vunpack.c.h.b16 %v6293
    %v6595 = vunpack.c.l.b16 %v6294
    %v6596 = vunpack.c.l.b16 %v6295
    %v6597 = vunpack.c.h.b16 %v6295
    %v6598 = vunpack.c.l.b16 %v6296
    %v6599 = vunpack.c.l.b16 %v6297
    %v6600 = vunpack.c.h.b16 %v6297
    %v6601 = vunpack.c.l.b16 %v6298
    %v6602 = vunpack.c.l.b16 %v6299
    %v6603 = vunpack.c.h.b16 %v6299
    %v6604 = vunpack.c.l.b16 %v6300
    %v6605 = vunpack.c.l.b16 %v6301
    %v6606 = vunpack.c.h.b16 %v6301
    %v6607 = vunpack.c.l.b16 %v6302
    %v6608 = vunpack.c.l.b16 %v6303
    %v6609 = vunpack.c.h.b16 %v6303
    %v6610 = vunpack.c.l.b16 %v6304
    %v6611 = vunpack.c.l.b16 %v6305
    %v6612 = vunpack.c.h.b16 %v6305
    %v6613 = vunpack.c.l.b16 %v6306
    %v6614 = vunpack.c.l.b16 %v6307
    %v6615 = vunpack.c.h.b16 %v6307
    %v6616 = vunpack.c.l.b16 %v6308
    %v6617 = vunpack.c.l.b16 %v6309
    %v6618 = vunpack.c.h.b16 %v6309
    %v6619 = vunpack.c.l.b16 %v6310
    %v6620 = vunpack.c.l.b16 %v6311
    %v6621 = vunpack.c.h.b16 %v6311
    %v6622 = vunpack.c.l.b16 %v6312
    %v6623 = vunpack.c.l.b16 %v6313
    %v6624 = vunpack.c.h.b16 %v6313
    %v6625 = vunpack.c.l.b16 %v6314
    %v6626 = vunpack.c.l.b16 %v6315
    %v6627 = vunpack.c.h.b16 %v6315
    %v6628 = vunpack.c.l.b16 %v6316
    %v6629 = vunpack.c.l.b16 %v6317
    %v6630 = vunpack.c.h.b16 %v6317
    %v6631 = vunpack.c.l.b16 %v6318
    %v6632 = vunpack.c.l.b16 %v6319
    %v6633 = vunpack.c.h.b16 %v6319
    %v6634 = vunpack.c.l.b16 %v6320
    %v6635 = vunpack.c.l.b16 %v6321
    %v6636 = vunpack.c.h.b16 %v6321
    %v6637 = vunpack.c.l.b16 %v6322
    %v6638 = vunpack.c.l.b16 %v6323
    %v6639 = vunpack.c.h.b16 %v6323
    %v6640 = vunpack.c.l.b16 %v6324
    %v6641 = vunpack.c.l.b16 %v6325
    %v6642 = vunpack.c.h.b16 %v6325
    %v6643 = vunpack.c.l.b16 %v6326
    %v6644 = vunpack.c.l.b16 %v6327
    %v6645 = vunpack.c.h.b16 %v6327
    %v6646 = vunpack.c.l.b16 %v6328
    %v6647 = vunpack.c.l.b16 %v6329
    %v6648 = vunpack.c.h.b16 %v6329
    %v6649 = vunpack.c.l.b16 %v6330
    %v6650 = vunpack.c.l.b16 %v6331
    %v6651 = vunpack.c.h.b16 %v6331
    %v6652 = vunpack.c.l.b16 %v6332
    %v6653 = vpack.c.b16 %v6464, %v6461
    %v6654 = vpack.c.b16 %v6465, %v6462
    %v6655 = vpack.c.b16 %v6466, %v6463
    %v6656 = vpack.c.b16 %v6470, %v6467
    %v6657 = vpack.c.b16 %v6471, %v6468
    %v6658 = vpack.c.b16 %v6472, %v6469
    %v6659 = vpack.c.b16 %v6476, %v6473
    %v6660 = vpack.c.b16 %v6477, %v6474
    %v6661 = vpack.c.b16 %v6478, %v6475
    %v6662 = vpack.c.b16 %v6482, %v6479
    %v6663 = vpack.c.b16 %v6483, %v6480
    %v6664 = vpack.c.b16 %v6484, %v6481
    %v6665 = vpack.c.b16 %v6488, %v6485
    %v6666 = vpack.c.b16 %v6489, %v6486
    %v6667 = vpack.c.b16 %v6490, %v6487
    %v6668 = vpack.c.b16 %v6494, %v6491
    %v6669 = vpack.c.b16 %v6495, %v6492
    %v6670 = vpack.c.b16 %v6496, %v6493
    %v6671 = vpack.c.b16 %v6500, %v6497
    %v6672 = vpack.c.b16 %v6501, %v6498
    %v6673 = vpack.c.b16 %v6502, %v6499
    %v6674 = vpack.c.b16 %v6506, %v6503
    %v6675 = vpack.c.b16 %v6507, %v6504
    %v6676 = vpack.c.b16 %v6508, %v6505
    %v6677 = vpack.c.b16 %v6512, %v6509
    %v6678 = vpack.c.b16 %v6513, %v6510
    %v6679 = vpack.c.b16 %v6514, %v6511
    %v6680 = vpack.c.b16 %v6518, %v6515
    %v6681 = vpack.c.b16 %v6519, %v6516
    %v6682 = vpack.c.b16 %v6520, %v6517
    %v6683 = vpack.c.b16 %v6524, %v6521
    %v6684 = vpack.c.b16 %v6525, %v6522
    %v6685 = vpack.c.b16 %v6526, %v6523
    %v6686 = vpack.c.b16 %v6530, %v6527
    %v6687 = vpack.c.b16 %v6531, %v6528
    %v6688 = vpack.c.b16 %v6532, %v6529
    %v6689 = vpack.c.b16 %v6536, %v6533
    %v6690 = vpack.c.b16 %v6537, %v6534
    %v6691 = vpack.c.b16 %v6538, %v6535
    %v6692 = vpack.c.b16 %v6542, %v6539
    %v6693 = vpack.c.b16 %v6543, %v6540
    %v6694 = vpack.c.b16 %v6544, %v6541
    %v6695 = vpack.c.b16 %v6548, %v6545
    %v6696 = vpack.c.b16 %v6549, %v6546
    %v6697 = vpack.c.b16 %v6550, %v6547
    %v6698 = vpack.c.b16 %v6554, %v6551
    %v6699 = vpack.c.b16 %v6555, %v6552
    %v6700 = vpack.c.b16 %v6556, %v6553
    %v6701 = vpack.c.b16 %v6560, %v6557
    %v6702 = vpack.c.b16 %v6561, %v6558
    %v6703 = vpack.c.b16 %v6562, %v6559
    %v6704 = vpack.c.b16 %v6566, %v6563
    %v6705 = vpack.c.b16 %v6567, %v6564
    %v6706 = vpack.c.b16 %v6568, %v6565
    %v6707 = vpack.c.b16 %v6572, %v6569
    %v6708 = vpack.c.b16 %v6573, %v6570
    %v6709 = vpack.c.b16 %v6574, %v6571
    %v6710 = vpack.c.b16 %v6578, %v6575
    %v6711 = vpack.c.b16 %v6579, %v6576
    %v6712 = vpack.c.b16 %v6580, %v6577
    %v6713 = vpack.c.b16 %v6584, %v6581
    %v6714 = vpack.c.b16 %v6585, %v6582
    %v6715 = vpack.c.b16 %v6586, %v6583
    %v6716 = vpack.c.b16 %v6590, %v6587
    %v6717 = vpack.c.b16 %v6591, %v6588
    %v6718 = vpack.c.b16 %v6592, %v6589
    %v6719 = vpack.c.b16 %v6596, %v6593
    %v6720 = vpack.c.b16 %v6597, %v6594
    %v6721 = vpack.c.b16 %v6598, %v6595
    %v6722 = vpack.c.b16 %v6602, %v6599
    %v6723 = vpack.c.b16 %v6603, %v6600
    %v6724 = vpack.c.b16 %v6604, %v6601
    %v6725 = vpack.c.b16 %v6608, %v6605
    %v6726 = vpack.c.b16 %v6609, %v6606
    %v6727 = vpack.c.b16 %v6610, %v6607
    %v6728 = vpack.c.b16 %v6614, %v6611
    %v6729 = vpack.c.b16 %v6615, %v6612
    %v6730 = vpack.c.b16 %v6616, %v6613
    %v6731 = vpack.c.b16 %v6620, %v6617
    %v6732 = vpack.c.b16 %v6621, %v6618
    %v6733 = vpack.c.b16 %v6622, %v6619
    %v6734 = vpack.c.b16 %v6626, %v6623
    %v6735 = vpack.c.b16 %v6627, %v6624
    %v6736 = vpack.c.b16 %v6628, %v6625
    %v6737 = vpack.c.b16 %v6632, %v6629
    %v6738 = vpack.c.b16 %v6633, %v6630
    %v6739 = vpack.c.b16 %v6634, %v6631
    %v6740 = vpack.c.b16 %v6638, %v6635
    %v6741 = vpack.c.b16 %v6639, %v6636
    %v6742 = vpack.c.b16 %v6640, %v6637
    %v6743 = vpack.c.b16 %v6644, %v6641
    %v6744 = vpack.c.b16 %v6645, %v6642
    %v6745 = vpack.c.b16 %v6646, %v6643
    %v6746 = vpack.c.b16 %v6650, %v6647
    %v6747 = vpack.c.b16 %v6651, %v6648
    %v6748 = vpack.c.b16 %v6652, %v6649
    %6845 = vmatprep.subr.bf16.mxu0 %v6675
    %6846 = vmatpush1.bf16.msra.mxu0 %v6674
    %6847 = vmatprep.subr.bf16.mxu0 %v6672
    %6848 = vmatpush1.bf16.msra.mxu0 %v6671
    %6849 = vmatprep.subr.bf16.mxu0 %v6669
    %6850 = vmatpush1.bf16.msra.mxu0 %v6668
    %6851 = vmatprep.subr.bf16.mxu0 %v6666
    %6852 = vmatpush1.bf16.msra.mxu0 %v6665
    %6853 = vmatprep.subr.bf16.mxu0 %v6663
    %6854 = vmatpush1.bf16.msra.mxu0 %v6662
    %6855 = vmatprep.subr.bf16.mxu0 %v6660
    %6856 = vmatpush1.bf16.msra.mxu0 %v6659
    %6857 = vmatprep.subr.bf16.mxu0 %v6657
    %6858 = vmatpush1.bf16.msra.mxu0 %v6656
    %6859 = vmatprep.subr.bf16.mxu0 %v6654
    %6860 = vmatpush1.bf16.msra.mxu0 %v6653
    %6861 = vmatprep.subr.bf16.mxu0 %v6699
    %6862 = vmatpush2.bf16.msra.mxu0 %v6698
    %6863 = vmatprep.subr.bf16.mxu0 %v6696
    %6864 = vmatpush2.bf16.msra.mxu0 %v6695
    %6865 = vmatprep.subr.bf16.mxu0 %v6693
    %6866 = vmatpush2.bf16.msra.mxu0 %v6692
    %6867 = vmatprep.subr.bf16.mxu0 %v6690
    %6868 = vmatpush2.bf16.msra.mxu0 %v6689
    %6869 = vmatprep.subr.bf16.mxu0 %v6687
    %6870 = vmatpush2.bf16.msra.mxu0 %v6686
    %6871 = vmatprep.subr.bf16.mxu0 %v6684
    %6872 = vmatpush2.bf16.msra.mxu0 %v6683
    %6873 = vmatprep.subr.bf16.mxu0 %v6681
    %6874 = vmatpush2.bf16.msra.mxu0 %v6680
    %6875 = vmatprep.subr.bf16.mxu0 %v6678
    %6876 = vmatpush2.bf16.msra.mxu0 %v6677
    %6877 = vmatprep.mubr.bf16.mxu0 %v6201
    %6878 = vmatmul.mubr.bf16.gmra.mxu0 %v6200
    %v6879 = vpop.f32.mrf.mxu0
    %v6880 = vadd.f32 0.0, %v6879
    %v6881 = vpop.f32.mrf.mxu0
    %v6882 = vadd.f32 0.0, %v6881
    %v6883 = vpop.f32.mrf.mxu0
    %v6884 = vpop.f32.mrf.mxu0
    %6885 = vdwg.mxu0
    %6886 = vmatprep.subr.bf16.mxu0 %v6723
    %6887 = vmatpush1.bf16.msra.mxu0 %v6722
    %6888 = vmatprep.subr.bf16.mxu0 %v6720
    %6889 = vmatpush1.bf16.msra.mxu0 %v6719
    %6890 = vmatprep.subr.bf16.mxu0 %v6717
    %6891 = vmatpush1.bf16.msra.mxu0 %v6716
    %6892 = vmatprep.subr.bf16.mxu0 %v6714
    %6893 = vmatpush1.bf16.msra.mxu0 %v6713
    %6894 = vmatprep.subr.bf16.mxu0 %v6711
    %6895 = vmatpush1.bf16.msra.mxu0 %v6710
    %6896 = vmatprep.subr.bf16.mxu0 %v6708
    %6897 = vmatpush1.bf16.msra.mxu0 %v6707
    %6898 = vmatprep.subr.bf16.mxu0 %v6705
    %6899 = vmatpush1.bf16.msra.mxu0 %v6704
    %6900 = vmatprep.subr.bf16.mxu0 %v6702
    %6901 = vmatpush1.bf16.msra.mxu0 %v6701
    %6902 = vmatprep.subr.bf16.mxu0 %v6747
    %6903 = vmatpush2.bf16.msra.mxu0 %v6746
    %6904 = vmatprep.subr.bf16.mxu0 %v6744
    %6905 = vmatpush2.bf16.msra.mxu0 %v6743
    %6906 = vmatprep.subr.bf16.mxu0 %v6741
    %6907 = vmatpush2.bf16.msra.mxu0 %v6740
    %6908 = vmatprep.subr.bf16.mxu0 %v6738
    %6909 = vmatpush2.bf16.msra.mxu0 %v6737
    %6910 = vmatprep.subr.bf16.mxu0 %v6735
    %6911 = vmatpush2.bf16.msra.mxu0 %v6734
    %6912 = vmatprep.subr.bf16.mxu0 %v6732
    %6913 = vmatpush2.bf16.msra.mxu0 %v6731
    %6914 = vmatprep.subr.bf16.mxu0 %v6729
    %6915 = vmatpush2.bf16.msra.mxu0 %v6728
    %6916 = vmatprep.subr.bf16.mxu0 %v6726
    %6917 = vmatpush2.bf16.msra.mxu0 %v6725
    %6918 = vmatprep.mubr.bf16.mxu0 %v6203
    %6919 = vmatmul.mubr.bf16.gmra.mxu0 %v6202
    %v6920 = vpop.f32.mrf.mxu0
    %v6921 = vadd.f32 %v6880, %v6920
    %v6922 = vpop.f32.mrf.mxu0
    %v6923 = vadd.f32 %v6882, %v6922
    %v6924 = vpop.f32.mrf.mxu0
    %v6925 = vpop.f32.mrf.mxu0
    %6926 = vdwg.mxu0
    %6927 = vmatprep.subr.bf16.mxu0 0
    %6928 = vmatpush1.bf16.msra.mxu0 %v6676
    %6929 = vmatprep.subr.bf16.mxu0 0
    %6930 = vmatpush1.bf16.msra.mxu0 %v6673
    %6931 = vmatprep.subr.bf16.mxu0 0
    %6932 = vmatpush1.bf16.msra.mxu0 %v6670
    %6933 = vmatprep.subr.bf16.mxu0 0
    %6934 = vmatpush1.bf16.msra.mxu0 %v6667
    %6935 = vmatprep.subr.bf16.mxu0 0
    %6936 = vmatpush1.bf16.msra.mxu0 %v6664
    %6937 = vmatprep.subr.bf16.mxu0 0
    %6938 = vmatpush1.bf16.msra.mxu0 %v6661
    %6939 = vmatprep.subr.bf16.mxu0 0
    %6940 = vmatpush1.bf16.msra.mxu0 %v6658
    %6941 = vmatprep.subr.bf16.mxu0 0
    %6942 = vmatpush1.bf16.msra.mxu0 %v6655
    %6943 = vmatprep.subr.bf16.mxu0 0
    %6944 = vmatpush2.bf16.msra.mxu0 %v6700
    %6945 = vmatprep.subr.bf16.mxu0 0
    %6946 = vmatpush2.bf16.msra.mxu0 %v6697
    %6947 = vmatprep.subr.bf16.mxu0 0
    %6948 = vmatpush2.bf16.msra.mxu0 %v6694
    %6949 = vmatprep.subr.bf16.mxu0 0
    %6950 = vmatpush2.bf16.msra.mxu0 %v6691
    %6951 = vmatprep.subr.bf16.mxu0 0
    %6952 = vmatpush2.bf16.msra.mxu0 %v6688
    %6953 = vmatprep.subr.bf16.mxu0 0
    %6954 = vmatpush2.bf16.msra.mxu0 %v6685
    %6955 = vmatprep.subr.bf16.mxu0 0
    %6956 = vmatpush2.bf16.msra.mxu0 %v6682
    %6957 = vmatprep.subr.bf16.mxu0 0
    %6958 = vmatpush2.bf16.msra.mxu0 %v6679
    %6959 = vmatprep.mubr.bf16.mxu0 %v6201
    %6960 = vmatmul.mubr.bf16.gmra.mxu0 %v6200
    %v6961 = vpop.f32.mrf.mxu0
    %v6962 = vadd.f32 0.0, %v6961
    %v6963 = vpop.f32.mrf.mxu0
    %v6964 = vpop.f32.mrf.mxu0
    %v6965 = vpop.f32.mrf.mxu0
    %6966 = vdwg.mxu0
    %6967 = vmatprep.subr.bf16.mxu0 0
    %6968 = vmatpush1.bf16.msra.mxu0 %v6724
    %6969 = vmatprep.subr.bf16.mxu0 0
    %6970 = vmatpush1.bf16.msra.mxu0 %v6721
    %6971 = vmatprep.subr.bf16.mxu0 0
    %6972 = vmatpush1.bf16.msra.mxu0 %v6718
    %6973 = vmatprep.subr.bf16.mxu0 0
    %6974 = vmatpush1.bf16.msra.mxu0 %v6715
    %6975 = vmatprep.subr.bf16.mxu0 0
    %6976 = vmatpush1.bf16.msra.mxu0 %v6712
    %6977 = vmatprep.subr.bf16.mxu0 0
    %6978 = vmatpush1.bf16.msra.mxu0 %v6709
    %6979 = vmatprep.subr.bf16.mxu0 0
    %6980 = vmatpush1.bf16.msra.mxu0 %v6706
    %6981 = vmatprep.subr.bf16.mxu0 0
    %6982 = vmatpush1.bf16.msra.mxu0 %v6703
    %6983 = vmatprep.subr.bf16.mxu0 0
    %6984 = vmatpush2.bf16.msra.mxu0 %v6748
    %6985 = vmatprep.subr.bf16.mxu0 0
    %6986 = vmatpush2.bf16.msra.mxu0 %v6745
    %6987 = vmatprep.subr.bf16.mxu0 0
    %6988 = vmatpush2.bf16.msra.mxu0 %v6742
    %6989 = vmatprep.subr.bf16.mxu0 0
    %6990 = vmatpush2.bf16.msra.mxu0 %v6739
    %6991 = vmatprep.subr.bf16.mxu0 0
    %6992 = vmatpush2.bf16.msra.mxu0 %v6736
    %6993 = vmatprep.subr.bf16.mxu0 0
    %6994 = vmatpush2.bf16.msra.mxu0 %v6733
    %6995 = vmatprep.subr.bf16.mxu0 0
    %6996 = vmatpush2.bf16.msra.mxu0 %v6730
    %6997 = vmatprep.subr.bf16.mxu0 0
    %6998 = vmatpush2.bf16.msra.mxu0 %v6727
    %6999 = vmatprep.mubr.bf16.mxu0 %v6203
    %7000 = vmatmul.mubr.bf16.gmra.mxu0 %v6202
    %v7001 = vpop.f32.mrf.mxu0
    %v7002 = vadd.f32 %v6962, %v7001
    %v7003 = vpop.f32.mrf.mxu0
    %v7004 = vpop.f32.mrf.mxu0
    %v7005 = vpop.f32.mrf.mxu0
    %7006 = vdwg.mxu0
    %v7010 = vrot.slane %v1967, 4
    %v7011 = vrot.slane %v1969, 4
    %v7012 = vrot.slane %v2048, 4
    %v7019 = vrot.slane %v3621, 4
    %v7020 = vrot.slane %v3623, 4
    %v7021 = vrot.slane %v3702, 4
    %v7028 = vrot.slane %v5267, 4
    %v7029 = vrot.slane %v5269, 4
    %v7030 = vrot.slane %v5348, 4
    %v7037 = vrot.slane %v6921, 4
    %v7038 = vrot.slane %v6923, 4
    %v7039 = vrot.slane %v7002, 4
    %v7043 = vsel %vm207, %v1144, %v7010
    %v7044 = vsel %vm207, %v1146, %v7011
    %v7045 = vsel %vm207, %v1225, %v7012
    %v7046 = vsel %vm207, %v2794, %v7019
    %v7047 = vsel %vm207, %v2796, %v7020
    %v7048 = vsel %vm207, %v2875, %v7021
    %v7049 = vsel %vm207, %v4444, %v7028
    %v7050 = vsel %vm207, %v4446, %v7029
    %v7051 = vsel %vm207, %v4525, %v7030
    %v7052 = vsel %vm207, %v6094, %v7037
    %v7053 = vsel %vm207, %v6096, %v7038
    %v7054 = vsel %vm207, %v6175, %v7039
    %v7055 = vld [vmem:[%s3] sm:$0xff]
    %v7056 = vld [vmem:[%s3 + $0x8] sm:$0xff]
    %v7057 = vld [vmem:[%s3 + $0x10] sm:$0xff]
    %v7058 = vld [vmem:[%s3 + $0x18] sm:$0xff]
    %7060 = vset.pattern.permute.xlu0 0
    %7061 = vperm.xlu0 %7060, %v7055
    %v7062 = vpop.permute.xlu0 %7061
    %7065 = vset.pattern.permute.xlu0 0
    %7066 = vperm.xlu0 %7065, %v7056
    %v7067 = vpop.permute.xlu0 %7066
    %7070 = vset.pattern.permute.xlu0 0
    %7071 = vperm.xlu0 %7070, %v7057
    %v7072 = vpop.permute.xlu0 %7071
    %7075 = vset.pattern.permute.xlu0 0
    %7076 = vperm.xlu0 %7075, %v7058
    %v7077 = vpop.permute.xlu0 %7076
    %v7079 = vmul.f32 %v7043, %v7062
    %v7080 = vmul.f32 %v7044, %v7062
    %v7081 = vmul.f32 %v7045, %v7062
    %v7082 = vmul.f32 %v7046, %v7067
    %v7083 = vmul.f32 %v7047, %v7067
    %v7084 = vmul.f32 %v7048, %v7067
    %v7085 = vmul.f32 %v7049, %v7072
    %v7086 = vmul.f32 %v7050, %v7072
    %v7087 = vmul.f32 %v7051, %v7072
    %v7088 = vmul.f32 %v7052, %v7077
    %v7089 = vmul.f32 %v7053, %v7077
    %v7090 = vmul.f32 %v7054, %v7077
    %v7091 = vld [vmem:[%s4] sm:$0xff]
    %v7092 = vld [vmem:[%s4 + $0x8] sm:$0xff]
    %v7093 = vld [vmem:[%s4 + $0x10] sm:$0xff]
    %v7094 = vld [vmem:[%s4 + $0x18] sm:$0xff]
    %7096 = vset.pattern.permute.xlu0 0
    %7097 = vperm.xlu0 %7096, %v7091
    %v7098 = vpop.permute.xlu0 %7097
    %7101 = vset.pattern.permute.xlu0 0
    %7102 = vperm.xlu0 %7101, %v7092
    %v7103 = vpop.permute.xlu0 %7102
    %7106 = vset.pattern.permute.xlu0 0
    %7107 = vperm.xlu0 %7106, %v7093
    %v7108 = vpop.permute.xlu0 %7107
    %7111 = vset.pattern.permute.xlu0 0
    %7112 = vperm.xlu0 %7111, %v7094
    %v7113 = vpop.permute.xlu0 %7112
    %v7115 = vadd.f32 %v7079, %v7098
    %v7116 = vadd.f32 %v7080, %v7098
    %v7117 = vadd.f32 %v7081, %v7098
    %v7118 = vadd.f32 %v7082, %v7103
    %v7119 = vadd.f32 %v7083, %v7103
    %v7120 = vadd.f32 %v7084, %v7103
    %v7121 = vadd.f32 %v7085, %v7108
    %v7122 = vadd.f32 %v7086, %v7108
    %v7123 = vadd.f32 %v7087, %v7108
    %v7124 = vadd.f32 %v7088, %v7113
    %v7125 = vadd.f32 %v7089, %v7113
    %v7126 = vadd.f32 %v7090, %v7113
    %vm7127 = vcmp.gt.f32.partialorder %v7115, 0.0
    %vm7128 = vcmp.gt.f32.partialorder %v7116, 0.0
    %vm7129 = vcmp.gt.f32.partialorder %v7117, 0.0
    %vm7130 = vcmp.gt.f32.partialorder %v7118, 0.0
    %vm7131 = vcmp.gt.f32.partialorder %v7119, 0.0
    %vm7132 = vcmp.gt.f32.partialorder %v7120, 0.0
    %vm7133 = vcmp.gt.f32.partialorder %v7121, 0.0
    %vm7134 = vcmp.gt.f32.partialorder %v7122, 0.0
    %vm7135 = vcmp.gt.f32.partialorder %v7123, 0.0
    %vm7136 = vcmp.gt.f32.partialorder %v7124, 0.0
    %vm7137 = vcmp.gt.f32.partialorder %v7125, 0.0
    %vm7138 = vcmp.gt.f32.partialorder %v7126, 0.0
    %v7139 = vmin.f32 %v7115, 0.0
    %v7140 = vmin.f32 %v7116, 0.0
    %v7141 = vmin.f32 %v7117, 0.0
    %v7142 = vmin.f32 %v7118, 0.0
    %v7143 = vmin.f32 %v7119, 0.0
    %v7144 = vmin.f32 %v7120, 0.0
    %v7145 = vmin.f32 %v7121, 0.0
    %v7146 = vmin.f32 %v7122, 0.0
    %v7147 = vmin.f32 %v7123, 0.0
    %v7148 = vmin.f32 %v7124, 0.0
    %v7149 = vmin.f32 %v7125, 0.0
    %v7150 = vmin.f32 %v7126, 0.0
    %v7151 = vmul.f32 %v7139, 1.442695
    %v7152 = vpow.pop %v7151
    %v7153 = vmul.f32 %v7140, 1.442695
    %v7154 = vpow.pop %v7153
    %v7155 = vmul.f32 %v7141, 1.442695
    %v7156 = vpow.pop %v7155
    %v7157 = vmul.f32 %v7142, 1.442695
    %v7158 = vpow.pop %v7157
    %v7159 = vmul.f32 %v7143, 1.442695
    %v7160 = vpow.pop %v7159
    %v7161 = vmul.f32 %v7144, 1.442695
    %v7162 = vpow.pop %v7161
    %v7163 = vmul.f32 %v7145, 1.442695
    %v7164 = vpow.pop %v7163
    %v7165 = vmul.f32 %v7146, 1.442695
    %v7166 = vpow.pop %v7165
    %v7167 = vmul.f32 %v7147, 1.442695
    %v7168 = vpow.pop %v7167
    %v7169 = vmul.f32 %v7148, 1.442695
    %v7170 = vpow.pop %v7169
    %v7171 = vmul.f32 %v7149, 1.442695
    %v7172 = vpow.pop %v7171
    %v7173 = vmul.f32 %v7150, 1.442695
    %v7174 = vpow.pop %v7173
    %v7175 = vsub.f32 %v7152, 1.0
    %v7176 = vsub.f32 %v7154, 1.0
    %v7177 = vsub.f32 %v7156, 1.0
    %v7178 = vsub.f32 %v7158, 1.0
    %v7179 = vsub.f32 %v7160, 1.0
    %v7180 = vsub.f32 %v7162, 1.0
    %v7181 = vsub.f32 %v7164, 1.0
    %v7182 = vsub.f32 %v7166, 1.0
    %v7183 = vsub.f32 %v7168, 1.0
    %v7184 = vsub.f32 %v7170, 1.0
    %v7185 = vsub.f32 %v7172, 1.0
    %v7186 = vsub.f32 %v7174, 1.0
    %v7187 = vsel %vm7127, %v7115, %v7175
    %v7188 = vsel %vm7128, %v7116, %v7176
    %v7189 = vsel %vm7129, %v7117, %v7177
    %v7190 = vsel %vm7130, %v7118, %v7178
    %v7191 = vsel %vm7131, %v7119, %v7179
    %v7192 = vsel %vm7132, %v7120, %v7180
    %v7193 = vsel %vm7133, %v7121, %v7181
    %v7194 = vsel %vm7134, %v7122, %v7182
    %v7195 = vsel %vm7135, %v7123, %v7183
    %v7196 = vsel %vm7136, %v7124, %v7184
    %v7197 = vsel %vm7137, %v7125, %v7185
    %v7198 = vsel %vm7138, %v7126, %v7186
    %v7199 = vpack.c.bf16 %v7190, %v7187
    %v7200 = vpack.c.bf16 %v7191, %v7188
    %v7201 = vpack.c.bf16 %v7192, %v7189
    %v7202 = vpack.c.bf16 %v7196, %v7193
    %v7203 = vpack.c.bf16 %v7197, %v7194
    %v7204 = vpack.c.bf16 %v7198, %v7195
    %v7205 = vld [vmem:[#allocation8] sm:$0xff]
    %v7206 = vld [vmem:[#allocation8 + $0x8] sm:$0xff]
    %v7207 = vld [vmem:[#allocation8 + $0x10] sm:$0xff]
    %v7208 = vld [vmem:[#allocation8 + $0x18] sm:$0xff]
    %v7209 = vld [vmem:[#allocation8 + $0x20] sm:$0xff]
    %v7210 = vld [vmem:[#allocation8 + $0x28] sm:$0xff]
    %v7211 = vld [vmem:[#allocation8 + $0x30] sm:$0xff]
    %v7212 = vld [vmem:[#allocation8 + $0x38] sm:$0xff]
    %v7213 = vld [vmem:[#allocation8 + $0x40] sm:$0xff]
    %v7214 = vld [vmem:[#allocation8 + $0x48] sm:$0xff]
    %v7215 = vld [vmem:[#allocation8 + $0x50] sm:$0xff]
    %v7216 = vld [vmem:[#allocation8 + $0x58] sm:$0xff]
    %v7217 = vld [vmem:[#allocation8 + $0x60] sm:$0xff]
    %v7218 = vld [vmem:[#allocation8 + $0x68] sm:$0xff]
    %v7219 = vld [vmem:[#allocation8 + $0x70] sm:$0xff]
    %v7220 = vld [vmem:[#allocation8 + $0x78] sm:$0xff]
    %v7221 = vld [vmem:[#allocation8 + $0x80] sm:$0xff]
    %v7222 = vld [vmem:[#allocation8 + $0x88] sm:$0xff]
    %v7223 = vld [vmem:[#allocation8 + $0x90] sm:$0xff]
    %v7224 = vld [vmem:[#allocation8 + $0x98] sm:$0xff]
    %v7225 = vld [vmem:[#allocation8 + $0xa0] sm:$0xff]
    %v7226 = vld [vmem:[#allocation8 + $0xa8] sm:$0xff]
    %v7227 = vld [vmem:[#allocation8 + $0xb0] sm:$0xff]
    %v7228 = vld [vmem:[#allocation8 + $0xb8] sm:$0xff]
    %v7229 = vld [vmem:[#allocation8 + $0xc0] sm:$0xff]
    %v7230 = vld [vmem:[#allocation8 + $0xc8] sm:$0xff]
    %v7231 = vld [vmem:[#allocation8 + $0xd0] sm:$0xff]
    %v7232 = vld [vmem:[#allocation8 + $0xd8] sm:$0xff]
    %v7233 = vld [vmem:[#allocation8 + $0xe0] sm:$0xff]
    %v7234 = vld [vmem:[#allocation8 + $0xe8] sm:$0xff]
    %v7235 = vld [vmem:[#allocation8 + $0xf0] sm:$0xff]
    %v7236 = vld [vmem:[#allocation8 + $0xf8] sm:$0xff]
    %v7237 = vld [vmem:[#allocation8 + $0x100] sm:$0xff]
    %v7238 = vld [vmem:[#allocation8 + $0x108] sm:$0xff]
    %v7239 = vld [vmem:[#allocation8 + $0x110] sm:$0xff]
    %v7240 = vld [vmem:[#allocation8 + $0x118] sm:$0xff]
    %v7241 = vld [vmem:[#allocation8 + $0x120] sm:$0xff]
    %v7242 = vld [vmem:[#allocation8 + $0x128] sm:$0xff]
    %v7243 = vld [vmem:[#allocation8 + $0x130] sm:$0xff]
    %v7244 = vld [vmem:[#allocation8 + $0x138] sm:$0xff]
    %v7245 = vld [vmem:[#allocation8 + $0x140] sm:$0xff]
    %v7246 = vld [vmem:[#allocation8 + $0x148] sm:$0xff]
    %v7247 = vld [vmem:[#allocation8 + $0x150] sm:$0xff]
    %v7248 = vld [vmem:[#allocation8 + $0x158] sm:$0xff]
    %v7249 = vld [vmem:[#allocation8 + $0x160] sm:$0xff]
    %v7250 = vld [vmem:[#allocation8 + $0x168] sm:$0xff]
    %v7251 = vld [vmem:[#allocation8 + $0x170] sm:$0xff]
    %v7252 = vld [vmem:[#allocation8 + $0x178] sm:$0xff]
    %v7301 = vunpack.c.l.b16 %v7205
    %v7302 = vunpack.c.h.b16 %v7205
    %v7303 = vunpack.c.l.b16 %v7206
    %v7304 = vunpack.c.h.b16 %v7206
    %v7305 = vunpack.c.l.b16 %v7207
    %v7306 = vunpack.c.h.b16 %v7207
    %v7307 = vunpack.c.l.b16 %v7208
    %v7308 = vunpack.c.h.b16 %v7208
    %v7309 = vunpack.c.l.b16 %v7209
    %v7310 = vunpack.c.h.b16 %v7209
    %v7311 = vunpack.c.l.b16 %v7210
    %v7312 = vunpack.c.h.b16 %v7210
    %v7313 = vunpack.c.l.b16 %v7211
    %v7314 = vunpack.c.h.b16 %v7211
    %v7315 = vunpack.c.l.b16 %v7212
    %v7316 = vunpack.c.h.b16 %v7212
    %v7317 = vunpack.c.l.b16 %v7213
    %v7318 = vunpack.c.h.b16 %v7213
    %v7319 = vunpack.c.l.b16 %v7214
    %v7320 = vunpack.c.h.b16 %v7214
    %v7321 = vunpack.c.l.b16 %v7215
    %v7322 = vunpack.c.h.b16 %v7215
    %v7323 = vunpack.c.l.b16 %v7216
    %v7324 = vunpack.c.h.b16 %v7216
    %v7325 = vunpack.c.l.b16 %v7217
    %v7326 = vunpack.c.h.b16 %v7217
    %v7327 = vunpack.c.l.b16 %v7218
    %v7328 = vunpack.c.h.b16 %v7218
    %v7329 = vunpack.c.l.b16 %v7219
    %v7330 = vunpack.c.h.b16 %v7219
    %v7331 = vunpack.c.l.b16 %v7220
    %v7332 = vunpack.c.h.b16 %v7220
    %v7333 = vunpack.c.l.b16 %v7221
    %v7334 = vunpack.c.h.b16 %v7221
    %v7335 = vunpack.c.l.b16 %v7222
    %v7336 = vunpack.c.h.b16 %v7222
    %v7337 = vunpack.c.l.b16 %v7223
    %v7338 = vunpack.c.h.b16 %v7223
    %v7339 = vunpack.c.l.b16 %v7224
    %v7340 = vunpack.c.h.b16 %v7224
    %v7341 = vunpack.c.l.b16 %v7225
    %v7342 = vunpack.c.h.b16 %v7225
    %v7343 = vunpack.c.l.b16 %v7226
    %v7344 = vunpack.c.h.b16 %v7226
    %v7345 = vunpack.c.l.b16 %v7227
    %v7346 = vunpack.c.h.b16 %v7227
    %v7347 = vunpack.c.l.b16 %v7228
    %v7348 = vunpack.c.h.b16 %v7228
    %v7349 = vunpack.c.l.b16 %v7229
    %v7350 = vunpack.c.h.b16 %v7229
    %v7351 = vunpack.c.l.b16 %v7230
    %v7352 = vunpack.c.h.b16 %v7230
    %v7353 = vunpack.c.l.b16 %v7231
    %v7354 = vunpack.c.h.b16 %v7231
    %v7355 = vunpack.c.l.b16 %v7232
    %v7356 = vunpack.c.h.b16 %v7232
    %v7357 = vunpack.c.l.b16 %v7233
    %v7358 = vunpack.c.h.b16 %v7233
    %v7359 = vunpack.c.l.b16 %v7234
    %v7360 = vunpack.c.h.b16 %v7234
    %v7361 = vunpack.c.l.b16 %v7235
    %v7362 = vunpack.c.h.b16 %v7235
    %v7363 = vunpack.c.l.b16 %v7236
    %v7364 = vunpack.c.h.b16 %v7236
    %v7365 = vunpack.c.l.b16 %v7237
    %v7366 = vunpack.c.h.b16 %v7237
    %v7367 = vunpack.c.l.b16 %v7238
    %v7368 = vunpack.c.h.b16 %v7238
    %v7369 = vunpack.c.l.b16 %v7239
    %v7370 = vunpack.c.h.b16 %v7239
    %v7371 = vunpack.c.l.b16 %v7240
    %v7372 = vunpack.c.h.b16 %v7240
    %v7373 = vunpack.c.l.b16 %v7241
    %v7374 = vunpack.c.h.b16 %v7241
    %v7375 = vunpack.c.l.b16 %v7242
    %v7376 = vunpack.c.h.b16 %v7242
    %v7377 = vunpack.c.l.b16 %v7243
    %v7378 = vunpack.c.h.b16 %v7243
    %v7379 = vunpack.c.l.b16 %v7244
    %v7380 = vunpack.c.h.b16 %v7244
    %v7381 = vunpack.c.l.b16 %v7245
    %v7382 = vunpack.c.h.b16 %v7245
    %v7383 = vunpack.c.l.b16 %v7246
    %v7384 = vunpack.c.h.b16 %v7246
    %v7385 = vunpack.c.l.b16 %v7247
    %v7386 = vunpack.c.h.b16 %v7247
    %v7387 = vunpack.c.l.b16 %v7248
    %v7388 = vunpack.c.h.b16 %v7248
    %v7389 = vunpack.c.l.b16 %v7249
    %v7390 = vunpack.c.h.b16 %v7249
    %v7391 = vunpack.c.l.b16 %v7250
    %v7392 = vunpack.c.h.b16 %v7250
    %v7393 = vunpack.c.l.b16 %v7251
    %v7394 = vunpack.c.h.b16 %v7251
    %v7395 = vunpack.c.l.b16 %v7252
    %v7396 = vunpack.c.h.b16 %v7252
    %v7397 = vpack.c.b16 %v7303, %v7301
    %v7398 = vpack.c.b16 %v7304, %v7302
    %v7399 = vpack.c.b16 %v7307, %v7305
    %v7400 = vpack.c.b16 %v7308, %v7306
    %v7401 = vpack.c.b16 %v7311, %v7309
    %v7402 = vpack.c.b16 %v7312, %v7310
    %v7403 = vpack.c.b16 %v7315, %v7313
    %v7404 = vpack.c.b16 %v7316, %v7314
    %v7405 = vpack.c.b16 %v7319, %v7317
    %v7406 = vpack.c.b16 %v7320, %v7318
    %v7407 = vpack.c.b16 %v7323, %v7321
    %v7408 = vpack.c.b16 %v7324, %v7322
    %v7409 = vpack.c.b16 %v7327, %v7325
    %v7410 = vpack.c.b16 %v7328, %v7326
    %v7411 = vpack.c.b16 %v7331, %v7329
    %v7412 = vpack.c.b16 %v7332, %v7330
    %v7413 = vpack.c.b16 %v7335, %v7333
    %v7414 = vpack.c.b16 %v7336, %v7334
    %v7415 = vpack.c.b16 %v7339, %v7337
    %v7416 = vpack.c.b16 %v7340, %v7338
    %v7417 = vpack.c.b16 %v7343, %v7341
    %v7418 = vpack.c.b16 %v7344, %v7342
    %v7419 = vpack.c.b16 %v7347, %v7345
    %v7420 = vpack.c.b16 %v7348, %v7346
    %v7421 = vpack.c.b16 %v7351, %v7349
    %v7422 = vpack.c.b16 %v7352, %v7350
    %v7423 = vpack.c.b16 %v7355, %v7353
    %v7424 = vpack.c.b16 %v7356, %v7354
    %v7425 = vpack.c.b16 %v7359, %v7357
    %v7426 = vpack.c.b16 %v7360, %v7358
    %v7427 = vpack.c.b16 %v7363, %v7361
    %v7428 = vpack.c.b16 %v7364, %v7362
    %v7429 = vpack.c.b16 %v7367, %v7365
    %v7430 = vpack.c.b16 %v7368, %v7366
    %v7431 = vpack.c.b16 %v7371, %v7369
    %v7432 = vpack.c.b16 %v7372, %v7370
    %v7433 = vpack.c.b16 %v7375, %v7373
    %v7434 = vpack.c.b16 %v7376, %v7374
    %v7435 = vpack.c.b16 %v7379, %v7377
    %v7436 = vpack.c.b16 %v7380, %v7378
    %v7437 = vpack.c.b16 %v7383, %v7381
    %v7438 = vpack.c.b16 %v7384, %v7382
    %v7439 = vpack.c.b16 %v7387, %v7385
    %v7440 = vpack.c.b16 %v7388, %v7386
    %v7441 = vpack.c.b16 %v7391, %v7389
    %v7442 = vpack.c.b16 %v7392, %v7390
    %v7443 = vpack.c.b16 %v7395, %v7393
    %v7444 = vpack.c.b16 %v7396, %v7394
    %7493 = vmatprep.subr.bf16.mxu0 %v7412
    %7494 = vmatpush1.bf16.msra.mxu0 %v7411
    %7495 = vmatprep.subr.bf16.mxu0 %v7410
    %7496 = vmatpush1.bf16.msra.mxu0 %v7409
    %7497 = vmatprep.subr.bf16.mxu0 %v7408
    %7498 = vmatpush1.bf16.msra.mxu0 %v7407
    %7499 = vmatprep.subr.bf16.mxu0 %v7406
    %7500 = vmatpush1.bf16.msra.mxu0 %v7405
    %7501 = vmatprep.subr.bf16.mxu0 %v7404
    %7502 = vmatpush1.bf16.msra.mxu0 %v7403
    %7503 = vmatprep.subr.bf16.mxu0 %v7402
    %7504 = vmatpush1.bf16.msra.mxu0 %v7401
    %7505 = vmatprep.subr.bf16.mxu0 %v7400
    %7506 = vmatpush1.bf16.msra.mxu0 %v7399
    %7507 = vmatprep.subr.bf16.mxu0 %v7398
    %7508 = vmatpush1.bf16.msra.mxu0 %v7397
    %7509 = vmatprep.subr.bf16.mxu0 %v7428
    %7510 = vmatpush2.bf16.msra.mxu0 %v7427
    %7511 = vmatprep.subr.bf16.mxu0 %v7426
    %7512 = vmatpush2.bf16.msra.mxu0 %v7425
    %7513 = vmatprep.subr.bf16.mxu0 %v7424
    %7514 = vmatpush2.bf16.msra.mxu0 %v7423
    %7515 = vmatprep.subr.bf16.mxu0 %v7422
    %7516 = vmatpush2.bf16.msra.mxu0 %v7421
    %7517 = vmatprep.subr.bf16.mxu0 %v7420
    %7518 = vmatpush2.bf16.msra.mxu0 %v7419
    %7519 = vmatprep.subr.bf16.mxu0 %v7418
    %7520 = vmatpush2.bf16.msra.mxu0 %v7417
    %7521 = vmatprep.subr.bf16.mxu0 %v7416
    %7522 = vmatpush2.bf16.msra.mxu0 %v7415
    %7523 = vmatprep.subr.bf16.mxu0 %v7414
    %7524 = vmatpush2.bf16.msra.mxu0 %v7413
    %7525 = vmatprep.mubr.bf16.mxu0 %v7200
    %7526 = vmatmul.mubr.bf16.gmra.mxu0 %v7199
    %v7527 = vpop.f32.mrf.mxu0
    %v7528 = vadd.f32 0.0, %v7527
    %v7529 = vpop.f32.mrf.mxu0
    %v7530 = vadd.f32 0.0, %v7529
    %v7531 = vpop.f32.mrf.mxu0
    %v7532 = vadd.f32 0.0, %v7531
    %v7533 = vpop.f32.mrf.mxu0
    %v7534 = vadd.f32 0.0, %v7533
    %7535 = vmatprep.mubr.bf16.mxu0 %v7203
    %7536 = vmatmul.mubr.bf16.gmra.mxu0 %v7202
    %v7537 = vpop.f32.mrf.mxu0
    %v7538 = vadd.f32 0.0, %v7537
    %v7539 = vpop.f32.mrf.mxu0
    %v7540 = vadd.f32 0.0, %v7539
    %v7541 = vpop.f32.mrf.mxu0
    %v7542 = vadd.f32 0.0, %v7541
    %v7543 = vpop.f32.mrf.mxu0
    %v7544 = vadd.f32 0.0, %v7543
    %7545 = vdwg.mxu0
    %7546 = vmatprep.subr.bf16.mxu0 %v7444
    %7547 = vmatpush1.bf16.msra.mxu0 %v7443
    %7548 = vmatprep.subr.bf16.mxu0 %v7442
    %7549 = vmatpush1.bf16.msra.mxu0 %v7441
    %7550 = vmatprep.subr.bf16.mxu0 %v7440
    %7551 = vmatpush1.bf16.msra.mxu0 %v7439
    %7552 = vmatprep.subr.bf16.mxu0 %v7438
    %7553 = vmatpush1.bf16.msra.mxu0 %v7437
    %7554 = vmatprep.subr.bf16.mxu0 %v7436
    %7555 = vmatpush1.bf16.msra.mxu0 %v7435
    %7556 = vmatprep.subr.bf16.mxu0 %v7434
    %7557 = vmatpush1.bf16.msra.mxu0 %v7433
    %7558 = vmatprep.subr.bf16.mxu0 %v7432
    %7559 = vmatpush1.bf16.msra.mxu0 %v7431
    %7560 = vmatprep.subr.bf16.mxu0 %v7430
    %7561 = vmatpush1.bf16.msra.mxu0 %v7429
    %7562 = vmatprep.subr.bf16.mxu0 0
    %7563 = vmatpush2.bf16.msra.mxu0 0
    %7564 = vmatprep.subr.bf16.mxu0 0
    %7565 = vmatpush2.bf16.msra.mxu0 0
    %7566 = vmatprep.subr.bf16.mxu0 0
    %7567 = vmatpush2.bf16.msra.mxu0 0
    %7568 = vmatprep.subr.bf16.mxu0 0
    %7569 = vmatpush2.bf16.msra.mxu0 0
    %7570 = vmatprep.subr.bf16.mxu0 0
    %7571 = vmatpush2.bf16.msra.mxu0 0
    %7572 = vmatprep.subr.bf16.mxu0 0
    %7573 = vmatpush2.bf16.msra.mxu0 0
    %7574 = vmatprep.subr.bf16.mxu0 0
    %7575 = vmatpush2.bf16.msra.mxu0 0
    %7576 = vmatprep.subr.bf16.mxu0 0
    %7577 = vmatpush2.bf16.msra.mxu0 0
    %7578 = vmatprep.mubr.bf16.mxu0 0
    %7579 = vmatmul.mubr.bf16.gmra.mxu0 %v7201
    %v7580 = vpop.f32.mrf.mxu0
    %v7581 = vadd.f32 %v7528, %v7580
    %v7582 = vpop.f32.mrf.mxu0
    %v7583 = vadd.f32 %v7530, %v7582
    %v7584 = vpop.f32.mrf.mxu0
    %v7585 = vadd.f32 %v7532, %v7584
    %v7586 = vpop.f32.mrf.mxu0
    %v7587 = vadd.f32 %v7534, %v7586
    %7588 = vmatprep.mubr.bf16.mxu0 0
    %7589 = vmatmul.mubr.bf16.gmra.mxu0 %v7204
    %v7590 = vpop.f32.mrf.mxu0
    %v7591 = vadd.f32 %v7538, %v7590
    %v7592 = vpop.f32.mrf.mxu0
    %v7593 = vadd.f32 %v7540, %v7592
    %v7594 = vpop.f32.mrf.mxu0
    %v7595 = vadd.f32 %v7542, %v7594
    %v7596 = vpop.f32.mrf.mxu0
    %v7597 = vadd.f32 %v7544, %v7596
    %7598 = vdwg.mxu0
    %v7599 = vld [vmem:[%s6] sm:$0xff]
    %v7600 = vld [vmem:[%s6 + $0x8] sm:$0xff]
    %v7601 = vld [vmem:[%s6 + $0x10] sm:$0xff]
    %v7602 = vld [vmem:[%s6 + $0x18] sm:$0xff]
    %7604 = vset.pattern.permute.xlu0 0
    %7605 = vperm.xlu0 %7604, %v7599
    %v7606 = vpop.permute.xlu0 %7605
    %7609 = vset.pattern.permute.xlu0 0
    %7610 = vperm.xlu0 %7609, %v7600
    %v7611 = vpop.permute.xlu0 %7610
    %7614 = vset.pattern.permute.xlu0 0
    %7615 = vperm.xlu0 %7614, %v7601
    %v7616 = vpop.permute.xlu0 %7615
    %7619 = vset.pattern.permute.xlu0 0
    %7620 = vperm.xlu0 %7619, %v7602
    %v7621 = vpop.permute.xlu0 %7620
    %v7623 = vmul.f32 %v7581, %v7606
    %v7624 = vmul.f32 %v7585, %v7611
    %v7625 = vmul.f32 %v7591, %v7616
    %v7626 = vmul.f32 %v7595, %v7621
    %7627 = vset.pattern.permute.xlu0 1
    %7628 = vperm.xlu0 %7627, %v7599
    %v7629 = vpop.permute.xlu0 %7628
    %7631 = vset.pattern.permute.xlu0 1
    %7632 = vperm.xlu0 %7631, %v7600
    %v7633 = vpop.permute.xlu0 %7632
    %7635 = vset.pattern.permute.xlu0 1
    %7636 = vperm.xlu0 %7635, %v7601
    %v7637 = vpop.permute.xlu0 %7636
    %7639 = vset.pattern.permute.xlu0 1
    %7640 = vperm.xlu0 %7639, %v7602
    %v7641 = vpop.permute.xlu0 %7640
    %v7643 = vmul.f32 %v7581, %v7629
    %v7644 = vmul.f32 %v7583, %v7629
    %v7645 = vmul.f32 %v7585, %v7633
    %v7646 = vmul.f32 %v7587, %v7633
    %v7647 = vmul.f32 %v7591, %v7637
    %v7648 = vmul.f32 %v7593, %v7637
    %v7649 = vmul.f32 %v7595, %v7641
    %v7650 = vmul.f32 %v7597, %v7641
    %7659 = vrot.lane.b32.xlu0 %v7643, 127
    %v7660 = vpop.permute.xlu0 %7659
    %7661 = vrot.lane.b32.xlu0 %v7644, 127
    %v7662 = vpop.permute.xlu0 %7661
    %7663 = vrot.lane.b32.xlu0 %v7645, 127
    %v7664 = vpop.permute.xlu0 %7663
    %7665 = vrot.lane.b32.xlu0 %v7646, 127
    %v7666 = vpop.permute.xlu0 %7665
    %7667 = vrot.lane.b32.xlu0 %v7647, 127
    %v7668 = vpop.permute.xlu0 %7667
    %7669 = vrot.lane.b32.xlu0 %v7648, 127
    %v7670 = vpop.permute.xlu0 %7669
    %7671 = vrot.lane.b32.xlu0 %v7649, 127
    %v7672 = vpop.permute.xlu0 %7671
    %7673 = vrot.lane.b32.xlu0 %v7650, 127
    %v7674 = vpop.permute.xlu0 %7673
    %vm7675 = vcmask 1039360
    %v7676 = vsel %vm7675, %v7660, %v7662
    %v7677 = vsel %vm7675, %v7664, %v7666
    %v7678 = vsel %vm7675, %v7668, %v7670
    %v7679 = vsel %vm7675, %v7672, %v7674
    %v7684 = vadd.f32 %v7623, %v7676
    %v7685 = vadd.f32 %v7624, %v7677
    %v7686 = vadd.f32 %v7625, %v7678
    %v7687 = vadd.f32 %v7626, %v7679
    %7688 = vset.pattern.permute.xlu0 2
    %7689 = vperm.xlu0 %7688, %v7599
    %v7690 = vpop.permute.xlu0 %7689
    %7692 = vset.pattern.permute.xlu0 2
    %7693 = vperm.xlu0 %7692, %v7600
    %v7694 = vpop.permute.xlu0 %7693
    %7696 = vset.pattern.permute.xlu0 2
    %7697 = vperm.xlu0 %7696, %v7601
    %v7698 = vpop.permute.xlu0 %7697
    %7700 = vset.pattern.permute.xlu0 2
    %7701 = vperm.xlu0 %7700, %v7602
    %v7702 = vpop.permute.xlu0 %7701
    %v7704 = vmul.f32 %v7581, %v7690
    %v7705 = vmul.f32 %v7583, %v7690
    %v7706 = vmul.f32 %v7585, %v7694
    %v7707 = vmul.f32 %v7587, %v7694
    %v7708 = vmul.f32 %v7591, %v7698
    %v7709 = vmul.f32 %v7593, %v7698
    %v7710 = vmul.f32 %v7595, %v7702
    %v7711 = vmul.f32 %v7597, %v7702
    %7720 = vrot.lane.b32.xlu0 %v7704, 126
    %v7721 = vpop.permute.xlu0 %7720
    %7722 = vrot.lane.b32.xlu0 %v7705, 126
    %v7723 = vpop.permute.xlu0 %7722
    %7724 = vrot.lane.b32.xlu0 %v7706, 126
    %v7725 = vpop.permute.xlu0 %7724
    %7726 = vrot.lane.b32.xlu0 %v7707, 126
    %v7727 = vpop.permute.xlu0 %7726
    %7728 = vrot.lane.b32.xlu0 %v7708, 126
    %v7729 = vpop.permute.xlu0 %7728
    %7730 = vrot.lane.b32.xlu0 %v7709, 126
    %v7731 = vpop.permute.xlu0 %7730
    %7732 = vrot.lane.b32.xlu0 %v7710, 126
    %v7733 = vpop.permute.xlu0 %7732
    %7734 = vrot.lane.b32.xlu0 %v7711, 126
    %v7735 = vpop.permute.xlu0 %7734
    %vm7736 = vcmask 1031168
    %v7737 = vsel %vm7736, %v7721, %v7723
    %v7738 = vsel %vm7736, %v7725, %v7727
    %v7739 = vsel %vm7736, %v7729, %v7731
    %v7740 = vsel %vm7736, %v7733, %v7735
    %v7745 = vadd.f32 %v7684, %v7737
    %v7746 = vadd.f32 %v7685, %v7738
    %v7747 = vadd.f32 %v7686, %v7739
    %v7748 = vadd.f32 %v7687, %v7740
    %7749 = vset.pattern.permute.xlu0 3
    %7750 = vperm.xlu0 %7749, %v7599
    %v7751 = vpop.permute.xlu0 %7750
    %7753 = vset.pattern.permute.xlu0 3
    %7754 = vperm.xlu0 %7753, %v7600
    %v7755 = vpop.permute.xlu0 %7754
    %7757 = vset.pattern.permute.xlu0 3
    %7758 = vperm.xlu0 %7757, %v7601
    %v7759 = vpop.permute.xlu0 %7758
    %7761 = vset.pattern.permute.xlu0 3
    %7762 = vperm.xlu0 %7761, %v7602
    %v7763 = vpop.permute.xlu0 %7762
    %v7765 = vmul.f32 %v7581, %v7751
    %v7766 = vmul.f32 %v7583, %v7751
    %v7767 = vmul.f32 %v7585, %v7755
    %v7768 = vmul.f32 %v7587, %v7755
    %v7769 = vmul.f32 %v7591, %v7759
    %v7770 = vmul.f32 %v7593, %v7759
    %v7771 = vmul.f32 %v7595, %v7763
    %v7772 = vmul.f32 %v7597, %v7763
    %7781 = vrot.lane.b32.xlu0 %v7765, 125
    %v7782 = vpop.permute.xlu0 %7781
    %7783 = vrot.lane.b32.xlu0 %v7766, 125
    %v7784 = vpop.permute.xlu0 %7783
    %7785 = vrot.lane.b32.xlu0 %v7767, 125
    %v7786 = vpop.permute.xlu0 %7785
    %7787 = vrot.lane.b32.xlu0 %v7768, 125
    %v7788 = vpop.permute.xlu0 %7787
    %7789 = vrot.lane.b32.xlu0 %v7769, 125
    %v7790 = vpop.permute.xlu0 %7789
    %7791 = vrot.lane.b32.xlu0 %v7770, 125
    %v7792 = vpop.permute.xlu0 %7791
    %7793 = vrot.lane.b32.xlu0 %v7771, 125
    %v7794 = vpop.permute.xlu0 %7793
    %7795 = vrot.lane.b32.xlu0 %v7772, 125
    %v7796 = vpop.permute.xlu0 %7795
    %vm7797 = vcmask 1022976
    %v7798 = vsel %vm7797, %v7782, %v7784
    %v7799 = vsel %vm7797, %v7786, %v7788
    %v7800 = vsel %vm7797, %v7790, %v7792
    %v7801 = vsel %vm7797, %v7794, %v7796
    %v7806 = vadd.f32 %v7745, %v7798
    %v7807 = vadd.f32 %v7746, %v7799
    %v7808 = vadd.f32 %v7747, %v7800
    %v7809 = vadd.f32 %v7748, %v7801
    %7810 = vset.pattern.permute.xlu0 4
    %7811 = vperm.xlu0 %7810, %v7599
    %v7812 = vpop.permute.xlu0 %7811
    %7814 = vset.pattern.permute.xlu0 4
    %7815 = vperm.xlu0 %7814, %v7600
    %v7816 = vpop.permute.xlu0 %7815
    %7818 = vset.pattern.permute.xlu0 4
    %7819 = vperm.xlu0 %7818, %v7601
    %v7820 = vpop.permute.xlu0 %7819
    %7822 = vset.pattern.permute.xlu0 4
    %7823 = vperm.xlu0 %7822, %v7602
    %v7824 = vpop.permute.xlu0 %7823
    %v7826 = vmul.f32 %v7581, %v7812
    %v7827 = vmul.f32 %v7583, %v7812
    %v7828 = vmul.f32 %v7585, %v7816
    %v7829 = vmul.f32 %v7587, %v7816
    %v7830 = vmul.f32 %v7591, %v7820
    %v7831 = vmul.f32 %v7593, %v7820
    %v7832 = vmul.f32 %v7595, %v7824
    %v7833 = vmul.f32 %v7597, %v7824
    %7842 = vrot.lane.b32.xlu0 %v7826, 124
    %v7843 = vpop.permute.xlu0 %7842
    %7844 = vrot.lane.b32.xlu0 %v7827, 124
    %v7845 = vpop.permute.xlu0 %7844
    %7846 = vrot.lane.b32.xlu0 %v7828, 124
    %v7847 = vpop.permute.xlu0 %7846
    %7848 = vrot.lane.b32.xlu0 %v7829, 124
    %v7849 = vpop.permute.xlu0 %7848
    %7850 = vrot.lane.b32.xlu0 %v7830, 124
    %v7851 = vpop.permute.xlu0 %7850
    %7852 = vrot.lane.b32.xlu0 %v7831, 124
    %v7853 = vpop.permute.xlu0 %7852
    %7854 = vrot.lane.b32.xlu0 %v7832, 124
    %v7855 = vpop.permute.xlu0 %7854
    %7856 = vrot.lane.b32.xlu0 %v7833, 124
    %v7857 = vpop.permute.xlu0 %7856
    %vm7858 = vcmask 1014784
    %v7859 = vsel %vm7858, %v7843, %v7845
    %v7860 = vsel %vm7858, %v7847, %v7849
    %v7861 = vsel %vm7858, %v7851, %v7853
    %v7862 = vsel %vm7858, %v7855, %v7857
    %v7867 = vadd.f32 %v7806, %v7859
    %v7868 = vadd.f32 %v7807, %v7860
    %v7869 = vadd.f32 %v7808, %v7861
    %v7870 = vadd.f32 %v7809, %v7862
    %7871 = vset.pattern.permute.xlu0 5
    %7872 = vperm.xlu0 %7871, %v7599
    %v7873 = vpop.permute.xlu0 %7872
    %7875 = vset.pattern.permute.xlu0 5
    %7876 = vperm.xlu0 %7875, %v7600
    %v7877 = vpop.permute.xlu0 %7876
    %7879 = vset.pattern.permute.xlu0 5
    %7880 = vperm.xlu0 %7879, %v7601
    %v7881 = vpop.permute.xlu0 %7880
    %7883 = vset.pattern.permute.xlu0 5
    %7884 = vperm.xlu0 %7883, %v7602
    %v7885 = vpop.permute.xlu0 %7884
    %v7887 = vmul.f32 %v7581, %v7873
    %v7888 = vmul.f32 %v7583, %v7873
    %v7889 = vmul.f32 %v7585, %v7877
    %v7890 = vmul.f32 %v7587, %v7877
    %v7891 = vmul.f32 %v7591, %v7881
    %v7892 = vmul.f32 %v7593, %v7881
    %v7893 = vmul.f32 %v7595, %v7885
    %v7894 = vmul.f32 %v7597, %v7885
    %7903 = vrot.lane.b32.xlu0 %v7887, 123
    %v7904 = vpop.permute.xlu0 %7903
    %7905 = vrot.lane.b32.xlu0 %v7888, 123
    %v7906 = vpop.permute.xlu0 %7905
    %7907 = vrot.lane.b32.xlu0 %v7889, 123
    %v7908 = vpop.permute.xlu0 %7907
    %7909 = vrot.lane.b32.xlu0 %v7890, 123
    %v7910 = vpop.permute.xlu0 %7909
    %7911 = vrot.lane.b32.xlu0 %v7891, 123
    %v7912 = vpop.permute.xlu0 %7911
    %7913 = vrot.lane.b32.xlu0 %v7892, 123
    %v7914 = vpop.permute.xlu0 %7913
    %7915 = vrot.lane.b32.xlu0 %v7893, 123
    %v7916 = vpop.permute.xlu0 %7915
    %7917 = vrot.lane.b32.xlu0 %v7894, 123
    %v7918 = vpop.permute.xlu0 %7917
    %vm7919 = vcmask 1006592
    %v7920 = vsel %vm7919, %v7904, %v7906
    %v7921 = vsel %vm7919, %v7908, %v7910
    %v7922 = vsel %vm7919, %v7912, %v7914
    %v7923 = vsel %vm7919, %v7916, %v7918
    %v7928 = vadd.f32 %v7867, %v7920
    %v7929 = vadd.f32 %v7868, %v7921
    %v7930 = vadd.f32 %v7869, %v7922
    %v7931 = vadd.f32 %v7870, %v7923
    %7932 = vset.pattern.permute.xlu0 6
    %7933 = vperm.xlu0 %7932, %v7599
    %v7934 = vpop.permute.xlu0 %7933
    %7936 = vset.pattern.permute.xlu0 6
    %7937 = vperm.xlu0 %7936, %v7600
    %v7938 = vpop.permute.xlu0 %7937
    %7940 = vset.pattern.permute.xlu0 6
    %7941 = vperm.xlu0 %7940, %v7601
    %v7942 = vpop.permute.xlu0 %7941
    %7944 = vset.pattern.permute.xlu0 6
    %7945 = vperm.xlu0 %7944, %v7602
    %v7946 = vpop.permute.xlu0 %7945
    %v7948 = vmul.f32 %v7581, %v7934
    %v7949 = vmul.f32 %v7583, %v7934
    %v7950 = vmul.f32 %v7585, %v7938
    %v7951 = vmul.f32 %v7587, %v7938
    %v7952 = vmul.f32 %v7591, %v7942
    %v7953 = vmul.f32 %v7593, %v7942
    %v7954 = vmul.f32 %v7595, %v7946
    %v7955 = vmul.f32 %v7597, %v7946
    %7964 = vrot.lane.b32.xlu0 %v7948, 122
    %v7965 = vpop.permute.xlu0 %7964
    %7966 = vrot.lane.b32.xlu0 %v7949, 122
    %v7967 = vpop.permute.xlu0 %7966
    %7968 = vrot.lane.b32.xlu0 %v7950, 122
    %v7969 = vpop.permute.xlu0 %7968
    %7970 = vrot.lane.b32.xlu0 %v7951, 122
    %v7971 = vpop.permute.xlu0 %7970
    %7972 = vrot.lane.b32.xlu0 %v7952, 122
    %v7973 = vpop.permute.xlu0 %7972
    %7974 = vrot.lane.b32.xlu0 %v7953, 122
    %v7975 = vpop.permute.xlu0 %7974
    %7976 = vrot.lane.b32.xlu0 %v7954, 122
    %v7977 = vpop.permute.xlu0 %7976
    %7978 = vrot.lane.b32.xlu0 %v7955, 122
    %v7979 = vpop.permute.xlu0 %7978
    %vm7980 = vcmask 998400
    %v7981 = vsel %vm7980, %v7965, %v7967
    %v7982 = vsel %vm7980, %v7969, %v7971
    %v7983 = vsel %vm7980, %v7973, %v7975
    %v7984 = vsel %vm7980, %v7977, %v7979
    %v7989 = vadd.f32 %v7928, %v7981
    %v7990 = vadd.f32 %v7929, %v7982
    %v7991 = vadd.f32 %v7930, %v7983
    %v7992 = vadd.f32 %v7931, %v7984
    %7993 = vset.pattern.permute.xlu0 7
    %7994 = vperm.xlu0 %7993, %v7599
    %v7995 = vpop.permute.xlu0 %7994
    %7997 = vset.pattern.permute.xlu0 7
    %7998 = vperm.xlu0 %7997, %v7600
    %v7999 = vpop.permute.xlu0 %7998
    %8001 = vset.pattern.permute.xlu0 7
    %8002 = vperm.xlu0 %8001, %v7601
    %v8003 = vpop.permute.xlu0 %8002
    %8005 = vset.pattern.permute.xlu0 7
    %8006 = vperm.xlu0 %8005, %v7602
    %v8007 = vpop.permute.xlu0 %8006
    %v8009 = vmul.f32 %v7581, %v7995
    %v8010 = vmul.f32 %v7583, %v7995
    %v8011 = vmul.f32 %v7585, %v7999
    %v8012 = vmul.f32 %v7587, %v7999
    %v8013 = vmul.f32 %v7591, %v8003
    %v8014 = vmul.f32 %v7593, %v8003
    %v8015 = vmul.f32 %v7595, %v8007
    %v8016 = vmul.f32 %v7597, %v8007
    %8025 = vrot.lane.b32.xlu0 %v8009, 121
    %v8026 = vpop.permute.xlu0 %8025
    %8027 = vrot.lane.b32.xlu0 %v8010, 121
    %v8028 = vpop.permute.xlu0 %8027
    %8029 = vrot.lane.b32.xlu0 %v8011, 121
    %v8030 = vpop.permute.xlu0 %8029
    %8031 = vrot.lane.b32.xlu0 %v8012, 121
    %v8032 = vpop.permute.xlu0 %8031
    %8033 = vrot.lane.b32.xlu0 %v8013, 121
    %v8034 = vpop.permute.xlu0 %8033
    %8035 = vrot.lane.b32.xlu0 %v8014, 121
    %v8036 = vpop.permute.xlu0 %8035
    %8037 = vrot.lane.b32.xlu0 %v8015, 121
    %v8038 = vpop.permute.xlu0 %8037
    %8039 = vrot.lane.b32.xlu0 %v8016, 121
    %v8040 = vpop.permute.xlu0 %8039
    %vm8041 = vcmask 990208
    %v8042 = vsel %vm8041, %v8026, %v8028
    %v8043 = vsel %vm8041, %v8030, %v8032
    %v8044 = vsel %vm8041, %v8034, %v8036
    %v8045 = vsel %vm8041, %v8038, %v8040
    %v8050 = vadd.f32 %v7989, %v8042
    %v8051 = vadd.f32 %v7990, %v8043
    %v8052 = vadd.f32 %v7991, %v8044
    %v8053 = vadd.f32 %v7992, %v8045
    %8054 = vset.pattern.permute.xlu0 8
    %8055 = vperm.xlu0 %8054, %v7599
    %v8056 = vpop.permute.xlu0 %8055
    %8058 = vset.pattern.permute.xlu0 8
    %8059 = vperm.xlu0 %8058, %v7600
    %v8060 = vpop.permute.xlu0 %8059
    %8062 = vset.pattern.permute.xlu0 8
    %8063 = vperm.xlu0 %8062, %v7601
    %v8064 = vpop.permute.xlu0 %8063
    %8066 = vset.pattern.permute.xlu0 8
    %8067 = vperm.xlu0 %8066, %v7602
    %v8068 = vpop.permute.xlu0 %8067
    %v8070 = vmul.f32 %v7581, %v8056
    %v8071 = vmul.f32 %v7583, %v8056
    %v8072 = vmul.f32 %v7585, %v8060
    %v8073 = vmul.f32 %v7587, %v8060
    %v8074 = vmul.f32 %v7591, %v8064
    %v8075 = vmul.f32 %v7593, %v8064
    %v8076 = vmul.f32 %v7595, %v8068
    %v8077 = vmul.f32 %v7597, %v8068
    %8086 = vrot.lane.b32.xlu0 %v8070, 120
    %v8087 = vpop.permute.xlu0 %8086
    %8088 = vrot.lane.b32.xlu0 %v8071, 120
    %v8089 = vpop.permute.xlu0 %8088
    %8090 = vrot.lane.b32.xlu0 %v8072, 120
    %v8091 = vpop.permute.xlu0 %8090
    %8092 = vrot.lane.b32.xlu0 %v8073, 120
    %v8093 = vpop.permute.xlu0 %8092
    %8094 = vrot.lane.b32.xlu0 %v8074, 120
    %v8095 = vpop.permute.xlu0 %8094
    %8096 = vrot.lane.b32.xlu0 %v8075, 120
    %v8097 = vpop.permute.xlu0 %8096
    %8098 = vrot.lane.b32.xlu0 %v8076, 120
    %v8099 = vpop.permute.xlu0 %8098
    %8100 = vrot.lane.b32.xlu0 %v8077, 120
    %v8101 = vpop.permute.xlu0 %8100
    %vm8102 = vcmask 982016
    %v8103 = vsel %vm8102, %v8087, %v8089
    %v8104 = vsel %vm8102, %v8091, %v8093
    %v8105 = vsel %vm8102, %v8095, %v8097
    %v8106 = vsel %vm8102, %v8099, %v8101
    %v8111 = vadd.f32 %v8050, %v8103
    %v8112 = vadd.f32 %v8051, %v8104
    %v8113 = vadd.f32 %v8052, %v8105
    %v8114 = vadd.f32 %v8053, %v8106
    %8115 = vset.pattern.permute.xlu0 9
    %8116 = vperm.xlu0 %8115, %v7599
    %v8117 = vpop.permute.xlu0 %8116
    %8119 = vset.pattern.permute.xlu0 9
    %8120 = vperm.xlu0 %8119, %v7600
    %v8121 = vpop.permute.xlu0 %8120
    %8123 = vset.pattern.permute.xlu0 9
    %8124 = vperm.xlu0 %8123, %v7601
    %v8125 = vpop.permute.xlu0 %8124
    %8127 = vset.pattern.permute.xlu0 9
    %8128 = vperm.xlu0 %8127, %v7602
    %v8129 = vpop.permute.xlu0 %8128
    %v8131 = vmul.f32 %v7581, %v8117
    %v8132 = vmul.f32 %v7583, %v8117
    %v8133 = vmul.f32 %v7585, %v8121
    %v8134 = vmul.f32 %v7587, %v8121
    %v8135 = vmul.f32 %v7591, %v8125
    %v8136 = vmul.f32 %v7593, %v8125
    %v8137 = vmul.f32 %v7595, %v8129
    %v8138 = vmul.f32 %v7597, %v8129
    %8147 = vrot.lane.b32.xlu0 %v8131, 119
    %v8148 = vpop.permute.xlu0 %8147
    %8149 = vrot.lane.b32.xlu0 %v8132, 119
    %v8150 = vpop.permute.xlu0 %8149
    %8151 = vrot.lane.b32.xlu0 %v8133, 119
    %v8152 = vpop.permute.xlu0 %8151
    %8153 = vrot.lane.b32.xlu0 %v8134, 119
    %v8154 = vpop.permute.xlu0 %8153
    %8155 = vrot.lane.b32.xlu0 %v8135, 119
    %v8156 = vpop.permute.xlu0 %8155
    %8157 = vrot.lane.b32.xlu0 %v8136, 119
    %v8158 = vpop.permute.xlu0 %8157
    %8159 = vrot.lane.b32.xlu0 %v8137, 119
    %v8160 = vpop.permute.xlu0 %8159
    %8161 = vrot.lane.b32.xlu0 %v8138, 119
    %v8162 = vpop.permute.xlu0 %8161
    %vm8163 = vcmask 973824
    %v8164 = vsel %vm8163, %v8148, %v8150
    %v8165 = vsel %vm8163, %v8152, %v8154
    %v8166 = vsel %vm8163, %v8156, %v8158
    %v8167 = vsel %vm8163, %v8160, %v8162
    %v8172 = vadd.f32 %v8111, %v8164
    %v8173 = vadd.f32 %v8112, %v8165
    %v8174 = vadd.f32 %v8113, %v8166
    %v8175 = vadd.f32 %v8114, %v8167
    %8176 = vset.pattern.permute.xlu0 10
    %8177 = vperm.xlu0 %8176, %v7599
    %v8178 = vpop.permute.xlu0 %8177
    %8180 = vset.pattern.permute.xlu0 10
    %8181 = vperm.xlu0 %8180, %v7600
    %v8182 = vpop.permute.xlu0 %8181
    %8184 = vset.pattern.permute.xlu0 10
    %8185 = vperm.xlu0 %8184, %v7601
    %v8186 = vpop.permute.xlu0 %8185
    %8188 = vset.pattern.permute.xlu0 10
    %8189 = vperm.xlu0 %8188, %v7602
    %v8190 = vpop.permute.xlu0 %8189
    %v8192 = vmul.f32 %v7581, %v8178
    %v8193 = vmul.f32 %v7583, %v8178
    %v8194 = vmul.f32 %v7585, %v8182
    %v8195 = vmul.f32 %v7587, %v8182
    %v8196 = vmul.f32 %v7591, %v8186
    %v8197 = vmul.f32 %v7593, %v8186
    %v8198 = vmul.f32 %v7595, %v8190
    %v8199 = vmul.f32 %v7597, %v8190
    %8208 = vrot.lane.b32.xlu0 %v8192, 118
    %v8209 = vpop.permute.xlu0 %8208
    %8210 = vrot.lane.b32.xlu0 %v8193, 118
    %v8211 = vpop.permute.xlu0 %8210
    %8212 = vrot.lane.b32.xlu0 %v8194, 118
    %v8213 = vpop.permute.xlu0 %8212
    %8214 = vrot.lane.b32.xlu0 %v8195, 118
    %v8215 = vpop.permute.xlu0 %8214
    %8216 = vrot.lane.b32.xlu0 %v8196, 118
    %v8217 = vpop.permute.xlu0 %8216
    %8218 = vrot.lane.b32.xlu0 %v8197, 118
    %v8219 = vpop.permute.xlu0 %8218
    %8220 = vrot.lane.b32.xlu0 %v8198, 118
    %v8221 = vpop.permute.xlu0 %8220
    %8222 = vrot.lane.b32.xlu0 %v8199, 118
    %v8223 = vpop.permute.xlu0 %8222
    %vm8224 = vcmask 965632
    %v8225 = vsel %vm8224, %v8209, %v8211
    %v8226 = vsel %vm8224, %v8213, %v8215
    %v8227 = vsel %vm8224, %v8217, %v8219
    %v8228 = vsel %vm8224, %v8221, %v8223
    %v8233 = vadd.f32 %v8172, %v8225
    %v8234 = vadd.f32 %v8173, %v8226
    %v8235 = vadd.f32 %v8174, %v8227
    %v8236 = vadd.f32 %v8175, %v8228
    %8237 = vset.pattern.permute.xlu0 11
    %8238 = vperm.xlu0 %8237, %v7599
    %v8239 = vpop.permute.xlu0 %8238
    %8241 = vset.pattern.permute.xlu0 11
    %8242 = vperm.xlu0 %8241, %v7600
    %v8243 = vpop.permute.xlu0 %8242
    %8245 = vset.pattern.permute.xlu0 11
    %8246 = vperm.xlu0 %8245, %v7601
    %v8247 = vpop.permute.xlu0 %8246
    %8249 = vset.pattern.permute.xlu0 11
    %8250 = vperm.xlu0 %8249, %v7602
    %v8251 = vpop.permute.xlu0 %8250
    %v8253 = vmul.f32 %v7581, %v8239
    %v8254 = vmul.f32 %v7583, %v8239
    %v8255 = vmul.f32 %v7585, %v8243
    %v8256 = vmul.f32 %v7587, %v8243
    %v8257 = vmul.f32 %v7591, %v8247
    %v8258 = vmul.f32 %v7593, %v8247
    %v8259 = vmul.f32 %v7595, %v8251
    %v8260 = vmul.f32 %v7597, %v8251
    %8269 = vrot.lane.b32.xlu0 %v8253, 117
    %v8270 = vpop.permute.xlu0 %8269
    %8271 = vrot.lane.b32.xlu0 %v8254, 117
    %v8272 = vpop.permute.xlu0 %8271
    %8273 = vrot.lane.b32.xlu0 %v8255, 117
    %v8274 = vpop.permute.xlu0 %8273
    %8275 = vrot.lane.b32.xlu0 %v8256, 117
    %v8276 = vpop.permute.xlu0 %8275
    %8277 = vrot.lane.b32.xlu0 %v8257, 117
    %v8278 = vpop.permute.xlu0 %8277
    %8279 = vrot.lane.b32.xlu0 %v8258, 117
    %v8280 = vpop.permute.xlu0 %8279
    %8281 = vrot.lane.b32.xlu0 %v8259, 117
    %v8282 = vpop.permute.xlu0 %8281
    %8283 = vrot.lane.b32.xlu0 %v8260, 117
    %v8284 = vpop.permute.xlu0 %8283
    %vm8285 = vcmask 957440
    %v8286 = vsel %vm8285, %v8270, %v8272
    %v8287 = vsel %vm8285, %v8274, %v8276
    %v8288 = vsel %vm8285, %v8278, %v8280
    %v8289 = vsel %vm8285, %v8282, %v8284
    %v8294 = vadd.f32 %v8233, %v8286
    %v8295 = vadd.f32 %v8234, %v8287
    %v8296 = vadd.f32 %v8235, %v8288
    %v8297 = vadd.f32 %v8236, %v8289
    %8298 = vset.pattern.permute.xlu0 12
    %8299 = vperm.xlu0 %8298, %v7599
    %v8300 = vpop.permute.xlu0 %8299
    %8302 = vset.pattern.permute.xlu0 12
    %8303 = vperm.xlu0 %8302, %v7600
    %v8304 = vpop.permute.xlu0 %8303
    %8306 = vset.pattern.permute.xlu0 12
    %8307 = vperm.xlu0 %8306, %v7601
    %v8308 = vpop.permute.xlu0 %8307
    %8310 = vset.pattern.permute.xlu0 12
    %8311 = vperm.xlu0 %8310, %v7602
    %v8312 = vpop.permute.xlu0 %8311
    %v8314 = vmul.f32 %v7581, %v8300
    %v8315 = vmul.f32 %v7583, %v8300
    %v8316 = vmul.f32 %v7585, %v8304
    %v8317 = vmul.f32 %v7587, %v8304
    %v8318 = vmul.f32 %v7591, %v8308
    %v8319 = vmul.f32 %v7593, %v8308
    %v8320 = vmul.f32 %v7595, %v8312
    %v8321 = vmul.f32 %v7597, %v8312
    %8330 = vrot.lane.b32.xlu0 %v8314, 116
    %v8331 = vpop.permute.xlu0 %8330
    %8332 = vrot.lane.b32.xlu0 %v8315, 116
    %v8333 = vpop.permute.xlu0 %8332
    %8334 = vrot.lane.b32.xlu0 %v8316, 116
    %v8335 = vpop.permute.xlu0 %8334
    %8336 = vrot.lane.b32.xlu0 %v8317, 116
    %v8337 = vpop.permute.xlu0 %8336
    %8338 = vrot.lane.b32.xlu0 %v8318, 116
    %v8339 = vpop.permute.xlu0 %8338
    %8340 = vrot.lane.b32.xlu0 %v8319, 116
    %v8341 = vpop.permute.xlu0 %8340
    %8342 = vrot.lane.b32.xlu0 %v8320, 116
    %v8343 = vpop.permute.xlu0 %8342
    %8344 = vrot.lane.b32.xlu0 %v8321, 116
    %v8345 = vpop.permute.xlu0 %8344
    %vm8346 = vcmask 949248
    %v8347 = vsel %vm8346, %v8331, %v8333
    %v8348 = vsel %vm8346, %v8335, %v8337
    %v8349 = vsel %vm8346, %v8339, %v8341
    %v8350 = vsel %vm8346, %v8343, %v8345
    %v8355 = vadd.f32 %v8294, %v8347
    %v8356 = vadd.f32 %v8295, %v8348
    %v8357 = vadd.f32 %v8296, %v8349
    %v8358 = vadd.f32 %v8297, %v8350
    %8359 = vset.pattern.permute.xlu0 13
    %8360 = vperm.xlu0 %8359, %v7599
    %v8361 = vpop.permute.xlu0 %8360
    %8363 = vset.pattern.permute.xlu0 13
    %8364 = vperm.xlu0 %8363, %v7600
    %v8365 = vpop.permute.xlu0 %8364
    %8367 = vset.pattern.permute.xlu0 13
    %8368 = vperm.xlu0 %8367, %v7601
    %v8369 = vpop.permute.xlu0 %8368
    %8371 = vset.pattern.permute.xlu0 13
    %8372 = vperm.xlu0 %8371, %v7602
    %v8373 = vpop.permute.xlu0 %8372
    %v8375 = vmul.f32 %v7581, %v8361
    %v8376 = vmul.f32 %v7583, %v8361
    %v8377 = vmul.f32 %v7585, %v8365
    %v8378 = vmul.f32 %v7587, %v8365
    %v8379 = vmul.f32 %v7591, %v8369
    %v8380 = vmul.f32 %v7593, %v8369
    %v8381 = vmul.f32 %v7595, %v8373
    %v8382 = vmul.f32 %v7597, %v8373
    %8391 = vrot.lane.b32.xlu0 %v8375, 115
    %v8392 = vpop.permute.xlu0 %8391
    %8393 = vrot.lane.b32.xlu0 %v8376, 115
    %v8394 = vpop.permute.xlu0 %8393
    %8395 = vrot.lane.b32.xlu0 %v8377, 115
    %v8396 = vpop.permute.xlu0 %8395
    %8397 = vrot.lane.b32.xlu0 %v8378, 115
    %v8398 = vpop.permute.xlu0 %8397
    %8399 = vrot.lane.b32.xlu0 %v8379, 115
    %v8400 = vpop.permute.xlu0 %8399
    %8401 = vrot.lane.b32.xlu0 %v8380, 115
    %v8402 = vpop.permute.xlu0 %8401
    %8403 = vrot.lane.b32.xlu0 %v8381, 115
    %v8404 = vpop.permute.xlu0 %8403
    %8405 = vrot.lane.b32.xlu0 %v8382, 115
    %v8406 = vpop.permute.xlu0 %8405
    %vm8407 = vcmask 941056
    %v8408 = vsel %vm8407, %v8392, %v8394
    %v8409 = vsel %vm8407, %v8396, %v8398
    %v8410 = vsel %vm8407, %v8400, %v8402
    %v8411 = vsel %vm8407, %v8404, %v8406
    %v8416 = vadd.f32 %v8355, %v8408
    %v8417 = vadd.f32 %v8356, %v8409
    %v8418 = vadd.f32 %v8357, %v8410
    %v8419 = vadd.f32 %v8358, %v8411
    %8420 = vset.pattern.permute.xlu0 14
    %8421 = vperm.xlu0 %8420, %v7599
    %v8422 = vpop.permute.xlu0 %8421
    %8424 = vset.pattern.permute.xlu0 14
    %8425 = vperm.xlu0 %8424, %v7600
    %v8426 = vpop.permute.xlu0 %8425
    %8428 = vset.pattern.permute.xlu0 14
    %8429 = vperm.xlu0 %8428, %v7601
    %v8430 = vpop.permute.xlu0 %8429
    %8432 = vset.pattern.permute.xlu0 14
    %8433 = vperm.xlu0 %8432, %v7602
    %v8434 = vpop.permute.xlu0 %8433
    %v8436 = vmul.f32 %v7581, %v8422
    %v8437 = vmul.f32 %v7583, %v8422
    %v8438 = vmul.f32 %v7585, %v8426
    %v8439 = vmul.f32 %v7587, %v8426
    %v8440 = vmul.f32 %v7591, %v8430
    %v8441 = vmul.f32 %v7593, %v8430
    %v8442 = vmul.f32 %v7595, %v8434
    %v8443 = vmul.f32 %v7597, %v8434
    %8452 = vrot.lane.b32.xlu0 %v8436, 114
    %v8453 = vpop.permute.xlu0 %8452
    %8454 = vrot.lane.b32.xlu0 %v8437, 114
    %v8455 = vpop.permute.xlu0 %8454
    %8456 = vrot.lane.b32.xlu0 %v8438, 114
    %v8457 = vpop.permute.xlu0 %8456
    %8458 = vrot.lane.b32.xlu0 %v8439, 114
    %v8459 = vpop.permute.xlu0 %8458
    %8460 = vrot.lane.b32.xlu0 %v8440, 114
    %v8461 = vpop.permute.xlu0 %8460
    %8462 = vrot.lane.b32.xlu0 %v8441, 114
    %v8463 = vpop.permute.xlu0 %8462
    %8464 = vrot.lane.b32.xlu0 %v8442, 114
    %v8465 = vpop.permute.xlu0 %8464
    %8466 = vrot.lane.b32.xlu0 %v8443, 114
    %v8467 = vpop.permute.xlu0 %8466
    %vm8468 = vcmask 932864
    %v8469 = vsel %vm8468, %v8453, %v8455
    %v8470 = vsel %vm8468, %v8457, %v8459
    %v8471 = vsel %vm8468, %v8461, %v8463
    %v8472 = vsel %vm8468, %v8465, %v8467
    %v8477 = vadd.f32 %v8416, %v8469
    %v8478 = vadd.f32 %v8417, %v8470
    %v8479 = vadd.f32 %v8418, %v8471
    %v8480 = vadd.f32 %v8419, %v8472
    %8481 = vset.pattern.permute.xlu0 15
    %8482 = vperm.xlu0 %8481, %v7599
    %v8483 = vpop.permute.xlu0 %8482
    %8485 = vset.pattern.permute.xlu0 15
    %8486 = vperm.xlu0 %8485, %v7600
    %v8487 = vpop.permute.xlu0 %8486
    %8489 = vset.pattern.permute.xlu0 15
    %8490 = vperm.xlu0 %8489, %v7601
    %v8491 = vpop.permute.xlu0 %8490
    %8493 = vset.pattern.permute.xlu0 15
    %8494 = vperm.xlu0 %8493, %v7602
    %v8495 = vpop.permute.xlu0 %8494
    %v8497 = vmul.f32 %v7581, %v8483
    %v8498 = vmul.f32 %v7583, %v8483
    %v8499 = vmul.f32 %v7585, %v8487
    %v8500 = vmul.f32 %v7587, %v8487
    %v8501 = vmul.f32 %v7591, %v8491
    %v8502 = vmul.f32 %v7593, %v8491
    %v8503 = vmul.f32 %v7595, %v8495
    %v8504 = vmul.f32 %v7597, %v8495
    %8513 = vrot.lane.b32.xlu0 %v8497, 113
    %v8514 = vpop.permute.xlu0 %8513
    %8515 = vrot.lane.b32.xlu0 %v8498, 113
    %v8516 = vpop.permute.xlu0 %8515
    %8517 = vrot.lane.b32.xlu0 %v8499, 113
    %v8518 = vpop.permute.xlu0 %8517
    %8519 = vrot.lane.b32.xlu0 %v8500, 113
    %v8520 = vpop.permute.xlu0 %8519
    %8521 = vrot.lane.b32.xlu0 %v8501, 113
    %v8522 = vpop.permute.xlu0 %8521
    %8523 = vrot.lane.b32.xlu0 %v8502, 113
    %v8524 = vpop.permute.xlu0 %8523
    %8525 = vrot.lane.b32.xlu0 %v8503, 113
    %v8526 = vpop.permute.xlu0 %8525
    %8527 = vrot.lane.b32.xlu0 %v8504, 113
    %v8528 = vpop.permute.xlu0 %8527
    %vm8529 = vcmask 924672
    %v8530 = vsel %vm8529, %v8514, %v8516
    %v8531 = vsel %vm8529, %v8518, %v8520
    %v8532 = vsel %vm8529, %v8522, %v8524
    %v8533 = vsel %vm8529, %v8526, %v8528
    %v8538 = vadd.f32 %v8477, %v8530
    %v8539 = vadd.f32 %v8478, %v8531
    %v8540 = vadd.f32 %v8479, %v8532
    %v8541 = vadd.f32 %v8480, %v8533
    %v8542 = vld [vmem:[#allocation10] sm:$0xf]
    %v8543 = vld [vmem:[#allocation10 + $0x4] sm:$0xf]
    %v8544 = vld [vmem:[#allocation10 + $0x8] sm:$0xf]
    %v8545 = vld [vmem:[#allocation10 + $0xc] sm:$0xf]
    %v8546 = vpack.c.bf16 %v8539, %v8538
    %v8547 = vpack.c.bf16 %v8541, %v8540
    %v8548 = vld [vmem:[%s8] sm:$0xff]
    %v8549 = vld [vmem:[%s8 + $0x8] sm:$0xff]
    %v8550 = vld [vmem:[%s8 + $0x10] sm:$0xff]
    %v8551 = vld [vmem:[%s8 + $0x18] sm:$0xff]
    %8553 = vset.pattern.permute.xlu0 0
    %8554 = vperm.xlu0 %8553, %v8548
    %v8555 = vpop.permute.xlu0 %8554
    %8558 = vset.pattern.permute.xlu0 0
    %8559 = vperm.xlu0 %8558, %v8549
    %v8560 = vpop.permute.xlu0 %8559
    %8563 = vset.pattern.permute.xlu0 0
    %8564 = vperm.xlu0 %8563, %v8550
    %v8565 = vpop.permute.xlu0 %8564
    %8568 = vset.pattern.permute.xlu0 0
    %8569 = vperm.xlu0 %8568, %v8551
    %v8570 = vpop.permute.xlu0 %8569
    %v8576 = vunpack.c.l.b16 %v8542
    %v8577 = vunpack.c.l.b16 %v8543
    %v8578 = vunpack.c.l.b16 %v8544
    %v8579 = vunpack.c.l.b16 %v8545
    %v8580 = vpack.c.b16 %v8577, %v8576
    %v8581 = vpack.c.b16 %v8579, %v8578
    %vm8582 = vcmask 261120
    %v8584 = vsel %vm8582, %v8580, 0
    %v8587 = vsel %vm8582, %v8581, 0
    %8589 = vmatprep.subr.bf16.mxu0 0
    %8590 = vmatpush1.bf16.msra.mxu0 0
    %8591 = vmatprep.subr.bf16.mxu0 0
    %8592 = vmatpush1.bf16.msra.mxu0 0
    %8593 = vmatprep.subr.bf16.mxu0 0
    %8594 = vmatpush1.bf16.msra.mxu0 0
    %8595 = vmatprep.subr.bf16.mxu0 0
    %8596 = vmatpush1.bf16.msra.mxu0 0
    %8597 = vmatprep.subr.bf16.mxu0 0
    %8598 = vmatpush1.bf16.msra.mxu0 0
    %8599 = vmatprep.subr.bf16.mxu0 0
    %8600 = vmatpush1.bf16.msra.mxu0 0
    %8601 = vmatprep.subr.bf16.mxu0 0
    %8602 = vmatpush1.bf16.msra.mxu0 %v8547
    %8603 = vmatprep.subr.bf16.mxu0 0
    %8604 = vmatpush1.bf16.msra.mxu0 %v8546
    %8605 = vmatprep.subr.bf16.mxu0 0
    %8606 = vmatpush2.bf16.msra.mxu0 0
    %8607 = vmatprep.subr.bf16.mxu0 0
    %8608 = vmatpush2.bf16.msra.mxu0 0
    %8609 = vmatprep.subr.bf16.mxu0 0
    %8610 = vmatpush2.bf16.msra.mxu0 0
    %8611 = vmatprep.subr.bf16.mxu0 0
    %8612 = vmatpush2.bf16.msra.mxu0 0
    %8613 = vmatprep.subr.bf16.mxu0 0
    %8614 = vmatpush2.bf16.msra.mxu0 0
    %8615 = vmatprep.subr.bf16.mxu0 0
    %8616 = vmatpush2.bf16.msra.mxu0 0
    %8617 = vmatprep.subr.bf16.mxu0 0
    %8618 = vmatpush2.bf16.msra.mxu0 0
    %8619 = vmatprep.subr.bf16.mxu0 0
    %8620 = vmatpush2.bf16.msra.mxu0 0
    %8621 = vmatprep.mubr.bf16.mxu0 0
    %8622 = vmatmul.mubr.bf16.gmra.mxu0 %v8584
    %v8623 = vpop.f32.mrf.mxu0
    %v8624 = vadd.f32 %v8555, %v8623
    %v8625 = vpop.f32.mrf.mxu0
    %v8626 = vpop.f32.mrf.mxu0
    %v8627 = vadd.f32 %v8560, %v8626
    %v8628 = vpop.f32.mrf.mxu0
    %8629 = vmatprep.mubr.bf16.mxu0 0
    %8630 = vmatmul.mubr.bf16.gmra.mxu0 %v8587
    %v8631 = vpop.f32.mrf.mxu0
    %v8632 = vadd.f32 %v8565, %v8631
    %v8633 = vpop.f32.mrf.mxu0
    %v8634 = vpop.f32.mrf.mxu0
    %v8635 = vadd.f32 %v8570, %v8634
    %v8636 = vpop.f32.mrf.mxu0
    %8637 = vdwg.mxu0
    %vm8638 = vcmp.gt.f32.partialorder %v8624, 0.0
    %vm8639 = vcmp.gt.f32.partialorder %v8627, 0.0
    %vm8640 = vcmp.gt.f32.partialorder %v8632, 0.0
    %vm8641 = vcmp.gt.f32.partialorder %v8635, 0.0
    %v8642 = vmin.f32 %v8624, 0.0
    %v8643 = vmin.f32 %v8627, 0.0
    %v8644 = vmin.f32 %v8632, 0.0
    %v8645 = vmin.f32 %v8635, 0.0
    %v8646 = vmul.f32 %v8642, 1.442695
    %v8647 = vpow.pop %v8646
    %v8648 = vmul.f32 %v8643, 1.442695
    %v8649 = vpow.pop %v8648
    %v8650 = vmul.f32 %v8644, 1.442695
    %v8651 = vpow.pop %v8650
    %v8652 = vmul.f32 %v8645, 1.442695
    %v8653 = vpow.pop %v8652
    %v8654 = vsub.f32 %v8647, 1.0
    %v8655 = vsub.f32 %v8649, 1.0
    %v8656 = vsub.f32 %v8651, 1.0
    %v8657 = vsub.f32 %v8653, 1.0
    %v8658 = vsel %vm8638, %v8624, %v8654
    %v8659 = vsel %vm8639, %v8627, %v8655
    %v8660 = vsel %vm8640, %v8632, %v8656
    %v8661 = vsel %vm8641, %v8635, %v8657
    %v8662 = vld [vmem:[#allocation11] sm:$0xff]
    %v8663 = vld [vmem:[#allocation11 + $0x8] sm:$0xff]
    %v8664 = vld [vmem:[#allocation11 + $0x10] sm:$0xff]
    %v8665 = vld [vmem:[#allocation11 + $0x18] sm:$0xff]
    %v8666 = vmul.f32 %v8658, %v8662
    %v8667 = vmul.f32 %v8659, %v8663
    %v8668 = vmul.f32 %v8660, %v8664
    %v8669 = vmul.f32 %v8661, %v8665
    %8670 = vadd.xlane.f32.xlu0 %v8666
    %v8671 = vpop.xlane.xlu0 %8670
    %8672 = vadd.xlane.f32.xlu0 %v8667
    %v8673 = vpop.xlane.xlu0 %8672
    %8674 = vadd.xlane.f32.xlu0 %v8668
    %v8675 = vpop.xlane.xlu0 %8674
    %8676 = vadd.xlane.f32.xlu0 %v8669
    %v8677 = vpop.xlane.xlu0 %8676
    %s8678 = scalar_lea.vmem [#allocation11], 32
    %v8679 = vld [vmem:[%s8678] sm:$0xff]
    %v8680 = vld [vmem:[%s8678 + $0x8] sm:$0xff]
    %v8681 = vld [vmem:[%s8678 + $0x10] sm:$0xff]
    %v8682 = vld [vmem:[%s8678 + $0x18] sm:$0xff]
    %v8683 = vmul.f32 %v8658, %v8679
    %v8684 = vmul.f32 %v8659, %v8680
    %v8685 = vmul.f32 %v8660, %v8681
    %v8686 = vmul.f32 %v8661, %v8682
    %8687 = vadd.xlane.f32.xlu0 %v8683
    %v8688 = vpop.xlane.xlu0 %8687
    %8689 = vadd.xlane.f32.xlu0 %v8684
    %v8690 = vpop.xlane.xlu0 %8689
    %8691 = vadd.xlane.f32.xlu0 %v8685
    %v8692 = vpop.xlane.xlu0 %8691
    %8693 = vadd.xlane.f32.xlu0 %v8686
    %v8694 = vpop.xlane.xlu0 %8693
    %s8695 = scalar_lea.vmem [#allocation11], 64
    %v8696 = vld [vmem:[%s8695] sm:$0xff]
    %v8697 = vld [vmem:[%s8695 + $0x8] sm:$0xff]
    %v8698 = vld [vmem:[%s8695 + $0x10] sm:$0xff]
    %v8699 = vld [vmem:[%s8695 + $0x18] sm:$0xff]
    %v8700 = vmul.f32 %v8658, %v8696
    %v8701 = vmul.f32 %v8659, %v8697
    %v8702 = vmul.f32 %v8660, %v8698
    %v8703 = vmul.f32 %v8661, %v8699
    %8704 = vadd.xlane.f32.xlu0 %v8700
    %v8705 = vpop.xlane.xlu0 %8704
    %8706 = vadd.xlane.f32.xlu0 %v8701
    %v8707 = vpop.xlane.xlu0 %8706
    %8708 = vadd.xlane.f32.xlu0 %v8702
    %v8709 = vpop.xlane.xlu0 %8708
    %8710 = vadd.xlane.f32.xlu0 %v8703
    %v8711 = vpop.xlane.xlu0 %8710
    %s8712 = scalar_lea.vmem [#allocation11], 96
    %v8713 = vld [vmem:[%s8712] sm:$0xff]
    %v8714 = vld [vmem:[%s8712 + $0x8] sm:$0xff]
    %v8715 = vld [vmem:[%s8712 + $0x10] sm:$0xff]
    %v8716 = vld [vmem:[%s8712 + $0x18] sm:$0xff]
    %v8717 = vmul.f32 %v8658, %v8713
    %v8718 = vmul.f32 %v8659, %v8714
    %v8719 = vmul.f32 %v8660, %v8715
    %v8720 = vmul.f32 %v8661, %v8716
    %8721 = vadd.xlane.f32.xlu0 %v8717
    %v8722 = vpop.xlane.xlu0 %8721
    %8723 = vadd.xlane.f32.xlu0 %v8718
    %v8724 = vpop.xlane.xlu0 %8723
    %8725 = vadd.xlane.f32.xlu0 %v8719
    %v8726 = vpop.xlane.xlu0 %8725
    %8727 = vadd.xlane.f32.xlu0 %v8720
    %v8728 = vpop.xlane.xlu0 %8727
    %vm8729 = vcmask 7168
    %v8730 = vsel %vm8729, %v8671, %v8688
    %v8731 = vsel %vm8729, %v8673, %v8690
    %v8732 = vsel %vm8729, %v8675, %v8692
    %v8733 = vsel %vm8729, %v8677, %v8694
    %vm8734 = vcmask 15360
    %v8735 = vsel %vm8734, %v8730, %v8705
    %v8736 = vsel %vm8734, %v8731, %v8707
    %v8737 = vsel %vm8734, %v8732, %v8709
    %v8738 = vsel %vm8734, %v8733, %v8711
    %vm8739 = vcmask 23552
    %v8740 = vsel %vm8739, %v8735, %v8722
    %v8741 = vsel %vm8739, %v8736, %v8724
    %v8742 = vsel %vm8739, %v8737, %v8726
    %v8743 = vsel %vm8739, %v8738, %v8728
    %v8744 = vld [vmem:[#allocation13] sm:$0x1]
    %v8745 = vpack.c.bf16 %v8741, %v8740
    %v8746 = vpack.c.bf16 %v8743, %v8742
    %v8747 = vld [vmem:[#allocation14] sm:$0x1]
    %v8749 = vlaneseq
    %v8750 = vshrl.u32 %v8749, 7
    %v8751 = vsub.s32 0, %v8750
    %v8752 = vrot.slane %v8747, %v8751
    %v8755 = vsel %vm8582, %v8744, 0
    %8757 = vmatprep.subr.bf16.mxu0 0
    %8758 = vmatpush1.bf16.msra.mxu0 0
    %8759 = vmatprep.subr.bf16.mxu0 0
    %8760 = vmatpush1.bf16.msra.mxu0 0
    %8761 = vmatprep.subr.bf16.mxu0 0
    %8762 = vmatpush1.bf16.msra.mxu0 0
    %8763 = vmatprep.subr.bf16.mxu0 0
    %8764 = vmatpush1.bf16.msra.mxu0 0
    %8765 = vmatprep.subr.bf16.mxu0 0
    %8766 = vmatpush1.bf16.msra.mxu0 0
    %8767 = vmatprep.subr.bf16.mxu0 0
    %8768 = vmatpush1.bf16.msra.mxu0 0
    %8769 = vmatprep.subr.bf16.mxu0 0
    %8770 = vmatpush1.bf16.msra.mxu0 %v8746
    %8771 = vmatprep.subr.bf16.mxu0 0
    %8772 = vmatpush1.bf16.msra.mxu0 %v8745
    %8773 = vmatprep.subr.bf16.mxu0 0
    %8774 = vmatpush2.bf16.msra.mxu0 0
    %8775 = vmatprep.subr.bf16.mxu0 0
    %8776 = vmatpush2.bf16.msra.mxu0 0
    %8777 = vmatprep.subr.bf16.mxu0 0
    %8778 = vmatpush2.bf16.msra.mxu0 0
    %8779 = vmatprep.subr.bf16.mxu0 0
    %8780 = vmatpush2.bf16.msra.mxu0 0
    %8781 = vmatprep.subr.bf16.mxu0 0
    %8782 = vmatpush2.bf16.msra.mxu0 0
    %8783 = vmatprep.subr.bf16.mxu0 0
    %8784 = vmatpush2.bf16.msra.mxu0 0
    %8785 = vmatprep.subr.bf16.mxu0 0
    %8786 = vmatpush2.bf16.msra.mxu0 0
    %8787 = vmatprep.subr.bf16.mxu0 0
    %8788 = vmatpush2.bf16.msra.mxu0 0
    %8789 = vmatprep.mubr.bf16.mxu0 0
    %8790 = vmatmul.mubr.bf16.gmra.mxu0 %v8755
    %v8791 = vpop.f32.mrf.mxu0
    %v8792 = vadd.f32 %v8752, %v8791
    %v8793 = vpop.f32.mrf.mxu0
    %v8794 = vpop.f32.mrf.mxu0
    %v8795 = vpop.f32.mrf.mxu0
    %8796 = vdwg.mxu0
    %vm8797 = vcmask 25600
    %v8798 = vsel %vm8797, %v8792, -inf
    %8799 = vmax.xlane.f32.xlu0 %v8798
    %v8800 = vpop.xlane.xlu0 %8799
    %v8801 = vsub.f32 %v8792, %v8800
    %v8802 = vmul.f32 %v8801, 1.442695
    %v8803 = vpow.pop %v8802
    %v8804 = vsel %vm8797, %v8803, 0.0
    %8805 = vadd.xlane.f32.xlu0 %v8804
    %v8806 = vpop.xlane.xlu0 %8805
    %v8807 = vrcp.pop %v8806
    %v8808 = vmul.f32 %v8803, %v8807
    %vm8809 = vcmask 31744
    %v8810 = vsel %vm8809, %v8808, 0.0
    %8811 = vst [vmem:[#allocation16] sm:$0x3] %v8810
    // Predicated region
    $region82: #{tpu_custom_call.1} parent=1 // pred_check
      _
    $region83: #{tpu_custom_call.1} parent=1 // pred_check_branch
      %8813 = sbr.rel (0) target = $region85
    $region84: #{tpu_custom_call.1} parent=1 // pred_region
      %s8815 = ssub.s32 32, 32
      %8816 = vsyncadd [#allocation4], %s8815
      %s8818 = sshll.u32 [#allocation16], 4
      %s8819 = int_to_ptr.vmem [resolvable:$true] %s8818
      %8821 = dma.vmem_to_hbm [thread:$0]  %s8819, 32, %s12, [#allocation4]
    $region85: #{tpu_custom_call.1} parent=1 // pred_fallthru
      _
    // Predicated region
    $region86: #{tpu_custom_call.1} parent=1 // pred_check
      _
    $region87: #{tpu_custom_call.1} parent=1 // pred_check_branch
      %8823 = sbr.rel (0) target = $region89
    $region88: #{tpu_custom_call.1} parent=1 // pred_region
      %8824 = dma.done [#allocation4], 32
    $region89: #{tpu_custom_call.1} parent=1 // pred_fallthru
      _
    %8825 = vsyncpa [#allocation3], 1
    %8826 = vsyncpa [#allocation6], 1
    %8827 = vsyncpa [#allocation9], 1
    %8828 = vsyncpa [#allocation12], 1
    %8829 = vsyncpa [#allocation15], 1
    %8830 = vsyncpa [#allocation4], 1

</llo_original>
